<compile_context>
chip_gen: v6e
topology: v6e:2x2x1
jax: 0.10.0
libtpu: 0.0.40
codegen_flags: <defaults>
</compile_context>

<pallas_src>
import functools

import jax
import jax.numpy as jnp
import numpy as np
from jax.experimental import pallas as pl
from jax.experimental.pallas import tpu as pltpu

POOL_SIZES = (32, 16, 8, 4)       # RefinerBlock pyramid pool kernel sizes
MID_CH = 20                       # RefinerBlock hidden width
POOL_CH = len(POOL_SIZES)         # 4 pooled / upsampled 1-channel maps


# ---------------------------------------------------------------------------
# Fused whole-network kernel (one grid step = one batch sample)
# ---------------------------------------------------------------------------
def _haze_net_kernel(*refs, num_blocks, H, W):
    """refs = (x, masks, Pt, Ut, Msel, [W1,b1,W2,b2,Wc,bc,W3,b3]*blocks, out).

      x     : (1, Cin0, H*W)  f32   channels-major, H*W in lanes
      masks : (9, H*W)        f32   per-tap border mask (1 = valid)
      Pt    : (H*W, R)        bf16  block-average matrix (transposed)
      Ut    : (R, H*W)        bf16  nearest-upsample 0/1 selector (transposed)
      Msel  : (4, R)          f32   keeps scale i only in row i
      W*    : packed conv weights (see prepare_params), b* column biases
      out   : (1, out_nc, H*W) f32
    """
    HW = H * W
    x_ref, masks_ref, pt_ref, ut_ref, msel_ref = refs[:5]
    wrefs = refs[5:5 + 8 * num_blocks]
    o_ref = refs[5 + 8 * num_blocks]

    masks = masks_ref[...]                                    # (9, HW) f32

    def lrelu(v):
        return jnp.where(v > 0, v, 0.2 * v)

    def conv3x3(x, w_ref, b_ref, act):
        """x: (Cin, HW) f32.  3x3 'same' conv as ONE (Cout,9Cin)@(9Cin,HW)."""
        slabs = []
        for t in range(9):                       # static unroll of the 9 taps
            dy, dx = t // 3 - 1, t % 3 - 1
            d = dy * W + dx
            if d == 0:
                slabs.append(x)                  # centre tap: no shift/mask
            else:
                shifted = pltpu.roll(x, (-d) % HW, axis=1)     # XLU rotate
                slabs.append(shifted * masks[t:t + 1, :])      # zero halo
        patches = jnp.concatenate(slabs, axis=0)               # (9*Cin, HW)
        patches = patches.astype(jnp.bfloat16)   # one cast per conv (hoisted)
        y = jnp.dot(w_ref[...], patches,
                    preferred_element_type=jnp.float32) + b_ref[...]
        return lrelu(y) if act == "lrelu" else jnp.tanh(y)     # (Cout, HW)

    feats = [x_ref[0]]                                         # (Cin0, HW)
    cur = None
    for blk in range(num_blocks):
        w1, b1, w2, b2, wc, bc, w3, b3 = wrefs[8 * blk: 8 * blk + 8]
        # HazeRefiner skip-concat kept virtual (channel concat in VMEM only).
        xin = feats[0] if blk == 0 else jnp.concatenate(feats, axis=0)
        y1 = conv3x3(xin, w1, b1, "lrelu")                     # (20, HW)
        y2 = conv3x3(y1, w2, b2, "lrelu")                      # (20, HW)

        # --- fused pooling pyramid (avg-pool 32/16/8/4 + 1x1 + lrelu + up) --
        pooled = jnp.dot(y2.astype(jnp.bfloat16), pt_ref[...],
                         preferred_element_type=jnp.float32)   # (20, R)
        z = jnp.dot(wc[...], pooled.astype(jnp.bfloat16),
                    preferred_element_type=jnp.float32) + bc[...]   # (4, R)
        z = lrelu(z) * msel_ref[...]
        up = jnp.dot(z.astype(jnp.bfloat16), ut_ref[...],
                     preferred_element_type=jnp.float32)       # (4, HW)

        # refine3 over the (virtual) concat [x1010..x1040 | y2]
        cur = conv3x3(jnp.concatenate([up, y2], axis=0), w3, b3, "tanh")
        if blk + 1 < num_blocks:
            feats.append(cur)

    o_ref[0] = cur                                             # lane-dense


# ---------------------------------------------------------------------------
# Host-side constants & parameter packing
# ---------------------------------------------------------------------------
def _build_tap_masks(H, W):
    hh, ww = np.meshgrid(np.arange(H), np.arange(W), indexing="ij")
    m = np.zeros((9, H * W), np.float32)
    for t in range(9):
        dy, dx = t // 3 - 1, t % 3 - 1
        valid = ((hh + dy >= 0) & (hh + dy < H)
                 & (ww + dx >= 0) & (ww + dx < W))
        m[t] = valid.reshape(-1).astype(np.float32)
    return m


def _build_pool_constants(H, W):
    assert H % max(POOL_SIZES) == 0 and W % max(POOL_SIZES) == 0
    R = sum((H // s) * (W // s) for s in POOL_SIZES)
    Pt = np.zeros((H * W, R), np.float32)     # block-average (transposed)
    Ut = np.zeros((R, H * W), np.float32)     # nearest-upsample selector
    M = np.zeros((POOL_CH, R), np.float32)    # scale-i mask on row i
    r0 = 0
    for i, s in enumerate(POOL_SIZES):
        nh, nw = H // s, W // s
        for cy in range(nh):
            for cx in range(nw):
                r = r0 + cy * nw + cx
                M[i, r] = 1.0
                for h in range(cy * s, (cy + 1) * s):
                    for w in range(cx * s, (cx + 1) * s):
                        Pt[h * W + w, r] = 1.0 / (s * s)   # exact in bf16
                        Ut[r, h * W + w] = 1.0
        r0 += nh * nw
    return Pt, Ut, M


def _pack_conv3x3(w):
    """(Cout, Cin, 3, 3) torch layout -> (Cout, 9*Cin) bf16, col = t*Cin + c,
    tap t = kh*3 + kw, matching the in-kernel patch ordering."""
    cout, cin = int(w.shape[0]), int(w.shape[1])
    return jnp.transpose(w, (0, 2, 3, 1)).reshape(cout, 9 * cin).astype(
        jnp.bfloat16)


def prepare_params(raw_blocks, H, W):
    masks = jnp.asarray(_build_tap_masks(H, W), jnp.float32)
    Pt, Ut, M = _build_pool_constants(H, W)
    consts = [masks,
              jnp.asarray(Pt, jnp.bfloat16),
              jnp.asarray(Ut, jnp.bfloat16),
              jnp.asarray(M, jnp.float32)]
    blocks = []
    for raw in raw_blocks:
        wc = jnp.stack([raw["wc%d" % i][0, :, 0, 0] for i in range(POOL_CH)],
                       axis=0).astype(jnp.bfloat16)             # (4, 20)
        bc = jnp.stack([raw["bc%d" % i][0] for i in range(POOL_CH)]
                       ).reshape(POOL_CH, 1).astype(jnp.float32)
        blocks.append([
            _pack_conv3x3(raw["w1"]),
            raw["b1"].reshape(-1, 1).astype(jnp.float32),
            _pack_conv3x3(raw["w2"]),
            raw["b2"].reshape(-1, 1).astype(jnp.float32),
            wc, bc,
            _pack_conv3x3(raw["w3"]),
            raw["b3"].reshape(-1, 1).astype(jnp.float32),
        ])
    return {"consts": consts, "blocks": blocks}


# ---------------------------------------------------------------------------
# Forward wrapper
# ---------------------------------------------------------------------------
def haze_refiner_forward(x_nchw, params):
    B, C, H, W = x_nchw.shape
    HW = H * W
    consts = params["consts"]
    blocks = params["blocks"]
    num_blocks = len(blocks)
    out_nc = int(blocks[-1][6].shape[0])
    flat_w = [w for blk in blocks for w in blk]

    x_flat = x_nchw.reshape(B, C, HW).astype(jnp.float32)   # NCHW-native

    in_specs = [pl.BlockSpec((1, C, HW), lambda b: (b, 0, 0))]
    for arr in consts + flat_w:
        in_specs.append(pl.BlockSpec(arr.shape, lambda b: (0, 0)))

    R = int(consts[1].shape[1])
    flops = 0
    for blk in range(num_blocks):
        cin_b = C + out_nc * blk
        flops += 2 * HW * MID_CH * 9 * cin_b               # refine1
        flops += 2 * HW * MID_CH * 9 * MID_CH              # refine2
        flops += 2 * MID_CH * HW * R                       # pooling matmul
        flops += 2 * POOL_CH * MID_CH * R                  # 1x1 convs
        flops += 2 * POOL_CH * R * HW                      # upsample matmul
        flops += 2 * HW * out_nc * 9 * (MID_CH + POOL_CH)  # refine3
    flops *= B
    trans = B * num_blocks * out_nc * HW                   # tanh
    bytes_accessed = int(
        4 * (B * C * HW + B * out_nc * HW)
        + sum(int(a.size) * a.dtype.itemsize for a in consts + flat_w))

    out_flat = pl.pallas_call(
        functools.partial(_haze_net_kernel, num_blocks=num_blocks, H=H, W=W),
        out_shape=jax.ShapeDtypeStruct((B, out_nc, HW), jnp.float32),
        grid=(B,),
        in_specs=in_specs,
        out_specs=pl.BlockSpec((1, out_nc, HW), lambda b: (b, 0, 0)),
        compiler_params=pltpu.CompilerParams(
            dimension_semantics=("parallel",),          # megacore on v7x
            vmem_limit_bytes=32 * 1024 * 1024),
        cost_estimate=pl.CostEstimate(flops=flops, transcendentals=trans,
                                      bytes_accessed=bytes_accessed),
    )(x_flat, *consts, *flat_w)
    return out_flat.reshape(B, out_nc, H, W)


# ---------------------------------------------------------------------------
# Pure-JAX f32 reference (mirrors the PyTorch module)
# ---------------------------------------------------------------------------
def _ref_conv(x, w, b, padding):
    y = jax.lax.conv_general_dilated(
        x, w, window_strides=(1, 1),
        padding=((padding, padding), (padding, padding)),
        dimension_numbers=("NCHW", "OIHW", "NCHW"))
    return y + b.reshape(1, -1, 1, 1)


def _ref_avg_pool(x, s):
    B, C, H, W = x.shape
    return x.reshape(B, C, H // s, s, W // s, s).mean(axis=(3, 5))


def _ref_upsample(x, H, W):
    return jnp.repeat(jnp.repeat(x, H // x.shape[2], axis=2),
                      W // x.shape[3], axis=3)


def _ref_refiner_block(x, raw):
    lrelu = lambda t: jnp.where(t > 0, t, 0.2 * t)
    o = lrelu(_ref_conv(x, raw["w1"], raw["b1"], 1))
    o = lrelu(_ref_conv(o, raw["w2"], raw["b2"], 1))
    H, W = o.shape[2], o.shape[3]
    ups = []
    for i, s in enumerate(POOL_SIZES):
        p = _ref_avg_pool(o, s)
        z = lrelu(_ref_conv(p, raw["wc%d" % i], raw["bc%d" % i], 0))
        ups.append(_ref_upsample(z, H, W))
    o = jnp.concatenate(ups + [o], axis=1)
    return jnp.tanh(_ref_conv(o, raw["w3"], raw["b3"], 1))


def _ref_haze_refiner(x, raw_blocks):
    last = x
    cur = _ref_refiner_block(last, raw_blocks[0])
    for raw in raw_blocks[1:]:
        last = jnp.concatenate([last, cur], axis=1)
        cur = _ref_refiner_block(last, raw)
    return cur


# ---------------------------------------------------------------------------
# Parameter init (torch-layout), main
# ---------------------------------------------------------------------------
def _init_block_raw(key, cin, cout):
    ks = jax.random.split(key, 14)

    def conv_w(k, co, ci, kh, kw):
        fan_in = float(ci * kh * kw)
        return jax.random.normal(k, (co, ci, kh, kw), jnp.float32) / float(
            np.sqrt(fan_in))

    raw = {
        "w1": conv_w(ks[0], MID_CH, cin, 3, 3),
        "b1": 0.05 * jax.random.normal(ks[1], (MID_CH,), jnp.float32),
        "w2": conv_w(ks[2], MID_CH, MID_CH, 3, 3),
        "b2": 0.05 * jax.random.normal(ks[3], (MID_CH,), jnp.float32),
        "w3": conv_w(ks[4], cout, MID_CH + POOL_CH, 3, 3),
        "b3": 0.05 * jax.random.normal(ks[5], (cout,), jnp.float32),
    }
    for i in range(POOL_CH):
        raw["wc%d" % i] = conv_w(ks[6 + 2 * i], 1, MID_CH, 1, 1)
        raw["bc%d" % i] = 0.05 * jax.random.normal(ks[7 + 2 * i], (1,),
                                                   jnp.float32)
    return raw


if __name__ == "__main__":
    B, input_nc, output_nc = 2, 4, 3
    H = W = 32                   # smallest size the 32x32 avg-pool allows
    block_num = 2                # HazeRefiner enforces max(2, block_num)

    key = jax.random.PRNGKey(0)
    kx, kp = jax.random.split(key)
    x = jax.random.normal(kx, (B, input_nc, H, W), jnp.float32)

    bkeys = jax.random.split(kp, block_num)
    raw_blocks = []
    for b in range(block_num):
        cin_b = input_nc + output_nc * b
        raw_blocks.append(_init_block_raw(bkeys[b], cin_b, output_nc))

    params = prepare_params(raw_blocks, H, W)

    out = jax.jit(haze_refiner_forward)(x, params)
    out = jax.block_until_ready(out)
    assert out.shape == (B, output_nc, H, W)

    ref = _ref_haze_refiner(x, raw_blocks)
    np.testing.assert_allclose(np.asarray(out), np.asarray(ref),
                               atol=2e-2, rtol=2e-2)
    print("KERNEL_OK")
</pallas_src>

<mosaic_0001>
module attributes {stable_mosaic.version = 11 : i64} {
  func.func @_haze_net_kernel(%arg0: i32, %arg1: memref<1x4x1024xf32, #tpu.memory_space<vmem>>, %arg2: memref<9x1024xf32, #tpu.memory_space<vmem>>, %arg3: memref<1024x85xbf16, #tpu.memory_space<vmem>>, %arg4: memref<85x1024xbf16, #tpu.memory_space<vmem>>, %arg5: memref<4x85xf32, #tpu.memory_space<vmem>>, %arg6: memref<20x36xbf16, #tpu.memory_space<vmem>>, %arg7: memref<20x1xf32, #tpu.memory_space<vmem>>, %arg8: memref<20x180xbf16, #tpu.memory_space<vmem>>, %arg9: memref<20x1xf32, #tpu.memory_space<vmem>>, %arg10: memref<4x20xbf16, #tpu.memory_space<vmem>>, %arg11: memref<4x1xf32, #tpu.memory_space<vmem>>, %arg12: memref<3x216xbf16, #tpu.memory_space<vmem>>, %arg13: memref<3x1xf32, #tpu.memory_space<vmem>>, %arg14: memref<20x63xbf16, #tpu.memory_space<vmem>>, %arg15: memref<20x1xf32, #tpu.memory_space<vmem>>, %arg16: memref<20x180xbf16, #tpu.memory_space<vmem>>, %arg17: memref<20x1xf32, #tpu.memory_space<vmem>>, %arg18: memref<4x20xbf16, #tpu.memory_space<vmem>>, %arg19: memref<4x1xf32, #tpu.memory_space<vmem>>, %arg20: memref<3x216xbf16, #tpu.memory_space<vmem>>, %arg21: memref<3x1xf32, #tpu.memory_space<vmem>>, %arg22: memref<1x3x1024xf32, #tpu.memory_space<vmem>>) attributes {dimension_semantics = [#tpu.dimension_semantics<parallel>], iteration_bounds = array<i64: 2>, scalar_prefetch = 0 : i64, scratch_operands = 0 : i64, tpu.core_type = #tpu.core_type<tc>, window_params = [{transform_indices = @transform_0, window_bounds = array<i64: 1, 4, 1024>}, {pipeline_mode = #tpu.pipeline_mode<synchronous>, transform_indices = @transform_1, window_bounds = array<i64: 9, 1024>}, {pipeline_mode = #tpu.pipeline_mode<synchronous>, transform_indices = @transform_2, window_bounds = array<i64: 1024, 85>}, {pipeline_mode = #tpu.pipeline_mode<synchronous>, transform_indices = @transform_3, window_bounds = array<i64: 85, 1024>}, {pipeline_mode = #tpu.pipeline_mode<synchronous>, transform_indices = @transform_4, window_bounds = array<i64: 4, 85>}, {pipeline_mode = #tpu.pipeline_mode<synchronous>, transform_indices = @transform_5, window_bounds = array<i64: 20, 36>}, {pipeline_mode = #tpu.pipeline_mode<synchronous>, transform_indices = @transform_6, window_bounds = array<i64: 20, 1>}, {pipeline_mode = #tpu.pipeline_mode<synchronous>, transform_indices = @transform_7, window_bounds = array<i64: 20, 180>}, {pipeline_mode = #tpu.pipeline_mode<synchronous>, transform_indices = @transform_8, window_bounds = array<i64: 20, 1>}, {pipeline_mode = #tpu.pipeline_mode<synchronous>, transform_indices = @transform_9, window_bounds = array<i64: 4, 20>}, {pipeline_mode = #tpu.pipeline_mode<synchronous>, transform_indices = @transform_10, window_bounds = array<i64: 4, 1>}, {pipeline_mode = #tpu.pipeline_mode<synchronous>, transform_indices = @transform_11, window_bounds = array<i64: 3, 216>}, {pipeline_mode = #tpu.pipeline_mode<synchronous>, transform_indices = @transform_12, window_bounds = array<i64: 3, 1>}, {pipeline_mode = #tpu.pipeline_mode<synchronous>, transform_indices = @transform_13, window_bounds = array<i64: 20, 63>}, {pipeline_mode = #tpu.pipeline_mode<synchronous>, transform_indices = @transform_14, window_bounds = array<i64: 20, 1>}, {pipeline_mode = #tpu.pipeline_mode<synchronous>, transform_indices = @transform_15, window_bounds = array<i64: 20, 180>}, {pipeline_mode = #tpu.pipeline_mode<synchronous>, transform_indices = @transform_16, window_bounds = array<i64: 20, 1>}, {pipeline_mode = #tpu.pipeline_mode<synchronous>, transform_indices = @transform_17, window_bounds = array<i64: 4, 20>}, {pipeline_mode = #tpu.pipeline_mode<synchronous>, transform_indices = @transform_18, window_bounds = array<i64: 4, 1>}, {pipeline_mode = #tpu.pipeline_mode<synchronous>, transform_indices = @transform_19, window_bounds = array<i64: 3, 216>}, {pipeline_mode = #tpu.pipeline_mode<synchronous>, transform_indices = @transform_20, window_bounds = array<i64: 3, 1>}, {transform_indices = @transform_21, window_bounds = array<i64: 1, 3, 1024>}]} {
    %c0 = arith.constant 0 : index
    %c0_0 = arith.constant 0 : index
    %0 = vector.load %arg2[%c0, %c0_0] : memref<9x1024xf32, #tpu.memory_space<vmem>>, vector<9x1024xf32>
    %c0_1 = arith.constant 0 : index
    %c0_2 = arith.constant 0 : index
    %c0_3 = arith.constant 0 : index
    %1 = vector.load %arg1[%c0_1, %c0_2, %c0_3] : memref<1x4x1024xf32, #tpu.memory_space<vmem>>, vector<1x4x1024xf32>
    %2 = vector.shape_cast %1 : vector<1x4x1024xf32> to vector<4x1024xf32>
    %c33_i32 = arith.constant 33 : i32
    %3 = tpu.dynamic_rotate %2 by %c33_i32 dim 1 : vector<4x1024xf32>, i32 -> vector<4x1024xf32>
    %4 = vector.extract_strided_slice %0 {offsets = [0, 0], sizes = [1, 1024], strides = [1, 1]} : vector<9x1024xf32> to vector<1x1024xf32>
    %5 = vector.broadcast %4 : vector<1x1024xf32> to vector<4x1024xf32>
    %6 = arith.mulf %3, %5 : vector<4x1024xf32>
    %c32_i32 = arith.constant 32 : i32
    %7 = tpu.dynamic_rotate %2 by %c32_i32 dim 1 : vector<4x1024xf32>, i32 -> vector<4x1024xf32>
    %8 = vector.extract_strided_slice %0 {offsets = [1, 0], sizes = [1, 1024], strides = [1, 1]} : vector<9x1024xf32> to vector<1x1024xf32>
    %9 = vector.broadcast %8 : vector<1x1024xf32> to vector<4x1024xf32>
    %10 = arith.mulf %7, %9 : vector<4x1024xf32>
    %c31_i32 = arith.constant 31 : i32
    %11 = tpu.dynamic_rotate %2 by %c31_i32 dim 1 : vector<4x1024xf32>, i32 -> vector<4x1024xf32>
    %12 = vector.extract_strided_slice %0 {offsets = [2, 0], sizes = [1, 1024], strides = [1, 1]} : vector<9x1024xf32> to vector<1x1024xf32>
    %13 = vector.broadcast %12 : vector<1x1024xf32> to vector<4x1024xf32>
    %14 = arith.mulf %11, %13 : vector<4x1024xf32>
    %c1_i32 = arith.constant 1 : i32
    %15 = tpu.dynamic_rotate %2 by %c1_i32 dim 1 : vector<4x1024xf32>, i32 -> vector<4x1024xf32>
    %16 = vector.extract_strided_slice %0 {offsets = [3, 0], sizes = [1, 1024], strides = [1, 1]} : vector<9x1024xf32> to vector<1x1024xf32>
    %17 = vector.broadcast %16 : vector<1x1024xf32> to vector<4x1024xf32>
    %18 = arith.mulf %15, %17 : vector<4x1024xf32>
    %c1023_i32 = arith.constant 1023 : i32
    %19 = tpu.dynamic_rotate %2 by %c1023_i32 dim 1 : vector<4x1024xf32>, i32 -> vector<4x1024xf32>
    %20 = vector.extract_strided_slice %0 {offsets = [5, 0], sizes = [1, 1024], strides = [1, 1]} : vector<9x1024xf32> to vector<1x1024xf32>
    %21 = vector.broadcast %20 : vector<1x1024xf32> to vector<4x1024xf32>
    %22 = arith.mulf %19, %21 : vector<4x1024xf32>
    %c993_i32 = arith.constant 993 : i32
    %23 = tpu.dynamic_rotate %2 by %c993_i32 dim 1 : vector<4x1024xf32>, i32 -> vector<4x1024xf32>
    %24 = vector.extract_strided_slice %0 {offsets = [6, 0], sizes = [1, 1024], strides = [1, 1]} : vector<9x1024xf32> to vector<1x1024xf32>
    %25 = vector.broadcast %24 : vector<1x1024xf32> to vector<4x1024xf32>
    %26 = arith.mulf %23, %25 : vector<4x1024xf32>
    %c992_i32 = arith.constant 992 : i32
    %27 = tpu.dynamic_rotate %2 by %c992_i32 dim 1 : vector<4x1024xf32>, i32 -> vector<4x1024xf32>
    %28 = vector.extract_strided_slice %0 {offsets = [7, 0], sizes = [1, 1024], strides = [1, 1]} : vector<9x1024xf32> to vector<1x1024xf32>
    %29 = vector.broadcast %28 : vector<1x1024xf32> to vector<4x1024xf32>
    %30 = arith.mulf %27, %29 : vector<4x1024xf32>
    %c991_i32 = arith.constant 991 : i32
    %31 = tpu.dynamic_rotate %2 by %c991_i32 dim 1 : vector<4x1024xf32>, i32 -> vector<4x1024xf32>
    %32 = vector.extract_strided_slice %0 {offsets = [8, 0], sizes = [1, 1024], strides = [1, 1]} : vector<9x1024xf32> to vector<1x1024xf32>
    %33 = vector.broadcast %32 : vector<1x1024xf32> to vector<4x1024xf32>
    %34 = arith.mulf %31, %33 : vector<4x1024xf32>
    %35 = tpu.concatenate %6, %10, %14, %18, %2, %22, %26, %30, %34 in 0 : vector<4x1024xf32>, vector<4x1024xf32>, vector<4x1024xf32>, vector<4x1024xf32>, vector<4x1024xf32>, vector<4x1024xf32>, vector<4x1024xf32>, vector<4x1024xf32>, vector<4x1024xf32> -> vector<36x1024xf32>
    %36 = arith.truncf %35 : vector<36x1024xf32> to vector<36x1024xbf16>
    %c0_4 = arith.constant 0 : index
    %c0_5 = arith.constant 0 : index
    %37 = vector.load %arg6[%c0_4, %c0_5] : memref<20x36xbf16, #tpu.memory_space<vmem>>, vector<20x36xbf16>
    %cst = arith.constant dense<0.000000e+00> : vector<20x1024xf32>
    %38 = tpu.matmul %37, %36, %cst {dimension_numbers = #tpu.dot_dimension_numbers<[1], [0], [0], [1], [0, 0, 1, 1], [], []>} : vector<20x36xbf16>, vector<36x1024xbf16>, vector<20x1024xf32> -> vector<20x1024xf32>
    %c0_6 = arith.constant 0 : index
    %c0_7 = arith.constant 0 : index
    %39 = vector.load %arg7[%c0_6, %c0_7] : memref<20x1xf32, #tpu.memory_space<vmem>>, vector<20x1xf32>
    %40 = vector.broadcast %39 : vector<20x1xf32> to vector<20x1024xf32>
    %41 = arith.addf %38, %40 : vector<20x1024xf32>
    %cst_8 = arith.constant 0.000000e+00 : f32
    %42 = vector.broadcast %cst_8 : f32 to vector<20x1024xf32>
    %43 = arith.cmpf ogt, %41, %42 : vector<20x1024xf32>
    %cst_9 = arith.constant 2.000000e-01 : f32
    %44 = vector.broadcast %cst_9 : f32 to vector<20x1024xf32>
    %45 = arith.mulf %44, %41 : vector<20x1024xf32>
    %46 = arith.select %43, %41, %45 : vector<20x1024xi1>, vector<20x1024xf32>
    %c33_i32_10 = arith.constant 33 : i32
    %47 = tpu.dynamic_rotate %46 by %c33_i32_10 dim 1 : vector<20x1024xf32>, i32 -> vector<20x1024xf32>
    %48 = vector.extract_strided_slice %0 {offsets = [0, 0], sizes = [1, 1024], strides = [1, 1]} : vector<9x1024xf32> to vector<1x1024xf32>
    %49 = vector.broadcast %48 : vector<1x1024xf32> to vector<20x1024xf32>
    %50 = arith.mulf %47, %49 : vector<20x1024xf32>
    %c32_i32_11 = arith.constant 32 : i32
    %51 = tpu.dynamic_rotate %46 by %c32_i32_11 dim 1 : vector<20x1024xf32>, i32 -> vector<20x1024xf32>
    %52 = vector.extract_strided_slice %0 {offsets = [1, 0], sizes = [1, 1024], strides = [1, 1]} : vector<9x1024xf32> to vector<1x1024xf32>
    %53 = vector.broadcast %52 : vector<1x1024xf32> to vector<20x1024xf32>
    %54 = arith.mulf %51, %53 : vector<20x1024xf32>
    %c31_i32_12 = arith.constant 31 : i32
    %55 = tpu.dynamic_rotate %46 by %c31_i32_12 dim 1 : vector<20x1024xf32>, i32 -> vector<20x1024xf32>
    %56 = vector.extract_strided_slice %0 {offsets = [2, 0], sizes = [1, 1024], strides = [1, 1]} : vector<9x1024xf32> to vector<1x1024xf32>
    %57 = vector.broadcast %56 : vector<1x1024xf32> to vector<20x1024xf32>
    %58 = arith.mulf %55, %57 : vector<20x1024xf32>
    %c1_i32_13 = arith.constant 1 : i32
    %59 = tpu.dynamic_rotate %46 by %c1_i32_13 dim 1 : vector<20x1024xf32>, i32 -> vector<20x1024xf32>
    %60 = vector.extract_strided_slice %0 {offsets = [3, 0], sizes = [1, 1024], strides = [1, 1]} : vector<9x1024xf32> to vector<1x1024xf32>
    %61 = vector.broadcast %60 : vector<1x1024xf32> to vector<20x1024xf32>
    %62 = arith.mulf %59, %61 : vector<20x1024xf32>
    %c1023_i32_14 = arith.constant 1023 : i32
    %63 = tpu.dynamic_rotate %46 by %c1023_i32_14 dim 1 : vector<20x1024xf32>, i32 -> vector<20x1024xf32>
    %64 = vector.extract_strided_slice %0 {offsets = [5, 0], sizes = [1, 1024], strides = [1, 1]} : vector<9x1024xf32> to vector<1x1024xf32>
    %65 = vector.broadcast %64 : vector<1x1024xf32> to vector<20x1024xf32>
    %66 = arith.mulf %63, %65 : vector<20x1024xf32>
    %c993_i32_15 = arith.constant 993 : i32
    %67 = tpu.dynamic_rotate %46 by %c993_i32_15 dim 1 : vector<20x1024xf32>, i32 -> vector<20x1024xf32>
    %68 = vector.extract_strided_slice %0 {offsets = [6, 0], sizes = [1, 1024], strides = [1, 1]} : vector<9x1024xf32> to vector<1x1024xf32>
    %69 = vector.broadcast %68 : vector<1x1024xf32> to vector<20x1024xf32>
    %70 = arith.mulf %67, %69 : vector<20x1024xf32>
    %c992_i32_16 = arith.constant 992 : i32
    %71 = tpu.dynamic_rotate %46 by %c992_i32_16 dim 1 : vector<20x1024xf32>, i32 -> vector<20x1024xf32>
    %72 = vector.extract_strided_slice %0 {offsets = [7, 0], sizes = [1, 1024], strides = [1, 1]} : vector<9x1024xf32> to vector<1x1024xf32>
    %73 = vector.broadcast %72 : vector<1x1024xf32> to vector<20x1024xf32>
    %74 = arith.mulf %71, %73 : vector<20x1024xf32>
    %c991_i32_17 = arith.constant 991 : i32
    %75 = tpu.dynamic_rotate %46 by %c991_i32_17 dim 1 : vector<20x1024xf32>, i32 -> vector<20x1024xf32>
    %76 = vector.extract_strided_slice %0 {offsets = [8, 0], sizes = [1, 1024], strides = [1, 1]} : vector<9x1024xf32> to vector<1x1024xf32>
    %77 = vector.broadcast %76 : vector<1x1024xf32> to vector<20x1024xf32>
    %78 = arith.mulf %75, %77 : vector<20x1024xf32>
    %79 = tpu.concatenate %50, %54, %58, %62, %46, %66, %70, %74, %78 in 0 : vector<20x1024xf32>, vector<20x1024xf32>, vector<20x1024xf32>, vector<20x1024xf32>, vector<20x1024xf32>, vector<20x1024xf32>, vector<20x1024xf32>, vector<20x1024xf32>, vector<20x1024xf32> -> vector<180x1024xf32>
    %80 = arith.truncf %79 : vector<180x1024xf32> to vector<180x1024xbf16>
    %c0_18 = arith.constant 0 : index
    %c0_19 = arith.constant 0 : index
    %81 = vector.load %arg8[%c0_18, %c0_19] : memref<20x180xbf16, #tpu.memory_space<vmem>>, vector<20x180xbf16>
    %cst_20 = arith.constant dense<0.000000e+00> : vector<20x1024xf32>
    %82 = tpu.matmul %81, %80, %cst_20 {dimension_numbers = #tpu.dot_dimension_numbers<[1], [0], [0], [1], [0, 0, 1, 1], [], []>} : vector<20x180xbf16>, vector<180x1024xbf16>, vector<20x1024xf32> -> vector<20x1024xf32>
    %c0_21 = arith.constant 0 : index
    %c0_22 = arith.constant 0 : index
    %83 = vector.load %arg9[%c0_21, %c0_22] : memref<20x1xf32, #tpu.memory_space<vmem>>, vector<20x1xf32>
    %84 = vector.broadcast %83 : vector<20x1xf32> to vector<20x1024xf32>
    %85 = arith.addf %82, %84 : vector<20x1024xf32>
    %cst_23 = arith.constant 0.000000e+00 : f32
    %86 = vector.broadcast %cst_23 : f32 to vector<20x1024xf32>
    %87 = arith.cmpf ogt, %85, %86 : vector<20x1024xf32>
    %cst_24 = arith.constant 2.000000e-01 : f32
    %88 = vector.broadcast %cst_24 : f32 to vector<20x1024xf32>
    %89 = arith.mulf %88, %85 : vector<20x1024xf32>
    %90 = arith.select %87, %85, %89 : vector<20x1024xi1>, vector<20x1024xf32>
    %91 = arith.truncf %90 : vector<20x1024xf32> to vector<20x1024xbf16>
    %c0_25 = arith.constant 0 : index
    %c0_26 = arith.constant 0 : index
    %92 = vector.load %arg3[%c0_25, %c0_26] : memref<1024x85xbf16, #tpu.memory_space<vmem>>, vector<1024x85xbf16>
    %cst_27 = arith.constant dense<0.000000e+00> : vector<20x85xf32>
    %93 = tpu.matmul %91, %92, %cst_27 {dimension_numbers = #tpu.dot_dimension_numbers<[1], [0], [0], [1], [0, 0, 1, 1], [], []>} : vector<20x1024xbf16>, vector<1024x85xbf16>, vector<20x85xf32> -> vector<20x85xf32>
    %c0_28 = arith.constant 0 : index
    %c0_29 = arith.constant 0 : index
    %94 = vector.load %arg10[%c0_28, %c0_29] : memref<4x20xbf16, #tpu.memory_space<vmem>>, vector<4x20xbf16>
    %95 = arith.truncf %93 : vector<20x85xf32> to vector<20x85xbf16>
    %cst_30 = arith.constant dense<0.000000e+00> : vector<4x85xf32>
    %96 = tpu.matmul %94, %95, %cst_30 {dimension_numbers = #tpu.dot_dimension_numbers<[1], [0], [0], [1], [0, 0, 1, 1], [], []>} : vector<4x20xbf16>, vector<20x85xbf16>, vector<4x85xf32> -> vector<4x85xf32>
    %c0_31 = arith.constant 0 : index
    %c0_32 = arith.constant 0 : index
    %97 = vector.load %arg11[%c0_31, %c0_32] : memref<4x1xf32, #tpu.memory_space<vmem>>, vector<4x1xf32>
    %98 = vector.broadcast %97 : vector<4x1xf32> to vector<4x85xf32>
    %99 = arith.addf %96, %98 : vector<4x85xf32>
    %cst_33 = arith.constant 0.000000e+00 : f32
    %100 = vector.broadcast %cst_33 : f32 to vector<4x85xf32>
    %101 = arith.cmpf ogt, %99, %100 : vector<4x85xf32>
    %cst_34 = arith.constant 2.000000e-01 : f32
    %102 = vector.broadcast %cst_34 : f32 to vector<4x85xf32>
    %103 = arith.mulf %102, %99 : vector<4x85xf32>
    %104 = arith.select %101, %99, %103 : vector<4x85xi1>, vector<4x85xf32>
    %c0_35 = arith.constant 0 : index
    %c0_36 = arith.constant 0 : index
    %105 = vector.load %arg5[%c0_35, %c0_36] : memref<4x85xf32, #tpu.memory_space<vmem>>, vector<4x85xf32>
    %106 = arith.mulf %104, %105 : vector<4x85xf32>
    %107 = arith.truncf %106 : vector<4x85xf32> to vector<4x85xbf16>
    %c0_37 = arith.constant 0 : index
    %c0_38 = arith.constant 0 : index
    %108 = vector.load %arg4[%c0_37, %c0_38] : memref<85x1024xbf16, #tpu.memory_space<vmem>>, vector<85x1024xbf16>
    %cst_39 = arith.constant dense<0.000000e+00> : vector<4x1024xf32>
    %109 = tpu.matmul %107, %108, %cst_39 {dimension_numbers = #tpu.dot_dimension_numbers<[1], [0], [0], [1], [0, 0, 1, 1], [], []>} : vector<4x85xbf16>, vector<85x1024xbf16>, vector<4x1024xf32> -> vector<4x1024xf32>
    %110 = tpu.concatenate %109, %90 in 0 : vector<4x1024xf32>, vector<20x1024xf32> -> vector<24x1024xf32>
    %c33_i32_40 = arith.constant 33 : i32
    %111 = tpu.dynamic_rotate %110 by %c33_i32_40 dim 1 : vector<24x1024xf32>, i32 -> vector<24x1024xf32>
    %112 = vector.extract_strided_slice %0 {offsets = [0, 0], sizes = [1, 1024], strides = [1, 1]} : vector<9x1024xf32> to vector<1x1024xf32>
    %113 = vector.broadcast %112 : vector<1x1024xf32> to vector<24x1024xf32>
    %114 = arith.mulf %111, %113 : vector<24x1024xf32>
    %c32_i32_41 = arith.constant 32 : i32
    %115 = tpu.dynamic_rotate %110 by %c32_i32_41 dim 1 : vector<24x1024xf32>, i32 -> vector<24x1024xf32>
    %116 = vector.extract_strided_slice %0 {offsets = [1, 0], sizes = [1, 1024], strides = [1, 1]} : vector<9x1024xf32> to vector<1x1024xf32>
    %117 = vector.broadcast %116 : vector<1x1024xf32> to vector<24x1024xf32>
    %118 = arith.mulf %115, %117 : vector<24x1024xf32>
    %c31_i32_42 = arith.constant 31 : i32
    %119 = tpu.dynamic_rotate %110 by %c31_i32_42 dim 1 : vector<24x1024xf32>, i32 -> vector<24x1024xf32>
    %120 = vector.extract_strided_slice %0 {offsets = [2, 0], sizes = [1, 1024], strides = [1, 1]} : vector<9x1024xf32> to vector<1x1024xf32>
    %121 = vector.broadcast %120 : vector<1x1024xf32> to vector<24x1024xf32>
    %122 = arith.mulf %119, %121 : vector<24x1024xf32>
    %c1_i32_43 = arith.constant 1 : i32
    %123 = tpu.dynamic_rotate %110 by %c1_i32_43 dim 1 : vector<24x1024xf32>, i32 -> vector<24x1024xf32>
    %124 = vector.extract_strided_slice %0 {offsets = [3, 0], sizes = [1, 1024], strides = [1, 1]} : vector<9x1024xf32> to vector<1x1024xf32>
    %125 = vector.broadcast %124 : vector<1x1024xf32> to vector<24x1024xf32>
    %126 = arith.mulf %123, %125 : vector<24x1024xf32>
    %c1023_i32_44 = arith.constant 1023 : i32
    %127 = tpu.dynamic_rotate %110 by %c1023_i32_44 dim 1 : vector<24x1024xf32>, i32 -> vector<24x1024xf32>
    %128 = vector.extract_strided_slice %0 {offsets = [5, 0], sizes = [1, 1024], strides = [1, 1]} : vector<9x1024xf32> to vector<1x1024xf32>
    %129 = vector.broadcast %128 : vector<1x1024xf32> to vector<24x1024xf32>
    %130 = arith.mulf %127, %129 : vector<24x1024xf32>
    %c993_i32_45 = arith.constant 993 : i32
    %131 = tpu.dynamic_rotate %110 by %c993_i32_45 dim 1 : vector<24x1024xf32>, i32 -> vector<24x1024xf32>
    %132 = vector.extract_strided_slice %0 {offsets = [6, 0], sizes = [1, 1024], strides = [1, 1]} : vector<9x1024xf32> to vector<1x1024xf32>
    %133 = vector.broadcast %132 : vector<1x1024xf32> to vector<24x1024xf32>
    %134 = arith.mulf %131, %133 : vector<24x1024xf32>
    %c992_i32_46 = arith.constant 992 : i32
    %135 = tpu.dynamic_rotate %110 by %c992_i32_46 dim 1 : vector<24x1024xf32>, i32 -> vector<24x1024xf32>
    %136 = vector.extract_strided_slice %0 {offsets = [7, 0], sizes = [1, 1024], strides = [1, 1]} : vector<9x1024xf32> to vector<1x1024xf32>
    %137 = vector.broadcast %136 : vector<1x1024xf32> to vector<24x1024xf32>
    %138 = arith.mulf %135, %137 : vector<24x1024xf32>
    %c991_i32_47 = arith.constant 991 : i32
    %139 = tpu.dynamic_rotate %110 by %c991_i32_47 dim 1 : vector<24x1024xf32>, i32 -> vector<24x1024xf32>
    %140 = vector.extract_strided_slice %0 {offsets = [8, 0], sizes = [1, 1024], strides = [1, 1]} : vector<9x1024xf32> to vector<1x1024xf32>
    %141 = vector.broadcast %140 : vector<1x1024xf32> to vector<24x1024xf32>
    %142 = arith.mulf %139, %141 : vector<24x1024xf32>
    %143 = tpu.concatenate %114, %118, %122, %126, %110, %130, %134, %138, %142 in 0 : vector<24x1024xf32>, vector<24x1024xf32>, vector<24x1024xf32>, vector<24x1024xf32>, vector<24x1024xf32>, vector<24x1024xf32>, vector<24x1024xf32>, vector<24x1024xf32>, vector<24x1024xf32> -> vector<216x1024xf32>
    %144 = arith.truncf %143 : vector<216x1024xf32> to vector<216x1024xbf16>
    %c0_48 = arith.constant 0 : index
    %c0_49 = arith.constant 0 : index
    %145 = vector.load %arg12[%c0_48, %c0_49] : memref<3x216xbf16, #tpu.memory_space<vmem>>, vector<3x216xbf16>
    %cst_50 = arith.constant dense<0.000000e+00> : vector<3x1024xf32>
    %146 = tpu.matmul %145, %144, %cst_50 {dimension_numbers = #tpu.dot_dimension_numbers<[1], [0], [0], [1], [0, 0, 1, 1], [], []>} : vector<3x216xbf16>, vector<216x1024xbf16>, vector<3x1024xf32> -> vector<3x1024xf32>
    %c0_51 = arith.constant 0 : index
    %c0_52 = arith.constant 0 : index
    %147 = vector.load %arg13[%c0_51, %c0_52] : memref<3x1xf32, #tpu.memory_space<vmem>>, vector<3x1xf32>
    %148 = vector.broadcast %147 : vector<3x1xf32> to vector<3x1024xf32>
    %149 = arith.addf %146, %148 : vector<3x1024xf32>
    %150 = math.tanh %149 : vector<3x1024xf32>
    %151 = tpu.concatenate %2, %150 in 0 : vector<4x1024xf32>, vector<3x1024xf32> -> vector<7x1024xf32>
    %c33_i32_53 = arith.constant 33 : i32
    %152 = tpu.dynamic_rotate %151 by %c33_i32_53 dim 1 : vector<7x1024xf32>, i32 -> vector<7x1024xf32>
    %153 = vector.extract_strided_slice %0 {offsets = [0, 0], sizes = [1, 1024], strides = [1, 1]} : vector<9x1024xf32> to vector<1x1024xf32>
    %154 = vector.broadcast %153 : vector<1x1024xf32> to vector<7x1024xf32>
    %155 = arith.mulf %152, %154 : vector<7x1024xf32>
    %c32_i32_54 = arith.constant 32 : i32
    %156 = tpu.dynamic_rotate %151 by %c32_i32_54 dim 1 : vector<7x1024xf32>, i32 -> vector<7x1024xf32>
    %157 = vector.extract_strided_slice %0 {offsets = [1, 0], sizes = [1, 1024], strides = [1, 1]} : vector<9x1024xf32> to vector<1x1024xf32>
    %158 = vector.broadcast %157 : vector<1x1024xf32> to vector<7x1024xf32>
    %159 = arith.mulf %156, %158 : vector<7x1024xf32>
    %c31_i32_55 = arith.constant 31 : i32
    %160 = tpu.dynamic_rotate %151 by %c31_i32_55 dim 1 : vector<7x1024xf32>, i32 -> vector<7x1024xf32>
    %161 = vector.extract_strided_slice %0 {offsets = [2, 0], sizes = [1, 1024], strides = [1, 1]} : vector<9x1024xf32> to vector<1x1024xf32>
    %162 = vector.broadcast %161 : vector<1x1024xf32> to vector<7x1024xf32>
    %163 = arith.mulf %160, %162 : vector<7x1024xf32>
    %c1_i32_56 = arith.constant 1 : i32
    %164 = tpu.dynamic_rotate %151 by %c1_i32_56 dim 1 : vector<7x1024xf32>, i32 -> vector<7x1024xf32>
    %165 = vector.extract_strided_slice %0 {offsets = [3, 0], sizes = [1, 1024], strides = [1, 1]} : vector<9x1024xf32> to vector<1x1024xf32>
    %166 = vector.broadcast %165 : vector<1x1024xf32> to vector<7x1024xf32>
    %167 = arith.mulf %164, %166 : vector<7x1024xf32>
    %c1023_i32_57 = arith.constant 1023 : i32
    %168 = tpu.dynamic_rotate %151 by %c1023_i32_57 dim 1 : vector<7x1024xf32>, i32 -> vector<7x1024xf32>
    %169 = vector.extract_strided_slice %0 {offsets = [5, 0], sizes = [1, 1024], strides = [1, 1]} : vector<9x1024xf32> to vector<1x1024xf32>
    %170 = vector.broadcast %169 : vector<1x1024xf32> to vector<7x1024xf32>
    %171 = arith.mulf %168, %170 : vector<7x1024xf32>
    %c993_i32_58 = arith.constant 993 : i32
    %172 = tpu.dynamic_rotate %151 by %c993_i32_58 dim 1 : vector<7x1024xf32>, i32 -> vector<7x1024xf32>
    %173 = vector.extract_strided_slice %0 {offsets = [6, 0], sizes = [1, 1024], strides = [1, 1]} : vector<9x1024xf32> to vector<1x1024xf32>
    %174 = vector.broadcast %173 : vector<1x1024xf32> to vector<7x1024xf32>
    %175 = arith.mulf %172, %174 : vector<7x1024xf32>
    %c992_i32_59 = arith.constant 992 : i32
    %176 = tpu.dynamic_rotate %151 by %c992_i32_59 dim 1 : vector<7x1024xf32>, i32 -> vector<7x1024xf32>
    %177 = vector.extract_strided_slice %0 {offsets = [7, 0], sizes = [1, 1024], strides = [1, 1]} : vector<9x1024xf32> to vector<1x1024xf32>
    %178 = vector.broadcast %177 : vector<1x1024xf32> to vector<7x1024xf32>
    %179 = arith.mulf %176, %178 : vector<7x1024xf32>
    %c991_i32_60 = arith.constant 991 : i32
    %180 = tpu.dynamic_rotate %151 by %c991_i32_60 dim 1 : vector<7x1024xf32>, i32 -> vector<7x1024xf32>
    %181 = vector.extract_strided_slice %0 {offsets = [8, 0], sizes = [1, 1024], strides = [1, 1]} : vector<9x1024xf32> to vector<1x1024xf32>
    %182 = vector.broadcast %181 : vector<1x1024xf32> to vector<7x1024xf32>
    %183 = arith.mulf %180, %182 : vector<7x1024xf32>
    %184 = tpu.concatenate %155, %159, %163, %167, %151, %171, %175, %179, %183 in 0 : vector<7x1024xf32>, vector<7x1024xf32>, vector<7x1024xf32>, vector<7x1024xf32>, vector<7x1024xf32>, vector<7x1024xf32>, vector<7x1024xf32>, vector<7x1024xf32>, vector<7x1024xf32> -> vector<63x1024xf32>
    %185 = arith.truncf %184 : vector<63x1024xf32> to vector<63x1024xbf16>
    %c0_61 = arith.constant 0 : index
    %c0_62 = arith.constant 0 : index
    %186 = vector.load %arg14[%c0_61, %c0_62] : memref<20x63xbf16, #tpu.memory_space<vmem>>, vector<20x63xbf16>
    %cst_63 = arith.constant dense<0.000000e+00> : vector<20x1024xf32>
    %187 = tpu.matmul %186, %185, %cst_63 {dimension_numbers = #tpu.dot_dimension_numbers<[1], [0], [0], [1], [0, 0, 1, 1], [], []>} : vector<20x63xbf16>, vector<63x1024xbf16>, vector<20x1024xf32> -> vector<20x1024xf32>
    %c0_64 = arith.constant 0 : index
    %c0_65 = arith.constant 0 : index
    %188 = vector.load %arg15[%c0_64, %c0_65] : memref<20x1xf32, #tpu.memory_space<vmem>>, vector<20x1xf32>
    %189 = vector.broadcast %188 : vector<20x1xf32> to vector<20x1024xf32>
    %190 = arith.addf %187, %189 : vector<20x1024xf32>
    %cst_66 = arith.constant 0.000000e+00 : f32
    %191 = vector.broadcast %cst_66 : f32 to vector<20x1024xf32>
    %192 = arith.cmpf ogt, %190, %191 : vector<20x1024xf32>
    %cst_67 = arith.constant 2.000000e-01 : f32
    %193 = vector.broadcast %cst_67 : f32 to vector<20x1024xf32>
    %194 = arith.mulf %193, %190 : vector<20x1024xf32>
    %195 = arith.select %192, %190, %194 : vector<20x1024xi1>, vector<20x1024xf32>
    %c33_i32_68 = arith.constant 33 : i32
    %196 = tpu.dynamic_rotate %195 by %c33_i32_68 dim 1 : vector<20x1024xf32>, i32 -> vector<20x1024xf32>
    %197 = vector.extract_strided_slice %0 {offsets = [0, 0], sizes = [1, 1024], strides = [1, 1]} : vector<9x1024xf32> to vector<1x1024xf32>
    %198 = vector.broadcast %197 : vector<1x1024xf32> to vector<20x1024xf32>
    %199 = arith.mulf %196, %198 : vector<20x1024xf32>
    %c32_i32_69 = arith.constant 32 : i32
    %200 = tpu.dynamic_rotate %195 by %c32_i32_69 dim 1 : vector<20x1024xf32>, i32 -> vector<20x1024xf32>
    %201 = vector.extract_strided_slice %0 {offsets = [1, 0], sizes = [1, 1024], strides = [1, 1]} : vector<9x1024xf32> to vector<1x1024xf32>
    %202 = vector.broadcast %201 : vector<1x1024xf32> to vector<20x1024xf32>
    %203 = arith.mulf %200, %202 : vector<20x1024xf32>
    %c31_i32_70 = arith.constant 31 : i32
    %204 = tpu.dynamic_rotate %195 by %c31_i32_70 dim 1 : vector<20x1024xf32>, i32 -> vector<20x1024xf32>
    %205 = vector.extract_strided_slice %0 {offsets = [2, 0], sizes = [1, 1024], strides = [1, 1]} : vector<9x1024xf32> to vector<1x1024xf32>
    %206 = vector.broadcast %205 : vector<1x1024xf32> to vector<20x1024xf32>
    %207 = arith.mulf %204, %206 : vector<20x1024xf32>
    %c1_i32_71 = arith.constant 1 : i32
    %208 = tpu.dynamic_rotate %195 by %c1_i32_71 dim 1 : vector<20x1024xf32>, i32 -> vector<20x1024xf32>
    %209 = vector.extract_strided_slice %0 {offsets = [3, 0], sizes = [1, 1024], strides = [1, 1]} : vector<9x1024xf32> to vector<1x1024xf32>
    %210 = vector.broadcast %209 : vector<1x1024xf32> to vector<20x1024xf32>
    %211 = arith.mulf %208, %210 : vector<20x1024xf32>
    %c1023_i32_72 = arith.constant 1023 : i32
    %212 = tpu.dynamic_rotate %195 by %c1023_i32_72 dim 1 : vector<20x1024xf32>, i32 -> vector<20x1024xf32>
    %213 = vector.extract_strided_slice %0 {offsets = [5, 0], sizes = [1, 1024], strides = [1, 1]} : vector<9x1024xf32> to vector<1x1024xf32>
    %214 = vector.broadcast %213 : vector<1x1024xf32> to vector<20x1024xf32>
    %215 = arith.mulf %212, %214 : vector<20x1024xf32>
    %c993_i32_73 = arith.constant 993 : i32
    %216 = tpu.dynamic_rotate %195 by %c993_i32_73 dim 1 : vector<20x1024xf32>, i32 -> vector<20x1024xf32>
    %217 = vector.extract_strided_slice %0 {offsets = [6, 0], sizes = [1, 1024], strides = [1, 1]} : vector<9x1024xf32> to vector<1x1024xf32>
    %218 = vector.broadcast %217 : vector<1x1024xf32> to vector<20x1024xf32>
    %219 = arith.mulf %216, %218 : vector<20x1024xf32>
    %c992_i32_74 = arith.constant 992 : i32
    %220 = tpu.dynamic_rotate %195 by %c992_i32_74 dim 1 : vector<20x1024xf32>, i32 -> vector<20x1024xf32>
    %221 = vector.extract_strided_slice %0 {offsets = [7, 0], sizes = [1, 1024], strides = [1, 1]} : vector<9x1024xf32> to vector<1x1024xf32>
    %222 = vector.broadcast %221 : vector<1x1024xf32> to vector<20x1024xf32>
    %223 = arith.mulf %220, %222 : vector<20x1024xf32>
    %c991_i32_75 = arith.constant 991 : i32
    %224 = tpu.dynamic_rotate %195 by %c991_i32_75 dim 1 : vector<20x1024xf32>, i32 -> vector<20x1024xf32>
    %225 = vector.extract_strided_slice %0 {offsets = [8, 0], sizes = [1, 1024], strides = [1, 1]} : vector<9x1024xf32> to vector<1x1024xf32>
    %226 = vector.broadcast %225 : vector<1x1024xf32> to vector<20x1024xf32>
    %227 = arith.mulf %224, %226 : vector<20x1024xf32>
    %228 = tpu.concatenate %199, %203, %207, %211, %195, %215, %219, %223, %227 in 0 : vector<20x1024xf32>, vector<20x1024xf32>, vector<20x1024xf32>, vector<20x1024xf32>, vector<20x1024xf32>, vector<20x1024xf32>, vector<20x1024xf32>, vector<20x1024xf32>, vector<20x1024xf32> -> vector<180x1024xf32>
    %229 = arith.truncf %228 : vector<180x1024xf32> to vector<180x1024xbf16>
    %c0_76 = arith.constant 0 : index
    %c0_77 = arith.constant 0 : index
    %230 = vector.load %arg16[%c0_76, %c0_77] : memref<20x180xbf16, #tpu.memory_space<vmem>>, vector<20x180xbf16>
    %cst_78 = arith.constant dense<0.000000e+00> : vector<20x1024xf32>
    %231 = tpu.matmul %230, %229, %cst_78 {dimension_numbers = #tpu.dot_dimension_numbers<[1], [0], [0], [1], [0, 0, 1, 1], [], []>} : vector<20x180xbf16>, vector<180x1024xbf16>, vector<20x1024xf32> -> vector<20x1024xf32>
    %c0_79 = arith.constant 0 : index
    %c0_80 = arith.constant 0 : index
    %232 = vector.load %arg17[%c0_79, %c0_80] : memref<20x1xf32, #tpu.memory_space<vmem>>, vector<20x1xf32>
    %233 = vector.broadcast %232 : vector<20x1xf32> to vector<20x1024xf32>
    %234 = arith.addf %231, %233 : vector<20x1024xf32>
    %cst_81 = arith.constant 0.000000e+00 : f32
    %235 = vector.broadcast %cst_81 : f32 to vector<20x1024xf32>
    %236 = arith.cmpf ogt, %234, %235 : vector<20x1024xf32>
    %cst_82 = arith.constant 2.000000e-01 : f32
    %237 = vector.broadcast %cst_82 : f32 to vector<20x1024xf32>
    %238 = arith.mulf %237, %234 : vector<20x1024xf32>
    %239 = arith.select %236, %234, %238 : vector<20x1024xi1>, vector<20x1024xf32>
    %240 = arith.truncf %239 : vector<20x1024xf32> to vector<20x1024xbf16>
    %c0_83 = arith.constant 0 : index
    %c0_84 = arith.constant 0 : index
    %241 = vector.load %arg3[%c0_83, %c0_84] : memref<1024x85xbf16, #tpu.memory_space<vmem>>, vector<1024x85xbf16>
    %cst_85 = arith.constant dense<0.000000e+00> : vector<20x85xf32>
    %242 = tpu.matmul %240, %241, %cst_85 {dimension_numbers = #tpu.dot_dimension_numbers<[1], [0], [0], [1], [0, 0, 1, 1], [], []>} : vector<20x1024xbf16>, vector<1024x85xbf16>, vector<20x85xf32> -> vector<20x85xf32>
    %c0_86 = arith.constant 0 : index
    %c0_87 = arith.constant 0 : index
    %243 = vector.load %arg18[%c0_86, %c0_87] : memref<4x20xbf16, #tpu.memory_space<vmem>>, vector<4x20xbf16>
    %244 = arith.truncf %242 : vector<20x85xf32> to vector<20x85xbf16>
    %cst_88 = arith.constant dense<0.000000e+00> : vector<4x85xf32>
    %245 = tpu.matmul %243, %244, %cst_88 {dimension_numbers = #tpu.dot_dimension_numbers<[1], [0], [0], [1], [0, 0, 1, 1], [], []>} : vector<4x20xbf16>, vector<20x85xbf16>, vector<4x85xf32> -> vector<4x85xf32>
    %c0_89 = arith.constant 0 : index
    %c0_90 = arith.constant 0 : index
    %246 = vector.load %arg19[%c0_89, %c0_90] : memref<4x1xf32, #tpu.memory_space<vmem>>, vector<4x1xf32>
    %247 = vector.broadcast %246 : vector<4x1xf32> to vector<4x85xf32>
    %248 = arith.addf %245, %247 : vector<4x85xf32>
    %cst_91 = arith.constant 0.000000e+00 : f32
    %249 = vector.broadcast %cst_91 : f32 to vector<4x85xf32>
    %250 = arith.cmpf ogt, %248, %249 : vector<4x85xf32>
    %cst_92 = arith.constant 2.000000e-01 : f32
    %251 = vector.broadcast %cst_92 : f32 to vector<4x85xf32>
    %252 = arith.mulf %251, %248 : vector<4x85xf32>
    %253 = arith.select %250, %248, %252 : vector<4x85xi1>, vector<4x85xf32>
    %c0_93 = arith.constant 0 : index
    %c0_94 = arith.constant 0 : index
    %254 = vector.load %arg5[%c0_93, %c0_94] : memref<4x85xf32, #tpu.memory_space<vmem>>, vector<4x85xf32>
    %255 = arith.mulf %253, %254 : vector<4x85xf32>
    %256 = arith.truncf %255 : vector<4x85xf32> to vector<4x85xbf16>
    %c0_95 = arith.constant 0 : index
    %c0_96 = arith.constant 0 : index
    %257 = vector.load %arg4[%c0_95, %c0_96] : memref<85x1024xbf16, #tpu.memory_space<vmem>>, vector<85x1024xbf16>
    %cst_97 = arith.constant dense<0.000000e+00> : vector<4x1024xf32>
    %258 = tpu.matmul %256, %257, %cst_97 {dimension_numbers = #tpu.dot_dimension_numbers<[1], [0], [0], [1], [0, 0, 1, 1], [], []>} : vector<4x85xbf16>, vector<85x1024xbf16>, vector<4x1024xf32> -> vector<4x1024xf32>
    %259 = tpu.concatenate %258, %239 in 0 : vector<4x1024xf32>, vector<20x1024xf32> -> vector<24x1024xf32>
    %c33_i32_98 = arith.constant 33 : i32
    %260 = tpu.dynamic_rotate %259 by %c33_i32_98 dim 1 : vector<24x1024xf32>, i32 -> vector<24x1024xf32>
    %261 = vector.extract_strided_slice %0 {offsets = [0, 0], sizes = [1, 1024], strides = [1, 1]} : vector<9x1024xf32> to vector<1x1024xf32>
    %262 = vector.broadcast %261 : vector<1x1024xf32> to vector<24x1024xf32>
    %263 = arith.mulf %260, %262 : vector<24x1024xf32>
    %c32_i32_99 = arith.constant 32 : i32
    %264 = tpu.dynamic_rotate %259 by %c32_i32_99 dim 1 : vector<24x1024xf32>, i32 -> vector<24x1024xf32>
    %265 = vector.extract_strided_slice %0 {offsets = [1, 0], sizes = [1, 1024], strides = [1, 1]} : vector<9x1024xf32> to vector<1x1024xf32>
    %266 = vector.broadcast %265 : vector<1x1024xf32> to vector<24x1024xf32>
    %267 = arith.mulf %264, %266 : vector<24x1024xf32>
    %c31_i32_100 = arith.constant 31 : i32
    %268 = tpu.dynamic_rotate %259 by %c31_i32_100 dim 1 : vector<24x1024xf32>, i32 -> vector<24x1024xf32>
    %269 = vector.extract_strided_slice %0 {offsets = [2, 0], sizes = [1, 1024], strides = [1, 1]} : vector<9x1024xf32> to vector<1x1024xf32>
    %270 = vector.broadcast %269 : vector<1x1024xf32> to vector<24x1024xf32>
    %271 = arith.mulf %268, %270 : vector<24x1024xf32>
    %c1_i32_101 = arith.constant 1 : i32
    %272 = tpu.dynamic_rotate %259 by %c1_i32_101 dim 1 : vector<24x1024xf32>, i32 -> vector<24x1024xf32>
    %273 = vector.extract_strided_slice %0 {offsets = [3, 0], sizes = [1, 1024], strides = [1, 1]} : vector<9x1024xf32> to vector<1x1024xf32>
    %274 = vector.broadcast %273 : vector<1x1024xf32> to vector<24x1024xf32>
    %275 = arith.mulf %272, %274 : vector<24x1024xf32>
    %c1023_i32_102 = arith.constant 1023 : i32
    %276 = tpu.dynamic_rotate %259 by %c1023_i32_102 dim 1 : vector<24x1024xf32>, i32 -> vector<24x1024xf32>
    %277 = vector.extract_strided_slice %0 {offsets = [5, 0], sizes = [1, 1024], strides = [1, 1]} : vector<9x1024xf32> to vector<1x1024xf32>
    %278 = vector.broadcast %277 : vector<1x1024xf32> to vector<24x1024xf32>
    %279 = arith.mulf %276, %278 : vector<24x1024xf32>
    %c993_i32_103 = arith.constant 993 : i32
    %280 = tpu.dynamic_rotate %259 by %c993_i32_103 dim 1 : vector<24x1024xf32>, i32 -> vector<24x1024xf32>
    %281 = vector.extract_strided_slice %0 {offsets = [6, 0], sizes = [1, 1024], strides = [1, 1]} : vector<9x1024xf32> to vector<1x1024xf32>
    %282 = vector.broadcast %281 : vector<1x1024xf32> to vector<24x1024xf32>
    %283 = arith.mulf %280, %282 : vector<24x1024xf32>
    %c992_i32_104 = arith.constant 992 : i32
    %284 = tpu.dynamic_rotate %259 by %c992_i32_104 dim 1 : vector<24x1024xf32>, i32 -> vector<24x1024xf32>
    %285 = vector.extract_strided_slice %0 {offsets = [7, 0], sizes = [1, 1024], strides = [1, 1]} : vector<9x1024xf32> to vector<1x1024xf32>
    %286 = vector.broadcast %285 : vector<1x1024xf32> to vector<24x1024xf32>
    %287 = arith.mulf %284, %286 : vector<24x1024xf32>
    %c991_i32_105 = arith.constant 991 : i32
    %288 = tpu.dynamic_rotate %259 by %c991_i32_105 dim 1 : vector<24x1024xf32>, i32 -> vector<24x1024xf32>
    %289 = vector.extract_strided_slice %0 {offsets = [8, 0], sizes = [1, 1024], strides = [1, 1]} : vector<9x1024xf32> to vector<1x1024xf32>
    %290 = vector.broadcast %289 : vector<1x1024xf32> to vector<24x1024xf32>
    %291 = arith.mulf %288, %290 : vector<24x1024xf32>
    %292 = tpu.concatenate %263, %267, %271, %275, %259, %279, %283, %287, %291 in 0 : vector<24x1024xf32>, vector<24x1024xf32>, vector<24x1024xf32>, vector<24x1024xf32>, vector<24x1024xf32>, vector<24x1024xf32>, vector<24x1024xf32>, vector<24x1024xf32>, vector<24x1024xf32> -> vector<216x1024xf32>
    %293 = arith.truncf %292 : vector<216x1024xf32> to vector<216x1024xbf16>
    %c0_106 = arith.constant 0 : index
    %c0_107 = arith.constant 0 : index
    %294 = vector.load %arg20[%c0_106, %c0_107] : memref<3x216xbf16, #tpu.memory_space<vmem>>, vector<3x216xbf16>
    %cst_108 = arith.constant dense<0.000000e+00> : vector<3x1024xf32>
    %295 = tpu.matmul %294, %293, %cst_108 {dimension_numbers = #tpu.dot_dimension_numbers<[1], [0], [0], [1], [0, 0, 1, 1], [], []>} : vector<3x216xbf16>, vector<216x1024xbf16>, vector<3x1024xf32> -> vector<3x1024xf32>
    %c0_109 = arith.constant 0 : index
    %c0_110 = arith.constant 0 : index
    %296 = vector.load %arg21[%c0_109, %c0_110] : memref<3x1xf32, #tpu.memory_space<vmem>>, vector<3x1xf32>
    %297 = vector.broadcast %296 : vector<3x1xf32> to vector<3x1024xf32>
    %298 = arith.addf %295, %297 : vector<3x1024xf32>
    %299 = math.tanh %298 : vector<3x1024xf32>
    %c0_111 = arith.constant 0 : index
    %c0_112 = arith.constant 0 : index
    %c0_113 = arith.constant 0 : index
    %300 = vector.load %arg22[%c0_111, %c0_112, %c0_113] : memref<1x3x1024xf32, #tpu.memory_space<vmem>>, vector<1x3x1024xf32>
    %301 = vector.shape_cast %300 : vector<1x3x1024xf32> to vector<3x1024xf32>
    %302 = vector.shape_cast %299 : vector<3x1024xf32> to vector<1x3x1024xf32>
    tpu.vector_store %arg22[%c0_111, %c0_112, %c0_113], %302 {strides = array<i32>} : memref<1x3x1024xf32, #tpu.memory_space<vmem>>, vector<1x3x1024xf32>,
    return
  }
  func.func @transform_0(%arg0: i32) -> (i32, i32, i32) {
    %c0_i32 = arith.constant 0 : i32
    %c0_i32_0 = arith.constant 0 : i32
    %c0_i32_1 = arith.constant 0 : i32
    return %arg0, %c0_i32, %c0_i32_0 : i32, i32, i32
  }
  func.func @transform_1(%arg0: i32) -> (i32, i32) {
    %c0_i32 = arith.constant 0 : i32
    %c0_i32_0 = arith.constant 0 : i32
    %c0_i32_1 = arith.constant 0 : i32
    return %c0_i32, %c0_i32_0 : i32, i32
  }
  func.func @transform_2(%arg0: i32) -> (i32, i32) {
    %c0_i32 = arith.constant 0 : i32
    %c0_i32_0 = arith.constant 0 : i32
    %c0_i32_1 = arith.constant 0 : i32
    return %c0_i32, %c0_i32_0 : i32, i32
  }
  func.func @transform_3(%arg0: i32) -> (i32, i32) {
    %c0_i32 = arith.constant 0 : i32
    %c0_i32_0 = arith.constant 0 : i32
    %c0_i32_1 = arith.constant 0 : i32
    return %c0_i32, %c0_i32_0 : i32, i32
  }
  func.func @transform_4(%arg0: i32) -> (i32, i32) {
    %c0_i32 = arith.constant 0 : i32
    %c0_i32_0 = arith.constant 0 : i32
    %c0_i32_1 = arith.constant 0 : i32
    return %c0_i32, %c0_i32_0 : i32, i32
  }
  func.func @transform_5(%arg0: i32) -> (i32, i32) {
    %c0_i32 = arith.constant 0 : i32
    %c0_i32_0 = arith.constant 0 : i32
    %c0_i32_1 = arith.constant 0 : i32
    return %c0_i32, %c0_i32_0 : i32, i32
  }
  func.func @transform_6(%arg0: i32) -> (i32, i32) {
    %c0_i32 = arith.constant 0 : i32
    %c0_i32_0 = arith.constant 0 : i32
    %c0_i32_1 = arith.constant 0 : i32
    return %c0_i32, %c0_i32_0 : i32, i32
  }
  func.func @transform_7(%arg0: i32) -> (i32, i32) {
    %c0_i32 = arith.constant 0 : i32
    %c0_i32_0 = arith.constant 0 : i32
    %c0_i32_1 = arith.constant 0 : i32
    return %c0_i32, %c0_i32_0 : i32, i32
  }
  func.func @transform_8(%arg0: i32) -> (i32, i32) {
    %c0_i32 = arith.constant 0 : i32
    %c0_i32_0 = arith.constant 0 : i32
    %c0_i32_1 = arith.constant 0 : i32
    return %c0_i32, %c0_i32_0 : i32, i32
  }
  func.func @transform_9(%arg0: i32) -> (i32, i32) {
    %c0_i32 = arith.constant 0 : i32
    %c0_i32_0 = arith.constant 0 : i32
    %c0_i32_1 = arith.constant 0 : i32
    return %c0_i32, %c0_i32_0 : i32, i32
  }
  func.func @transform_10(%arg0: i32) -> (i32, i32) {
    %c0_i32 = arith.constant 0 : i32
    %c0_i32_0 = arith.constant 0 : i32
    %c0_i32_1 = arith.constant 0 : i32
    return %c0_i32, %c0_i32_0 : i32, i32
  }
  func.func @transform_11(%arg0: i32) -> (i32, i32) {
    %c0_i32 = arith.constant 0 : i32
    %c0_i32_0 = arith.constant 0 : i32
    %c0_i32_1 = arith.constant 0 : i32
    return %c0_i32, %c0_i32_0 : i32, i32
  }
  func.func @transform_12(%arg0: i32) -> (i32, i32) {
    %c0_i32 = arith.constant 0 : i32
    %c0_i32_0 = arith.constant 0 : i32
    %c0_i32_1 = arith.constant 0 : i32
    return %c0_i32, %c0_i32_0 : i32, i32
  }
  func.func @transform_13(%arg0: i32) -> (i32, i32) {
    %c0_i32 = arith.constant 0 : i32
    %c0_i32_0 = arith.constant 0 : i32
    %c0_i32_1 = arith.constant 0 : i32
    return %c0_i32, %c0_i32_0 : i32, i32
  }
  func.func @transform_14(%arg0: i32) -> (i32, i32) {
    %c0_i32 = arith.constant 0 : i32
    %c0_i32_0 = arith.constant 0 : i32
    %c0_i32_1 = arith.constant 0 : i32
    return %c0_i32, %c0_i32_0 : i32, i32
  }
  func.func @transform_15(%arg0: i32) -> (i32, i32) {
    %c0_i32 = arith.constant 0 : i32
    %c0_i32_0 = arith.constant 0 : i32
    %c0_i32_1 = arith.constant 0 : i32
    return %c0_i32, %c0_i32_0 : i32, i32
  }
  func.func @transform_16(%arg0: i32) -> (i32, i32) {
    %c0_i32 = arith.constant 0 : i32
    %c0_i32_0 = arith.constant 0 : i32
    %c0_i32_1 = arith.constant 0 : i32
    return %c0_i32, %c0_i32_0 : i32, i32
  }
  func.func @transform_17(%arg0: i32) -> (i32, i32) {
    %c0_i32 = arith.constant 0 : i32
    %c0_i32_0 = arith.constant 0 : i32
    %c0_i32_1 = arith.constant 0 : i32
    return %c0_i32, %c0_i32_0 : i32, i32
  }
  func.func @transform_18(%arg0: i32) -> (i32, i32) {
    %c0_i32 = arith.constant 0 : i32
    %c0_i32_0 = arith.constant 0 : i32
    %c0_i32_1 = arith.constant 0 : i32
    return %c0_i32, %c0_i32_0 : i32, i32
  }
  func.func @transform_19(%arg0: i32) -> (i32, i32) {
    %c0_i32 = arith.constant 0 : i32
    %c0_i32_0 = arith.constant 0 : i32
    %c0_i32_1 = arith.constant 0 : i32
    return %c0_i32, %c0_i32_0 : i32, i32
  }
  func.func @transform_20(%arg0: i32) -> (i32, i32) {
    %c0_i32 = arith.constant 0 : i32
    %c0_i32_0 = arith.constant 0 : i32
    %c0_i32_1 = arith.constant 0 : i32
    return %c0_i32, %c0_i32_0 : i32, i32
  }
  func.func @transform_21(%arg0: i32) -> (i32, i32, i32) {
    %c0_i32 = arith.constant 0 : i32
    %c0_i32_0 = arith.constant 0 : i32
    %c0_i32_1 = arith.constant 0 : i32
    return %arg0, %c0_i32, %c0_i32_0 : i32, i32, i32
  }
}

</mosaic_0001>

<llo_original>
// kernel: haze_refiner_forward.1
$region0: #{haze_refiner_forward.1}
  #allocation0 [shape = 'u32[]', space=smem, size = 0x4, offset = 0x4, fixed_abs, tag = 'smem constant byte address 0x4 - core index']
  #allocation1 [shape = 'u32[144,128]{1,0:T(1,128)}', space=vmem, size = 0x12000, scoped, tag = 'internal scratch']
  %s0 = inlined_call_operand.vmem [shape: f32[2,4,1024], index: 0, kind: input, shape index: {}]
  %s1 = inlined_call_operand.vmem [shape: f32[9,1024], index: 1, kind: input, shape index: {}]
  %s2 = inlined_call_operand.vmem [shape: bf16[1024,85], index: 2, kind: input, shape index: {}]
  %s3 = inlined_call_operand.vmem [shape: bf16[85,1024], index: 3, kind: input, shape index: {}]
  %s4 = inlined_call_operand.vmem [shape: f32[4,85], index: 4, kind: input, shape index: {}]
  %s5 = inlined_call_operand.vmem [shape: bf16[20,36], index: 5, kind: input, shape index: {}]
  %s6 = inlined_call_operand.vmem [shape: f32[20,1], index: 6, kind: input, shape index: {}]
  %s7 = inlined_call_operand.vmem [shape: bf16[20,180], index: 7, kind: input, shape index: {}]
  %s8 = inlined_call_operand.vmem [shape: f32[20,1], index: 8, kind: input, shape index: {}]
  %s9 = inlined_call_operand.vmem [shape: bf16[4,20], index: 9, kind: input, shape index: {}]
  %s10 = inlined_call_operand.vmem [shape: f32[4,1], index: 10, kind: input, shape index: {}]
  %s11 = inlined_call_operand.vmem [shape: bf16[3,216], index: 11, kind: input, shape index: {}]
  %s12 = inlined_call_operand.vmem [shape: f32[3,1], index: 12, kind: input, shape index: {}]
  %s13 = inlined_call_operand.vmem [shape: bf16[20,63], index: 13, kind: input, shape index: {}]
  %s14 = inlined_call_operand.vmem [shape: f32[20,1], index: 14, kind: input, shape index: {}]
  %s15 = inlined_call_operand.vmem [shape: bf16[20,180], index: 15, kind: input, shape index: {}]
  %s16 = inlined_call_operand.vmem [shape: f32[20,1], index: 16, kind: input, shape index: {}]
  %s17 = inlined_call_operand.vmem [shape: bf16[4,20], index: 17, kind: input, shape index: {}]
  %s18 = inlined_call_operand.vmem [shape: f32[4,1], index: 18, kind: input, shape index: {}]
  %s19 = inlined_call_operand.vmem [shape: bf16[3,216], index: 19, kind: input, shape index: {}]
  %s20 = inlined_call_operand.vmem [shape: f32[3,1], index: 20, kind: input, shape index: {}]
  %s21 = inlined_call_operand.vmem [shape: f32[2,3,1024], index: 21, kind: output, shape index: {}]
  %s22 = sld [smem:[#allocation0]]
  $region117: #{haze_refiner_forward.1} parent=0
    _
  %s24 = ssub.s32 1, %s22
  %s25 = scalar_select 0, %s24, %s22
  loop: start=0, step=1, limit=4
  $region2: #{haze_refiner_forward.1} parent=0 // loop_pre_header
    _
  $region3: #{haze_refiner_forward.1} parent=0 // loop_header
    %s27 = sphi 0, %s31
    %p28 = scmp.ge.s32.totalorder %s27, 4
    %s37 = sphi 0, %s39
    %s40 = sphi 0, %s37
    %s41 = sphi 0, %s40
    %s57 = sphi 0, %s41
    %s61 = sphi 0, %s61
    %s63 = sphi 0, %s61
    %s64 = sphi 0, %s63
    %s78 = sphi 0, %s64
    %s82 = sphi 0, %s82
    %s84 = sphi 0, %s82
    %s85 = sphi 0, %s84
    %s99 = sphi 0, %s85
    %s103 = sphi 0, %s103
    %s105 = sphi 0, %s103
    %s106 = sphi 0, %s105
    %s120 = sphi 0, %s106
    %s124 = sphi 0, %s124
    %s126 = sphi 0, %s124
    %s127 = sphi 0, %s126
    %s141 = sphi 0, %s127
    %s145 = sphi 0, %s145
    %s147 = sphi 0, %s145
    %s148 = sphi 0, %s147
    %s162 = sphi 0, %s148
    %s166 = sphi 0, %s166
    %s168 = sphi 0, %s166
    %s169 = sphi 0, %s168
    %s183 = sphi 0, %s169
    %s187 = sphi 0, %s187
    %s189 = sphi 0, %s187
    %s190 = sphi 0, %s189
    %s204 = sphi 0, %s190
    %s208 = sphi 0, %s208
    %s210 = sphi 0, %s208
    %s211 = sphi 0, %s210
    %s225 = sphi 0, %s211
    %s229 = sphi 0, %s229
    %s231 = sphi 0, %s229
    %s232 = sphi 0, %s231
    %s246 = sphi 0, %s232
    %s250 = sphi 0, %s250
    %s252 = sphi 0, %s250
    %s253 = sphi 0, %s252
    %s267 = sphi 0, %s253
    %s271 = sphi 0, %s271
    %s273 = sphi 0, %s271
    %s274 = sphi 0, %s273
    %s288 = sphi 0, %s274
    %s292 = sphi 0, %s292
    %s294 = sphi 0, %s292
    %s295 = sphi 0, %s294
    %s309 = sphi 0, %s295
    %s313 = sphi 0, %s313
    %s315 = sphi 0, %s313
    %s316 = sphi 0, %s315
    %s330 = sphi 0, %s316
    %s334 = sphi 0, %s334
    %s336 = sphi 0, %s334
    %s337 = sphi 0, %s336
    %s351 = sphi 0, %s337
    %s355 = sphi 0, %s355
    %s357 = sphi 0, %s355
    %s358 = sphi 0, %s357
    %s372 = sphi 0, %s358
    %s376 = sphi 0, %s376
    %s378 = sphi 0, %s376
    %s379 = sphi 0, %s378
    %s393 = sphi 0, %s379
    %s397 = sphi 0, %s397
    %s399 = sphi 0, %s397
    %s400 = sphi 0, %s399
    %s414 = sphi 0, %s400
    %s418 = sphi 0, %s418
    %s420 = sphi 0, %s418
    %s421 = sphi 0, %s420
    %s435 = sphi 0, %s421
    %s439 = sphi 0, %s439
    %s441 = sphi 0, %s439
    %s442 = sphi 0, %s441
    %s456 = sphi 0, %s442
    %s460 = sphi 0, %s460
    %s462 = sphi 0, %s460
    %s463 = sphi 0, %s462
    %s477 = sphi 0, %s463
    %s483 = sphi 0, %s485
    %s486 = sphi 0, %s483
    %s487 = sphi 0, %s486
    %s503 = sphi 0, %s487
  $region4: #{haze_refiner_forward.1} parent=0 // loop_header_branch
    %30 = sbr.rel (%p28) target = $region8
  $region5: #{haze_refiner_forward.1} parent=0 // loop_body
    %s32 = ssub.s32 %s27, 1
    %s33 = ssub.s32 %s27, 2
    %s34 = sadd.s32 %s27, 1
    %s35 = ssub.s32 %s27, %s34
    %p36 = scmp.eq.s32.totalorder %s35, 0
    %s38 = sadd.s32 %s37, 1
    %s39 = scalar_select %p36, %s37, %s38
    %p42 = pneg %p36
    %p43 = scmp.eq.s32.totalorder %s27, 1
    %p44 = por %p42, %p43
    %p45 = scmp.ne.s32.totalorder %s37, %s40
    %p46 = scmp.eq.s32.totalorder %s27, 0
    %p47 = por %p45, %p46
    %p48 = scmp.ne.s32.totalorder %s37, %s40
    %p49 = scmp.eq.s32.totalorder %s32, 1
    %p50 = por %p48, %p49
    %p51 = scmp.ne.s32.totalorder %s40, %s41
    %p52 = scmp.eq.s32.totalorder %s32, 0
    %p53 = por %p51, %p52
    %p54 = scmp.ne.s32.totalorder %s40, %s41
    %p55 = scmp.eq.s32.totalorder %s33, 1
    %p56 = por %p54, %p55
    %p58 = scmp.ne.s32.totalorder %s41, %s57
    %p59 = scmp.eq.s32.totalorder %s33, 0
    %p60 = por %p58, %p59
    %s62 = sadd.s32 %s61, 1
    %p65 = scmp.eq.s32.totalorder %s27, 1
    %p66 = scmp.ne.s32.totalorder %s61, %s63
    %p67 = scmp.eq.s32.totalorder %s27, 0
    %p68 = por %p66, %p67
    %p69 = scmp.ne.s32.totalorder %s61, %s63
    %p70 = scmp.eq.s32.totalorder %s32, 1
    %p71 = por %p69, %p70
    %p72 = scmp.ne.s32.totalorder %s63, %s64
    %p73 = scmp.eq.s32.totalorder %s32, 0
    %p74 = por %p72, %p73
    %p75 = scmp.ne.s32.totalorder %s63, %s64
    %p76 = scmp.eq.s32.totalorder %s33, 1
    %p77 = por %p75, %p76
    %p79 = scmp.ne.s32.totalorder %s64, %s78
    %p80 = scmp.eq.s32.totalorder %s33, 0
    %p81 = por %p79, %p80
    %s83 = sadd.s32 %s82, 1
    %p86 = scmp.eq.s32.totalorder %s27, 1
    %p87 = scmp.ne.s32.totalorder %s82, %s84
    %p88 = scmp.eq.s32.totalorder %s27, 0
    %p89 = por %p87, %p88
    %p90 = scmp.ne.s32.totalorder %s82, %s84
    %p91 = scmp.eq.s32.totalorder %s32, 1
    %p92 = por %p90, %p91
    %p93 = scmp.ne.s32.totalorder %s84, %s85
    %p94 = scmp.eq.s32.totalorder %s32, 0
    %p95 = por %p93, %p94
    %p96 = scmp.ne.s32.totalorder %s84, %s85
    %p97 = scmp.eq.s32.totalorder %s33, 1
    %p98 = por %p96, %p97
    %p100 = scmp.ne.s32.totalorder %s85, %s99
    %p101 = scmp.eq.s32.totalorder %s33, 0
    %p102 = por %p100, %p101
    %s104 = sadd.s32 %s103, 1
    %p107 = scmp.eq.s32.totalorder %s27, 1
    %p108 = scmp.ne.s32.totalorder %s103, %s105
    %p109 = scmp.eq.s32.totalorder %s27, 0
    %p110 = por %p108, %p109
    %p111 = scmp.ne.s32.totalorder %s103, %s105
    %p112 = scmp.eq.s32.totalorder %s32, 1
    %p113 = por %p111, %p112
    %p114 = scmp.ne.s32.totalorder %s105, %s106
    %p115 = scmp.eq.s32.totalorder %s32, 0
    %p116 = por %p114, %p115
    %p117 = scmp.ne.s32.totalorder %s105, %s106
    %p118 = scmp.eq.s32.totalorder %s33, 1
    %p119 = por %p117, %p118
    %p121 = scmp.ne.s32.totalorder %s106, %s120
    %p122 = scmp.eq.s32.totalorder %s33, 0
    %p123 = por %p121, %p122
    %s125 = sadd.s32 %s124, 1
    %p128 = scmp.eq.s32.totalorder %s27, 1
    %p129 = scmp.ne.s32.totalorder %s124, %s126
    %p130 = scmp.eq.s32.totalorder %s27, 0
    %p131 = por %p129, %p130
    %p132 = scmp.ne.s32.totalorder %s124, %s126
    %p133 = scmp.eq.s32.totalorder %s32, 1
    %p134 = por %p132, %p133
    %p135 = scmp.ne.s32.totalorder %s126, %s127
    %p136 = scmp.eq.s32.totalorder %s32, 0
    %p137 = por %p135, %p136
    %p138 = scmp.ne.s32.totalorder %s126, %s127
    %p139 = scmp.eq.s32.totalorder %s33, 1
    %p140 = por %p138, %p139
    %p142 = scmp.ne.s32.totalorder %s127, %s141
    %p143 = scmp.eq.s32.totalorder %s33, 0
    %p144 = por %p142, %p143
    %s146 = sadd.s32 %s145, 1
    %p149 = scmp.eq.s32.totalorder %s27, 1
    %p150 = scmp.ne.s32.totalorder %s145, %s147
    %p151 = scmp.eq.s32.totalorder %s27, 0
    %p152 = por %p150, %p151
    %p153 = scmp.ne.s32.totalorder %s145, %s147
    %p154 = scmp.eq.s32.totalorder %s32, 1
    %p155 = por %p153, %p154
    %p156 = scmp.ne.s32.totalorder %s147, %s148
    %p157 = scmp.eq.s32.totalorder %s32, 0
    %p158 = por %p156, %p157
    %p159 = scmp.ne.s32.totalorder %s147, %s148
    %p160 = scmp.eq.s32.totalorder %s33, 1
    %p161 = por %p159, %p160
    %p163 = scmp.ne.s32.totalorder %s148, %s162
    %p164 = scmp.eq.s32.totalorder %s33, 0
    %p165 = por %p163, %p164
    %s167 = sadd.s32 %s166, 1
    %p170 = scmp.eq.s32.totalorder %s27, 1
    %p171 = scmp.ne.s32.totalorder %s166, %s168
    %p172 = scmp.eq.s32.totalorder %s27, 0
    %p173 = por %p171, %p172
    %p174 = scmp.ne.s32.totalorder %s166, %s168
    %p175 = scmp.eq.s32.totalorder %s32, 1
    %p176 = por %p174, %p175
    %p177 = scmp.ne.s32.totalorder %s168, %s169
    %p178 = scmp.eq.s32.totalorder %s32, 0
    %p179 = por %p177, %p178
    %p180 = scmp.ne.s32.totalorder %s168, %s169
    %p181 = scmp.eq.s32.totalorder %s33, 1
    %p182 = por %p180, %p181
    %p184 = scmp.ne.s32.totalorder %s169, %s183
    %p185 = scmp.eq.s32.totalorder %s33, 0
    %p186 = por %p184, %p185
    %s188 = sadd.s32 %s187, 1
    %p191 = scmp.eq.s32.totalorder %s27, 1
    %p192 = scmp.ne.s32.totalorder %s187, %s189
    %p193 = scmp.eq.s32.totalorder %s27, 0
    %p194 = por %p192, %p193
    %p195 = scmp.ne.s32.totalorder %s187, %s189
    %p196 = scmp.eq.s32.totalorder %s32, 1
    %p197 = por %p195, %p196
    %p198 = scmp.ne.s32.totalorder %s189, %s190
    %p199 = scmp.eq.s32.totalorder %s32, 0
    %p200 = por %p198, %p199
    %p201 = scmp.ne.s32.totalorder %s189, %s190
    %p202 = scmp.eq.s32.totalorder %s33, 1
    %p203 = por %p201, %p202
    %p205 = scmp.ne.s32.totalorder %s190, %s204
    %p206 = scmp.eq.s32.totalorder %s33, 0
    %p207 = por %p205, %p206
    %s209 = sadd.s32 %s208, 1
    %p212 = scmp.eq.s32.totalorder %s27, 1
    %p213 = scmp.ne.s32.totalorder %s208, %s210
    %p214 = scmp.eq.s32.totalorder %s27, 0
    %p215 = por %p213, %p214
    %p216 = scmp.ne.s32.totalorder %s208, %s210
    %p217 = scmp.eq.s32.totalorder %s32, 1
    %p218 = por %p216, %p217
    %p219 = scmp.ne.s32.totalorder %s210, %s211
    %p220 = scmp.eq.s32.totalorder %s32, 0
    %p221 = por %p219, %p220
    %p222 = scmp.ne.s32.totalorder %s210, %s211
    %p223 = scmp.eq.s32.totalorder %s33, 1
    %p224 = por %p222, %p223
    %p226 = scmp.ne.s32.totalorder %s211, %s225
    %p227 = scmp.eq.s32.totalorder %s33, 0
    %p228 = por %p226, %p227
    %s230 = sadd.s32 %s229, 1
    %p233 = scmp.eq.s32.totalorder %s27, 1
    %p234 = scmp.ne.s32.totalorder %s229, %s231
    %p235 = scmp.eq.s32.totalorder %s27, 0
    %p236 = por %p234, %p235
    %p237 = scmp.ne.s32.totalorder %s229, %s231
    %p238 = scmp.eq.s32.totalorder %s32, 1
    %p239 = por %p237, %p238
    %p240 = scmp.ne.s32.totalorder %s231, %s232
    %p241 = scmp.eq.s32.totalorder %s32, 0
    %p242 = por %p240, %p241
    %p243 = scmp.ne.s32.totalorder %s231, %s232
    %p244 = scmp.eq.s32.totalorder %s33, 1
    %p245 = por %p243, %p244
    %p247 = scmp.ne.s32.totalorder %s232, %s246
    %p248 = scmp.eq.s32.totalorder %s33, 0
    %p249 = por %p247, %p248
    %s251 = sadd.s32 %s250, 1
    %p254 = scmp.eq.s32.totalorder %s27, 1
    %p255 = scmp.ne.s32.totalorder %s250, %s252
    %p256 = scmp.eq.s32.totalorder %s27, 0
    %p257 = por %p255, %p256
    %p258 = scmp.ne.s32.totalorder %s250, %s252
    %p259 = scmp.eq.s32.totalorder %s32, 1
    %p260 = por %p258, %p259
    %p261 = scmp.ne.s32.totalorder %s252, %s253
    %p262 = scmp.eq.s32.totalorder %s32, 0
    %p263 = por %p261, %p262
    %p264 = scmp.ne.s32.totalorder %s252, %s253
    %p265 = scmp.eq.s32.totalorder %s33, 1
    %p266 = por %p264, %p265
    %p268 = scmp.ne.s32.totalorder %s253, %s267
    %p269 = scmp.eq.s32.totalorder %s33, 0
    %p270 = por %p268, %p269
    %s272 = sadd.s32 %s271, 1
    %p275 = scmp.eq.s32.totalorder %s27, 1
    %p276 = scmp.ne.s32.totalorder %s271, %s273
    %p277 = scmp.eq.s32.totalorder %s27, 0
    %p278 = por %p276, %p277
    %p279 = scmp.ne.s32.totalorder %s271, %s273
    %p280 = scmp.eq.s32.totalorder %s32, 1
    %p281 = por %p279, %p280
    %p282 = scmp.ne.s32.totalorder %s273, %s274
    %p283 = scmp.eq.s32.totalorder %s32, 0
    %p284 = por %p282, %p283
    %p285 = scmp.ne.s32.totalorder %s273, %s274
    %p286 = scmp.eq.s32.totalorder %s33, 1
    %p287 = por %p285, %p286
    %p289 = scmp.ne.s32.totalorder %s274, %s288
    %p290 = scmp.eq.s32.totalorder %s33, 0
    %p291 = por %p289, %p290
    %s293 = sadd.s32 %s292, 1
    %p296 = scmp.eq.s32.totalorder %s27, 1
    %p297 = scmp.ne.s32.totalorder %s292, %s294
    %p298 = scmp.eq.s32.totalorder %s27, 0
    %p299 = por %p297, %p298
    %p300 = scmp.ne.s32.totalorder %s292, %s294
    %p301 = scmp.eq.s32.totalorder %s32, 1
    %p302 = por %p300, %p301
    %p303 = scmp.ne.s32.totalorder %s294, %s295
    %p304 = scmp.eq.s32.totalorder %s32, 0
    %p305 = por %p303, %p304
    %p306 = scmp.ne.s32.totalorder %s294, %s295
    %p307 = scmp.eq.s32.totalorder %s33, 1
    %p308 = por %p306, %p307
    %p310 = scmp.ne.s32.totalorder %s295, %s309
    %p311 = scmp.eq.s32.totalorder %s33, 0
    %p312 = por %p310, %p311
    %s314 = sadd.s32 %s313, 1
    %p317 = scmp.eq.s32.totalorder %s27, 1
    %p318 = scmp.ne.s32.totalorder %s313, %s315
    %p319 = scmp.eq.s32.totalorder %s27, 0
    %p320 = por %p318, %p319
    %p321 = scmp.ne.s32.totalorder %s313, %s315
    %p322 = scmp.eq.s32.totalorder %s32, 1
    %p323 = por %p321, %p322
    %p324 = scmp.ne.s32.totalorder %s315, %s316
    %p325 = scmp.eq.s32.totalorder %s32, 0
    %p326 = por %p324, %p325
    %p327 = scmp.ne.s32.totalorder %s315, %s316
    %p328 = scmp.eq.s32.totalorder %s33, 1
    %p329 = por %p327, %p328
    %p331 = scmp.ne.s32.totalorder %s316, %s330
    %p332 = scmp.eq.s32.totalorder %s33, 0
    %p333 = por %p331, %p332
    %s335 = sadd.s32 %s334, 1
    %p338 = scmp.eq.s32.totalorder %s27, 1
    %p339 = scmp.ne.s32.totalorder %s334, %s336
    %p340 = scmp.eq.s32.totalorder %s27, 0
    %p341 = por %p339, %p340
    %p342 = scmp.ne.s32.totalorder %s334, %s336
    %p343 = scmp.eq.s32.totalorder %s32, 1
    %p344 = por %p342, %p343
    %p345 = scmp.ne.s32.totalorder %s336, %s337
    %p346 = scmp.eq.s32.totalorder %s32, 0
    %p347 = por %p345, %p346
    %p348 = scmp.ne.s32.totalorder %s336, %s337
    %p349 = scmp.eq.s32.totalorder %s33, 1
    %p350 = por %p348, %p349
    %p352 = scmp.ne.s32.totalorder %s337, %s351
    %p353 = scmp.eq.s32.totalorder %s33, 0
    %p354 = por %p352, %p353
    %s356 = sadd.s32 %s355, 1
    %p359 = scmp.eq.s32.totalorder %s27, 1
    %p360 = scmp.ne.s32.totalorder %s355, %s357
    %p361 = scmp.eq.s32.totalorder %s27, 0
    %p362 = por %p360, %p361
    %p363 = scmp.ne.s32.totalorder %s355, %s357
    %p364 = scmp.eq.s32.totalorder %s32, 1
    %p365 = por %p363, %p364
    %p366 = scmp.ne.s32.totalorder %s357, %s358
    %p367 = scmp.eq.s32.totalorder %s32, 0
    %p368 = por %p366, %p367
    %p369 = scmp.ne.s32.totalorder %s357, %s358
    %p370 = scmp.eq.s32.totalorder %s33, 1
    %p371 = por %p369, %p370
    %p373 = scmp.ne.s32.totalorder %s358, %s372
    %p374 = scmp.eq.s32.totalorder %s33, 0
    %p375 = por %p373, %p374
    %s377 = sadd.s32 %s376, 1
    %p380 = scmp.eq.s32.totalorder %s27, 1
    %p381 = scmp.ne.s32.totalorder %s376, %s378
    %p382 = scmp.eq.s32.totalorder %s27, 0
    %p383 = por %p381, %p382
    %p384 = scmp.ne.s32.totalorder %s376, %s378
    %p385 = scmp.eq.s32.totalorder %s32, 1
    %p386 = por %p384, %p385
    %p387 = scmp.ne.s32.totalorder %s378, %s379
    %p388 = scmp.eq.s32.totalorder %s32, 0
    %p389 = por %p387, %p388
    %p390 = scmp.ne.s32.totalorder %s378, %s379
    %p391 = scmp.eq.s32.totalorder %s33, 1
    %p392 = por %p390, %p391
    %p394 = scmp.ne.s32.totalorder %s379, %s393
    %p395 = scmp.eq.s32.totalorder %s33, 0
    %p396 = por %p394, %p395
    %s398 = sadd.s32 %s397, 1
    %p401 = scmp.eq.s32.totalorder %s27, 1
    %p402 = scmp.ne.s32.totalorder %s397, %s399
    %p403 = scmp.eq.s32.totalorder %s27, 0
    %p404 = por %p402, %p403
    %p405 = scmp.ne.s32.totalorder %s397, %s399
    %p406 = scmp.eq.s32.totalorder %s32, 1
    %p407 = por %p405, %p406
    %p408 = scmp.ne.s32.totalorder %s399, %s400
    %p409 = scmp.eq.s32.totalorder %s32, 0
    %p410 = por %p408, %p409
    %p411 = scmp.ne.s32.totalorder %s399, %s400
    %p412 = scmp.eq.s32.totalorder %s33, 1
    %p413 = por %p411, %p412
    %p415 = scmp.ne.s32.totalorder %s400, %s414
    %p416 = scmp.eq.s32.totalorder %s33, 0
    %p417 = por %p415, %p416
    %s419 = sadd.s32 %s418, 1
    %p422 = scmp.eq.s32.totalorder %s27, 1
    %p423 = scmp.ne.s32.totalorder %s418, %s420
    %p424 = scmp.eq.s32.totalorder %s27, 0
    %p425 = por %p423, %p424
    %p426 = scmp.ne.s32.totalorder %s418, %s420
    %p427 = scmp.eq.s32.totalorder %s32, 1
    %p428 = por %p426, %p427
    %p429 = scmp.ne.s32.totalorder %s420, %s421
    %p430 = scmp.eq.s32.totalorder %s32, 0
    %p431 = por %p429, %p430
    %p432 = scmp.ne.s32.totalorder %s420, %s421
    %p433 = scmp.eq.s32.totalorder %s33, 1
    %p434 = por %p432, %p433
    %p436 = scmp.ne.s32.totalorder %s421, %s435
    %p437 = scmp.eq.s32.totalorder %s33, 0
    %p438 = por %p436, %p437
    %s440 = sadd.s32 %s439, 1
    %p443 = scmp.eq.s32.totalorder %s27, 1
    %p444 = scmp.ne.s32.totalorder %s439, %s441
    %p445 = scmp.eq.s32.totalorder %s27, 0
    %p446 = por %p444, %p445
    %p447 = scmp.ne.s32.totalorder %s439, %s441
    %p448 = scmp.eq.s32.totalorder %s32, 1
    %p449 = por %p447, %p448
    %p450 = scmp.ne.s32.totalorder %s441, %s442
    %p451 = scmp.eq.s32.totalorder %s32, 0
    %p452 = por %p450, %p451
    %p453 = scmp.ne.s32.totalorder %s441, %s442
    %p454 = scmp.eq.s32.totalorder %s33, 1
    %p455 = por %p453, %p454
    %p457 = scmp.ne.s32.totalorder %s442, %s456
    %p458 = scmp.eq.s32.totalorder %s33, 0
    %p459 = por %p457, %p458
    %s461 = sadd.s32 %s460, 1
    %p464 = scmp.eq.s32.totalorder %s27, 1
    %p465 = scmp.ne.s32.totalorder %s460, %s462
    %p466 = scmp.eq.s32.totalorder %s27, 0
    %p467 = por %p465, %p466
    %p468 = scmp.ne.s32.totalorder %s460, %s462
    %p469 = scmp.eq.s32.totalorder %s32, 1
    %p470 = por %p468, %p469
    %p471 = scmp.ne.s32.totalorder %s462, %s463
    %p472 = scmp.eq.s32.totalorder %s32, 0
    %p473 = por %p471, %p472
    %p474 = scmp.ne.s32.totalorder %s462, %s463
    %p475 = scmp.eq.s32.totalorder %s33, 1
    %p476 = por %p474, %p475
    %p478 = scmp.ne.s32.totalorder %s463, %s477
    %p479 = scmp.eq.s32.totalorder %s33, 0
    %p480 = por %p478, %p479
    %s481 = ssub.s32 %s27, %s34
    %p482 = scmp.eq.s32.totalorder %s481, 0
    %s484 = sadd.s32 %s483, 1
    %s485 = scalar_select %p482, %s483, %s484
    %p488 = pneg %p482
    %p489 = scmp.eq.s32.totalorder %s27, 1
    %p490 = por %p488, %p489
    %p491 = scmp.ne.s32.totalorder %s483, %s486
    %p492 = scmp.eq.s32.totalorder %s27, 0
    %p493 = por %p491, %p492
    %p494 = scmp.ne.s32.totalorder %s483, %s486
    %p495 = scmp.eq.s32.totalorder %s32, 1
    %p496 = por %p494, %p495
    %p497 = scmp.ne.s32.totalorder %s486, %s487
    %p498 = scmp.eq.s32.totalorder %s32, 0
    %p499 = por %p497, %p498
    %p500 = scmp.ne.s32.totalorder %s486, %s487
    %p501 = scmp.eq.s32.totalorder %s33, 1
    %p502 = por %p500, %p501
    %p504 = scmp.ne.s32.totalorder %s487, %s503
    %p505 = scmp.eq.s32.totalorder %s33, 0
    %p506 = por %p504, %p505
    %p507 = scmp.le.s32.totalorder 1, %s27
    %p508 = scmp.lt.s32.totalorder %s27, 3
    %p509 = pnand %p507, %p508
    %p510 = pneg %p509
    // Predicated region
    $region9: #{haze_refiner_forward.1} parent=5 // pred_check
      _
    $region10: #{haze_refiner_forward.1} parent=5 // pred_check_branch
      %512 = sbr.rel (%p509) target = $region12
    $region11: #{haze_refiner_forward.1} parent=5 // pred_region
      %s513 = ssub.s32 %s27, 1
      // Predicated region
      $region13: #{haze_refiner_forward.1} parent=11 // pred_check
        %p514 = pneg %p74
      $region14: #{haze_refiner_forward.1} parent=11 // pred_check_branch
        %516 = sbr.rel (%p514) target = $region16
      $region15: #{haze_refiner_forward.1} parent=11 // pred_region
        _
      $region16: #{haze_refiner_forward.1} parent=11 // pred_fallthru
        _
      // Predicated region
      $region17: #{haze_refiner_forward.1} parent=11 // pred_check
        %p517 = pneg %p95
      $region18: #{haze_refiner_forward.1} parent=11 // pred_check_branch
        %519 = sbr.rel (%p517) target = $region20
      $region19: #{haze_refiner_forward.1} parent=11 // pred_region
        _
      $region20: #{haze_refiner_forward.1} parent=11 // pred_fallthru
        _
      // Predicated region
      $region21: #{haze_refiner_forward.1} parent=11 // pred_check
        %p520 = pneg %p116
      $region22: #{haze_refiner_forward.1} parent=11 // pred_check_branch
        %522 = sbr.rel (%p520) target = $region24
      $region23: #{haze_refiner_forward.1} parent=11 // pred_region
        _
      $region24: #{haze_refiner_forward.1} parent=11 // pred_fallthru
        _
      // Predicated region
      $region25: #{haze_refiner_forward.1} parent=11 // pred_check
        %p523 = pneg %p137
      $region26: #{haze_refiner_forward.1} parent=11 // pred_check_branch
        %525 = sbr.rel (%p523) target = $region28
      $region27: #{haze_refiner_forward.1} parent=11 // pred_region
        _
      $region28: #{haze_refiner_forward.1} parent=11 // pred_fallthru
        _
      // Predicated region
      $region29: #{haze_refiner_forward.1} parent=11 // pred_check
        %p526 = pneg %p158
      $region30: #{haze_refiner_forward.1} parent=11 // pred_check_branch
        %528 = sbr.rel (%p526) target = $region32
      $region31: #{haze_refiner_forward.1} parent=11 // pred_region
        _
      $region32: #{haze_refiner_forward.1} parent=11 // pred_fallthru
        _
      // Predicated region
      $region33: #{haze_refiner_forward.1} parent=11 // pred_check
        %p529 = pneg %p179
      $region34: #{haze_refiner_forward.1} parent=11 // pred_check_branch
        %531 = sbr.rel (%p529) target = $region36
      $region35: #{haze_refiner_forward.1} parent=11 // pred_region
        _
      $region36: #{haze_refiner_forward.1} parent=11 // pred_fallthru
        _
      // Predicated region
      $region37: #{haze_refiner_forward.1} parent=11 // pred_check
        %p532 = pneg %p200
      $region38: #{haze_refiner_forward.1} parent=11 // pred_check_branch
        %534 = sbr.rel (%p532) target = $region40
      $region39: #{haze_refiner_forward.1} parent=11 // pred_region
        _
      $region40: #{haze_refiner_forward.1} parent=11 // pred_fallthru
        _
      // Predicated region
      $region41: #{haze_refiner_forward.1} parent=11 // pred_check
        %p535 = pneg %p221
      $region42: #{haze_refiner_forward.1} parent=11 // pred_check_branch
        %537 = sbr.rel (%p535) target = $region44
      $region43: #{haze_refiner_forward.1} parent=11 // pred_region
        _
      $region44: #{haze_refiner_forward.1} parent=11 // pred_fallthru
        _
      // Predicated region
      $region45: #{haze_refiner_forward.1} parent=11 // pred_check
        %p538 = pneg %p242
      $region46: #{haze_refiner_forward.1} parent=11 // pred_check_branch
        %540 = sbr.rel (%p538) target = $region48
      $region47: #{haze_refiner_forward.1} parent=11 // pred_region
        _
      $region48: #{haze_refiner_forward.1} parent=11 // pred_fallthru
        _
      // Predicated region
      $region49: #{haze_refiner_forward.1} parent=11 // pred_check
        %p541 = pneg %p263
      $region50: #{haze_refiner_forward.1} parent=11 // pred_check_branch
        %543 = sbr.rel (%p541) target = $region52
      $region51: #{haze_refiner_forward.1} parent=11 // pred_region
        _
      $region52: #{haze_refiner_forward.1} parent=11 // pred_fallthru
        _
      // Predicated region
      $region53: #{haze_refiner_forward.1} parent=11 // pred_check
        %p544 = pneg %p284
      $region54: #{haze_refiner_forward.1} parent=11 // pred_check_branch
        %546 = sbr.rel (%p544) target = $region56
      $region55: #{haze_refiner_forward.1} parent=11 // pred_region
        _
      $region56: #{haze_refiner_forward.1} parent=11 // pred_fallthru
        _
      // Predicated region
      $region57: #{haze_refiner_forward.1} parent=11 // pred_check
        %p547 = pneg %p305
      $region58: #{haze_refiner_forward.1} parent=11 // pred_check_branch
        %549 = sbr.rel (%p547) target = $region60
      $region59: #{haze_refiner_forward.1} parent=11 // pred_region
        _
      $region60: #{haze_refiner_forward.1} parent=11 // pred_fallthru
        _
      // Predicated region
      $region61: #{haze_refiner_forward.1} parent=11 // pred_check
        %p550 = pneg %p326
      $region62: #{haze_refiner_forward.1} parent=11 // pred_check_branch
        %552 = sbr.rel (%p550) target = $region64
      $region63: #{haze_refiner_forward.1} parent=11 // pred_region
        _
      $region64: #{haze_refiner_forward.1} parent=11 // pred_fallthru
        _
      // Predicated region
      $region65: #{haze_refiner_forward.1} parent=11 // pred_check
        %p553 = pneg %p347
      $region66: #{haze_refiner_forward.1} parent=11 // pred_check_branch
        %555 = sbr.rel (%p553) target = $region68
      $region67: #{haze_refiner_forward.1} parent=11 // pred_region
        _
      $region68: #{haze_refiner_forward.1} parent=11 // pred_fallthru
        _
      // Predicated region
      $region69: #{haze_refiner_forward.1} parent=11 // pred_check
        %p556 = pneg %p368
      $region70: #{haze_refiner_forward.1} parent=11 // pred_check_branch
        %558 = sbr.rel (%p556) target = $region72
      $region71: #{haze_refiner_forward.1} parent=11 // pred_region
        _
      $region72: #{haze_refiner_forward.1} parent=11 // pred_fallthru
        _
      // Predicated region
      $region73: #{haze_refiner_forward.1} parent=11 // pred_check
        %p559 = pneg %p389
      $region74: #{haze_refiner_forward.1} parent=11 // pred_check_branch
        %561 = sbr.rel (%p559) target = $region76
      $region75: #{haze_refiner_forward.1} parent=11 // pred_region
        _
      $region76: #{haze_refiner_forward.1} parent=11 // pred_fallthru
        _
      // Predicated region
      $region77: #{haze_refiner_forward.1} parent=11 // pred_check
        %p562 = pneg %p410
      $region78: #{haze_refiner_forward.1} parent=11 // pred_check_branch
        %564 = sbr.rel (%p562) target = $region80
      $region79: #{haze_refiner_forward.1} parent=11 // pred_region
        _
      $region80: #{haze_refiner_forward.1} parent=11 // pred_fallthru
        _
      // Predicated region
      $region81: #{haze_refiner_forward.1} parent=11 // pred_check
        %p565 = pneg %p431
      $region82: #{haze_refiner_forward.1} parent=11 // pred_check_branch
        %567 = sbr.rel (%p565) target = $region84
      $region83: #{haze_refiner_forward.1} parent=11 // pred_region
        _
      $region84: #{haze_refiner_forward.1} parent=11 // pred_fallthru
        _
      // Predicated region
      $region85: #{haze_refiner_forward.1} parent=11 // pred_check
        %p568 = pneg %p452
      $region86: #{haze_refiner_forward.1} parent=11 // pred_check_branch
        %570 = sbr.rel (%p568) target = $region88
      $region87: #{haze_refiner_forward.1} parent=11 // pred_region
        _
      $region88: #{haze_refiner_forward.1} parent=11 // pred_fallthru
        _
      // Predicated region
      $region89: #{haze_refiner_forward.1} parent=11 // pred_check
        %p571 = pneg %p473
      $region90: #{haze_refiner_forward.1} parent=11 // pred_check_branch
        %573 = sbr.rel (%p571) target = $region92
      $region91: #{haze_refiner_forward.1} parent=11 // pred_region
        _
      $region92: #{haze_refiner_forward.1} parent=11 // pred_fallthru
        _
    $region12: #{haze_refiner_forward.1} parent=5 // pred_fallthru
      _
    %p574 = scmp.lt.s32.totalorder %s27, 2
    // Predicated region
    $region93: #{haze_refiner_forward.1} parent=5 // pred_check
      %p575 = pneg %p574
    $region94: #{haze_refiner_forward.1} parent=5 // pred_check_branch
      %577 = sbr.rel (%p575) target = $region96
    $region95: #{haze_refiner_forward.1} parent=5 // pred_region
      // Predicated region
      $region97: #{haze_refiner_forward.1} parent=95 // pred_check
        %p578 = pneg %p47
      $region98: #{haze_refiner_forward.1} parent=95 // pred_check_branch
        %580 = sbr.rel (%p578) target = $region100
      $region99: #{haze_refiner_forward.1} parent=95 // pred_region
        %p581 = scmp.lt.s32.totalorder %s27, 1
        %s582 = scalar_select %p581, %s27, 1
        %s583 = smul.addr %s582, 8
        %s584 = smul.addr %s583, 4
        %s585 = scalar_lea.vmem %s0, %s584
      $region100: #{haze_refiner_forward.1} parent=95 // pred_fallthru
        _
    $region96: #{haze_refiner_forward.1} parent=5 // pred_fallthru
      _
    %p586 = scmp.le.s32.totalorder 1, %s27
    %p587 = scmp.lt.s32.totalorder %s27, 3
    %p588 = pnand %p586, %p587
    %p589 = pneg %p588
    // Predicated region
    $region101: #{haze_refiner_forward.1} parent=5 // pred_check
      _
    $region102: #{haze_refiner_forward.1} parent=5 // pred_check_branch
      %591 = sbr.rel (%p588) target = $region104
    $region103: #{haze_refiner_forward.1} parent=5 // pred_region
      %s592 = ssub.s32 %s27, 1
      %p593 = scmp.lt.s32.totalorder %s32, 1
      %s594 = scalar_select %p593, %s32, 1
      %s595 = smul.addr %s594, 8
      %s596 = smul.addr %s595, 4
      %s597 = scalar_lea.vmem %s0, %s596
      %p598 = pneg %p53
      %p599 = pneg %p50
      %p600 = pneg %p74
      %p601 = pneg %p71
      %p602 = pneg %p95
      %p603 = pneg %p92
      %p604 = pneg %p116
      %p605 = pneg %p113
      %p606 = pneg %p137
      %p607 = pneg %p134
      %p608 = pneg %p158
      %p609 = pneg %p155
      %p610 = pneg %p179
      %p611 = pneg %p176
      %p612 = pneg %p200
      %p613 = pneg %p197
      %p614 = pneg %p221
      %p615 = pneg %p218
      %p616 = pneg %p242
      %p617 = pneg %p239
      %p618 = pneg %p263
      %p619 = pneg %p260
      %p620 = pneg %p284
      %p621 = pneg %p281
      %p622 = pneg %p305
      %p623 = pneg %p302
      %p624 = pneg %p326
      %p625 = pneg %p323
      %p626 = pneg %p347
      %p627 = pneg %p344
      %p628 = pneg %p368
      %p629 = pneg %p365
      %p630 = pneg %p389
      %p631 = pneg %p386
      %p632 = pneg %p410
      %p633 = pneg %p407
      %p634 = pneg %p431
      %p635 = pneg %p428
      %p636 = pneg %p452
      %p637 = pneg %p449
      %p638 = pneg %p473
      %p639 = pneg %p470
      %p640 = pneg %p499
      %p641 = pneg %p496
      %p642 = scmp.lt.s32.totalorder %s32, 1
      %s643 = scalar_select %p642, %s32, 1
      %s644 = smul.addr %s643, 8
      %s645 = smul.addr %s644, 4
      %s646 = scalar_lea.vmem %s21, %s645
      %p647 = scmp.lt.s32.totalorder %s32, 1
      %s648 = scalar_select %p647, %s32, 1
      %s649 = smul.addr %s648, 8
      %s650 = smul.addr %s649, 4
      %s651 = scalar_lea.vmem %s0, %s650
      %p652 = scmp.lt.s32.totalorder %s32, 1
      %s653 = scalar_select %p652, %s32, 1
      %s654 = smul.addr %s653, 8
      %s655 = smul.addr %s654, 4
      %s656 = scalar_lea.vmem %s21, %s655
      %v658 = vld [vmem:[%s1] sm:$0xff]
      %v659 = vld [vmem:[%s1 + $0x8] sm:$0xff]
      %v660 = vld [vmem:[%s1 + $0x10] sm:$0xff]
      %v661 = vld [vmem:[%s1 + $0x18] sm:$0xff]
      %v662 = vld [vmem:[%s1 + $0x20] sm:$0xff]
      %v663 = vld [vmem:[%s1 + $0x28] sm:$0xff]
      %v664 = vld [vmem:[%s1 + $0x30] sm:$0xff]
      %v665 = vld [vmem:[%s1 + $0x38] sm:$0xff]
      %v666 = vld [vmem:[%s1 + $0x40] sm:$0x1]
      %v667 = vld [vmem:[%s1 + $0x48] sm:$0x1]
      %v668 = vld [vmem:[%s1 + $0x50] sm:$0x1]
      %v669 = vld [vmem:[%s1 + $0x58] sm:$0x1]
      %v670 = vld [vmem:[%s1 + $0x60] sm:$0x1]
      %v671 = vld [vmem:[%s1 + $0x68] sm:$0x1]
      %v672 = vld [vmem:[%s1 + $0x70] sm:$0x1]
      %v673 = vld [vmem:[%s1 + $0x78] sm:$0x1]
      %v674 = vld [vmem:[%s651] sm:$0xff]
      %v675 = vld [vmem:[%s651 + $0x8] sm:$0xff]
      %v676 = vld [vmem:[%s651 + $0x10] sm:$0xff]
      %v677 = vld [vmem:[%s651 + $0x18] sm:$0xff]
      %v682 = vcombine.high %v674, %v674
      %v683 = vcombine.high %v675, %v675
      %v684 = vcombine.high %v676, %v676
      %v685 = vcombine.high %v677, %v677
      %690 = vrot.lane.b32.xlu0 %v674, 33
      %v691 = vpop.permute.xlu0 %690
      %692 = vrot.lane.b32.xlu0 %v682, 33
      %v693 = vpop.permute.xlu0 %692
      %694 = vrot.lane.b32.xlu0 %v675, 33
      %v695 = vpop.permute.xlu0 %694
      %696 = vrot.lane.b32.xlu0 %v683, 33
      %v697 = vpop.permute.xlu0 %696
      %698 = vrot.lane.b32.xlu0 %v676, 33
      %v699 = vpop.permute.xlu0 %698
      %700 = vrot.lane.b32.xlu0 %v684, 33
      %v701 = vpop.permute.xlu0 %700
      %702 = vrot.lane.b32.xlu0 %v677, 33
      %v703 = vpop.permute.xlu0 %702
      %704 = vrot.lane.b32.xlu0 %v685, 33
      %v705 = vpop.permute.xlu0 %704
      %v706 = vlaneseq
      %v707 = vand.u32 %v706, 127
      %vm708 = vcmp.lt.s32.totalorder %v707, 33
      %v709 = vsel %vm708, %v703, %v705
      %v710 = vsel %vm708, %v701, %v703
      %v711 = vsel %vm708, %v699, %v701
      %v712 = vsel %vm708, %v697, %v699
      %v713 = vsel %vm708, %v695, %v697
      %v714 = vsel %vm708, %v693, %v695
      %v715 = vsel %vm708, %v691, %v693
      %v716 = vsel %vm708, %v705, %v691
      %v717 = vlaneseq
      %v718 = vshrl.u32 %v717, 7
      %v719 = vsub.s32 0, %v718
      %v720 = vrot.slane %v658, %v719
      %v721 = vlaneseq
      %v722 = vshrl.u32 %v721, 7
      %v723 = vsub.s32 0, %v722
      %v724 = vrot.slane %v659, %v723
      %v725 = vlaneseq
      %v726 = vshrl.u32 %v725, 7
      %v727 = vsub.s32 0, %v726
      %v728 = vrot.slane %v660, %v727
      %v729 = vlaneseq
      %v730 = vshrl.u32 %v729, 7
      %v731 = vsub.s32 0, %v730
      %v732 = vrot.slane %v661, %v731
      %v733 = vlaneseq
      %v734 = vshrl.u32 %v733, 7
      %v735 = vsub.s32 0, %v734
      %v736 = vrot.slane %v662, %v735
      %v737 = vlaneseq
      %v738 = vshrl.u32 %v737, 7
      %v739 = vsub.s32 0, %v738
      %v740 = vrot.slane %v663, %v739
      %v741 = vlaneseq
      %v742 = vshrl.u32 %v741, 7
      %v743 = vsub.s32 0, %v742
      %v744 = vrot.slane %v664, %v743
      %v745 = vlaneseq
      %v746 = vshrl.u32 %v745, 7
      %v747 = vsub.s32 0, %v746
      %v748 = vrot.slane %v665, %v747
      %v749 = vmul.f32 %v716, %v720
      %v750 = vmul.f32 %v715, %v724
      %v751 = vmul.f32 %v714, %v728
      %v752 = vmul.f32 %v713, %v732
      %v753 = vmul.f32 %v712, %v736
      %v754 = vmul.f32 %v711, %v740
      %v755 = vmul.f32 %v710, %v744
      %v756 = vmul.f32 %v709, %v748
      %757 = vrot.lane.b32.xlu0 %v674, 32
      %v758 = vpop.permute.xlu0 %757
      %759 = vrot.lane.b32.xlu0 %v682, 32
      %v760 = vpop.permute.xlu0 %759
      %761 = vrot.lane.b32.xlu0 %v675, 32
      %v762 = vpop.permute.xlu0 %761
      %763 = vrot.lane.b32.xlu0 %v683, 32
      %v764 = vpop.permute.xlu0 %763
      %765 = vrot.lane.b32.xlu0 %v676, 32
      %v766 = vpop.permute.xlu0 %765
      %767 = vrot.lane.b32.xlu0 %v684, 32
      %v768 = vpop.permute.xlu0 %767
      %769 = vrot.lane.b32.xlu0 %v677, 32
      %v770 = vpop.permute.xlu0 %769
      %771 = vrot.lane.b32.xlu0 %v685, 32
      %v772 = vpop.permute.xlu0 %771
      %vm773 = vcmp.lt.s32.totalorder %v707, 32
      %v774 = vsel %vm773, %v770, %v772
      %v775 = vsel %vm773, %v768, %v770
      %v776 = vsel %vm773, %v766, %v768
      %v777 = vsel %vm773, %v764, %v766
      %v778 = vsel %vm773, %v762, %v764
      %v779 = vsel %vm773, %v760, %v762
      %v780 = vsel %vm773, %v758, %v760
      %v781 = vsel %vm773, %v772, %v758
      %v782 = vlaneseq
      %v783 = vshrl.u32 %v782, 7
      %v784 = vsub.s32 1, %v783
      %v785 = vrot.slane %v658, %v784
      %v786 = vlaneseq
      %v787 = vshrl.u32 %v786, 7
      %v788 = vsub.s32 1, %v787
      %v789 = vrot.slane %v659, %v788
      %v790 = vlaneseq
      %v791 = vshrl.u32 %v790, 7
      %v792 = vsub.s32 1, %v791
      %v793 = vrot.slane %v660, %v792
      %v794 = vlaneseq
      %v795 = vshrl.u32 %v794, 7
      %v796 = vsub.s32 1, %v795
      %v797 = vrot.slane %v661, %v796
      %v798 = vlaneseq
      %v799 = vshrl.u32 %v798, 7
      %v800 = vsub.s32 1, %v799
      %v801 = vrot.slane %v662, %v800
      %v802 = vlaneseq
      %v803 = vshrl.u32 %v802, 7
      %v804 = vsub.s32 1, %v803
      %v805 = vrot.slane %v663, %v804
      %v806 = vlaneseq
      %v807 = vshrl.u32 %v806, 7
      %v808 = vsub.s32 1, %v807
      %v809 = vrot.slane %v664, %v808
      %v810 = vlaneseq
      %v811 = vshrl.u32 %v810, 7
      %v812 = vsub.s32 1, %v811
      %v813 = vrot.slane %v665, %v812
      %v814 = vmul.f32 %v781, %v785
      %v815 = vmul.f32 %v780, %v789
      %v816 = vmul.f32 %v779, %v793
      %v817 = vmul.f32 %v778, %v797
      %v818 = vmul.f32 %v777, %v801
      %v819 = vmul.f32 %v776, %v805
      %v820 = vmul.f32 %v775, %v809
      %v821 = vmul.f32 %v774, %v813
      %822 = vrot.lane.b32.xlu0 %v674, 31
      %v823 = vpop.permute.xlu0 %822
      %824 = vrot.lane.b32.xlu0 %v682, 31
      %v825 = vpop.permute.xlu0 %824
      %826 = vrot.lane.b32.xlu0 %v675, 31
      %v827 = vpop.permute.xlu0 %826
      %828 = vrot.lane.b32.xlu0 %v683, 31
      %v829 = vpop.permute.xlu0 %828
      %830 = vrot.lane.b32.xlu0 %v676, 31
      %v831 = vpop.permute.xlu0 %830
      %832 = vrot.lane.b32.xlu0 %v684, 31
      %v833 = vpop.permute.xlu0 %832
      %834 = vrot.lane.b32.xlu0 %v677, 31
      %v835 = vpop.permute.xlu0 %834
      %836 = vrot.lane.b32.xlu0 %v685, 31
      %v837 = vpop.permute.xlu0 %836
      %vm838 = vcmp.lt.s32.totalorder %v707, 31
      %v839 = vsel %vm838, %v835, %v837
      %v840 = vsel %vm838, %v833, %v835
      %v841 = vsel %vm838, %v831, %v833
      %v842 = vsel %vm838, %v829, %v831
      %v843 = vsel %vm838, %v827, %v829
      %v844 = vsel %vm838, %v825, %v827
      %v845 = vsel %vm838, %v823, %v825
      %v846 = vsel %vm838, %v837, %v823
      %v847 = vlaneseq
      %v848 = vshrl.u32 %v847, 7
      %v849 = vsub.s32 2, %v848
      %v850 = vrot.slane %v658, %v849
      %v851 = vlaneseq
      %v852 = vshrl.u32 %v851, 7
      %v853 = vsub.s32 2, %v852
      %v854 = vrot.slane %v659, %v853
      %v855 = vlaneseq
      %v856 = vshrl.u32 %v855, 7
      %v857 = vsub.s32 2, %v856
      %v858 = vrot.slane %v660, %v857
      %v859 = vlaneseq
      %v860 = vshrl.u32 %v859, 7
      %v861 = vsub.s32 2, %v860
      %v862 = vrot.slane %v661, %v861
      %v863 = vlaneseq
      %v864 = vshrl.u32 %v863, 7
      %v865 = vsub.s32 2, %v864
      %v866 = vrot.slane %v662, %v865
      %v867 = vlaneseq
      %v868 = vshrl.u32 %v867, 7
      %v869 = vsub.s32 2, %v868
      %v870 = vrot.slane %v663, %v869
      %v871 = vlaneseq
      %v872 = vshrl.u32 %v871, 7
      %v873 = vsub.s32 2, %v872
      %v874 = vrot.slane %v664, %v873
      %v875 = vlaneseq
      %v876 = vshrl.u32 %v875, 7
      %v877 = vsub.s32 2, %v876
      %v878 = vrot.slane %v665, %v877
      %v879 = vmul.f32 %v846, %v850
      %v880 = vmul.f32 %v845, %v854
      %v881 = vmul.f32 %v844, %v858
      %v882 = vmul.f32 %v843, %v862
      %v883 = vmul.f32 %v842, %v866
      %v884 = vmul.f32 %v841, %v870
      %v885 = vmul.f32 %v840, %v874
      %v886 = vmul.f32 %v839, %v878
      %887 = vrot.lane.b32.xlu0 %v674, 1
      %v888 = vpop.permute.xlu0 %887
      %889 = vrot.lane.b32.xlu0 %v682, 1
      %v890 = vpop.permute.xlu0 %889
      %891 = vrot.lane.b32.xlu0 %v675, 1
      %v892 = vpop.permute.xlu0 %891
      %893 = vrot.lane.b32.xlu0 %v683, 1
      %v894 = vpop.permute.xlu0 %893
      %895 = vrot.lane.b32.xlu0 %v676, 1
      %v896 = vpop.permute.xlu0 %895
      %897 = vrot.lane.b32.xlu0 %v684, 1
      %v898 = vpop.permute.xlu0 %897
      %899 = vrot.lane.b32.xlu0 %v677, 1
      %v900 = vpop.permute.xlu0 %899
      %901 = vrot.lane.b32.xlu0 %v685, 1
      %v902 = vpop.permute.xlu0 %901
      %vm903 = vcmp.lt.s32.totalorder %v707, 1
      %v904 = vsel %vm903, %v900, %v902
      %v905 = vsel %vm903, %v898, %v900
      %v906 = vsel %vm903, %v896, %v898
      %v907 = vsel %vm903, %v894, %v896
      %v908 = vsel %vm903, %v892, %v894
      %v909 = vsel %vm903, %v890, %v892
      %v910 = vsel %vm903, %v888, %v890
      %v911 = vsel %vm903, %v902, %v888
      %v912 = vlaneseq
      %v913 = vshrl.u32 %v912, 7
      %v914 = vsub.s32 3, %v913
      %v915 = vrot.slane %v658, %v914
      %v916 = vlaneseq
      %v917 = vshrl.u32 %v916, 7
      %v918 = vsub.s32 3, %v917
      %v919 = vrot.slane %v659, %v918
      %v920 = vlaneseq
      %v921 = vshrl.u32 %v920, 7
      %v922 = vsub.s32 3, %v921
      %v923 = vrot.slane %v660, %v922
      %v924 = vlaneseq
      %v925 = vshrl.u32 %v924, 7
      %v926 = vsub.s32 3, %v925
      %v927 = vrot.slane %v661, %v926
      %v928 = vlaneseq
      %v929 = vshrl.u32 %v928, 7
      %v930 = vsub.s32 3, %v929
      %v931 = vrot.slane %v662, %v930
      %v932 = vlaneseq
      %v933 = vshrl.u32 %v932, 7
      %v934 = vsub.s32 3, %v933
      %v935 = vrot.slane %v663, %v934
      %v936 = vlaneseq
      %v937 = vshrl.u32 %v936, 7
      %v938 = vsub.s32 3, %v937
      %v939 = vrot.slane %v664, %v938
      %v940 = vlaneseq
      %v941 = vshrl.u32 %v940, 7
      %v942 = vsub.s32 3, %v941
      %v943 = vrot.slane %v665, %v942
      %v944 = vmul.f32 %v911, %v915
      %v945 = vmul.f32 %v910, %v919
      %v946 = vmul.f32 %v909, %v923
      %v947 = vmul.f32 %v908, %v927
      %v948 = vmul.f32 %v907, %v931
      %v949 = vmul.f32 %v906, %v935
      %v950 = vmul.f32 %v905, %v939
      %v951 = vmul.f32 %v904, %v943
      %952 = vrot.lane.b32.xlu0 %v674, 127
      %v953 = vpop.permute.xlu0 %952
      %954 = vrot.lane.b32.xlu0 %v682, 127
      %v955 = vpop.permute.xlu0 %954
      %956 = vrot.lane.b32.xlu0 %v675, 127
      %v957 = vpop.permute.xlu0 %956
      %958 = vrot.lane.b32.xlu0 %v683, 127
      %v959 = vpop.permute.xlu0 %958
      %960 = vrot.lane.b32.xlu0 %v676, 127
      %v961 = vpop.permute.xlu0 %960
      %962 = vrot.lane.b32.xlu0 %v684, 127
      %v963 = vpop.permute.xlu0 %962
      %964 = vrot.lane.b32.xlu0 %v677, 127
      %v965 = vpop.permute.xlu0 %964
      %966 = vrot.lane.b32.xlu0 %v685, 127
      %v967 = vpop.permute.xlu0 %966
      %vm968 = vcmp.lt.s32.totalorder %v707, 127
      %v969 = vsel %vm968, %v965, %v967
      %v970 = vsel %vm968, %v963, %v965
      %v971 = vsel %vm968, %v961, %v963
      %v972 = vsel %vm968, %v959, %v961
      %v973 = vsel %vm968, %v957, %v959
      %v974 = vsel %vm968, %v955, %v957
      %v975 = vsel %vm968, %v953, %v955
      %v976 = vsel %vm968, %v967, %v953
      %v977 = vlaneseq
      %v978 = vshrl.u32 %v977, 7
      %v979 = vsub.s32 5, %v978
      %v980 = vrot.slane %v658, %v979
      %v981 = vlaneseq
      %v982 = vshrl.u32 %v981, 7
      %v983 = vsub.s32 5, %v982
      %v984 = vrot.slane %v659, %v983
      %v985 = vlaneseq
      %v986 = vshrl.u32 %v985, 7
      %v987 = vsub.s32 5, %v986
      %v988 = vrot.slane %v660, %v987
      %v989 = vlaneseq
      %v990 = vshrl.u32 %v989, 7
      %v991 = vsub.s32 5, %v990
      %v992 = vrot.slane %v661, %v991
      %v993 = vlaneseq
      %v994 = vshrl.u32 %v993, 7
      %v995 = vsub.s32 5, %v994
      %v996 = vrot.slane %v662, %v995
      %v997 = vlaneseq
      %v998 = vshrl.u32 %v997, 7
      %v999 = vsub.s32 5, %v998
      %v1000 = vrot.slane %v663, %v999
      %v1001 = vlaneseq
      %v1002 = vshrl.u32 %v1001, 7
      %v1003 = vsub.s32 5, %v1002
      %v1004 = vrot.slane %v664, %v1003
      %v1005 = vlaneseq
      %v1006 = vshrl.u32 %v1005, 7
      %v1007 = vsub.s32 5, %v1006
      %v1008 = vrot.slane %v665, %v1007
      %v1009 = vmul.f32 %v975, %v980
      %v1010 = vmul.f32 %v974, %v984
      %v1011 = vmul.f32 %v973, %v988
      %v1012 = vmul.f32 %v972, %v992
      %v1013 = vmul.f32 %v971, %v996
      %v1014 = vmul.f32 %v970, %v1000
      %v1015 = vmul.f32 %v969, %v1004
      %v1016 = vmul.f32 %v976, %v1008
      %1017 = vrot.lane.b32.xlu0 %v674, 97
      %v1018 = vpop.permute.xlu0 %1017
      %1019 = vrot.lane.b32.xlu0 %v682, 97
      %v1020 = vpop.permute.xlu0 %1019
      %1021 = vrot.lane.b32.xlu0 %v675, 97
      %v1022 = vpop.permute.xlu0 %1021
      %1023 = vrot.lane.b32.xlu0 %v683, 97
      %v1024 = vpop.permute.xlu0 %1023
      %1025 = vrot.lane.b32.xlu0 %v676, 97
      %v1026 = vpop.permute.xlu0 %1025
      %1027 = vrot.lane.b32.xlu0 %v684, 97
      %v1028 = vpop.permute.xlu0 %1027
      %1029 = vrot.lane.b32.xlu0 %v677, 97
      %v1030 = vpop.permute.xlu0 %1029
      %1031 = vrot.lane.b32.xlu0 %v685, 97
      %v1032 = vpop.permute.xlu0 %1031
      %vm1033 = vcmp.lt.s32.totalorder %v707, 97
      %v1034 = vsel %vm1033, %v1030, %v1032
      %v1035 = vsel %vm1033, %v1028, %v1030
      %v1036 = vsel %vm1033, %v1026, %v1028
      %v1037 = vsel %vm1033, %v1024, %v1026
      %v1038 = vsel %vm1033, %v1022, %v1024
      %v1039 = vsel %vm1033, %v1020, %v1022
      %v1040 = vsel %vm1033, %v1018, %v1020
      %v1041 = vsel %vm1033, %v1032, %v1018
      %v1042 = vlaneseq
      %v1043 = vshrl.u32 %v1042, 7
      %v1044 = vsub.s32 6, %v1043
      %v1045 = vrot.slane %v658, %v1044
      %v1046 = vlaneseq
      %v1047 = vshrl.u32 %v1046, 7
      %v1048 = vsub.s32 6, %v1047
      %v1049 = vrot.slane %v659, %v1048
      %v1050 = vlaneseq
      %v1051 = vshrl.u32 %v1050, 7
      %v1052 = vsub.s32 6, %v1051
      %v1053 = vrot.slane %v660, %v1052
      %v1054 = vlaneseq
      %v1055 = vshrl.u32 %v1054, 7
      %v1056 = vsub.s32 6, %v1055
      %v1057 = vrot.slane %v661, %v1056
      %v1058 = vlaneseq
      %v1059 = vshrl.u32 %v1058, 7
      %v1060 = vsub.s32 6, %v1059
      %v1061 = vrot.slane %v662, %v1060
      %v1062 = vlaneseq
      %v1063 = vshrl.u32 %v1062, 7
      %v1064 = vsub.s32 6, %v1063
      %v1065 = vrot.slane %v663, %v1064
      %v1066 = vlaneseq
      %v1067 = vshrl.u32 %v1066, 7
      %v1068 = vsub.s32 6, %v1067
      %v1069 = vrot.slane %v664, %v1068
      %v1070 = vlaneseq
      %v1071 = vshrl.u32 %v1070, 7
      %v1072 = vsub.s32 6, %v1071
      %v1073 = vrot.slane %v665, %v1072
      %v1074 = vmul.f32 %v1040, %v1045
      %v1075 = vmul.f32 %v1039, %v1049
      %v1076 = vmul.f32 %v1038, %v1053
      %v1077 = vmul.f32 %v1037, %v1057
      %v1078 = vmul.f32 %v1036, %v1061
      %v1079 = vmul.f32 %v1035, %v1065
      %v1080 = vmul.f32 %v1034, %v1069
      %v1081 = vmul.f32 %v1041, %v1073
      %1082 = vrot.lane.b32.xlu0 %v674, 96
      %v1083 = vpop.permute.xlu0 %1082
      %1084 = vrot.lane.b32.xlu0 %v682, 96
      %v1085 = vpop.permute.xlu0 %1084
      %1086 = vrot.lane.b32.xlu0 %v675, 96
      %v1087 = vpop.permute.xlu0 %1086
      %1088 = vrot.lane.b32.xlu0 %v683, 96
      %v1089 = vpop.permute.xlu0 %1088
      %1090 = vrot.lane.b32.xlu0 %v676, 96
      %v1091 = vpop.permute.xlu0 %1090
      %1092 = vrot.lane.b32.xlu0 %v684, 96
      %v1093 = vpop.permute.xlu0 %1092
      %1094 = vrot.lane.b32.xlu0 %v677, 96
      %v1095 = vpop.permute.xlu0 %1094
      %1096 = vrot.lane.b32.xlu0 %v685, 96
      %v1097 = vpop.permute.xlu0 %1096
      %vm1098 = vcmp.lt.s32.totalorder %v707, 96
      %v1099 = vsel %vm1098, %v1095, %v1097
      %v1100 = vsel %vm1098, %v1093, %v1095
      %v1101 = vsel %vm1098, %v1091, %v1093
      %v1102 = vsel %vm1098, %v1089, %v1091
      %v1103 = vsel %vm1098, %v1087, %v1089
      %v1104 = vsel %vm1098, %v1085, %v1087
      %v1105 = vsel %vm1098, %v1083, %v1085
      %v1106 = vsel %vm1098, %v1097, %v1083
      %v1107 = vlaneseq
      %v1108 = vshrl.u32 %v1107, 7
      %v1109 = vsub.s32 7, %v1108
      %v1110 = vrot.slane %v658, %v1109
      %v1111 = vlaneseq
      %v1112 = vshrl.u32 %v1111, 7
      %v1113 = vsub.s32 7, %v1112
      %v1114 = vrot.slane %v659, %v1113
      %v1115 = vlaneseq
      %v1116 = vshrl.u32 %v1115, 7
      %v1117 = vsub.s32 7, %v1116
      %v1118 = vrot.slane %v660, %v1117
      %v1119 = vlaneseq
      %v1120 = vshrl.u32 %v1119, 7
      %v1121 = vsub.s32 7, %v1120
      %v1122 = vrot.slane %v661, %v1121
      %v1123 = vlaneseq
      %v1124 = vshrl.u32 %v1123, 7
      %v1125 = vsub.s32 7, %v1124
      %v1126 = vrot.slane %v662, %v1125
      %v1127 = vlaneseq
      %v1128 = vshrl.u32 %v1127, 7
      %v1129 = vsub.s32 7, %v1128
      %v1130 = vrot.slane %v663, %v1129
      %v1131 = vlaneseq
      %v1132 = vshrl.u32 %v1131, 7
      %v1133 = vsub.s32 7, %v1132
      %v1134 = vrot.slane %v664, %v1133
      %v1135 = vlaneseq
      %v1136 = vshrl.u32 %v1135, 7
      %v1137 = vsub.s32 7, %v1136
      %v1138 = vrot.slane %v665, %v1137
      %v1139 = vmul.f32 %v1105, %v1110
      %v1140 = vmul.f32 %v1104, %v1114
      %v1141 = vmul.f32 %v1103, %v1118
      %v1142 = vmul.f32 %v1102, %v1122
      %v1143 = vmul.f32 %v1101, %v1126
      %v1144 = vmul.f32 %v1100, %v1130
      %v1145 = vmul.f32 %v1099, %v1134
      %v1146 = vmul.f32 %v1106, %v1138
      %1147 = vrot.lane.b32.xlu0 %v674, 95
      %v1148 = vpop.permute.xlu0 %1147
      %1149 = vrot.lane.b32.xlu0 %v682, 95
      %v1150 = vpop.permute.xlu0 %1149
      %1151 = vrot.lane.b32.xlu0 %v675, 95
      %v1152 = vpop.permute.xlu0 %1151
      %1153 = vrot.lane.b32.xlu0 %v683, 95
      %v1154 = vpop.permute.xlu0 %1153
      %1155 = vrot.lane.b32.xlu0 %v676, 95
      %v1156 = vpop.permute.xlu0 %1155
      %1157 = vrot.lane.b32.xlu0 %v684, 95
      %v1158 = vpop.permute.xlu0 %1157
      %1159 = vrot.lane.b32.xlu0 %v677, 95
      %v1160 = vpop.permute.xlu0 %1159
      %1161 = vrot.lane.b32.xlu0 %v685, 95
      %v1162 = vpop.permute.xlu0 %1161
      %vm1163 = vcmp.lt.s32.totalorder %v707, 95
      %v1164 = vsel %vm1163, %v1160, %v1162
      %v1165 = vsel %vm1163, %v1158, %v1160
      %v1166 = vsel %vm1163, %v1156, %v1158
      %v1167 = vsel %vm1163, %v1154, %v1156
      %v1168 = vsel %vm1163, %v1152, %v1154
      %v1169 = vsel %vm1163, %v1150, %v1152
      %v1170 = vsel %vm1163, %v1148, %v1150
      %v1171 = vsel %vm1163, %v1162, %v1148
      %v1172 = vlaneseq
      %v1173 = vshrl.u32 %v1172, 7
      %v1174 = vsub.s32 0, %v1173
      %v1175 = vrot.slane %v666, %v1174
      %v1176 = vlaneseq
      %v1177 = vshrl.u32 %v1176, 7
      %v1178 = vsub.s32 0, %v1177
      %v1179 = vrot.slane %v667, %v1178
      %v1180 = vlaneseq
      %v1181 = vshrl.u32 %v1180, 7
      %v1182 = vsub.s32 0, %v1181
      %v1183 = vrot.slane %v668, %v1182
      %v1184 = vlaneseq
      %v1185 = vshrl.u32 %v1184, 7
      %v1186 = vsub.s32 0, %v1185
      %v1187 = vrot.slane %v669, %v1186
      %v1188 = vlaneseq
      %v1189 = vshrl.u32 %v1188, 7
      %v1190 = vsub.s32 0, %v1189
      %v1191 = vrot.slane %v670, %v1190
      %v1192 = vlaneseq
      %v1193 = vshrl.u32 %v1192, 7
      %v1194 = vsub.s32 0, %v1193
      %v1195 = vrot.slane %v671, %v1194
      %v1196 = vlaneseq
      %v1197 = vshrl.u32 %v1196, 7
      %v1198 = vsub.s32 0, %v1197
      %v1199 = vrot.slane %v672, %v1198
      %v1200 = vlaneseq
      %v1201 = vshrl.u32 %v1200, 7
      %v1202 = vsub.s32 0, %v1201
      %v1203 = vrot.slane %v673, %v1202
      %v1204 = vmul.f32 %v1170, %v1175
      %v1205 = vmul.f32 %v1169, %v1179
      %v1206 = vmul.f32 %v1168, %v1183
      %v1207 = vmul.f32 %v1167, %v1187
      %v1208 = vmul.f32 %v1166, %v1191
      %v1209 = vmul.f32 %v1165, %v1195
      %v1210 = vmul.f32 %v1164, %v1199
      %v1211 = vmul.f32 %v1171, %v1203
      %v1220 = vrot.slane %v814, 4
      %v1221 = vrot.slane %v815, 4
      %v1222 = vrot.slane %v816, 4
      %v1223 = vrot.slane %v817, 4
      %v1224 = vrot.slane %v818, 4
      %v1225 = vrot.slane %v819, 4
      %v1226 = vrot.slane %v820, 4
      %v1227 = vrot.slane %v821, 4
      %v1244 = vrot.slane %v944, 4
      %v1245 = vrot.slane %v945, 4
      %v1246 = vrot.slane %v946, 4
      %v1247 = vrot.slane %v947, 4
      %v1248 = vrot.slane %v948, 4
      %v1249 = vrot.slane %v949, 4
      %v1250 = vrot.slane %v950, 4
      %v1251 = vrot.slane %v951, 4
      %v1268 = vrot.slane %v1009, 4
      %v1269 = vrot.slane %v1010, 4
      %v1270 = vrot.slane %v1011, 4
      %v1271 = vrot.slane %v1012, 4
      %v1272 = vrot.slane %v1013, 4
      %v1273 = vrot.slane %v1014, 4
      %v1274 = vrot.slane %v1015, 4
      %v1275 = vrot.slane %v1016, 4
      %v1292 = vrot.slane %v1139, 4
      %v1293 = vrot.slane %v1140, 4
      %v1294 = vrot.slane %v1141, 4
      %v1295 = vrot.slane %v1142, 4
      %v1296 = vrot.slane %v1143, 4
      %v1297 = vrot.slane %v1144, 4
      %v1298 = vrot.slane %v1145, 4
      %v1299 = vrot.slane %v1146, 4
      %vm1308 = vcmask 1043456
      %v1309 = vsel %vm1308, %v749, %v1220
      %v1310 = vsel %vm1308, %v750, %v1221
      %v1311 = vsel %vm1308, %v751, %v1222
      %v1312 = vsel %vm1308, %v752, %v1223
      %v1313 = vsel %vm1308, %v753, %v1224
      %v1314 = vsel %vm1308, %v754, %v1225
      %v1315 = vsel %vm1308, %v755, %v1226
      %v1316 = vsel %vm1308, %v756, %v1227
      %v1317 = vsel %vm1308, %v879, %v1244
      %v1318 = vsel %vm1308, %v880, %v1245
      %v1319 = vsel %vm1308, %v881, %v1246
      %v1320 = vsel %vm1308, %v882, %v1247
      %v1321 = vsel %vm1308, %v883, %v1248
      %v1322 = vsel %vm1308, %v884, %v1249
      %v1323 = vsel %vm1308, %v885, %v1250
      %v1324 = vsel %vm1308, %v886, %v1251
      %v1325 = vsel %vm1308, %v674, %v1268
      %v1326 = vsel %vm1308, %v682, %v1269
      %v1327 = vsel %vm1308, %v675, %v1270
      %v1328 = vsel %vm1308, %v683, %v1271
      %v1329 = vsel %vm1308, %v676, %v1272
      %v1330 = vsel %vm1308, %v684, %v1273
      %v1331 = vsel %vm1308, %v677, %v1274
      %v1332 = vsel %vm1308, %v685, %v1275
      %v1333 = vsel %vm1308, %v1074, %v1292
      %v1334 = vsel %vm1308, %v1075, %v1293
      %v1335 = vsel %vm1308, %v1076, %v1294
      %v1336 = vsel %vm1308, %v1077, %v1295
      %v1337 = vsel %vm1308, %v1078, %v1296
      %v1338 = vsel %vm1308, %v1079, %v1297
      %v1339 = vsel %vm1308, %v1080, %v1298
      %v1340 = vsel %vm1308, %v1081, %v1299
      %v1341 = vpack.c.bf16 %v1317, %v1309
      %v1342 = vpack.c.bf16 %v1318, %v1310
      %v1343 = vpack.c.bf16 %v1319, %v1311
      %v1344 = vpack.c.bf16 %v1320, %v1312
      %v1345 = vpack.c.bf16 %v1321, %v1313
      %v1346 = vpack.c.bf16 %v1322, %v1314
      %v1347 = vpack.c.bf16 %v1323, %v1315
      %v1348 = vpack.c.bf16 %v1324, %v1316
      %v1349 = vpack.c.bf16 %v1333, %v1325
      %v1350 = vpack.c.bf16 %v1334, %v1326
      %v1351 = vpack.c.bf16 %v1335, %v1327
      %v1352 = vpack.c.bf16 %v1336, %v1328
      %v1353 = vpack.c.bf16 %v1337, %v1329
      %v1354 = vpack.c.bf16 %v1338, %v1330
      %v1355 = vpack.c.bf16 %v1339, %v1331
      %v1356 = vpack.c.bf16 %v1340, %v1332
      %v1357 = vpack.c.bf16 %v1204, %v1204
      %v1358 = vpack.c.bf16 %v1205, %v1205
      %v1359 = vpack.c.bf16 %v1206, %v1206
      %v1360 = vpack.c.bf16 %v1207, %v1207
      %v1361 = vpack.c.bf16 %v1208, %v1208
      %v1362 = vpack.c.bf16 %v1209, %v1209
      %v1363 = vpack.c.bf16 %v1210, %v1210
      %v1364 = vpack.c.bf16 %v1211, %v1211
      %v1365 = vld [vmem:[%s5] sm:$0xf]
      %v1366 = vld [vmem:[%s5 + $0x4] sm:$0xf]
      %v1367 = vld [vmem:[%s5 + $0x8] sm:$0x3]
      %v1368 = vld [vmem:[%s6] sm:$0xff]
      %v1369 = vld [vmem:[%s6 + $0x8] sm:$0xff]
      %v1370 = vld [vmem:[%s6 + $0x10] sm:$0xf]
      %1372 = vset.pattern.permute.xlu0 0
      %1373 = vperm.xlu0 %1372, %v1368
      %v1374 = vpop.permute.xlu0 %1373
      %1377 = vset.pattern.permute.xlu0 0
      %1378 = vperm.xlu0 %1377, %v1369
      %v1379 = vpop.permute.xlu0 %1378
      %1382 = vset.pattern.permute.xlu0 0
      %1383 = vperm.xlu0 %1382, %v1370
      %v1384 = vpop.permute.xlu0 %1383
      %v1389 = vunpack.c.l.b16 %v1365
      %v1390 = vunpack.c.l.b16 %v1366
      %v1391 = vunpack.c.l.b16 %v1367
      %v1392 = vpack.c.b16 %v1390, %v1389
      %v1393 = vpack.c.b16 %v1391, %v1391
      %vm1394 = vcmask 293888
      %v1396 = vsel %vm1394, %v1392, 0
      %v1399 = vsel %vm1394, %v1393, 0
      %vm1401 = vcmask 1041408
      %v1403 = vsel %vm1401, %v1357, 0
      %v1406 = vsel %vm1401, %v1358, 0
      %v1409 = vsel %vm1401, %v1359, 0
      %v1412 = vsel %vm1401, %v1360, 0
      %v1415 = vsel %vm1401, %v1361, 0
      %v1418 = vsel %vm1401, %v1362, 0
      %v1421 = vsel %vm1401, %v1363, 0
      %v1424 = vsel %vm1401, %v1364, 0
      %1426 = vmatprep.subr.bf16.mxu0 0
      %1427 = vmatpush1.bf16.msra.mxu0 0
      %1428 = vmatprep.subr.bf16.mxu0 0
      %1429 = vmatpush1.bf16.msra.mxu0 0
      %1430 = vmatprep.subr.bf16.mxu0 0
      %1431 = vmatpush1.bf16.msra.mxu0 0
      %1432 = vmatprep.subr.bf16.mxu0 0
      %1433 = vmatpush1.bf16.msra.mxu0 0
      %1434 = vmatprep.subr.bf16.mxu0 0
      %1435 = vmatpush1.bf16.msra.mxu0 0
      %1436 = vmatprep.subr.bf16.mxu0 %v1406
      %1437 = vmatpush1.bf16.msra.mxu0 %v1403
      %1438 = vmatprep.subr.bf16.mxu0 %v1350
      %1439 = vmatpush1.bf16.msra.mxu0 %v1349
      %1440 = vmatprep.subr.bf16.mxu0 %v1342
      %1441 = vmatpush1.bf16.msra.mxu0 %v1341
      %1442 = vmatprep.subr.bf16.mxu0 0
      %1443 = vmatpush2.bf16.msra.mxu0 0
      %1444 = vmatprep.subr.bf16.mxu0 0
      %1445 = vmatpush2.bf16.msra.mxu0 0
      %1446 = vmatprep.subr.bf16.mxu0 0
      %1447 = vmatpush2.bf16.msra.mxu0 0
      %1448 = vmatprep.subr.bf16.mxu0 0
      %1449 = vmatpush2.bf16.msra.mxu0 0
      %1450 = vmatprep.subr.bf16.mxu0 0
      %1451 = vmatpush2.bf16.msra.mxu0 0
      %1452 = vmatprep.subr.bf16.mxu0 0
      %1453 = vmatpush2.bf16.msra.mxu0 0
      %1454 = vmatprep.subr.bf16.mxu0 0
      %1455 = vmatpush2.bf16.msra.mxu0 0
      %1456 = vmatprep.subr.bf16.mxu0 0
      %1457 = vmatpush2.bf16.msra.mxu0 0
      %1458 = vmatprep.mubr.bf16.mxu0 0
      %1459 = vmatmul.mubr.bf16.gmra.mxu0 %v1396
      %v1460 = vpop.f32.mrf.mxu0
      %v1461 = vadd.f32 %v1374, %v1460
      %v1462 = vpop.f32.mrf.mxu0
      %v1463 = vadd.f32 %v1374, %v1462
      %v1464 = vpop.f32.mrf.mxu0
      %v1465 = vadd.f32 %v1379, %v1464
      %v1466 = vpop.f32.mrf.mxu0
      %v1467 = vadd.f32 %v1379, %v1466
      %1468 = vmatprep.mubr.bf16.mxu0 0
      %1469 = vmatmul.mubr.bf16.gmra.mxu0 %v1399
      %v1470 = vpop.f32.mrf.mxu0
      %v1471 = vadd.f32 %v1384, %v1470
      %v1472 = vpop.f32.mrf.mxu0
      %v1473 = vadd.f32 %v1384, %v1472
      %v1474 = vpop.f32.mrf.mxu0
      %v1475 = vpop.f32.mrf.mxu0
      %1476 = vdwg.mxu0
      %1477 = vmatprep.subr.bf16.mxu0 0
      %1478 = vmatpush1.bf16.msra.mxu0 0
      %1479 = vmatprep.subr.bf16.mxu0 0
      %1480 = vmatpush1.bf16.msra.mxu0 0
      %1481 = vmatprep.subr.bf16.mxu0 0
      %1482 = vmatpush1.bf16.msra.mxu0 0
      %1483 = vmatprep.subr.bf16.mxu0 0
      %1484 = vmatpush1.bf16.msra.mxu0 0
      %1485 = vmatprep.subr.bf16.mxu0 0
      %1486 = vmatpush1.bf16.msra.mxu0 0
      %1487 = vmatprep.subr.bf16.mxu0 %v1412
      %1488 = vmatpush1.bf16.msra.mxu0 %v1409
      %1489 = vmatprep.subr.bf16.mxu0 %v1352
      %1490 = vmatpush1.bf16.msra.mxu0 %v1351
      %1491 = vmatprep.subr.bf16.mxu0 %v1344
      %1492 = vmatpush1.bf16.msra.mxu0 %v1343
      %1493 = vmatprep.subr.bf16.mxu0 0
      %1494 = vmatpush2.bf16.msra.mxu0 0
      %1495 = vmatprep.subr.bf16.mxu0 0
      %1496 = vmatpush2.bf16.msra.mxu0 0
      %1497 = vmatprep.subr.bf16.mxu0 0
      %1498 = vmatpush2.bf16.msra.mxu0 0
      %1499 = vmatprep.subr.bf16.mxu0 0
      %1500 = vmatpush2.bf16.msra.mxu0 0
      %1501 = vmatprep.subr.bf16.mxu0 0
      %1502 = vmatpush2.bf16.msra.mxu0 0
      %1503 = vmatprep.subr.bf16.mxu0 0
      %1504 = vmatpush2.bf16.msra.mxu0 0
      %1505 = vmatprep.subr.bf16.mxu0 0
      %1506 = vmatpush2.bf16.msra.mxu0 0
      %1507 = vmatprep.subr.bf16.mxu0 0
      %1508 = vmatpush2.bf16.msra.mxu0 0
      %1509 = vmatprep.mubr.bf16.mxu0 0
      %1510 = vmatmul.mubr.bf16.gmra.mxu0 %v1396
      %v1511 = vpop.f32.mrf.mxu0
      %v1512 = vadd.f32 %v1374, %v1511
      %v1513 = vpop.f32.mrf.mxu0
      %v1514 = vadd.f32 %v1374, %v1513
      %v1515 = vpop.f32.mrf.mxu0
      %v1516 = vadd.f32 %v1379, %v1515
      %v1517 = vpop.f32.mrf.mxu0
      %v1518 = vadd.f32 %v1379, %v1517
      %1519 = vmatprep.mubr.bf16.mxu0 0
      %1520 = vmatmul.mubr.bf16.gmra.mxu0 %v1399
      %v1521 = vpop.f32.mrf.mxu0
      %v1522 = vadd.f32 %v1384, %v1521
      %v1523 = vpop.f32.mrf.mxu0
      %v1524 = vadd.f32 %v1384, %v1523
      %v1525 = vpop.f32.mrf.mxu0
      %v1526 = vpop.f32.mrf.mxu0
      %1527 = vdwg.mxu0
      %1528 = vmatprep.subr.bf16.mxu0 0
      %1529 = vmatpush1.bf16.msra.mxu0 0
      %1530 = vmatprep.subr.bf16.mxu0 0
      %1531 = vmatpush1.bf16.msra.mxu0 0
      %1532 = vmatprep.subr.bf16.mxu0 0
      %1533 = vmatpush1.bf16.msra.mxu0 0
      %1534 = vmatprep.subr.bf16.mxu0 0
      %1535 = vmatpush1.bf16.msra.mxu0 0
      %1536 = vmatprep.subr.bf16.mxu0 0
      %1537 = vmatpush1.bf16.msra.mxu0 0
      %1538 = vmatprep.subr.bf16.mxu0 %v1418
      %1539 = vmatpush1.bf16.msra.mxu0 %v1415
      %1540 = vmatprep.subr.bf16.mxu0 %v1354
      %1541 = vmatpush1.bf16.msra.mxu0 %v1353
      %1542 = vmatprep.subr.bf16.mxu0 %v1346
      %1543 = vmatpush1.bf16.msra.mxu0 %v1345
      %1544 = vmatprep.subr.bf16.mxu0 0
      %1545 = vmatpush2.bf16.msra.mxu0 0
      %1546 = vmatprep.subr.bf16.mxu0 0
      %1547 = vmatpush2.bf16.msra.mxu0 0
      %1548 = vmatprep.subr.bf16.mxu0 0
      %1549 = vmatpush2.bf16.msra.mxu0 0
      %1550 = vmatprep.subr.bf16.mxu0 0
      %1551 = vmatpush2.bf16.msra.mxu0 0
      %1552 = vmatprep.subr.bf16.mxu0 0
      %1553 = vmatpush2.bf16.msra.mxu0 0
      %1554 = vmatprep.subr.bf16.mxu0 0
      %1555 = vmatpush2.bf16.msra.mxu0 0
      %1556 = vmatprep.subr.bf16.mxu0 0
      %1557 = vmatpush2.bf16.msra.mxu0 0
      %1558 = vmatprep.subr.bf16.mxu0 0
      %1559 = vmatpush2.bf16.msra.mxu0 0
      %1560 = vmatprep.mubr.bf16.mxu0 0
      %1561 = vmatmul.mubr.bf16.gmra.mxu0 %v1396
      %v1562 = vpop.f32.mrf.mxu0
      %v1563 = vadd.f32 %v1374, %v1562
      %v1564 = vpop.f32.mrf.mxu0
      %v1565 = vadd.f32 %v1374, %v1564
      %v1566 = vpop.f32.mrf.mxu0
      %v1567 = vadd.f32 %v1379, %v1566
      %v1568 = vpop.f32.mrf.mxu0
      %v1569 = vadd.f32 %v1379, %v1568
      %1570 = vmatprep.mubr.bf16.mxu0 0
      %1571 = vmatmul.mubr.bf16.gmra.mxu0 %v1399
      %v1572 = vpop.f32.mrf.mxu0
      %v1573 = vadd.f32 %v1384, %v1572
      %v1574 = vpop.f32.mrf.mxu0
      %v1575 = vadd.f32 %v1384, %v1574
      %v1576 = vpop.f32.mrf.mxu0
      %v1577 = vpop.f32.mrf.mxu0
      %1578 = vdwg.mxu0
      %1579 = vmatprep.subr.bf16.mxu0 0
      %1580 = vmatpush1.bf16.msra.mxu0 0
      %1581 = vmatprep.subr.bf16.mxu0 0
      %1582 = vmatpush1.bf16.msra.mxu0 0
      %1583 = vmatprep.subr.bf16.mxu0 0
      %1584 = vmatpush1.bf16.msra.mxu0 0
      %1585 = vmatprep.subr.bf16.mxu0 0
      %1586 = vmatpush1.bf16.msra.mxu0 0
      %1587 = vmatprep.subr.bf16.mxu0 0
      %1588 = vmatpush1.bf16.msra.mxu0 0
      %1589 = vmatprep.subr.bf16.mxu0 %v1424
      %1590 = vmatpush1.bf16.msra.mxu0 %v1421
      %1591 = vmatprep.subr.bf16.mxu0 %v1356
      %1592 = vmatpush1.bf16.msra.mxu0 %v1355
      %1593 = vmatprep.subr.bf16.mxu0 %v1348
      %1594 = vmatpush1.bf16.msra.mxu0 %v1347
      %1595 = vmatprep.subr.bf16.mxu0 0
      %1596 = vmatpush2.bf16.msra.mxu0 0
      %1597 = vmatprep.subr.bf16.mxu0 0
      %1598 = vmatpush2.bf16.msra.mxu0 0
      %1599 = vmatprep.subr.bf16.mxu0 0
      %1600 = vmatpush2.bf16.msra.mxu0 0
      %1601 = vmatprep.subr.bf16.mxu0 0
      %1602 = vmatpush2.bf16.msra.mxu0 0
      %1603 = vmatprep.subr.bf16.mxu0 0
      %1604 = vmatpush2.bf16.msra.mxu0 0
      %1605 = vmatprep.subr.bf16.mxu0 0
      %1606 = vmatpush2.bf16.msra.mxu0 0
      %1607 = vmatprep.subr.bf16.mxu0 0
      %1608 = vmatpush2.bf16.msra.mxu0 0
      %1609 = vmatprep.subr.bf16.mxu0 0
      %1610 = vmatpush2.bf16.msra.mxu0 0
      %1611 = vmatprep.mubr.bf16.mxu0 0
      %1612 = vmatmul.mubr.bf16.gmra.mxu0 %v1396
      %v1613 = vpop.f32.mrf.mxu0
      %v1614 = vadd.f32 %v1374, %v1613
      %v1615 = vpop.f32.mrf.mxu0
      %v1616 = vadd.f32 %v1374, %v1615
      %v1617 = vpop.f32.mrf.mxu0
      %v1618 = vadd.f32 %v1379, %v1617
      %v1619 = vpop.f32.mrf.mxu0
      %v1620 = vadd.f32 %v1379, %v1619
      %1621 = vmatprep.mubr.bf16.mxu0 0
      %1622 = vmatmul.mubr.bf16.gmra.mxu0 %v1399
      %v1623 = vpop.f32.mrf.mxu0
      %v1624 = vadd.f32 %v1384, %v1623
      %v1625 = vpop.f32.mrf.mxu0
      %v1626 = vadd.f32 %v1384, %v1625
      %v1627 = vpop.f32.mrf.mxu0
      %v1628 = vpop.f32.mrf.mxu0
      %1629 = vdwg.mxu0
      %vm1630 = vcmp.gt.f32.partialorder %v1461, 0.0
      %vm1631 = vcmp.gt.f32.partialorder %v1463, 0.0
      %vm1632 = vcmp.gt.f32.partialorder %v1512, 0.0
      %vm1633 = vcmp.gt.f32.partialorder %v1514, 0.0
      %vm1634 = vcmp.gt.f32.partialorder %v1563, 0.0
      %vm1635 = vcmp.gt.f32.partialorder %v1565, 0.0
      %vm1636 = vcmp.gt.f32.partialorder %v1614, 0.0
      %vm1637 = vcmp.gt.f32.partialorder %v1616, 0.0
      %vm1638 = vcmp.gt.f32.partialorder %v1465, 0.0
      %vm1639 = vcmp.gt.f32.partialorder %v1467, 0.0
      %vm1640 = vcmp.gt.f32.partialorder %v1516, 0.0
      %vm1641 = vcmp.gt.f32.partialorder %v1518, 0.0
      %vm1642 = vcmp.gt.f32.partialorder %v1567, 0.0
      %vm1643 = vcmp.gt.f32.partialorder %v1569, 0.0
      %vm1644 = vcmp.gt.f32.partialorder %v1618, 0.0
      %vm1645 = vcmp.gt.f32.partialorder %v1620, 0.0
      %vm1646 = vcmp.gt.f32.partialorder %v1471, 0.0
      %vm1647 = vcmp.gt.f32.partialorder %v1473, 0.0
      %vm1648 = vcmp.gt.f32.partialorder %v1522, 0.0
      %vm1649 = vcmp.gt.f32.partialorder %v1524, 0.0
      %vm1650 = vcmp.gt.f32.partialorder %v1573, 0.0
      %vm1651 = vcmp.gt.f32.partialorder %v1575, 0.0
      %vm1652 = vcmp.gt.f32.partialorder %v1624, 0.0
      %vm1653 = vcmp.gt.f32.partialorder %v1626, 0.0
      %v1654 = vmul.f32 %v1461, 0.2
      %v1655 = vmul.f32 %v1463, 0.2
      %v1656 = vmul.f32 %v1512, 0.2
      %v1657 = vmul.f32 %v1514, 0.2
      %v1658 = vmul.f32 %v1563, 0.2
      %v1659 = vmul.f32 %v1565, 0.2
      %v1660 = vmul.f32 %v1614, 0.2
      %v1661 = vmul.f32 %v1616, 0.2
      %v1662 = vmul.f32 %v1465, 0.2
      %v1663 = vmul.f32 %v1467, 0.2
      %v1664 = vmul.f32 %v1516, 0.2
      %v1665 = vmul.f32 %v1518, 0.2
      %v1666 = vmul.f32 %v1567, 0.2
      %v1667 = vmul.f32 %v1569, 0.2
      %v1668 = vmul.f32 %v1618, 0.2
      %v1669 = vmul.f32 %v1620, 0.2
      %v1670 = vmul.f32 %v1471, 0.2
      %v1671 = vmul.f32 %v1473, 0.2
      %v1672 = vmul.f32 %v1522, 0.2
      %v1673 = vmul.f32 %v1524, 0.2
      %v1674 = vmul.f32 %v1573, 0.2
      %v1675 = vmul.f32 %v1575, 0.2
      %v1676 = vmul.f32 %v1624, 0.2
      %v1677 = vmul.f32 %v1626, 0.2
      %v1678 = vsel %vm1630, %v1461, %v1654
      %v1679 = vsel %vm1631, %v1463, %v1655
      %v1680 = vsel %vm1632, %v1512, %v1656
      %v1681 = vsel %vm1633, %v1514, %v1657
      %v1682 = vsel %vm1634, %v1563, %v1658
      %v1683 = vsel %vm1635, %v1565, %v1659
      %v1684 = vsel %vm1636, %v1614, %v1660
      %v1685 = vsel %vm1637, %v1616, %v1661
      %v1686 = vsel %vm1638, %v1465, %v1662
      %v1687 = vsel %vm1639, %v1467, %v1663
      %v1688 = vsel %vm1640, %v1516, %v1664
      %v1689 = vsel %vm1641, %v1518, %v1665
      %v1690 = vsel %vm1642, %v1567, %v1666
      %v1691 = vsel %vm1643, %v1569, %v1667
      %v1692 = vsel %vm1644, %v1618, %v1668
      %v1693 = vsel %vm1645, %v1620, %v1669
      %v1694 = vsel %vm1646, %v1471, %v1670
      %v1695 = vsel %vm1647, %v1473, %v1671
      %v1696 = vsel %vm1648, %v1522, %v1672
      %v1697 = vsel %vm1649, %v1524, %v1673
      %v1698 = vsel %vm1650, %v1573, %v1674
      %v1699 = vsel %vm1651, %v1575, %v1675
      %v1700 = vsel %vm1652, %v1624, %v1676
      %v1701 = vsel %vm1653, %v1626, %v1677
      %1702 = vrot.lane.b32.xlu0 %v1678, 33
      %v1703 = vpop.permute.xlu0 %1702
      %1704 = vrot.lane.b32.xlu0 %v1686, 33
      %v1705 = vpop.permute.xlu0 %1704
      %1706 = vrot.lane.b32.xlu0 %v1694, 33
      %v1707 = vpop.permute.xlu0 %1706
      %1708 = vrot.lane.b32.xlu0 %v1679, 33
      %v1709 = vpop.permute.xlu0 %1708
      %1710 = vrot.lane.b32.xlu0 %v1687, 33
      %v1711 = vpop.permute.xlu0 %1710
      %1712 = vrot.lane.b32.xlu0 %v1695, 33
      %v1713 = vpop.permute.xlu0 %1712
      %1714 = vrot.lane.b32.xlu0 %v1680, 33
      %v1715 = vpop.permute.xlu0 %1714
      %1716 = vrot.lane.b32.xlu0 %v1688, 33
      %v1717 = vpop.permute.xlu0 %1716
      %1718 = vrot.lane.b32.xlu0 %v1696, 33
      %v1719 = vpop.permute.xlu0 %1718
      %1720 = vrot.lane.b32.xlu0 %v1681, 33
      %v1721 = vpop.permute.xlu0 %1720
      %1722 = vrot.lane.b32.xlu0 %v1689, 33
      %v1723 = vpop.permute.xlu0 %1722
      %1724 = vrot.lane.b32.xlu0 %v1697, 33
      %v1725 = vpop.permute.xlu0 %1724
      %1726 = vrot.lane.b32.xlu0 %v1682, 33
      %v1727 = vpop.permute.xlu0 %1726
      %1728 = vrot.lane.b32.xlu0 %v1690, 33
      %v1729 = vpop.permute.xlu0 %1728
      %1730 = vrot.lane.b32.xlu0 %v1698, 33
      %v1731 = vpop.permute.xlu0 %1730
      %1732 = vrot.lane.b32.xlu0 %v1683, 33
      %v1733 = vpop.permute.xlu0 %1732
      %1734 = vrot.lane.b32.xlu0 %v1691, 33
      %v1735 = vpop.permute.xlu0 %1734
      %1736 = vrot.lane.b32.xlu0 %v1699, 33
      %v1737 = vpop.permute.xlu0 %1736
      %1738 = vrot.lane.b32.xlu0 %v1684, 33
      %v1739 = vpop.permute.xlu0 %1738
      %1740 = vrot.lane.b32.xlu0 %v1692, 33
      %v1741 = vpop.permute.xlu0 %1740
      %1742 = vrot.lane.b32.xlu0 %v1700, 33
      %v1743 = vpop.permute.xlu0 %1742
      %1744 = vrot.lane.b32.xlu0 %v1685, 33
      %v1745 = vpop.permute.xlu0 %1744
      %1746 = vrot.lane.b32.xlu0 %v1693, 33
      %v1747 = vpop.permute.xlu0 %1746
      %1748 = vrot.lane.b32.xlu0 %v1701, 33
      %v1749 = vpop.permute.xlu0 %1748
      %v1750 = vsel %vm708, %v1739, %v1745
      %v1751 = vsel %vm708, %v1741, %v1747
      %v1752 = vsel %vm708, %v1743, %v1749
      %v1753 = vsel %vm708, %v1733, %v1739
      %v1754 = vsel %vm708, %v1735, %v1741
      %v1755 = vsel %vm708, %v1737, %v1743
      %v1756 = vsel %vm708, %v1727, %v1733
      %v1757 = vsel %vm708, %v1729, %v1735
      %v1758 = vsel %vm708, %v1731, %v1737
      %v1759 = vsel %vm708, %v1721, %v1727
      %v1760 = vsel %vm708, %v1723, %v1729
      %v1761 = vsel %vm708, %v1725, %v1731
      %v1762 = vsel %vm708, %v1715, %v1721
      %v1763 = vsel %vm708, %v1717, %v1723
      %v1764 = vsel %vm708, %v1719, %v1725
      %v1765 = vsel %vm708, %v1709, %v1715
      %v1766 = vsel %vm708, %v1711, %v1717
      %v1767 = vsel %vm708, %v1713, %v1719
      %v1768 = vsel %vm708, %v1703, %v1709
      %v1769 = vsel %vm708, %v1705, %v1711
      %v1770 = vsel %vm708, %v1707, %v1713
      %v1771 = vsel %vm708, %v1745, %v1703
      %v1772 = vsel %vm708, %v1747, %v1705
      %v1773 = vsel %vm708, %v1749, %v1707
      %v1774 = vmul.f32 %v1771, %v720
      %v1775 = vmul.f32 %v1768, %v724
      %v1776 = vmul.f32 %v1765, %v728
      %v1777 = vmul.f32 %v1762, %v732
      %v1778 = vmul.f32 %v1759, %v736
      %v1779 = vmul.f32 %v1756, %v740
      %v1780 = vmul.f32 %v1753, %v744
      %v1781 = vmul.f32 %v1750, %v748
      %v1782 = vmul.f32 %v1772, %v720
      %v1783 = vmul.f32 %v1769, %v724
      %v1784 = vmul.f32 %v1766, %v728
      %v1785 = vmul.f32 %v1763, %v732
      %v1786 = vmul.f32 %v1760, %v736
      %v1787 = vmul.f32 %v1757, %v740
      %v1788 = vmul.f32 %v1754, %v744
      %v1789 = vmul.f32 %v1751, %v748
      %v1790 = vmul.f32 %v1773, %v720
      %v1791 = vmul.f32 %v1770, %v724
      %v1792 = vmul.f32 %v1767, %v728
      %v1793 = vmul.f32 %v1764, %v732
      %v1794 = vmul.f32 %v1761, %v736
      %v1795 = vmul.f32 %v1758, %v740
      %v1796 = vmul.f32 %v1755, %v744
      %v1797 = vmul.f32 %v1752, %v748
      %1798 = vrot.lane.b32.xlu0 %v1678, 32
      %v1799 = vpop.permute.xlu0 %1798
      %1800 = vrot.lane.b32.xlu0 %v1686, 32
      %v1801 = vpop.permute.xlu0 %1800
      %1802 = vrot.lane.b32.xlu0 %v1694, 32
      %v1803 = vpop.permute.xlu0 %1802
      %1804 = vrot.lane.b32.xlu0 %v1679, 32
      %v1805 = vpop.permute.xlu0 %1804
      %1806 = vrot.lane.b32.xlu0 %v1687, 32
      %v1807 = vpop.permute.xlu0 %1806
      %1808 = vrot.lane.b32.xlu0 %v1695, 32
      %v1809 = vpop.permute.xlu0 %1808
      %1810 = vrot.lane.b32.xlu0 %v1680, 32
      %v1811 = vpop.permute.xlu0 %1810
      %1812 = vrot.lane.b32.xlu0 %v1688, 32
      %v1813 = vpop.permute.xlu0 %1812
      %1814 = vrot.lane.b32.xlu0 %v1696, 32
      %v1815 = vpop.permute.xlu0 %1814
      %1816 = vrot.lane.b32.xlu0 %v1681, 32
      %v1817 = vpop.permute.xlu0 %1816
      %1818 = vrot.lane.b32.xlu0 %v1689, 32
      %v1819 = vpop.permute.xlu0 %1818
      %1820 = vrot.lane.b32.xlu0 %v1697, 32
      %v1821 = vpop.permute.xlu0 %1820
      %1822 = vrot.lane.b32.xlu0 %v1682, 32
      %v1823 = vpop.permute.xlu0 %1822
      %1824 = vrot.lane.b32.xlu0 %v1690, 32
      %v1825 = vpop.permute.xlu0 %1824
      %1826 = vrot.lane.b32.xlu0 %v1698, 32
      %v1827 = vpop.permute.xlu0 %1826
      %1828 = vrot.lane.b32.xlu0 %v1683, 32
      %v1829 = vpop.permute.xlu0 %1828
      %1830 = vrot.lane.b32.xlu0 %v1691, 32
      %v1831 = vpop.permute.xlu0 %1830
      %1832 = vrot.lane.b32.xlu0 %v1699, 32
      %v1833 = vpop.permute.xlu0 %1832
      %1834 = vrot.lane.b32.xlu0 %v1684, 32
      %v1835 = vpop.permute.xlu0 %1834
      %1836 = vrot.lane.b32.xlu0 %v1692, 32
      %v1837 = vpop.permute.xlu0 %1836
      %1838 = vrot.lane.b32.xlu0 %v1700, 32
      %v1839 = vpop.permute.xlu0 %1838
      %1840 = vrot.lane.b32.xlu0 %v1685, 32
      %v1841 = vpop.permute.xlu0 %1840
      %1842 = vrot.lane.b32.xlu0 %v1693, 32
      %v1843 = vpop.permute.xlu0 %1842
      %1844 = vrot.lane.b32.xlu0 %v1701, 32
      %v1845 = vpop.permute.xlu0 %1844
      %v1846 = vsel %vm773, %v1835, %v1841
      %v1847 = vsel %vm773, %v1837, %v1843
      %v1848 = vsel %vm773, %v1839, %v1845
      %v1849 = vsel %vm773, %v1829, %v1835
      %v1850 = vsel %vm773, %v1831, %v1837
      %v1851 = vsel %vm773, %v1833, %v1839
      %v1852 = vsel %vm773, %v1823, %v1829
      %v1853 = vsel %vm773, %v1825, %v1831
      %v1854 = vsel %vm773, %v1827, %v1833
      %v1855 = vsel %vm773, %v1817, %v1823
      %v1856 = vsel %vm773, %v1819, %v1825
      %v1857 = vsel %vm773, %v1821, %v1827
      %v1858 = vsel %vm773, %v1811, %v1817
      %v1859 = vsel %vm773, %v1813, %v1819
      %v1860 = vsel %vm773, %v1815, %v1821
      %v1861 = vsel %vm773, %v1805, %v1811
      %v1862 = vsel %vm773, %v1807, %v1813
      %v1863 = vsel %vm773, %v1809, %v1815
      %v1864 = vsel %vm773, %v1799, %v1805
      %v1865 = vsel %vm773, %v1801, %v1807
      %v1866 = vsel %vm773, %v1803, %v1809
      %v1867 = vsel %vm773, %v1841, %v1799
      %v1868 = vsel %vm773, %v1843, %v1801
      %v1869 = vsel %vm773, %v1845, %v1803
      %v1870 = vmul.f32 %v1867, %v785
      %v1871 = vmul.f32 %v1864, %v789
      %v1872 = vmul.f32 %v1861, %v793
      %v1873 = vmul.f32 %v1858, %v797
      %v1874 = vmul.f32 %v1855, %v801
      %v1875 = vmul.f32 %v1852, %v805
      %v1876 = vmul.f32 %v1849, %v809
      %v1877 = vmul.f32 %v1846, %v813
      %v1878 = vmul.f32 %v1868, %v785
      %v1879 = vmul.f32 %v1865, %v789
      %v1880 = vmul.f32 %v1862, %v793
      %v1881 = vmul.f32 %v1859, %v797
      %v1882 = vmul.f32 %v1856, %v801
      %v1883 = vmul.f32 %v1853, %v805
      %v1884 = vmul.f32 %v1850, %v809
      %v1885 = vmul.f32 %v1847, %v813
      %v1886 = vmul.f32 %v1869, %v785
      %v1887 = vmul.f32 %v1866, %v789
      %v1888 = vmul.f32 %v1863, %v793
      %v1889 = vmul.f32 %v1860, %v797
      %v1890 = vmul.f32 %v1857, %v801
      %v1891 = vmul.f32 %v1854, %v805
      %v1892 = vmul.f32 %v1851, %v809
      %v1893 = vmul.f32 %v1848, %v813
      %1894 = vrot.lane.b32.xlu0 %v1678, 31
      %v1895 = vpop.permute.xlu0 %1894
      %1896 = vrot.lane.b32.xlu0 %v1686, 31
      %v1897 = vpop.permute.xlu0 %1896
      %1898 = vrot.lane.b32.xlu0 %v1694, 31
      %v1899 = vpop.permute.xlu0 %1898
      %1900 = vrot.lane.b32.xlu0 %v1679, 31
      %v1901 = vpop.permute.xlu0 %1900
      %1902 = vrot.lane.b32.xlu0 %v1687, 31
      %v1903 = vpop.permute.xlu0 %1902
      %1904 = vrot.lane.b32.xlu0 %v1695, 31
      %v1905 = vpop.permute.xlu0 %1904
      %1906 = vrot.lane.b32.xlu0 %v1680, 31
      %v1907 = vpop.permute.xlu0 %1906
      %1908 = vrot.lane.b32.xlu0 %v1688, 31
      %v1909 = vpop.permute.xlu0 %1908
      %1910 = vrot.lane.b32.xlu0 %v1696, 31
      %v1911 = vpop.permute.xlu0 %1910
      %1912 = vrot.lane.b32.xlu0 %v1681, 31
      %v1913 = vpop.permute.xlu0 %1912
      %1914 = vrot.lane.b32.xlu0 %v1689, 31
      %v1915 = vpop.permute.xlu0 %1914
      %1916 = vrot.lane.b32.xlu0 %v1697, 31
      %v1917 = vpop.permute.xlu0 %1916
      %1918 = vrot.lane.b32.xlu0 %v1682, 31
      %v1919 = vpop.permute.xlu0 %1918
      %1920 = vrot.lane.b32.xlu0 %v1690, 31
      %v1921 = vpop.permute.xlu0 %1920
      %1922 = vrot.lane.b32.xlu0 %v1698, 31
      %v1923 = vpop.permute.xlu0 %1922
      %1924 = vrot.lane.b32.xlu0 %v1683, 31
      %v1925 = vpop.permute.xlu0 %1924
      %1926 = vrot.lane.b32.xlu0 %v1691, 31
      %v1927 = vpop.permute.xlu0 %1926
      %1928 = vrot.lane.b32.xlu0 %v1699, 31
      %v1929 = vpop.permute.xlu0 %1928
      %1930 = vrot.lane.b32.xlu0 %v1684, 31
      %v1931 = vpop.permute.xlu0 %1930
      %1932 = vrot.lane.b32.xlu0 %v1692, 31
      %v1933 = vpop.permute.xlu0 %1932
      %1934 = vrot.lane.b32.xlu0 %v1700, 31
      %v1935 = vpop.permute.xlu0 %1934
      %1936 = vrot.lane.b32.xlu0 %v1685, 31
      %v1937 = vpop.permute.xlu0 %1936
      %1938 = vrot.lane.b32.xlu0 %v1693, 31
      %v1939 = vpop.permute.xlu0 %1938
      %1940 = vrot.lane.b32.xlu0 %v1701, 31
      %v1941 = vpop.permute.xlu0 %1940
      %v1942 = vsel %vm838, %v1931, %v1937
      %v1943 = vsel %vm838, %v1933, %v1939
      %v1944 = vsel %vm838, %v1935, %v1941
      %v1945 = vsel %vm838, %v1925, %v1931
      %v1946 = vsel %vm838, %v1927, %v1933
      %v1947 = vsel %vm838, %v1929, %v1935
      %v1948 = vsel %vm838, %v1919, %v1925
      %v1949 = vsel %vm838, %v1921, %v1927
      %v1950 = vsel %vm838, %v1923, %v1929
      %v1951 = vsel %vm838, %v1913, %v1919
      %v1952 = vsel %vm838, %v1915, %v1921
      %v1953 = vsel %vm838, %v1917, %v1923
      %v1954 = vsel %vm838, %v1907, %v1913
      %v1955 = vsel %vm838, %v1909, %v1915
      %v1956 = vsel %vm838, %v1911, %v1917
      %v1957 = vsel %vm838, %v1901, %v1907
      %v1958 = vsel %vm838, %v1903, %v1909
      %v1959 = vsel %vm838, %v1905, %v1911
      %v1960 = vsel %vm838, %v1895, %v1901
      %v1961 = vsel %vm838, %v1897, %v1903
      %v1962 = vsel %vm838, %v1899, %v1905
      %v1963 = vsel %vm838, %v1937, %v1895
      %v1964 = vsel %vm838, %v1939, %v1897
      %v1965 = vsel %vm838, %v1941, %v1899
      %v1966 = vmul.f32 %v1963, %v850
      %v1967 = vmul.f32 %v1960, %v854
      %v1968 = vmul.f32 %v1957, %v858
      %v1969 = vmul.f32 %v1954, %v862
      %v1970 = vmul.f32 %v1951, %v866
      %v1971 = vmul.f32 %v1948, %v870
      %v1972 = vmul.f32 %v1945, %v874
      %v1973 = vmul.f32 %v1942, %v878
      %v1974 = vmul.f32 %v1964, %v850
      %v1975 = vmul.f32 %v1961, %v854
      %v1976 = vmul.f32 %v1958, %v858
      %v1977 = vmul.f32 %v1955, %v862
      %v1978 = vmul.f32 %v1952, %v866
      %v1979 = vmul.f32 %v1949, %v870
      %v1980 = vmul.f32 %v1946, %v874
      %v1981 = vmul.f32 %v1943, %v878
      %v1982 = vmul.f32 %v1965, %v850
      %v1983 = vmul.f32 %v1962, %v854
      %v1984 = vmul.f32 %v1959, %v858
      %v1985 = vmul.f32 %v1956, %v862
      %v1986 = vmul.f32 %v1953, %v866
      %v1987 = vmul.f32 %v1950, %v870
      %v1988 = vmul.f32 %v1947, %v874
      %v1989 = vmul.f32 %v1944, %v878
      %1990 = vrot.lane.b32.xlu0 %v1678, 1
      %v1991 = vpop.permute.xlu0 %1990
      %1992 = vrot.lane.b32.xlu0 %v1686, 1
      %v1993 = vpop.permute.xlu0 %1992
      %1994 = vrot.lane.b32.xlu0 %v1694, 1
      %v1995 = vpop.permute.xlu0 %1994
      %1996 = vrot.lane.b32.xlu0 %v1679, 1
      %v1997 = vpop.permute.xlu0 %1996
      %1998 = vrot.lane.b32.xlu0 %v1687, 1
      %v1999 = vpop.permute.xlu0 %1998
      %2000 = vrot.lane.b32.xlu0 %v1695, 1
      %v2001 = vpop.permute.xlu0 %2000
      %2002 = vrot.lane.b32.xlu0 %v1680, 1
      %v2003 = vpop.permute.xlu0 %2002
      %2004 = vrot.lane.b32.xlu0 %v1688, 1
      %v2005 = vpop.permute.xlu0 %2004
      %2006 = vrot.lane.b32.xlu0 %v1696, 1
      %v2007 = vpop.permute.xlu0 %2006
      %2008 = vrot.lane.b32.xlu0 %v1681, 1
      %v2009 = vpop.permute.xlu0 %2008
      %2010 = vrot.lane.b32.xlu0 %v1689, 1
      %v2011 = vpop.permute.xlu0 %2010
      %2012 = vrot.lane.b32.xlu0 %v1697, 1
      %v2013 = vpop.permute.xlu0 %2012
      %2014 = vrot.lane.b32.xlu0 %v1682, 1
      %v2015 = vpop.permute.xlu0 %2014
      %2016 = vrot.lane.b32.xlu0 %v1690, 1
      %v2017 = vpop.permute.xlu0 %2016
      %2018 = vrot.lane.b32.xlu0 %v1698, 1
      %v2019 = vpop.permute.xlu0 %2018
      %2020 = vrot.lane.b32.xlu0 %v1683, 1
      %v2021 = vpop.permute.xlu0 %2020
      %2022 = vrot.lane.b32.xlu0 %v1691, 1
      %v2023 = vpop.permute.xlu0 %2022
      %2024 = vrot.lane.b32.xlu0 %v1699, 1
      %v2025 = vpop.permute.xlu0 %2024
      %2026 = vrot.lane.b32.xlu0 %v1684, 1
      %v2027 = vpop.permute.xlu0 %2026
      %2028 = vrot.lane.b32.xlu0 %v1692, 1
      %v2029 = vpop.permute.xlu0 %2028
      %2030 = vrot.lane.b32.xlu0 %v1700, 1
      %v2031 = vpop.permute.xlu0 %2030
      %2032 = vrot.lane.b32.xlu0 %v1685, 1
      %v2033 = vpop.permute.xlu0 %2032
      %2034 = vrot.lane.b32.xlu0 %v1693, 1
      %v2035 = vpop.permute.xlu0 %2034
      %2036 = vrot.lane.b32.xlu0 %v1701, 1
      %v2037 = vpop.permute.xlu0 %2036
      %v2038 = vsel %vm903, %v2027, %v2033
      %v2039 = vsel %vm903, %v2029, %v2035
      %v2040 = vsel %vm903, %v2031, %v2037
      %v2041 = vsel %vm903, %v2021, %v2027
      %v2042 = vsel %vm903, %v2023, %v2029
      %v2043 = vsel %vm903, %v2025, %v2031
      %v2044 = vsel %vm903, %v2015, %v2021
      %v2045 = vsel %vm903, %v2017, %v2023
      %v2046 = vsel %vm903, %v2019, %v2025
      %v2047 = vsel %vm903, %v2009, %v2015
      %v2048 = vsel %vm903, %v2011, %v2017
      %v2049 = vsel %vm903, %v2013, %v2019
      %v2050 = vsel %vm903, %v2003, %v2009
      %v2051 = vsel %vm903, %v2005, %v2011
      %v2052 = vsel %vm903, %v2007, %v2013
      %v2053 = vsel %vm903, %v1997, %v2003
      %v2054 = vsel %vm903, %v1999, %v2005
      %v2055 = vsel %vm903, %v2001, %v2007
      %v2056 = vsel %vm903, %v1991, %v1997
      %v2057 = vsel %vm903, %v1993, %v1999
      %v2058 = vsel %vm903, %v1995, %v2001
      %v2059 = vsel %vm903, %v2033, %v1991
      %v2060 = vsel %vm903, %v2035, %v1993
      %v2061 = vsel %vm903, %v2037, %v1995
      %v2062 = vmul.f32 %v2059, %v915
      %v2063 = vmul.f32 %v2056, %v919
      %v2064 = vmul.f32 %v2053, %v923
      %v2065 = vmul.f32 %v2050, %v927
      %v2066 = vmul.f32 %v2047, %v931
      %v2067 = vmul.f32 %v2044, %v935
      %v2068 = vmul.f32 %v2041, %v939
      %v2069 = vmul.f32 %v2038, %v943
      %v2070 = vmul.f32 %v2060, %v915
      %v2071 = vmul.f32 %v2057, %v919
      %v2072 = vmul.f32 %v2054, %v923
      %v2073 = vmul.f32 %v2051, %v927
      %v2074 = vmul.f32 %v2048, %v931
      %v2075 = vmul.f32 %v2045, %v935
      %v2076 = vmul.f32 %v2042, %v939
      %v2077 = vmul.f32 %v2039, %v943
      %v2078 = vmul.f32 %v2061, %v915
      %v2079 = vmul.f32 %v2058, %v919
      %v2080 = vmul.f32 %v2055, %v923
      %v2081 = vmul.f32 %v2052, %v927
      %v2082 = vmul.f32 %v2049, %v931
      %v2083 = vmul.f32 %v2046, %v935
      %v2084 = vmul.f32 %v2043, %v939
      %v2085 = vmul.f32 %v2040, %v943
      %2086 = vrot.lane.b32.xlu0 %v1678, 127
      %v2087 = vpop.permute.xlu0 %2086
      %2088 = vrot.lane.b32.xlu0 %v1686, 127
      %v2089 = vpop.permute.xlu0 %2088
      %2090 = vrot.lane.b32.xlu0 %v1694, 127
      %v2091 = vpop.permute.xlu0 %2090
      %2092 = vrot.lane.b32.xlu0 %v1679, 127
      %v2093 = vpop.permute.xlu0 %2092
      %2094 = vrot.lane.b32.xlu0 %v1687, 127
      %v2095 = vpop.permute.xlu0 %2094
      %2096 = vrot.lane.b32.xlu0 %v1695, 127
      %v2097 = vpop.permute.xlu0 %2096
      %2098 = vrot.lane.b32.xlu0 %v1680, 127
      %v2099 = vpop.permute.xlu0 %2098
      %2100 = vrot.lane.b32.xlu0 %v1688, 127
      %v2101 = vpop.permute.xlu0 %2100
      %2102 = vrot.lane.b32.xlu0 %v1696, 127
      %v2103 = vpop.permute.xlu0 %2102
      %2104 = vrot.lane.b32.xlu0 %v1681, 127
      %v2105 = vpop.permute.xlu0 %2104
      %2106 = vrot.lane.b32.xlu0 %v1689, 127
      %v2107 = vpop.permute.xlu0 %2106
      %2108 = vrot.lane.b32.xlu0 %v1697, 127
      %v2109 = vpop.permute.xlu0 %2108
      %2110 = vrot.lane.b32.xlu0 %v1682, 127
      %v2111 = vpop.permute.xlu0 %2110
      %2112 = vrot.lane.b32.xlu0 %v1690, 127
      %v2113 = vpop.permute.xlu0 %2112
      %2114 = vrot.lane.b32.xlu0 %v1698, 127
      %v2115 = vpop.permute.xlu0 %2114
      %2116 = vrot.lane.b32.xlu0 %v1683, 127
      %v2117 = vpop.permute.xlu0 %2116
      %2118 = vrot.lane.b32.xlu0 %v1691, 127
      %v2119 = vpop.permute.xlu0 %2118
      %2120 = vrot.lane.b32.xlu0 %v1699, 127
      %v2121 = vpop.permute.xlu0 %2120
      %2122 = vrot.lane.b32.xlu0 %v1684, 127
      %v2123 = vpop.permute.xlu0 %2122
      %2124 = vrot.lane.b32.xlu0 %v1692, 127
      %v2125 = vpop.permute.xlu0 %2124
      %2126 = vrot.lane.b32.xlu0 %v1700, 127
      %v2127 = vpop.permute.xlu0 %2126
      %2128 = vrot.lane.b32.xlu0 %v1685, 127
      %v2129 = vpop.permute.xlu0 %2128
      %2130 = vrot.lane.b32.xlu0 %v1693, 127
      %v2131 = vpop.permute.xlu0 %2130
      %2132 = vrot.lane.b32.xlu0 %v1701, 127
      %v2133 = vpop.permute.xlu0 %2132
      %v2134 = vsel %vm968, %v2123, %v2129
      %v2135 = vsel %vm968, %v2125, %v2131
      %v2136 = vsel %vm968, %v2127, %v2133
      %v2137 = vsel %vm968, %v2117, %v2123
      %v2138 = vsel %vm968, %v2119, %v2125
      %v2139 = vsel %vm968, %v2121, %v2127
      %v2140 = vsel %vm968, %v2111, %v2117
      %v2141 = vsel %vm968, %v2113, %v2119
      %v2142 = vsel %vm968, %v2115, %v2121
      %v2143 = vsel %vm968, %v2105, %v2111
      %v2144 = vsel %vm968, %v2107, %v2113
      %v2145 = vsel %vm968, %v2109, %v2115
      %v2146 = vsel %vm968, %v2099, %v2105
      %v2147 = vsel %vm968, %v2101, %v2107
      %v2148 = vsel %vm968, %v2103, %v2109
      %v2149 = vsel %vm968, %v2093, %v2099
      %v2150 = vsel %vm968, %v2095, %v2101
      %v2151 = vsel %vm968, %v2097, %v2103
      %v2152 = vsel %vm968, %v2087, %v2093
      %v2153 = vsel %vm968, %v2089, %v2095
      %v2154 = vsel %vm968, %v2091, %v2097
      %v2155 = vsel %vm968, %v2129, %v2087
      %v2156 = vsel %vm968, %v2131, %v2089
      %v2157 = vsel %vm968, %v2133, %v2091
      %v2158 = vmul.f32 %v2152, %v980
      %v2159 = vmul.f32 %v2149, %v984
      %v2160 = vmul.f32 %v2146, %v988
      %v2161 = vmul.f32 %v2143, %v992
      %v2162 = vmul.f32 %v2140, %v996
      %v2163 = vmul.f32 %v2137, %v1000
      %v2164 = vmul.f32 %v2134, %v1004
      %v2165 = vmul.f32 %v2155, %v1008
      %v2166 = vmul.f32 %v2153, %v980
      %v2167 = vmul.f32 %v2150, %v984
      %v2168 = vmul.f32 %v2147, %v988
      %v2169 = vmul.f32 %v2144, %v992
      %v2170 = vmul.f32 %v2141, %v996
      %v2171 = vmul.f32 %v2138, %v1000
      %v2172 = vmul.f32 %v2135, %v1004
      %v2173 = vmul.f32 %v2156, %v1008
      %v2174 = vmul.f32 %v2154, %v980
      %v2175 = vmul.f32 %v2151, %v984
      %v2176 = vmul.f32 %v2148, %v988
      %v2177 = vmul.f32 %v2145, %v992
      %v2178 = vmul.f32 %v2142, %v996
      %v2179 = vmul.f32 %v2139, %v1000
      %v2180 = vmul.f32 %v2136, %v1004
      %v2181 = vmul.f32 %v2157, %v1008
      %2182 = vrot.lane.b32.xlu0 %v1678, 97
      %v2183 = vpop.permute.xlu0 %2182
      %2184 = vrot.lane.b32.xlu0 %v1686, 97
      %v2185 = vpop.permute.xlu0 %2184
      %2186 = vrot.lane.b32.xlu0 %v1694, 97
      %v2187 = vpop.permute.xlu0 %2186
      %2188 = vrot.lane.b32.xlu0 %v1679, 97
      %v2189 = vpop.permute.xlu0 %2188
      %2190 = vrot.lane.b32.xlu0 %v1687, 97
      %v2191 = vpop.permute.xlu0 %2190
      %2192 = vrot.lane.b32.xlu0 %v1695, 97
      %v2193 = vpop.permute.xlu0 %2192
      %2194 = vrot.lane.b32.xlu0 %v1680, 97
      %v2195 = vpop.permute.xlu0 %2194
      %2196 = vrot.lane.b32.xlu0 %v1688, 97
      %v2197 = vpop.permute.xlu0 %2196
      %2198 = vrot.lane.b32.xlu0 %v1696, 97
      %v2199 = vpop.permute.xlu0 %2198
      %2200 = vrot.lane.b32.xlu0 %v1681, 97
      %v2201 = vpop.permute.xlu0 %2200
      %2202 = vrot.lane.b32.xlu0 %v1689, 97
      %v2203 = vpop.permute.xlu0 %2202
      %2204 = vrot.lane.b32.xlu0 %v1697, 97
      %v2205 = vpop.permute.xlu0 %2204
      %2206 = vrot.lane.b32.xlu0 %v1682, 97
      %v2207 = vpop.permute.xlu0 %2206
      %2208 = vrot.lane.b32.xlu0 %v1690, 97
      %v2209 = vpop.permute.xlu0 %2208
      %2210 = vrot.lane.b32.xlu0 %v1698, 97
      %v2211 = vpop.permute.xlu0 %2210
      %2212 = vrot.lane.b32.xlu0 %v1683, 97
      %v2213 = vpop.permute.xlu0 %2212
      %2214 = vrot.lane.b32.xlu0 %v1691, 97
      %v2215 = vpop.permute.xlu0 %2214
      %2216 = vrot.lane.b32.xlu0 %v1699, 97
      %v2217 = vpop.permute.xlu0 %2216
      %2218 = vrot.lane.b32.xlu0 %v1684, 97
      %v2219 = vpop.permute.xlu0 %2218
      %2220 = vrot.lane.b32.xlu0 %v1692, 97
      %v2221 = vpop.permute.xlu0 %2220
      %2222 = vrot.lane.b32.xlu0 %v1700, 97
      %v2223 = vpop.permute.xlu0 %2222
      %2224 = vrot.lane.b32.xlu0 %v1685, 97
      %v2225 = vpop.permute.xlu0 %2224
      %2226 = vrot.lane.b32.xlu0 %v1693, 97
      %v2227 = vpop.permute.xlu0 %2226
      %2228 = vrot.lane.b32.xlu0 %v1701, 97
      %v2229 = vpop.permute.xlu0 %2228
      %v2230 = vsel %vm1033, %v2219, %v2225
      %v2231 = vsel %vm1033, %v2221, %v2227
      %v2232 = vsel %vm1033, %v2223, %v2229
      %v2233 = vsel %vm1033, %v2213, %v2219
      %v2234 = vsel %vm1033, %v2215, %v2221
      %v2235 = vsel %vm1033, %v2217, %v2223
      %v2236 = vsel %vm1033, %v2207, %v2213
      %v2237 = vsel %vm1033, %v2209, %v2215
      %v2238 = vsel %vm1033, %v2211, %v2217
      %v2239 = vsel %vm1033, %v2201, %v2207
      %v2240 = vsel %vm1033, %v2203, %v2209
      %v2241 = vsel %vm1033, %v2205, %v2211
      %v2242 = vsel %vm1033, %v2195, %v2201
      %v2243 = vsel %vm1033, %v2197, %v2203
      %v2244 = vsel %vm1033, %v2199, %v2205
      %v2245 = vsel %vm1033, %v2189, %v2195
      %v2246 = vsel %vm1033, %v2191, %v2197
      %v2247 = vsel %vm1033, %v2193, %v2199
      %v2248 = vsel %vm1033, %v2183, %v2189
      %v2249 = vsel %vm1033, %v2185, %v2191
      %v2250 = vsel %vm1033, %v2187, %v2193
      %v2251 = vsel %vm1033, %v2225, %v2183
      %v2252 = vsel %vm1033, %v2227, %v2185
      %v2253 = vsel %vm1033, %v2229, %v2187
      %v2254 = vmul.f32 %v2248, %v1045
      %v2255 = vmul.f32 %v2245, %v1049
      %v2256 = vmul.f32 %v2242, %v1053
      %v2257 = vmul.f32 %v2239, %v1057
      %v2258 = vmul.f32 %v2236, %v1061
      %v2259 = vmul.f32 %v2233, %v1065
      %v2260 = vmul.f32 %v2230, %v1069
      %v2261 = vmul.f32 %v2251, %v1073
      %v2262 = vmul.f32 %v2249, %v1045
      %v2263 = vmul.f32 %v2246, %v1049
      %v2264 = vmul.f32 %v2243, %v1053
      %v2265 = vmul.f32 %v2240, %v1057
      %v2266 = vmul.f32 %v2237, %v1061
      %v2267 = vmul.f32 %v2234, %v1065
      %v2268 = vmul.f32 %v2231, %v1069
      %v2269 = vmul.f32 %v2252, %v1073
      %v2270 = vmul.f32 %v2250, %v1045
      %v2271 = vmul.f32 %v2247, %v1049
      %v2272 = vmul.f32 %v2244, %v1053
      %v2273 = vmul.f32 %v2241, %v1057
      %v2274 = vmul.f32 %v2238, %v1061
      %v2275 = vmul.f32 %v2235, %v1065
      %v2276 = vmul.f32 %v2232, %v1069
      %v2277 = vmul.f32 %v2253, %v1073
      %2278 = vrot.lane.b32.xlu0 %v1678, 96
      %v2279 = vpop.permute.xlu0 %2278
      %2280 = vrot.lane.b32.xlu0 %v1686, 96
      %v2281 = vpop.permute.xlu0 %2280
      %2282 = vrot.lane.b32.xlu0 %v1694, 96
      %v2283 = vpop.permute.xlu0 %2282
      %2284 = vrot.lane.b32.xlu0 %v1679, 96
      %v2285 = vpop.permute.xlu0 %2284
      %2286 = vrot.lane.b32.xlu0 %v1687, 96
      %v2287 = vpop.permute.xlu0 %2286
      %2288 = vrot.lane.b32.xlu0 %v1695, 96
      %v2289 = vpop.permute.xlu0 %2288
      %2290 = vrot.lane.b32.xlu0 %v1680, 96
      %v2291 = vpop.permute.xlu0 %2290
      %2292 = vrot.lane.b32.xlu0 %v1688, 96
      %v2293 = vpop.permute.xlu0 %2292
      %2294 = vrot.lane.b32.xlu0 %v1696, 96
      %v2295 = vpop.permute.xlu0 %2294
      %2296 = vrot.lane.b32.xlu0 %v1681, 96
      %v2297 = vpop.permute.xlu0 %2296
      %2298 = vrot.lane.b32.xlu0 %v1689, 96
      %v2299 = vpop.permute.xlu0 %2298
      %2300 = vrot.lane.b32.xlu0 %v1697, 96
      %v2301 = vpop.permute.xlu0 %2300
      %2302 = vrot.lane.b32.xlu0 %v1682, 96
      %v2303 = vpop.permute.xlu0 %2302
      %2304 = vrot.lane.b32.xlu0 %v1690, 96
      %v2305 = vpop.permute.xlu0 %2304
      %2306 = vrot.lane.b32.xlu0 %v1698, 96
      %v2307 = vpop.permute.xlu0 %2306
      %2308 = vrot.lane.b32.xlu0 %v1683, 96
      %v2309 = vpop.permute.xlu0 %2308
      %2310 = vrot.lane.b32.xlu0 %v1691, 96
      %v2311 = vpop.permute.xlu0 %2310
      %2312 = vrot.lane.b32.xlu0 %v1699, 96
      %v2313 = vpop.permute.xlu0 %2312
      %2314 = vrot.lane.b32.xlu0 %v1684, 96
      %v2315 = vpop.permute.xlu0 %2314
      %2316 = vrot.lane.b32.xlu0 %v1692, 96
      %v2317 = vpop.permute.xlu0 %2316
      %2318 = vrot.lane.b32.xlu0 %v1700, 96
      %v2319 = vpop.permute.xlu0 %2318
      %2320 = vrot.lane.b32.xlu0 %v1685, 96
      %v2321 = vpop.permute.xlu0 %2320
      %2322 = vrot.lane.b32.xlu0 %v1693, 96
      %v2323 = vpop.permute.xlu0 %2322
      %2324 = vrot.lane.b32.xlu0 %v1701, 96
      %v2325 = vpop.permute.xlu0 %2324
      %v2326 = vsel %vm1098, %v2315, %v2321
      %v2327 = vsel %vm1098, %v2317, %v2323
      %v2328 = vsel %vm1098, %v2319, %v2325
      %v2329 = vsel %vm1098, %v2309, %v2315
      %v2330 = vsel %vm1098, %v2311, %v2317
      %v2331 = vsel %vm1098, %v2313, %v2319
      %v2332 = vsel %vm1098, %v2303, %v2309
      %v2333 = vsel %vm1098, %v2305, %v2311
      %v2334 = vsel %vm1098, %v2307, %v2313
      %v2335 = vsel %vm1098, %v2297, %v2303
      %v2336 = vsel %vm1098, %v2299, %v2305
      %v2337 = vsel %vm1098, %v2301, %v2307
      %v2338 = vsel %vm1098, %v2291, %v2297
      %v2339 = vsel %vm1098, %v2293, %v2299
      %v2340 = vsel %vm1098, %v2295, %v2301
      %v2341 = vsel %vm1098, %v2285, %v2291
      %v2342 = vsel %vm1098, %v2287, %v2293
      %v2343 = vsel %vm1098, %v2289, %v2295
      %v2344 = vsel %vm1098, %v2279, %v2285
      %v2345 = vsel %vm1098, %v2281, %v2287
      %v2346 = vsel %vm1098, %v2283, %v2289
      %v2347 = vsel %vm1098, %v2321, %v2279
      %v2348 = vsel %vm1098, %v2323, %v2281
      %v2349 = vsel %vm1098, %v2325, %v2283
      %v2350 = vmul.f32 %v2344, %v1110
      %v2351 = vmul.f32 %v2341, %v1114
      %v2352 = vmul.f32 %v2338, %v1118
      %v2353 = vmul.f32 %v2335, %v1122
      %v2354 = vmul.f32 %v2332, %v1126
      %v2355 = vmul.f32 %v2329, %v1130
      %v2356 = vmul.f32 %v2326, %v1134
      %v2357 = vmul.f32 %v2347, %v1138
      %v2358 = vmul.f32 %v2345, %v1110
      %v2359 = vmul.f32 %v2342, %v1114
      %v2360 = vmul.f32 %v2339, %v1118
      %v2361 = vmul.f32 %v2336, %v1122
      %v2362 = vmul.f32 %v2333, %v1126
      %v2363 = vmul.f32 %v2330, %v1130
      %v2364 = vmul.f32 %v2327, %v1134
      %v2365 = vmul.f32 %v2348, %v1138
      %v2366 = vmul.f32 %v2346, %v1110
      %v2367 = vmul.f32 %v2343, %v1114
      %v2368 = vmul.f32 %v2340, %v1118
      %v2369 = vmul.f32 %v2337, %v1122
      %v2370 = vmul.f32 %v2334, %v1126
      %v2371 = vmul.f32 %v2331, %v1130
      %v2372 = vmul.f32 %v2328, %v1134
      %v2373 = vmul.f32 %v2349, %v1138
      %2374 = vrot.lane.b32.xlu0 %v1678, 95
      %v2375 = vpop.permute.xlu0 %2374
      %2376 = vrot.lane.b32.xlu0 %v1686, 95
      %v2377 = vpop.permute.xlu0 %2376
      %2378 = vrot.lane.b32.xlu0 %v1694, 95
      %v2379 = vpop.permute.xlu0 %2378
      %2380 = vrot.lane.b32.xlu0 %v1679, 95
      %v2381 = vpop.permute.xlu0 %2380
      %2382 = vrot.lane.b32.xlu0 %v1687, 95
      %v2383 = vpop.permute.xlu0 %2382
      %2384 = vrot.lane.b32.xlu0 %v1695, 95
      %v2385 = vpop.permute.xlu0 %2384
      %2386 = vrot.lane.b32.xlu0 %v1680, 95
      %v2387 = vpop.permute.xlu0 %2386
      %2388 = vrot.lane.b32.xlu0 %v1688, 95
      %v2389 = vpop.permute.xlu0 %2388
      %2390 = vrot.lane.b32.xlu0 %v1696, 95
      %v2391 = vpop.permute.xlu0 %2390
      %2392 = vrot.lane.b32.xlu0 %v1681, 95
      %v2393 = vpop.permute.xlu0 %2392
      %2394 = vrot.lane.b32.xlu0 %v1689, 95
      %v2395 = vpop.permute.xlu0 %2394
      %2396 = vrot.lane.b32.xlu0 %v1697, 95
      %v2397 = vpop.permute.xlu0 %2396
      %2398 = vrot.lane.b32.xlu0 %v1682, 95
      %v2399 = vpop.permute.xlu0 %2398
      %2400 = vrot.lane.b32.xlu0 %v1690, 95
      %v2401 = vpop.permute.xlu0 %2400
      %2402 = vrot.lane.b32.xlu0 %v1698, 95
      %v2403 = vpop.permute.xlu0 %2402
      %2404 = vrot.lane.b32.xlu0 %v1683, 95
      %v2405 = vpop.permute.xlu0 %2404
      %2406 = vrot.lane.b32.xlu0 %v1691, 95
      %v2407 = vpop.permute.xlu0 %2406
      %2408 = vrot.lane.b32.xlu0 %v1699, 95
      %v2409 = vpop.permute.xlu0 %2408
      %2410 = vrot.lane.b32.xlu0 %v1684, 95
      %v2411 = vpop.permute.xlu0 %2410
      %2412 = vrot.lane.b32.xlu0 %v1692, 95
      %v2413 = vpop.permute.xlu0 %2412
      %2414 = vrot.lane.b32.xlu0 %v1700, 95
      %v2415 = vpop.permute.xlu0 %2414
      %2416 = vrot.lane.b32.xlu0 %v1685, 95
      %v2417 = vpop.permute.xlu0 %2416
      %2418 = vrot.lane.b32.xlu0 %v1693, 95
      %v2419 = vpop.permute.xlu0 %2418
      %2420 = vrot.lane.b32.xlu0 %v1701, 95
      %v2421 = vpop.permute.xlu0 %2420
      %v2422 = vsel %vm1163, %v2411, %v2417
      %v2423 = vsel %vm1163, %v2413, %v2419
      %v2424 = vsel %vm1163, %v2415, %v2421
      %v2425 = vsel %vm1163, %v2405, %v2411
      %v2426 = vsel %vm1163, %v2407, %v2413
      %v2427 = vsel %vm1163, %v2409, %v2415
      %v2428 = vsel %vm1163, %v2399, %v2405
      %v2429 = vsel %vm1163, %v2401, %v2407
      %v2430 = vsel %vm1163, %v2403, %v2409
      %v2431 = vsel %vm1163, %v2393, %v2399
      %v2432 = vsel %vm1163, %v2395, %v2401
      %v2433 = vsel %vm1163, %v2397, %v2403
      %v2434 = vsel %vm1163, %v2387, %v2393
      %v2435 = vsel %vm1163, %v2389, %v2395
      %v2436 = vsel %vm1163, %v2391, %v2397
      %v2437 = vsel %vm1163, %v2381, %v2387
      %v2438 = vsel %vm1163, %v2383, %v2389
      %v2439 = vsel %vm1163, %v2385, %v2391
      %v2440 = vsel %vm1163, %v2375, %v2381
      %v2441 = vsel %vm1163, %v2377, %v2383
      %v2442 = vsel %vm1163, %v2379, %v2385
      %v2443 = vsel %vm1163, %v2417, %v2375
      %v2444 = vsel %vm1163, %v2419, %v2377
      %v2445 = vsel %vm1163, %v2421, %v2379
      %v2446 = vmul.f32 %v2440, %v1175
      %v2447 = vmul.f32 %v2437, %v1179
      %v2448 = vmul.f32 %v2434, %v1183
      %v2449 = vmul.f32 %v2431, %v1187
      %v2450 = vmul.f32 %v2428, %v1191
      %v2451 = vmul.f32 %v2425, %v1195
      %v2452 = vmul.f32 %v2422, %v1199
      %v2453 = vmul.f32 %v2443, %v1203
      %v2454 = vmul.f32 %v2441, %v1175
      %v2455 = vmul.f32 %v2438, %v1179
      %v2456 = vmul.f32 %v2435, %v1183
      %v2457 = vmul.f32 %v2432, %v1187
      %v2458 = vmul.f32 %v2429, %v1191
      %v2459 = vmul.f32 %v2426, %v1195
      %v2460 = vmul.f32 %v2423, %v1199
      %v2461 = vmul.f32 %v2444, %v1203
      %v2462 = vmul.f32 %v2442, %v1175
      %v2463 = vmul.f32 %v2439, %v1179
      %v2464 = vmul.f32 %v2436, %v1183
      %v2465 = vmul.f32 %v2433, %v1187
      %v2466 = vmul.f32 %v2430, %v1191
      %v2467 = vmul.f32 %v2427, %v1195
      %v2468 = vmul.f32 %v2424, %v1199
      %v2469 = vmul.f32 %v2445, %v1203
      %v2494 = vrot.slane %v1870, 4
      %v2495 = vrot.slane %v1871, 4
      %v2496 = vrot.slane %v1872, 4
      %v2497 = vrot.slane %v1873, 4
      %v2498 = vrot.slane %v1874, 4
      %v2499 = vrot.slane %v1875, 4
      %v2500 = vrot.slane %v1876, 4
      %v2501 = vrot.slane %v1877, 4
      %v2502 = vrot.slane %v1878, 4
      %v2503 = vsel %vm1308, %v2494, %v2502
      %v2504 = vrot.slane %v1879, 4
      %v2505 = vsel %vm1308, %v2495, %v2504
      %v2506 = vrot.slane %v1880, 4
      %v2507 = vsel %vm1308, %v2496, %v2506
      %v2508 = vrot.slane %v1881, 4
      %v2509 = vsel %vm1308, %v2497, %v2508
      %v2510 = vrot.slane %v1882, 4
      %v2511 = vsel %vm1308, %v2498, %v2510
      %v2512 = vrot.slane %v1883, 4
      %v2513 = vsel %vm1308, %v2499, %v2512
      %v2514 = vrot.slane %v1884, 4
      %v2515 = vsel %vm1308, %v2500, %v2514
      %v2516 = vrot.slane %v1885, 4
      %v2517 = vsel %vm1308, %v2501, %v2516
      %v2518 = vrot.slane %v1886, 4
      %v2519 = vsel %vm1308, %v2502, %v2518
      %v2520 = vrot.slane %v1887, 4
      %v2521 = vsel %vm1308, %v2504, %v2520
      %v2522 = vrot.slane %v1888, 4
      %v2523 = vsel %vm1308, %v2506, %v2522
      %v2524 = vrot.slane %v1889, 4
      %v2525 = vsel %vm1308, %v2508, %v2524
      %v2526 = vrot.slane %v1890, 4
      %v2527 = vsel %vm1308, %v2510, %v2526
      %v2528 = vrot.slane %v1891, 4
      %v2529 = vsel %vm1308, %v2512, %v2528
      %v2530 = vrot.slane %v1892, 4
      %v2531 = vsel %vm1308, %v2514, %v2530
      %v2532 = vrot.slane %v1893, 4
      %v2533 = vsel %vm1308, %v2516, %v2532
      %v2582 = vrot.slane %v2062, 4
      %v2583 = vrot.slane %v2063, 4
      %v2584 = vrot.slane %v2064, 4
      %v2585 = vrot.slane %v2065, 4
      %v2586 = vrot.slane %v2066, 4
      %v2587 = vrot.slane %v2067, 4
      %v2588 = vrot.slane %v2068, 4
      %v2589 = vrot.slane %v2069, 4
      %v2590 = vrot.slane %v2070, 4
      %v2591 = vsel %vm1308, %v2582, %v2590
      %v2592 = vrot.slane %v2071, 4
      %v2593 = vsel %vm1308, %v2583, %v2592
      %v2594 = vrot.slane %v2072, 4
      %v2595 = vsel %vm1308, %v2584, %v2594
      %v2596 = vrot.slane %v2073, 4
      %v2597 = vsel %vm1308, %v2585, %v2596
      %v2598 = vrot.slane %v2074, 4
      %v2599 = vsel %vm1308, %v2586, %v2598
      %v2600 = vrot.slane %v2075, 4
      %v2601 = vsel %vm1308, %v2587, %v2600
      %v2602 = vrot.slane %v2076, 4
      %v2603 = vsel %vm1308, %v2588, %v2602
      %v2604 = vrot.slane %v2077, 4
      %v2605 = vsel %vm1308, %v2589, %v2604
      %v2606 = vrot.slane %v2078, 4
      %v2607 = vsel %vm1308, %v2590, %v2606
      %v2608 = vrot.slane %v2079, 4
      %v2609 = vsel %vm1308, %v2592, %v2608
      %v2610 = vrot.slane %v2080, 4
      %v2611 = vsel %vm1308, %v2594, %v2610
      %v2612 = vrot.slane %v2081, 4
      %v2613 = vsel %vm1308, %v2596, %v2612
      %v2614 = vrot.slane %v2082, 4
      %v2615 = vsel %vm1308, %v2598, %v2614
      %v2616 = vrot.slane %v2083, 4
      %v2617 = vsel %vm1308, %v2600, %v2616
      %v2618 = vrot.slane %v2084, 4
      %v2619 = vsel %vm1308, %v2602, %v2618
      %v2620 = vrot.slane %v2085, 4
      %v2621 = vsel %vm1308, %v2604, %v2620
      %v2670 = vrot.slane %v2158, 4
      %v2671 = vrot.slane %v2159, 4
      %v2672 = vrot.slane %v2160, 4
      %v2673 = vrot.slane %v2161, 4
      %v2674 = vrot.slane %v2162, 4
      %v2675 = vrot.slane %v2163, 4
      %v2676 = vrot.slane %v2164, 4
      %v2677 = vrot.slane %v2165, 4
      %v2678 = vrot.slane %v2166, 4
      %v2679 = vsel %vm1308, %v2670, %v2678
      %v2680 = vrot.slane %v2167, 4
      %v2681 = vsel %vm1308, %v2671, %v2680
      %v2682 = vrot.slane %v2168, 4
      %v2683 = vsel %vm1308, %v2672, %v2682
      %v2684 = vrot.slane %v2169, 4
      %v2685 = vsel %vm1308, %v2673, %v2684
      %v2686 = vrot.slane %v2170, 4
      %v2687 = vsel %vm1308, %v2674, %v2686
      %v2688 = vrot.slane %v2171, 4
      %v2689 = vsel %vm1308, %v2675, %v2688
      %v2690 = vrot.slane %v2172, 4
      %v2691 = vsel %vm1308, %v2676, %v2690
      %v2692 = vrot.slane %v2173, 4
      %v2693 = vsel %vm1308, %v2677, %v2692
      %v2694 = vrot.slane %v2174, 4
      %v2695 = vsel %vm1308, %v2678, %v2694
      %v2696 = vrot.slane %v2175, 4
      %v2697 = vsel %vm1308, %v2680, %v2696
      %v2698 = vrot.slane %v2176, 4
      %v2699 = vsel %vm1308, %v2682, %v2698
      %v2700 = vrot.slane %v2177, 4
      %v2701 = vsel %vm1308, %v2684, %v2700
      %v2702 = vrot.slane %v2178, 4
      %v2703 = vsel %vm1308, %v2686, %v2702
      %v2704 = vrot.slane %v2179, 4
      %v2705 = vsel %vm1308, %v2688, %v2704
      %v2706 = vrot.slane %v2180, 4
      %v2707 = vsel %vm1308, %v2690, %v2706
      %v2708 = vrot.slane %v2181, 4
      %v2709 = vsel %vm1308, %v2692, %v2708
      %v2758 = vrot.slane %v2350, 4
      %v2759 = vrot.slane %v2351, 4
      %v2760 = vrot.slane %v2352, 4
      %v2761 = vrot.slane %v2353, 4
      %v2762 = vrot.slane %v2354, 4
      %v2763 = vrot.slane %v2355, 4
      %v2764 = vrot.slane %v2356, 4
      %v2765 = vrot.slane %v2357, 4
      %v2766 = vrot.slane %v2358, 4
      %v2767 = vsel %vm1308, %v2758, %v2766
      %v2768 = vrot.slane %v2359, 4
      %v2769 = vsel %vm1308, %v2759, %v2768
      %v2770 = vrot.slane %v2360, 4
      %v2771 = vsel %vm1308, %v2760, %v2770
      %v2772 = vrot.slane %v2361, 4
      %v2773 = vsel %vm1308, %v2761, %v2772
      %v2774 = vrot.slane %v2362, 4
      %v2775 = vsel %vm1308, %v2762, %v2774
      %v2776 = vrot.slane %v2363, 4
      %v2777 = vsel %vm1308, %v2763, %v2776
      %v2778 = vrot.slane %v2364, 4
      %v2779 = vsel %vm1308, %v2764, %v2778
      %v2780 = vrot.slane %v2365, 4
      %v2781 = vsel %vm1308, %v2765, %v2780
      %v2782 = vrot.slane %v2366, 4
      %v2783 = vsel %vm1308, %v2766, %v2782
      %v2784 = vrot.slane %v2367, 4
      %v2785 = vsel %vm1308, %v2768, %v2784
      %v2786 = vrot.slane %v2368, 4
      %v2787 = vsel %vm1308, %v2770, %v2786
      %v2788 = vrot.slane %v2369, 4
      %v2789 = vsel %vm1308, %v2772, %v2788
      %v2790 = vrot.slane %v2370, 4
      %v2791 = vsel %vm1308, %v2774, %v2790
      %v2792 = vrot.slane %v2371, 4
      %v2793 = vsel %vm1308, %v2776, %v2792
      %v2794 = vrot.slane %v2372, 4
      %v2795 = vsel %vm1308, %v2778, %v2794
      %v2796 = vrot.slane %v2373, 4
      %v2797 = vsel %vm1308, %v2780, %v2796
      %v2822 = vsel %vm1308, %v1790, %v2494
      %v2823 = vsel %vm1308, %v1791, %v2495
      %v2824 = vsel %vm1308, %v1792, %v2496
      %v2825 = vsel %vm1308, %v1793, %v2497
      %v2826 = vsel %vm1308, %v1794, %v2498
      %v2827 = vsel %vm1308, %v1795, %v2499
      %v2828 = vsel %vm1308, %v1796, %v2500
      %v2829 = vsel %vm1308, %v1797, %v2501
      %v2830 = vsel %vm1308, %v1982, %v2582
      %v2831 = vsel %vm1308, %v1983, %v2583
      %v2832 = vsel %vm1308, %v1984, %v2584
      %v2833 = vsel %vm1308, %v1985, %v2585
      %v2834 = vsel %vm1308, %v1986, %v2586
      %v2835 = vsel %vm1308, %v1987, %v2587
      %v2836 = vsel %vm1308, %v1988, %v2588
      %v2837 = vsel %vm1308, %v1989, %v2589
      %v2838 = vsel %vm1308, %v1694, %v2670
      %v2839 = vsel %vm1308, %v1695, %v2671
      %v2840 = vsel %vm1308, %v1696, %v2672
      %v2841 = vsel %vm1308, %v1697, %v2673
      %v2842 = vsel %vm1308, %v1698, %v2674
      %v2843 = vsel %vm1308, %v1699, %v2675
      %v2844 = vsel %vm1308, %v1700, %v2676
      %v2845 = vsel %vm1308, %v1701, %v2677
      %v2846 = vsel %vm1308, %v2270, %v2758
      %v2847 = vsel %vm1308, %v2271, %v2759
      %v2848 = vsel %vm1308, %v2272, %v2760
      %v2849 = vsel %vm1308, %v2273, %v2761
      %v2850 = vsel %vm1308, %v2274, %v2762
      %v2851 = vsel %vm1308, %v2275, %v2763
      %v2852 = vsel %vm1308, %v2276, %v2764
      %v2853 = vsel %vm1308, %v2277, %v2765
      %v2854 = vpack.c.bf16 %v1782, %v1774
      %v2855 = vpack.c.bf16 %v1783, %v1775
      %v2856 = vpack.c.bf16 %v1784, %v1776
      %v2857 = vpack.c.bf16 %v1785, %v1777
      %v2858 = vpack.c.bf16 %v1786, %v1778
      %v2859 = vpack.c.bf16 %v1787, %v1779
      %v2860 = vpack.c.bf16 %v1788, %v1780
      %v2861 = vpack.c.bf16 %v1789, %v1781
      %v2862 = vpack.c.bf16 %v2503, %v2822
      %v2863 = vpack.c.bf16 %v2505, %v2823
      %v2864 = vpack.c.bf16 %v2507, %v2824
      %v2865 = vpack.c.bf16 %v2509, %v2825
      %v2866 = vpack.c.bf16 %v2511, %v2826
      %v2867 = vpack.c.bf16 %v2513, %v2827
      %v2868 = vpack.c.bf16 %v2515, %v2828
      %v2869 = vpack.c.bf16 %v2517, %v2829
      %v2870 = vpack.c.bf16 %v1966, %v2519
      %v2871 = vpack.c.bf16 %v1967, %v2521
      %v2872 = vpack.c.bf16 %v1968, %v2523
      %v2873 = vpack.c.bf16 %v1969, %v2525
      %v2874 = vpack.c.bf16 %v1970, %v2527
      %v2875 = vpack.c.bf16 %v1971, %v2529
      %v2876 = vpack.c.bf16 %v1972, %v2531
      %v2877 = vpack.c.bf16 %v1973, %v2533
      %v2878 = vpack.c.bf16 %v2830, %v1974
      %v2879 = vpack.c.bf16 %v2831, %v1975
      %v2880 = vpack.c.bf16 %v2832, %v1976
      %v2881 = vpack.c.bf16 %v2833, %v1977
      %v2882 = vpack.c.bf16 %v2834, %v1978
      %v2883 = vpack.c.bf16 %v2835, %v1979
      %v2884 = vpack.c.bf16 %v2836, %v1980
      %v2885 = vpack.c.bf16 %v2837, %v1981
      %v2886 = vpack.c.bf16 %v2607, %v2591
      %v2887 = vpack.c.bf16 %v2609, %v2593
      %v2888 = vpack.c.bf16 %v2611, %v2595
      %v2889 = vpack.c.bf16 %v2613, %v2597
      %v2890 = vpack.c.bf16 %v2615, %v2599
      %v2891 = vpack.c.bf16 %v2617, %v2601
      %v2892 = vpack.c.bf16 %v2619, %v2603
      %v2893 = vpack.c.bf16 %v2621, %v2605
      %v2894 = vpack.c.bf16 %v1686, %v1678
      %v2895 = vpack.c.bf16 %v1687, %v1679
      %v2896 = vpack.c.bf16 %v1688, %v1680
      %v2897 = vpack.c.bf16 %v1689, %v1681
      %v2898 = vpack.c.bf16 %v1690, %v1682
      %v2899 = vpack.c.bf16 %v1691, %v1683
      %v2900 = vpack.c.bf16 %v1692, %v1684
      %v2901 = vpack.c.bf16 %v1693, %v1685
      %v2902 = vpack.c.bf16 %v2679, %v2838
      %v2903 = vpack.c.bf16 %v2681, %v2839
      %v2904 = vpack.c.bf16 %v2683, %v2840
      %v2905 = vpack.c.bf16 %v2685, %v2841
      %v2906 = vpack.c.bf16 %v2687, %v2842
      %v2907 = vpack.c.bf16 %v2689, %v2843
      %v2908 = vpack.c.bf16 %v2691, %v2844
      %v2909 = vpack.c.bf16 %v2693, %v2845
      %v2910 = vpack.c.bf16 %v2254, %v2695
      %v2911 = vpack.c.bf16 %v2255, %v2697
      %v2912 = vpack.c.bf16 %v2256, %v2699
      %v2913 = vpack.c.bf16 %v2257, %v2701
      %v2914 = vpack.c.bf16 %v2258, %v2703
      %v2915 = vpack.c.bf16 %v2259, %v2705
      %v2916 = vpack.c.bf16 %v2260, %v2707
      %v2917 = vpack.c.bf16 %v2261, %v2709
      %v2918 = vpack.c.bf16 %v2846, %v2262
      %v2919 = vpack.c.bf16 %v2847, %v2263
      %v2920 = vpack.c.bf16 %v2848, %v2264
      %v2921 = vpack.c.bf16 %v2849, %v2265
      %v2922 = vpack.c.bf16 %v2850, %v2266
      %v2923 = vpack.c.bf16 %v2851, %v2267
      %v2924 = vpack.c.bf16 %v2852, %v2268
      %v2925 = vpack.c.bf16 %v2853, %v2269
      %v2926 = vpack.c.bf16 %v2783, %v2767
      %v2927 = vpack.c.bf16 %v2785, %v2769
      %v2928 = vpack.c.bf16 %v2787, %v2771
      %v2929 = vpack.c.bf16 %v2789, %v2773
      %v2930 = vpack.c.bf16 %v2791, %v2775
      %v2931 = vpack.c.bf16 %v2793, %v2777
      %v2932 = vpack.c.bf16 %v2795, %v2779
      %v2933 = vpack.c.bf16 %v2797, %v2781
      %v2934 = vpack.c.bf16 %v2454, %v2446
      %v2935 = vpack.c.bf16 %v2455, %v2447
      %v2936 = vpack.c.bf16 %v2456, %v2448
      %v2937 = vpack.c.bf16 %v2457, %v2449
      %v2938 = vpack.c.bf16 %v2458, %v2450
      %v2939 = vpack.c.bf16 %v2459, %v2451
      %v2940 = vpack.c.bf16 %v2460, %v2452
      %v2941 = vpack.c.bf16 %v2461, %v2453
      %v2942 = vpack.c.bf16 %v2462, %v2462
      %v2943 = vpack.c.bf16 %v2463, %v2463
      %v2944 = vpack.c.bf16 %v2464, %v2464
      %v2945 = vpack.c.bf16 %v2465, %v2465
      %v2946 = vpack.c.bf16 %v2466, %v2466
      %v2947 = vpack.c.bf16 %v2467, %v2467
      %v2948 = vpack.c.bf16 %v2468, %v2468
      %v2949 = vpack.c.bf16 %v2469, %v2469
      %v2950 = vld [vmem:[%s7] sm:$0xff]
      %v2951 = vld [vmem:[%s7 + $0x8] sm:$0xff]
      %v2952 = vld [vmem:[%s7 + $0x10] sm:$0x33]
      %v2953 = vld [vmem:[%s8] sm:$0xff]
      %v2954 = vld [vmem:[%s8 + $0x8] sm:$0xff]
      %v2955 = vld [vmem:[%s8 + $0x10] sm:$0xf]
      %2957 = vset.pattern.permute.xlu0 0
      %2958 = vperm.xlu0 %2957, %v2953
      %v2959 = vpop.permute.xlu0 %2958
      %2962 = vset.pattern.permute.xlu0 0
      %2963 = vperm.xlu0 %2962, %v2954
      %v2964 = vpop.permute.xlu0 %2963
      %2967 = vset.pattern.permute.xlu0 0
      %2968 = vperm.xlu0 %2967, %v2955
      %v2969 = vpop.permute.xlu0 %2968
      %v2974 = vunpack.c.l.b16 %v2950
      %v2975 = vunpack.c.h.b16 %v2950
      %v2976 = vunpack.c.l.b16 %v2951
      %v2977 = vunpack.c.h.b16 %v2951
      %v2978 = vunpack.c.l.b16 %v2952
      %v2979 = vunpack.c.h.b16 %v2952
      %v2980 = vpack.c.b16 %v2976, %v2974
      %v2981 = vpack.c.b16 %v2977, %v2975
      %v2982 = vpack.c.b16 %v2978, %v2978
      %v2983 = vpack.c.b16 %v2979, %v2979
      %vm2986 = vcmask 424960
      %v2988 = vsel %vm2986, %v2981, 0
      %v2991 = vsel %vm2986, %v2983, 0
      %v2994 = vsel %vm1401, %v2942, 0
      %v2997 = vsel %vm1401, %v2943, 0
      %v3000 = vsel %vm1401, %v2944, 0
      %v3003 = vsel %vm1401, %v2945, 0
      %v3006 = vsel %vm1401, %v2946, 0
      %v3009 = vsel %vm1401, %v2947, 0
      %v3012 = vsel %vm1401, %v2948, 0
      %v3015 = vsel %vm1401, %v2949, 0
      %3017 = vmatprep.subr.bf16.mxu0 %v2911
      %3018 = vmatpush1.bf16.msra.mxu0 %v2910
      %3019 = vmatprep.subr.bf16.mxu0 %v2903
      %3020 = vmatpush1.bf16.msra.mxu0 %v2902
      %3021 = vmatprep.subr.bf16.mxu0 %v2895
      %3022 = vmatpush1.bf16.msra.mxu0 %v2894
      %3023 = vmatprep.subr.bf16.mxu0 %v2887
      %3024 = vmatpush1.bf16.msra.mxu0 %v2886
      %3025 = vmatprep.subr.bf16.mxu0 %v2879
      %3026 = vmatpush1.bf16.msra.mxu0 %v2878
      %3027 = vmatprep.subr.bf16.mxu0 %v2871
      %3028 = vmatpush1.bf16.msra.mxu0 %v2870
      %3029 = vmatprep.subr.bf16.mxu0 %v2863
      %3030 = vmatpush1.bf16.msra.mxu0 %v2862
      %3031 = vmatprep.subr.bf16.mxu0 %v2855
      %3032 = vmatpush1.bf16.msra.mxu0 %v2854
      %3033 = vmatprep.subr.bf16.mxu0 0
      %3034 = vmatpush2.bf16.msra.mxu0 0
      %3035 = vmatprep.subr.bf16.mxu0 0
      %3036 = vmatpush2.bf16.msra.mxu0 0
      %3037 = vmatprep.subr.bf16.mxu0 0
      %3038 = vmatpush2.bf16.msra.mxu0 0
      %3039 = vmatprep.subr.bf16.mxu0 0
      %3040 = vmatpush2.bf16.msra.mxu0 0
      %3041 = vmatprep.subr.bf16.mxu0 %v2997
      %3042 = vmatpush2.bf16.msra.mxu0 %v2994
      %3043 = vmatprep.subr.bf16.mxu0 %v2935
      %3044 = vmatpush2.bf16.msra.mxu0 %v2934
      %3045 = vmatprep.subr.bf16.mxu0 %v2927
      %3046 = vmatpush2.bf16.msra.mxu0 %v2926
      %3047 = vmatprep.subr.bf16.mxu0 %v2919
      %3048 = vmatpush2.bf16.msra.mxu0 %v2918
      %3049 = vmatprep.mubr.bf16.mxu0 %v2988
      %3050 = vmatmul.mubr.bf16.gmra.mxu0 %v2980
      %v3051 = vpop.f32.mrf.mxu0
      %v3052 = vadd.f32 %v2959, %v3051
      %v3053 = vpop.f32.mrf.mxu0
      %v3054 = vadd.f32 %v2959, %v3053
      %v3055 = vpop.f32.mrf.mxu0
      %v3056 = vadd.f32 %v2964, %v3055
      %v3057 = vpop.f32.mrf.mxu0
      %v3058 = vadd.f32 %v2964, %v3057
      %3059 = vmatprep.mubr.bf16.mxu0 %v2991
      %3060 = vmatmul.mubr.bf16.gmra.mxu0 %v2982
      %v3061 = vpop.f32.mrf.mxu0
      %v3062 = vadd.f32 %v2969, %v3061
      %v3063 = vpop.f32.mrf.mxu0
      %v3064 = vadd.f32 %v2969, %v3063
      %v3065 = vpop.f32.mrf.mxu0
      %v3066 = vpop.f32.mrf.mxu0
      %3067 = vdwg.mxu0
      %3068 = vmatprep.subr.bf16.mxu0 %v2913
      %3069 = vmatpush1.bf16.msra.mxu0 %v2912
      %3070 = vmatprep.subr.bf16.mxu0 %v2905
      %3071 = vmatpush1.bf16.msra.mxu0 %v2904
      %3072 = vmatprep.subr.bf16.mxu0 %v2897
      %3073 = vmatpush1.bf16.msra.mxu0 %v2896
      %3074 = vmatprep.subr.bf16.mxu0 %v2889
      %3075 = vmatpush1.bf16.msra.mxu0 %v2888
      %3076 = vmatprep.subr.bf16.mxu0 %v2881
      %3077 = vmatpush1.bf16.msra.mxu0 %v2880
      %3078 = vmatprep.subr.bf16.mxu0 %v2873
      %3079 = vmatpush1.bf16.msra.mxu0 %v2872
      %3080 = vmatprep.subr.bf16.mxu0 %v2865
      %3081 = vmatpush1.bf16.msra.mxu0 %v2864
      %3082 = vmatprep.subr.bf16.mxu0 %v2857
      %3083 = vmatpush1.bf16.msra.mxu0 %v2856
      %3084 = vmatprep.subr.bf16.mxu0 0
      %3085 = vmatpush2.bf16.msra.mxu0 0
      %3086 = vmatprep.subr.bf16.mxu0 0
      %3087 = vmatpush2.bf16.msra.mxu0 0
      %3088 = vmatprep.subr.bf16.mxu0 0
      %3089 = vmatpush2.bf16.msra.mxu0 0
      %3090 = vmatprep.subr.bf16.mxu0 0
      %3091 = vmatpush2.bf16.msra.mxu0 0
      %3092 = vmatprep.subr.bf16.mxu0 %v3003
      %3093 = vmatpush2.bf16.msra.mxu0 %v3000
      %3094 = vmatprep.subr.bf16.mxu0 %v2937
      %3095 = vmatpush2.bf16.msra.mxu0 %v2936
      %3096 = vmatprep.subr.bf16.mxu0 %v2929
      %3097 = vmatpush2.bf16.msra.mxu0 %v2928
      %3098 = vmatprep.subr.bf16.mxu0 %v2921
      %3099 = vmatpush2.bf16.msra.mxu0 %v2920
      %3100 = vmatprep.mubr.bf16.mxu0 %v2988
      %3101 = vmatmul.mubr.bf16.gmra.mxu0 %v2980
      %v3102 = vpop.f32.mrf.mxu0
      %v3103 = vadd.f32 %v2959, %v3102
      %v3104 = vpop.f32.mrf.mxu0
      %v3105 = vadd.f32 %v2959, %v3104
      %v3106 = vpop.f32.mrf.mxu0
      %v3107 = vadd.f32 %v2964, %v3106
      %v3108 = vpop.f32.mrf.mxu0
      %v3109 = vadd.f32 %v2964, %v3108
      %3110 = vmatprep.mubr.bf16.mxu0 %v2991
      %3111 = vmatmul.mubr.bf16.gmra.mxu0 %v2982
      %v3112 = vpop.f32.mrf.mxu0
      %v3113 = vadd.f32 %v2969, %v3112
      %v3114 = vpop.f32.mrf.mxu0
      %v3115 = vadd.f32 %v2969, %v3114
      %v3116 = vpop.f32.mrf.mxu0
      %v3117 = vpop.f32.mrf.mxu0
      %3118 = vdwg.mxu0
      %3119 = vmatprep.subr.bf16.mxu0 %v2915
      %3120 = vmatpush1.bf16.msra.mxu0 %v2914
      %3121 = vmatprep.subr.bf16.mxu0 %v2907
      %3122 = vmatpush1.bf16.msra.mxu0 %v2906
      %3123 = vmatprep.subr.bf16.mxu0 %v2899
      %3124 = vmatpush1.bf16.msra.mxu0 %v2898
      %3125 = vmatprep.subr.bf16.mxu0 %v2891
      %3126 = vmatpush1.bf16.msra.mxu0 %v2890
      %3127 = vmatprep.subr.bf16.mxu0 %v2883
      %3128 = vmatpush1.bf16.msra.mxu0 %v2882
      %3129 = vmatprep.subr.bf16.mxu0 %v2875
      %3130 = vmatpush1.bf16.msra.mxu0 %v2874
      %3131 = vmatprep.subr.bf16.mxu0 %v2867
      %3132 = vmatpush1.bf16.msra.mxu0 %v2866
      %3133 = vmatprep.subr.bf16.mxu0 %v2859
      %3134 = vmatpush1.bf16.msra.mxu0 %v2858
      %3135 = vmatprep.subr.bf16.mxu0 0
      %3136 = vmatpush2.bf16.msra.mxu0 0
      %3137 = vmatprep.subr.bf16.mxu0 0
      %3138 = vmatpush2.bf16.msra.mxu0 0
      %3139 = vmatprep.subr.bf16.mxu0 0
      %3140 = vmatpush2.bf16.msra.mxu0 0
      %3141 = vmatprep.subr.bf16.mxu0 0
      %3142 = vmatpush2.bf16.msra.mxu0 0
      %3143 = vmatprep.subr.bf16.mxu0 %v3009
      %3144 = vmatpush2.bf16.msra.mxu0 %v3006
      %3145 = vmatprep.subr.bf16.mxu0 %v2939
      %3146 = vmatpush2.bf16.msra.mxu0 %v2938
      %3147 = vmatprep.subr.bf16.mxu0 %v2931
      %3148 = vmatpush2.bf16.msra.mxu0 %v2930
      %3149 = vmatprep.subr.bf16.mxu0 %v2923
      %3150 = vmatpush2.bf16.msra.mxu0 %v2922
      %3151 = vmatprep.mubr.bf16.mxu0 %v2988
      %3152 = vmatmul.mubr.bf16.gmra.mxu0 %v2980
      %v3153 = vpop.f32.mrf.mxu0
      %v3154 = vadd.f32 %v2959, %v3153
      %v3155 = vpop.f32.mrf.mxu0
      %v3156 = vadd.f32 %v2959, %v3155
      %v3157 = vpop.f32.mrf.mxu0
      %v3158 = vadd.f32 %v2964, %v3157
      %v3159 = vpop.f32.mrf.mxu0
      %v3160 = vadd.f32 %v2964, %v3159
      %3161 = vmatprep.mubr.bf16.mxu0 %v2991
      %3162 = vmatmul.mubr.bf16.gmra.mxu0 %v2982
      %v3163 = vpop.f32.mrf.mxu0
      %v3164 = vadd.f32 %v2969, %v3163
      %v3165 = vpop.f32.mrf.mxu0
      %v3166 = vadd.f32 %v2969, %v3165
      %v3167 = vpop.f32.mrf.mxu0
      %v3168 = vpop.f32.mrf.mxu0
      %3169 = vdwg.mxu0
      %3170 = vmatprep.subr.bf16.mxu0 %v2917
      %3171 = vmatpush1.bf16.msra.mxu0 %v2916
      %3172 = vmatprep.subr.bf16.mxu0 %v2909
      %3173 = vmatpush1.bf16.msra.mxu0 %v2908
      %3174 = vmatprep.subr.bf16.mxu0 %v2901
      %3175 = vmatpush1.bf16.msra.mxu0 %v2900
      %3176 = vmatprep.subr.bf16.mxu0 %v2893
      %3177 = vmatpush1.bf16.msra.mxu0 %v2892
      %3178 = vmatprep.subr.bf16.mxu0 %v2885
      %3179 = vmatpush1.bf16.msra.mxu0 %v2884
      %3180 = vmatprep.subr.bf16.mxu0 %v2877
      %3181 = vmatpush1.bf16.msra.mxu0 %v2876
      %3182 = vmatprep.subr.bf16.mxu0 %v2869
      %3183 = vmatpush1.bf16.msra.mxu0 %v2868
      %3184 = vmatprep.subr.bf16.mxu0 %v2861
      %3185 = vmatpush1.bf16.msra.mxu0 %v2860
      %3186 = vmatprep.subr.bf16.mxu0 0
      %3187 = vmatpush2.bf16.msra.mxu0 0
      %3188 = vmatprep.subr.bf16.mxu0 0
      %3189 = vmatpush2.bf16.msra.mxu0 0
      %3190 = vmatprep.subr.bf16.mxu0 0
      %3191 = vmatpush2.bf16.msra.mxu0 0
      %3192 = vmatprep.subr.bf16.mxu0 0
      %3193 = vmatpush2.bf16.msra.mxu0 0
      %3194 = vmatprep.subr.bf16.mxu0 %v3015
      %3195 = vmatpush2.bf16.msra.mxu0 %v3012
      %3196 = vmatprep.subr.bf16.mxu0 %v2941
      %3197 = vmatpush2.bf16.msra.mxu0 %v2940
      %3198 = vmatprep.subr.bf16.mxu0 %v2933
      %3199 = vmatpush2.bf16.msra.mxu0 %v2932
      %3200 = vmatprep.subr.bf16.mxu0 %v2925
      %3201 = vmatpush2.bf16.msra.mxu0 %v2924
      %3202 = vmatprep.mubr.bf16.mxu0 %v2988
      %3203 = vmatmul.mubr.bf16.gmra.mxu0 %v2980
      %v3204 = vpop.f32.mrf.mxu0
      %v3205 = vadd.f32 %v2959, %v3204
      %v3206 = vpop.f32.mrf.mxu0
      %v3207 = vadd.f32 %v2959, %v3206
      %v3208 = vpop.f32.mrf.mxu0
      %v3209 = vadd.f32 %v2964, %v3208
      %v3210 = vpop.f32.mrf.mxu0
      %v3211 = vadd.f32 %v2964, %v3210
      %3212 = vmatprep.mubr.bf16.mxu0 %v2991
      %3213 = vmatmul.mubr.bf16.gmra.mxu0 %v2982
      %v3214 = vpop.f32.mrf.mxu0
      %v3215 = vadd.f32 %v2969, %v3214
      %v3216 = vpop.f32.mrf.mxu0
      %v3217 = vadd.f32 %v2969, %v3216
      %v3218 = vpop.f32.mrf.mxu0
      %v3219 = vpop.f32.mrf.mxu0
      %3220 = vdwg.mxu0
      %vm3221 = vcmp.gt.f32.partialorder %v3052, 0.0
      %vm3222 = vcmp.gt.f32.partialorder %v3054, 0.0
      %vm3223 = vcmp.gt.f32.partialorder %v3103, 0.0
      %vm3224 = vcmp.gt.f32.partialorder %v3105, 0.0
      %vm3225 = vcmp.gt.f32.partialorder %v3154, 0.0
      %vm3226 = vcmp.gt.f32.partialorder %v3156, 0.0
      %vm3227 = vcmp.gt.f32.partialorder %v3205, 0.0
      %vm3228 = vcmp.gt.f32.partialorder %v3207, 0.0
      %vm3229 = vcmp.gt.f32.partialorder %v3056, 0.0
      %vm3230 = vcmp.gt.f32.partialorder %v3058, 0.0
      %vm3231 = vcmp.gt.f32.partialorder %v3107, 0.0
      %vm3232 = vcmp.gt.f32.partialorder %v3109, 0.0
      %vm3233 = vcmp.gt.f32.partialorder %v3158, 0.0
      %vm3234 = vcmp.gt.f32.partialorder %v3160, 0.0
      %vm3235 = vcmp.gt.f32.partialorder %v3209, 0.0
      %vm3236 = vcmp.gt.f32.partialorder %v3211, 0.0
      %vm3237 = vcmp.gt.f32.partialorder %v3062, 0.0
      %vm3238 = vcmp.gt.f32.partialorder %v3064, 0.0
      %vm3239 = vcmp.gt.f32.partialorder %v3113, 0.0
      %vm3240 = vcmp.gt.f32.partialorder %v3115, 0.0
      %vm3241 = vcmp.gt.f32.partialorder %v3164, 0.0
      %vm3242 = vcmp.gt.f32.partialorder %v3166, 0.0
      %vm3243 = vcmp.gt.f32.partialorder %v3215, 0.0
      %vm3244 = vcmp.gt.f32.partialorder %v3217, 0.0
      %v3245 = vmul.f32 %v3052, 0.2
      %v3246 = vmul.f32 %v3054, 0.2
      %v3247 = vmul.f32 %v3103, 0.2
      %v3248 = vmul.f32 %v3105, 0.2
      %v3249 = vmul.f32 %v3154, 0.2
      %v3250 = vmul.f32 %v3156, 0.2
      %v3251 = vmul.f32 %v3205, 0.2
      %v3252 = vmul.f32 %v3207, 0.2
      %v3253 = vmul.f32 %v3056, 0.2
      %v3254 = vmul.f32 %v3058, 0.2
      %v3255 = vmul.f32 %v3107, 0.2
      %v3256 = vmul.f32 %v3109, 0.2
      %v3257 = vmul.f32 %v3158, 0.2
      %v3258 = vmul.f32 %v3160, 0.2
      %v3259 = vmul.f32 %v3209, 0.2
      %v3260 = vmul.f32 %v3211, 0.2
      %v3261 = vmul.f32 %v3062, 0.2
      %v3262 = vmul.f32 %v3064, 0.2
      %v3263 = vmul.f32 %v3113, 0.2
      %v3264 = vmul.f32 %v3115, 0.2
      %v3265 = vmul.f32 %v3164, 0.2
      %v3266 = vmul.f32 %v3166, 0.2
      %v3267 = vmul.f32 %v3215, 0.2
      %v3268 = vmul.f32 %v3217, 0.2
      %v3269 = vsel %vm3221, %v3052, %v3245
      %v3270 = vsel %vm3222, %v3054, %v3246
      %v3271 = vsel %vm3223, %v3103, %v3247
      %v3272 = vsel %vm3224, %v3105, %v3248
      %v3273 = vsel %vm3225, %v3154, %v3249
      %v3274 = vsel %vm3226, %v3156, %v3250
      %v3275 = vsel %vm3227, %v3205, %v3251
      %v3276 = vsel %vm3228, %v3207, %v3252
      %v3277 = vsel %vm3229, %v3056, %v3253
      %v3278 = vsel %vm3230, %v3058, %v3254
      %v3279 = vsel %vm3231, %v3107, %v3255
      %v3280 = vsel %vm3232, %v3109, %v3256
      %v3281 = vsel %vm3233, %v3158, %v3257
      %v3282 = vsel %vm3234, %v3160, %v3258
      %v3283 = vsel %vm3235, %v3209, %v3259
      %v3284 = vsel %vm3236, %v3211, %v3260
      %v3285 = vsel %vm3237, %v3062, %v3261
      %v3286 = vsel %vm3238, %v3064, %v3262
      %v3287 = vsel %vm3239, %v3113, %v3263
      %v3288 = vsel %vm3240, %v3115, %v3264
      %v3289 = vsel %vm3241, %v3164, %v3265
      %v3290 = vsel %vm3242, %v3166, %v3266
      %v3291 = vsel %vm3243, %v3215, %v3267
      %v3292 = vsel %vm3244, %v3217, %v3268
      %v3293 = vpack.c.bf16 %v3277, %v3269
      %v3294 = vpack.c.bf16 %v3278, %v3270
      %v3295 = vpack.c.bf16 %v3279, %v3271
      %v3296 = vpack.c.bf16 %v3280, %v3272
      %v3297 = vpack.c.bf16 %v3281, %v3273
      %v3298 = vpack.c.bf16 %v3282, %v3274
      %v3299 = vpack.c.bf16 %v3283, %v3275
      %v3300 = vpack.c.bf16 %v3284, %v3276
      %v3301 = vpack.c.bf16 %v3285, %v3285
      %v3302 = vpack.c.bf16 %v3286, %v3286
      %v3303 = vpack.c.bf16 %v3287, %v3287
      %v3304 = vpack.c.bf16 %v3288, %v3288
      %v3305 = vpack.c.bf16 %v3289, %v3289
      %v3306 = vpack.c.bf16 %v3290, %v3290
      %v3307 = vpack.c.bf16 %v3291, %v3291
      %v3308 = vpack.c.bf16 %v3292, %v3292
      %v3309 = vld [vmem:[%s2] sm:$0xf]
      %v3310 = vld [vmem:[%s2 + $0x4] sm:$0xf]
      %v3311 = vld [vmem:[%s2 + $0x8] sm:$0xf]
      %v3312 = vld [vmem:[%s2 + $0xc] sm:$0xf]
      %v3313 = vld [vmem:[%s2 + $0x10] sm:$0xf]
      %v3314 = vld [vmem:[%s2 + $0x14] sm:$0xf]
      %v3315 = vld [vmem:[%s2 + $0x18] sm:$0xf]
      %v3316 = vld [vmem:[%s2 + $0x1c] sm:$0xf]
      %v3317 = vld [vmem:[%s2 + $0x20] sm:$0xf]
      %v3318 = vld [vmem:[%s2 + $0x24] sm:$0xf]
      %v3319 = vld [vmem:[%s2 + $0x28] sm:$0xf]
      %v3320 = vld [vmem:[%s2 + $0x2c] sm:$0xf]
      %v3321 = vld [vmem:[%s2 + $0x30] sm:$0xf]
      %v3322 = vld [vmem:[%s2 + $0x34] sm:$0xf]
      %v3323 = vld [vmem:[%s2 + $0x38] sm:$0xf]
      %v3324 = vld [vmem:[%s2 + $0x3c] sm:$0xf]
      %v3325 = vld [vmem:[%s2 + $0x40] sm:$0xf]
      %v3326 = vld [vmem:[%s2 + $0x44] sm:$0xf]
      %v3327 = vld [vmem:[%s2 + $0x48] sm:$0xf]
      %v3328 = vld [vmem:[%s2 + $0x4c] sm:$0xf]
      %v3329 = vld [vmem:[%s2 + $0x50] sm:$0xf]
      %v3330 = vld [vmem:[%s2 + $0x54] sm:$0xf]
      %v3331 = vld [vmem:[%s2 + $0x58] sm:$0xf]
      %v3332 = vld [vmem:[%s2 + $0x5c] sm:$0xf]
      %v3333 = vld [vmem:[%s2 + $0x60] sm:$0xf]
      %v3334 = vld [vmem:[%s2 + $0x64] sm:$0xf]
      %v3335 = vld [vmem:[%s2 + $0x68] sm:$0xf]
      %v3336 = vld [vmem:[%s2 + $0x6c] sm:$0xf]
      %v3337 = vld [vmem:[%s2 + $0x70] sm:$0xf]
      %v3338 = vld [vmem:[%s2 + $0x74] sm:$0xf]
      %v3339 = vld [vmem:[%s2 + $0x78] sm:$0xf]
      %v3340 = vld [vmem:[%s2 + $0x7c] sm:$0xf]
      %v3341 = vld [vmem:[%s2 + $0x80] sm:$0xf]
      %v3342 = vld [vmem:[%s2 + $0x84] sm:$0xf]
      %v3343 = vld [vmem:[%s2 + $0x88] sm:$0xf]
      %v3344 = vld [vmem:[%s2 + $0x8c] sm:$0xf]
      %v3345 = vld [vmem:[%s2 + $0x90] sm:$0xf]
      %v3346 = vld [vmem:[%s2 + $0x94] sm:$0xf]
      %v3347 = vld [vmem:[%s2 + $0x98] sm:$0xf]
      %v3348 = vld [vmem:[%s2 + $0x9c] sm:$0xf]
      %v3349 = vld [vmem:[%s2 + $0xa0] sm:$0xf]
      %v3350 = vld [vmem:[%s2 + $0xa4] sm:$0xf]
      %v3351 = vld [vmem:[%s2 + $0xa8] sm:$0xf]
      %v3352 = vld [vmem:[%s2 + $0xac] sm:$0xf]
      %v3353 = vld [vmem:[%s2 + $0xb0] sm:$0xf]
      %v3354 = vld [vmem:[%s2 + $0xb4] sm:$0xf]
      %v3355 = vld [vmem:[%s2 + $0xb8] sm:$0xf]
      %v3356 = vld [vmem:[%s2 + $0xbc] sm:$0xf]
      %v3357 = vld [vmem:[%s2 + $0xc0] sm:$0xf]
      %v3358 = vld [vmem:[%s2 + $0xc4] sm:$0xf]
      %v3359 = vld [vmem:[%s2 + $0xc8] sm:$0xf]
      %v3360 = vld [vmem:[%s2 + $0xcc] sm:$0xf]
      %v3361 = vld [vmem:[%s2 + $0xd0] sm:$0xf]
      %v3362 = vld [vmem:[%s2 + $0xd4] sm:$0xf]
      %v3363 = vld [vmem:[%s2 + $0xd8] sm:$0xf]
      %v3364 = vld [vmem:[%s2 + $0xdc] sm:$0xf]
      %v3365 = vld [vmem:[%s2 + $0xe0] sm:$0xf]
      %v3366 = vld [vmem:[%s2 + $0xe4] sm:$0xf]
      %v3367 = vld [vmem:[%s2 + $0xe8] sm:$0xf]
      %v3368 = vld [vmem:[%s2 + $0xec] sm:$0xf]
      %v3369 = vld [vmem:[%s2 + $0xf0] sm:$0xf]
      %v3370 = vld [vmem:[%s2 + $0xf4] sm:$0xf]
      %v3371 = vld [vmem:[%s2 + $0xf8] sm:$0xf]
      %v3372 = vld [vmem:[%s2 + $0xfc] sm:$0xf]
      %v3373 = vld [vmem:[%s2 + $0x100] sm:$0xf]
      %v3374 = vld [vmem:[%s2 + $0x104] sm:$0xf]
      %v3375 = vld [vmem:[%s2 + $0x108] sm:$0xf]
      %v3376 = vld [vmem:[%s2 + $0x10c] sm:$0xf]
      %v3377 = vld [vmem:[%s2 + $0x110] sm:$0xf]
      %v3378 = vld [vmem:[%s2 + $0x114] sm:$0xf]
      %v3379 = vld [vmem:[%s2 + $0x118] sm:$0xf]
      %v3380 = vld [vmem:[%s2 + $0x11c] sm:$0xf]
      %v3381 = vld [vmem:[%s2 + $0x120] sm:$0xf]
      %v3382 = vld [vmem:[%s2 + $0x124] sm:$0xf]
      %v3383 = vld [vmem:[%s2 + $0x128] sm:$0xf]
      %v3384 = vld [vmem:[%s2 + $0x12c] sm:$0xf]
      %v3385 = vld [vmem:[%s2 + $0x130] sm:$0xf]
      %v3386 = vld [vmem:[%s2 + $0x134] sm:$0xf]
      %v3387 = vld [vmem:[%s2 + $0x138] sm:$0xf]
      %v3388 = vld [vmem:[%s2 + $0x13c] sm:$0xf]
      %v3389 = vld [vmem:[%s2 + $0x140] sm:$0xf]
      %v3390 = vld [vmem:[%s2 + $0x144] sm:$0xf]
      %v3391 = vld [vmem:[%s2 + $0x148] sm:$0xf]
      %v3392 = vld [vmem:[%s2 + $0x14c] sm:$0xf]
      %v3393 = vld [vmem:[%s2 + $0x150] sm:$0xf]
      %v3394 = vld [vmem:[%s2 + $0x154] sm:$0xf]
      %v3395 = vld [vmem:[%s2 + $0x158] sm:$0xf]
      %v3396 = vld [vmem:[%s2 + $0x15c] sm:$0xf]
      %v3397 = vld [vmem:[%s2 + $0x160] sm:$0xf]
      %v3398 = vld [vmem:[%s2 + $0x164] sm:$0xf]
      %v3399 = vld [vmem:[%s2 + $0x168] sm:$0xf]
      %v3400 = vld [vmem:[%s2 + $0x16c] sm:$0xf]
      %v3401 = vld [vmem:[%s2 + $0x170] sm:$0xf]
      %v3402 = vld [vmem:[%s2 + $0x174] sm:$0xf]
      %v3403 = vld [vmem:[%s2 + $0x178] sm:$0xf]
      %v3404 = vld [vmem:[%s2 + $0x17c] sm:$0xf]
      %v3405 = vld [vmem:[%s2 + $0x180] sm:$0xf]
      %v3406 = vld [vmem:[%s2 + $0x184] sm:$0xf]
      %v3407 = vld [vmem:[%s2 + $0x188] sm:$0xf]
      %v3408 = vld [vmem:[%s2 + $0x18c] sm:$0xf]
      %v3409 = vld [vmem:[%s2 + $0x190] sm:$0xf]
      %v3410 = vld [vmem:[%s2 + $0x194] sm:$0xf]
      %v3411 = vld [vmem:[%s2 + $0x198] sm:$0xf]
      %v3412 = vld [vmem:[%s2 + $0x19c] sm:$0xf]
      %v3413 = vld [vmem:[%s2 + $0x1a0] sm:$0xf]
      %v3414 = vld [vmem:[%s2 + $0x1a4] sm:$0xf]
      %v3415 = vld [vmem:[%s2 + $0x1a8] sm:$0xf]
      %v3416 = vld [vmem:[%s2 + $0x1ac] sm:$0xf]
      %v3417 = vld [vmem:[%s2 + $0x1b0] sm:$0xf]
      %v3418 = vld [vmem:[%s2 + $0x1b4] sm:$0xf]
      %v3419 = vld [vmem:[%s2 + $0x1b8] sm:$0xf]
      %v3420 = vld [vmem:[%s2 + $0x1bc] sm:$0xf]
      %v3421 = vld [vmem:[%s2 + $0x1c0] sm:$0xf]
      %v3422 = vld [vmem:[%s2 + $0x1c4] sm:$0xf]
      %v3423 = vld [vmem:[%s2 + $0x1c8] sm:$0xf]
      %v3424 = vld [vmem:[%s2 + $0x1cc] sm:$0xf]
      %v3425 = vld [vmem:[%s2 + $0x1d0] sm:$0xf]
      %v3426 = vld [vmem:[%s2 + $0x1d4] sm:$0xf]
      %v3427 = vld [vmem:[%s2 + $0x1d8] sm:$0xf]
      %v3428 = vld [vmem:[%s2 + $0x1dc] sm:$0xf]
      %v3429 = vld [vmem:[%s2 + $0x1e0] sm:$0xf]
      %v3430 = vld [vmem:[%s2 + $0x1e4] sm:$0xf]
      %v3431 = vld [vmem:[%s2 + $0x1e8] sm:$0xf]
      %v3432 = vld [vmem:[%s2 + $0x1ec] sm:$0xf]
      %v3433 = vld [vmem:[%s2 + $0x1f0] sm:$0xf]
      %v3434 = vld [vmem:[%s2 + $0x1f4] sm:$0xf]
      %v3435 = vld [vmem:[%s2 + $0x1f8] sm:$0xf]
      %v3436 = vld [vmem:[%s2 + $0x1fc] sm:$0xf]
      %v3565 = vunpack.c.l.b16 %v3309
      %v3566 = vunpack.c.l.b16 %v3310
      %v3567 = vunpack.c.l.b16 %v3311
      %v3568 = vunpack.c.l.b16 %v3312
      %v3569 = vunpack.c.l.b16 %v3313
      %v3570 = vunpack.c.l.b16 %v3314
      %v3571 = vunpack.c.l.b16 %v3315
      %v3572 = vunpack.c.l.b16 %v3316
      %v3573 = vunpack.c.l.b16 %v3317
      %v3574 = vunpack.c.l.b16 %v3318
      %v3575 = vunpack.c.l.b16 %v3319
      %v3576 = vunpack.c.l.b16 %v3320
      %v3577 = vunpack.c.l.b16 %v3321
      %v3578 = vunpack.c.l.b16 %v3322
      %v3579 = vunpack.c.l.b16 %v3323
      %v3580 = vunpack.c.l.b16 %v3324
      %v3581 = vunpack.c.l.b16 %v3325
      %v3582 = vunpack.c.l.b16 %v3326
      %v3583 = vunpack.c.l.b16 %v3327
      %v3584 = vunpack.c.l.b16 %v3328
      %v3585 = vunpack.c.l.b16 %v3329
      %v3586 = vunpack.c.l.b16 %v3330
      %v3587 = vunpack.c.l.b16 %v3331
      %v3588 = vunpack.c.l.b16 %v3332
      %v3589 = vunpack.c.l.b16 %v3333
      %v3590 = vunpack.c.l.b16 %v3334
      %v3591 = vunpack.c.l.b16 %v3335
      %v3592 = vunpack.c.l.b16 %v3336
      %v3593 = vunpack.c.l.b16 %v3337
      %v3594 = vunpack.c.l.b16 %v3338
      %v3595 = vunpack.c.l.b16 %v3339
      %v3596 = vunpack.c.l.b16 %v3340
      %v3597 = vunpack.c.l.b16 %v3341
      %v3598 = vunpack.c.l.b16 %v3342
      %v3599 = vunpack.c.l.b16 %v3343
      %v3600 = vunpack.c.l.b16 %v3344
      %v3601 = vunpack.c.l.b16 %v3345
      %v3602 = vunpack.c.l.b16 %v3346
      %v3603 = vunpack.c.l.b16 %v3347
      %v3604 = vunpack.c.l.b16 %v3348
      %v3605 = vunpack.c.l.b16 %v3349
      %v3606 = vunpack.c.l.b16 %v3350
      %v3607 = vunpack.c.l.b16 %v3351
      %v3608 = vunpack.c.l.b16 %v3352
      %v3609 = vunpack.c.l.b16 %v3353
      %v3610 = vunpack.c.l.b16 %v3354
      %v3611 = vunpack.c.l.b16 %v3355
      %v3612 = vunpack.c.l.b16 %v3356
      %v3613 = vunpack.c.l.b16 %v3357
      %v3614 = vunpack.c.l.b16 %v3358
      %v3615 = vunpack.c.l.b16 %v3359
      %v3616 = vunpack.c.l.b16 %v3360
      %v3617 = vunpack.c.l.b16 %v3361
      %v3618 = vunpack.c.l.b16 %v3362
      %v3619 = vunpack.c.l.b16 %v3363
      %v3620 = vunpack.c.l.b16 %v3364
      %v3621 = vunpack.c.l.b16 %v3365
      %v3622 = vunpack.c.l.b16 %v3366
      %v3623 = vunpack.c.l.b16 %v3367
      %v3624 = vunpack.c.l.b16 %v3368
      %v3625 = vunpack.c.l.b16 %v3369
      %v3626 = vunpack.c.l.b16 %v3370
      %v3627 = vunpack.c.l.b16 %v3371
      %v3628 = vunpack.c.l.b16 %v3372
      %v3629 = vunpack.c.l.b16 %v3373
      %v3630 = vunpack.c.l.b16 %v3374
      %v3631 = vunpack.c.l.b16 %v3375
      %v3632 = vunpack.c.l.b16 %v3376
      %v3633 = vunpack.c.l.b16 %v3377
      %v3634 = vunpack.c.l.b16 %v3378
      %v3635 = vunpack.c.l.b16 %v3379
      %v3636 = vunpack.c.l.b16 %v3380
      %v3637 = vunpack.c.l.b16 %v3381
      %v3638 = vunpack.c.l.b16 %v3382
      %v3639 = vunpack.c.l.b16 %v3383
      %v3640 = vunpack.c.l.b16 %v3384
      %v3641 = vunpack.c.l.b16 %v3385
      %v3642 = vunpack.c.l.b16 %v3386
      %v3643 = vunpack.c.l.b16 %v3387
      %v3644 = vunpack.c.l.b16 %v3388
      %v3645 = vunpack.c.l.b16 %v3389
      %v3646 = vunpack.c.l.b16 %v3390
      %v3647 = vunpack.c.l.b16 %v3391
      %v3648 = vunpack.c.l.b16 %v3392
      %v3649 = vunpack.c.l.b16 %v3393
      %v3650 = vunpack.c.l.b16 %v3394
      %v3651 = vunpack.c.l.b16 %v3395
      %v3652 = vunpack.c.l.b16 %v3396
      %v3653 = vunpack.c.l.b16 %v3397
      %v3654 = vunpack.c.l.b16 %v3398
      %v3655 = vunpack.c.l.b16 %v3399
      %v3656 = vunpack.c.l.b16 %v3400
      %v3657 = vunpack.c.l.b16 %v3401
      %v3658 = vunpack.c.l.b16 %v3402
      %v3659 = vunpack.c.l.b16 %v3403
      %v3660 = vunpack.c.l.b16 %v3404
      %v3661 = vunpack.c.l.b16 %v3405
      %v3662 = vunpack.c.l.b16 %v3406
      %v3663 = vunpack.c.l.b16 %v3407
      %v3664 = vunpack.c.l.b16 %v3408
      %v3665 = vunpack.c.l.b16 %v3409
      %v3666 = vunpack.c.l.b16 %v3410
      %v3667 = vunpack.c.l.b16 %v3411
      %v3668 = vunpack.c.l.b16 %v3412
      %v3669 = vunpack.c.l.b16 %v3413
      %v3670 = vunpack.c.l.b16 %v3414
      %v3671 = vunpack.c.l.b16 %v3415
      %v3672 = vunpack.c.l.b16 %v3416
      %v3673 = vunpack.c.l.b16 %v3417
      %v3674 = vunpack.c.l.b16 %v3418
      %v3675 = vunpack.c.l.b16 %v3419
      %v3676 = vunpack.c.l.b16 %v3420
      %v3677 = vunpack.c.l.b16 %v3421
      %v3678 = vunpack.c.l.b16 %v3422
      %v3679 = vunpack.c.l.b16 %v3423
      %v3680 = vunpack.c.l.b16 %v3424
      %v3681 = vunpack.c.l.b16 %v3425
      %v3682 = vunpack.c.l.b16 %v3426
      %v3683 = vunpack.c.l.b16 %v3427
      %v3684 = vunpack.c.l.b16 %v3428
      %v3685 = vunpack.c.l.b16 %v3429
      %v3686 = vunpack.c.l.b16 %v3430
      %v3687 = vunpack.c.l.b16 %v3431
      %v3688 = vunpack.c.l.b16 %v3432
      %v3689 = vunpack.c.l.b16 %v3433
      %v3690 = vunpack.c.l.b16 %v3434
      %v3691 = vunpack.c.l.b16 %v3435
      %v3692 = vunpack.c.l.b16 %v3436
      %v3693 = vpack.c.b16 %v3566, %v3565
      %v3694 = vpack.c.b16 %v3568, %v3567
      %v3695 = vpack.c.b16 %v3570, %v3569
      %v3696 = vpack.c.b16 %v3572, %v3571
      %v3697 = vpack.c.b16 %v3574, %v3573
      %v3698 = vpack.c.b16 %v3576, %v3575
      %v3699 = vpack.c.b16 %v3578, %v3577
      %v3700 = vpack.c.b16 %v3580, %v3579
      %v3701 = vpack.c.b16 %v3582, %v3581
      %v3702 = vpack.c.b16 %v3584, %v3583
      %v3703 = vpack.c.b16 %v3586, %v3585
      %v3704 = vpack.c.b16 %v3588, %v3587
      %v3705 = vpack.c.b16 %v3590, %v3589
      %v3706 = vpack.c.b16 %v3592, %v3591
      %v3707 = vpack.c.b16 %v3594, %v3593
      %v3708 = vpack.c.b16 %v3596, %v3595
      %v3709 = vpack.c.b16 %v3598, %v3597
      %v3710 = vpack.c.b16 %v3600, %v3599
      %v3711 = vpack.c.b16 %v3602, %v3601
      %v3712 = vpack.c.b16 %v3604, %v3603
      %v3713 = vpack.c.b16 %v3606, %v3605
      %v3714 = vpack.c.b16 %v3608, %v3607
      %v3715 = vpack.c.b16 %v3610, %v3609
      %v3716 = vpack.c.b16 %v3612, %v3611
      %v3717 = vpack.c.b16 %v3614, %v3613
      %v3718 = vpack.c.b16 %v3616, %v3615
      %v3719 = vpack.c.b16 %v3618, %v3617
      %v3720 = vpack.c.b16 %v3620, %v3619
      %v3721 = vpack.c.b16 %v3622, %v3621
      %v3722 = vpack.c.b16 %v3624, %v3623
      %v3723 = vpack.c.b16 %v3626, %v3625
      %v3724 = vpack.c.b16 %v3628, %v3627
      %v3725 = vpack.c.b16 %v3630, %v3629
      %v3726 = vpack.c.b16 %v3632, %v3631
      %v3727 = vpack.c.b16 %v3634, %v3633
      %v3728 = vpack.c.b16 %v3636, %v3635
      %v3729 = vpack.c.b16 %v3638, %v3637
      %v3730 = vpack.c.b16 %v3640, %v3639
      %v3731 = vpack.c.b16 %v3642, %v3641
      %v3732 = vpack.c.b16 %v3644, %v3643
      %v3733 = vpack.c.b16 %v3646, %v3645
      %v3734 = vpack.c.b16 %v3648, %v3647
      %v3735 = vpack.c.b16 %v3650, %v3649
      %v3736 = vpack.c.b16 %v3652, %v3651
      %v3737 = vpack.c.b16 %v3654, %v3653
      %v3738 = vpack.c.b16 %v3656, %v3655
      %v3739 = vpack.c.b16 %v3658, %v3657
      %v3740 = vpack.c.b16 %v3660, %v3659
      %v3741 = vpack.c.b16 %v3662, %v3661
      %v3742 = vpack.c.b16 %v3664, %v3663
      %v3743 = vpack.c.b16 %v3666, %v3665
      %v3744 = vpack.c.b16 %v3668, %v3667
      %v3745 = vpack.c.b16 %v3670, %v3669
      %v3746 = vpack.c.b16 %v3672, %v3671
      %v3747 = vpack.c.b16 %v3674, %v3673
      %v3748 = vpack.c.b16 %v3676, %v3675
      %v3749 = vpack.c.b16 %v3678, %v3677
      %v3750 = vpack.c.b16 %v3680, %v3679
      %v3751 = vpack.c.b16 %v3682, %v3681
      %v3752 = vpack.c.b16 %v3684, %v3683
      %v3753 = vpack.c.b16 %v3686, %v3685
      %v3754 = vpack.c.b16 %v3688, %v3687
      %v3755 = vpack.c.b16 %v3690, %v3689
      %v3756 = vpack.c.b16 %v3692, %v3691
      %3821 = vmatprep.subr.bf16.mxu0 0
      %3822 = vmatpush1.bf16.msra.mxu0 %v3700
      %3823 = vmatprep.subr.bf16.mxu0 0
      %3824 = vmatpush1.bf16.msra.mxu0 %v3699
      %3825 = vmatprep.subr.bf16.mxu0 0
      %3826 = vmatpush1.bf16.msra.mxu0 %v3698
      %3827 = vmatprep.subr.bf16.mxu0 0
      %3828 = vmatpush1.bf16.msra.mxu0 %v3697
      %3829 = vmatprep.subr.bf16.mxu0 0
      %3830 = vmatpush1.bf16.msra.mxu0 %v3696
      %3831 = vmatprep.subr.bf16.mxu0 0
      %3832 = vmatpush1.bf16.msra.mxu0 %v3695
      %3833 = vmatprep.subr.bf16.mxu0 0
      %3834 = vmatpush1.bf16.msra.mxu0 %v3694
      %3835 = vmatprep.subr.bf16.mxu0 0
      %3836 = vmatpush1.bf16.msra.mxu0 %v3693
      %3837 = vmatprep.subr.bf16.mxu0 0
      %3838 = vmatpush2.bf16.msra.mxu0 %v3708
      %3839 = vmatprep.subr.bf16.mxu0 0
      %3840 = vmatpush2.bf16.msra.mxu0 %v3707
      %3841 = vmatprep.subr.bf16.mxu0 0
      %3842 = vmatpush2.bf16.msra.mxu0 %v3706
      %3843 = vmatprep.subr.bf16.mxu0 0
      %3844 = vmatpush2.bf16.msra.mxu0 %v3705
      %3845 = vmatprep.subr.bf16.mxu0 0
      %3846 = vmatpush2.bf16.msra.mxu0 %v3704
      %3847 = vmatprep.subr.bf16.mxu0 0
      %3848 = vmatpush2.bf16.msra.mxu0 %v3703
      %3849 = vmatprep.subr.bf16.mxu0 0
      %3850 = vmatpush2.bf16.msra.mxu0 %v3702
      %3851 = vmatprep.subr.bf16.mxu0 0
      %3852 = vmatpush2.bf16.msra.mxu0 %v3701
      %3853 = vmatprep.mubr.bf16.mxu0 %v3294
      %3854 = vmatmul.mubr.bf16.gmra.mxu0 %v3293
      %v3855 = vpop.f32.mrf.mxu0
      %v3856 = vadd.f32 0.0, %v3855
      %v3857 = vpop.f32.mrf.mxu0
      %v3858 = vpop.f32.mrf.mxu0
      %v3859 = vadd.f32 0.0, %v3858
      %v3860 = vpop.f32.mrf.mxu0
      %3861 = vmatprep.mubr.bf16.mxu0 %v3302
      %3862 = vmatmul.mubr.bf16.gmra.mxu0 %v3301
      %v3863 = vpop.f32.mrf.mxu0
      %v3864 = vadd.f32 0.0, %v3863
      %v3865 = vpop.f32.mrf.mxu0
      %v3866 = vpop.f32.mrf.mxu0
      %v3867 = vpop.f32.mrf.mxu0
      %3868 = vdwg.mxu0
      %3869 = vmatprep.subr.bf16.mxu0 0
      %3870 = vmatpush1.bf16.msra.mxu0 %v3716
      %3871 = vmatprep.subr.bf16.mxu0 0
      %3872 = vmatpush1.bf16.msra.mxu0 %v3715
      %3873 = vmatprep.subr.bf16.mxu0 0
      %3874 = vmatpush1.bf16.msra.mxu0 %v3714
      %3875 = vmatprep.subr.bf16.mxu0 0
      %3876 = vmatpush1.bf16.msra.mxu0 %v3713
      %3877 = vmatprep.subr.bf16.mxu0 0
      %3878 = vmatpush1.bf16.msra.mxu0 %v3712
      %3879 = vmatprep.subr.bf16.mxu0 0
      %3880 = vmatpush1.bf16.msra.mxu0 %v3711
      %3881 = vmatprep.subr.bf16.mxu0 0
      %3882 = vmatpush1.bf16.msra.mxu0 %v3710
      %3883 = vmatprep.subr.bf16.mxu0 0
      %3884 = vmatpush1.bf16.msra.mxu0 %v3709
      %3885 = vmatprep.subr.bf16.mxu0 0
      %3886 = vmatpush2.bf16.msra.mxu0 %v3724
      %3887 = vmatprep.subr.bf16.mxu0 0
      %3888 = vmatpush2.bf16.msra.mxu0 %v3723
      %3889 = vmatprep.subr.bf16.mxu0 0
      %3890 = vmatpush2.bf16.msra.mxu0 %v3722
      %3891 = vmatprep.subr.bf16.mxu0 0
      %3892 = vmatpush2.bf16.msra.mxu0 %v3721
      %3893 = vmatprep.subr.bf16.mxu0 0
      %3894 = vmatpush2.bf16.msra.mxu0 %v3720
      %3895 = vmatprep.subr.bf16.mxu0 0
      %3896 = vmatpush2.bf16.msra.mxu0 %v3719
      %3897 = vmatprep.subr.bf16.mxu0 0
      %3898 = vmatpush2.bf16.msra.mxu0 %v3718
      %3899 = vmatprep.subr.bf16.mxu0 0
      %3900 = vmatpush2.bf16.msra.mxu0 %v3717
      %3901 = vmatprep.mubr.bf16.mxu0 %v3296
      %3902 = vmatmul.mubr.bf16.gmra.mxu0 %v3295
      %v3903 = vpop.f32.mrf.mxu0
      %v3904 = vadd.f32 %v3856, %v3903
      %v3905 = vpop.f32.mrf.mxu0
      %v3906 = vpop.f32.mrf.mxu0
      %v3907 = vadd.f32 %v3859, %v3906
      %v3908 = vpop.f32.mrf.mxu0
      %3909 = vmatprep.mubr.bf16.mxu0 %v3304
      %3910 = vmatmul.mubr.bf16.gmra.mxu0 %v3303
      %v3911 = vpop.f32.mrf.mxu0
      %v3912 = vadd.f32 %v3864, %v3911
      %v3913 = vpop.f32.mrf.mxu0
      %v3914 = vpop.f32.mrf.mxu0
      %v3915 = vpop.f32.mrf.mxu0
      %3916 = vdwg.mxu0
      %3917 = vmatprep.subr.bf16.mxu0 0
      %3918 = vmatpush1.bf16.msra.mxu0 %v3732
      %3919 = vmatprep.subr.bf16.mxu0 0
      %3920 = vmatpush1.bf16.msra.mxu0 %v3731
      %3921 = vmatprep.subr.bf16.mxu0 0
      %3922 = vmatpush1.bf16.msra.mxu0 %v3730
      %3923 = vmatprep.subr.bf16.mxu0 0
      %3924 = vmatpush1.bf16.msra.mxu0 %v3729
      %3925 = vmatprep.subr.bf16.mxu0 0
      %3926 = vmatpush1.bf16.msra.mxu0 %v3728
      %3927 = vmatprep.subr.bf16.mxu0 0
      %3928 = vmatpush1.bf16.msra.mxu0 %v3727
      %3929 = vmatprep.subr.bf16.mxu0 0
      %3930 = vmatpush1.bf16.msra.mxu0 %v3726
      %3931 = vmatprep.subr.bf16.mxu0 0
      %3932 = vmatpush1.bf16.msra.mxu0 %v3725
      %3933 = vmatprep.subr.bf16.mxu0 0
      %3934 = vmatpush2.bf16.msra.mxu0 %v3740
      %3935 = vmatprep.subr.bf16.mxu0 0
      %3936 = vmatpush2.bf16.msra.mxu0 %v3739
      %3937 = vmatprep.subr.bf16.mxu0 0
      %3938 = vmatpush2.bf16.msra.mxu0 %v3738
      %3939 = vmatprep.subr.bf16.mxu0 0
      %3940 = vmatpush2.bf16.msra.mxu0 %v3737
      %3941 = vmatprep.subr.bf16.mxu0 0
      %3942 = vmatpush2.bf16.msra.mxu0 %v3736
      %3943 = vmatprep.subr.bf16.mxu0 0
      %3944 = vmatpush2.bf16.msra.mxu0 %v3735
      %3945 = vmatprep.subr.bf16.mxu0 0
      %3946 = vmatpush2.bf16.msra.mxu0 %v3734
      %3947 = vmatprep.subr.bf16.mxu0 0
      %3948 = vmatpush2.bf16.msra.mxu0 %v3733
      %3949 = vmatprep.mubr.bf16.mxu0 %v3298
      %3950 = vmatmul.mubr.bf16.gmra.mxu0 %v3297
      %v3951 = vpop.f32.mrf.mxu0
      %v3952 = vadd.f32 %v3904, %v3951
      %v3953 = vpop.f32.mrf.mxu0
      %v3954 = vpop.f32.mrf.mxu0
      %v3955 = vadd.f32 %v3907, %v3954
      %v3956 = vpop.f32.mrf.mxu0
      %3957 = vmatprep.mubr.bf16.mxu0 %v3306
      %3958 = vmatmul.mubr.bf16.gmra.mxu0 %v3305
      %v3959 = vpop.f32.mrf.mxu0
      %v3960 = vadd.f32 %v3912, %v3959
      %v3961 = vpop.f32.mrf.mxu0
      %v3962 = vpop.f32.mrf.mxu0
      %v3963 = vpop.f32.mrf.mxu0
      %3964 = vdwg.mxu0
      %3965 = vmatprep.subr.bf16.mxu0 0
      %3966 = vmatpush1.bf16.msra.mxu0 %v3748
      %3967 = vmatprep.subr.bf16.mxu0 0
      %3968 = vmatpush1.bf16.msra.mxu0 %v3747
      %3969 = vmatprep.subr.bf16.mxu0 0
      %3970 = vmatpush1.bf16.msra.mxu0 %v3746
      %3971 = vmatprep.subr.bf16.mxu0 0
      %3972 = vmatpush1.bf16.msra.mxu0 %v3745
      %3973 = vmatprep.subr.bf16.mxu0 0
      %3974 = vmatpush1.bf16.msra.mxu0 %v3744
      %3975 = vmatprep.subr.bf16.mxu0 0
      %3976 = vmatpush1.bf16.msra.mxu0 %v3743
      %3977 = vmatprep.subr.bf16.mxu0 0
      %3978 = vmatpush1.bf16.msra.mxu0 %v3742
      %3979 = vmatprep.subr.bf16.mxu0 0
      %3980 = vmatpush1.bf16.msra.mxu0 %v3741
      %3981 = vmatprep.subr.bf16.mxu0 0
      %3982 = vmatpush2.bf16.msra.mxu0 %v3756
      %3983 = vmatprep.subr.bf16.mxu0 0
      %3984 = vmatpush2.bf16.msra.mxu0 %v3755
      %3985 = vmatprep.subr.bf16.mxu0 0
      %3986 = vmatpush2.bf16.msra.mxu0 %v3754
      %3987 = vmatprep.subr.bf16.mxu0 0
      %3988 = vmatpush2.bf16.msra.mxu0 %v3753
      %3989 = vmatprep.subr.bf16.mxu0 0
      %3990 = vmatpush2.bf16.msra.mxu0 %v3752
      %3991 = vmatprep.subr.bf16.mxu0 0
      %3992 = vmatpush2.bf16.msra.mxu0 %v3751
      %3993 = vmatprep.subr.bf16.mxu0 0
      %3994 = vmatpush2.bf16.msra.mxu0 %v3750
      %3995 = vmatprep.subr.bf16.mxu0 0
      %3996 = vmatpush2.bf16.msra.mxu0 %v3749
      %3997 = vmatprep.mubr.bf16.mxu0 %v3300
      %3998 = vmatmul.mubr.bf16.gmra.mxu0 %v3299
      %v3999 = vpop.f32.mrf.mxu0
      %v4000 = vadd.f32 %v3952, %v3999
      %v4001 = vpop.f32.mrf.mxu0
      %v4002 = vpop.f32.mrf.mxu0
      %v4003 = vadd.f32 %v3955, %v4002
      %v4004 = vpop.f32.mrf.mxu0
      %4005 = vmatprep.mubr.bf16.mxu0 %v3308
      %4006 = vmatmul.mubr.bf16.gmra.mxu0 %v3307
      %v4007 = vpop.f32.mrf.mxu0
      %v4008 = vadd.f32 %v3960, %v4007
      %v4009 = vpop.f32.mrf.mxu0
      %v4010 = vpop.f32.mrf.mxu0
      %v4011 = vpop.f32.mrf.mxu0
      %4012 = vdwg.mxu0
      %v4013 = vld [vmem:[%s9] sm:$0x3]
      %v4014 = vpack.c.bf16 %v4003, %v4000
      %v4015 = vpack.c.bf16 %v4008, %v4008
      %v4016 = vld [vmem:[%s10] sm:$0xf]
      %4018 = vset.pattern.permute.xlu0 0
      %4019 = vperm.xlu0 %4018, %v4016
      %v4020 = vpop.permute.xlu0 %4019
      %vm4022 = vcmask 162816
      %v4024 = vsel %vm4022, %v4013, 0
      %v4027 = vsel %vm1401, %v4015, 0
      %4029 = vmatprep.subr.bf16.mxu0 0
      %4030 = vmatpush1.bf16.msra.mxu0 0
      %4031 = vmatprep.subr.bf16.mxu0 0
      %4032 = vmatpush1.bf16.msra.mxu0 0
      %4033 = vmatprep.subr.bf16.mxu0 0
      %4034 = vmatpush1.bf16.msra.mxu0 0
      %4035 = vmatprep.subr.bf16.mxu0 0
      %4036 = vmatpush1.bf16.msra.mxu0 0
      %4037 = vmatprep.subr.bf16.mxu0 0
      %4038 = vmatpush1.bf16.msra.mxu0 0
      %4039 = vmatprep.subr.bf16.mxu0 0
      %4040 = vmatpush1.bf16.msra.mxu0 0
      %4041 = vmatprep.subr.bf16.mxu0 0
      %4042 = vmatpush1.bf16.msra.mxu0 %v4027
      %4043 = vmatprep.subr.bf16.mxu0 0
      %4044 = vmatpush1.bf16.msra.mxu0 %v4014
      %4045 = vmatprep.subr.bf16.mxu0 0
      %4046 = vmatpush2.bf16.msra.mxu0 0
      %4047 = vmatprep.subr.bf16.mxu0 0
      %4048 = vmatpush2.bf16.msra.mxu0 0
      %4049 = vmatprep.subr.bf16.mxu0 0
      %4050 = vmatpush2.bf16.msra.mxu0 0
      %4051 = vmatprep.subr.bf16.mxu0 0
      %4052 = vmatpush2.bf16.msra.mxu0 0
      %4053 = vmatprep.subr.bf16.mxu0 0
      %4054 = vmatpush2.bf16.msra.mxu0 0
      %4055 = vmatprep.subr.bf16.mxu0 0
      %4056 = vmatpush2.bf16.msra.mxu0 0
      %4057 = vmatprep.subr.bf16.mxu0 0
      %4058 = vmatpush2.bf16.msra.mxu0 0
      %4059 = vmatprep.subr.bf16.mxu0 0
      %4060 = vmatpush2.bf16.msra.mxu0 0
      %4061 = vmatprep.mubr.bf16.mxu0 0
      %4062 = vmatmul.mubr.bf16.gmra.mxu0 %v4024
      %v4063 = vpop.f32.mrf.mxu0
      %v4064 = vadd.f32 %v4020, %v4063
      %v4065 = vpop.f32.mrf.mxu0
      %v4066 = vpop.f32.mrf.mxu0
      %v4067 = vpop.f32.mrf.mxu0
      %4068 = vdwg.mxu0
      %vm4069 = vcmp.gt.f32.partialorder %v4064, 0.0
      %v4070 = vmul.f32 %v4064, 0.2
      %v4071 = vsel %vm4069, %v4064, %v4070
      %v4072 = vld [vmem:[%s4] sm:$0xf]
      %v4073 = vmul.f32 %v4071, %v4072
      %v4074 = vpack.c.bf16 %v4073, %v4073
      %v4075 = vld [vmem:[%s3] sm:$0xff]
      %v4076 = vld [vmem:[%s3 + $0x8] sm:$0xff]
      %v4077 = vld [vmem:[%s3 + $0x10] sm:$0xff]
      %v4078 = vld [vmem:[%s3 + $0x18] sm:$0xff]
      %v4079 = vld [vmem:[%s3 + $0x20] sm:$0xff]
      %v4080 = vld [vmem:[%s3 + $0x28] sm:$0xff]
      %v4081 = vld [vmem:[%s3 + $0x30] sm:$0xff]
      %v4082 = vld [vmem:[%s3 + $0x38] sm:$0xff]
      %v4083 = vld [vmem:[%s3 + $0x40] sm:$0xff]
      %v4084 = vld [vmem:[%s3 + $0x48] sm:$0xff]
      %v4085 = vld [vmem:[%s3 + $0x50] sm:$0xff]
      %v4086 = vld [vmem:[%s3 + $0x58] sm:$0xff]
      %v4087 = vld [vmem:[%s3 + $0x60] sm:$0xff]
      %v4088 = vld [vmem:[%s3 + $0x68] sm:$0xff]
      %v4089 = vld [vmem:[%s3 + $0x70] sm:$0xff]
      %v4090 = vld [vmem:[%s3 + $0x78] sm:$0xff]
      %v4091 = vld [vmem:[%s3 + $0x80] sm:$0xff]
      %v4092 = vld [vmem:[%s3 + $0x88] sm:$0xff]
      %v4093 = vld [vmem:[%s3 + $0x90] sm:$0xff]
      %v4094 = vld [vmem:[%s3 + $0x98] sm:$0xff]
      %v4095 = vld [vmem:[%s3 + $0xa0] sm:$0xff]
      %v4096 = vld [vmem:[%s3 + $0xa8] sm:$0xff]
      %v4097 = vld [vmem:[%s3 + $0xb0] sm:$0xff]
      %v4098 = vld [vmem:[%s3 + $0xb8] sm:$0xff]
      %v4099 = vld [vmem:[%s3 + $0xc0] sm:$0xff]
      %v4100 = vld [vmem:[%s3 + $0xc8] sm:$0xff]
      %v4101 = vld [vmem:[%s3 + $0xd0] sm:$0xff]
      %v4102 = vld [vmem:[%s3 + $0xd8] sm:$0xff]
      %v4103 = vld [vmem:[%s3 + $0xe0] sm:$0xff]
      %v4104 = vld [vmem:[%s3 + $0xe8] sm:$0xff]
      %v4105 = vld [vmem:[%s3 + $0xf0] sm:$0xff]
      %v4106 = vld [vmem:[%s3 + $0xf8] sm:$0xff]
      %v4107 = vld [vmem:[%s3 + $0x100] sm:$0xff]
      %v4108 = vld [vmem:[%s3 + $0x108] sm:$0xff]
      %v4109 = vld [vmem:[%s3 + $0x110] sm:$0xff]
      %v4110 = vld [vmem:[%s3 + $0x118] sm:$0xff]
      %v4111 = vld [vmem:[%s3 + $0x120] sm:$0xff]
      %v4112 = vld [vmem:[%s3 + $0x128] sm:$0xff]
      %v4113 = vld [vmem:[%s3 + $0x130] sm:$0xff]
      %v4114 = vld [vmem:[%s3 + $0x138] sm:$0xff]
      %v4115 = vld [vmem:[%s3 + $0x140] sm:$0x77]
      %v4116 = vld [vmem:[%s3 + $0x148] sm:$0x77]
      %v4117 = vld [vmem:[%s3 + $0x150] sm:$0x77]
      %v4118 = vld [vmem:[%s3 + $0x158] sm:$0x77]
      %v4163 = vunpack.c.l.b16 %v4075
      %v4164 = vunpack.c.h.b16 %v4075
      %v4165 = vunpack.c.l.b16 %v4076
      %v4166 = vunpack.c.h.b16 %v4076
      %v4167 = vunpack.c.l.b16 %v4077
      %v4168 = vunpack.c.h.b16 %v4077
      %v4169 = vunpack.c.l.b16 %v4078
      %v4170 = vunpack.c.h.b16 %v4078
      %v4171 = vunpack.c.l.b16 %v4079
      %v4172 = vunpack.c.h.b16 %v4079
      %v4173 = vunpack.c.l.b16 %v4080
      %v4174 = vunpack.c.h.b16 %v4080
      %v4175 = vunpack.c.l.b16 %v4081
      %v4176 = vunpack.c.h.b16 %v4081
      %v4177 = vunpack.c.l.b16 %v4082
      %v4178 = vunpack.c.h.b16 %v4082
      %v4179 = vunpack.c.l.b16 %v4083
      %v4180 = vunpack.c.h.b16 %v4083
      %v4181 = vunpack.c.l.b16 %v4084
      %v4182 = vunpack.c.h.b16 %v4084
      %v4183 = vunpack.c.l.b16 %v4085
      %v4184 = vunpack.c.h.b16 %v4085
      %v4185 = vunpack.c.l.b16 %v4086
      %v4186 = vunpack.c.h.b16 %v4086
      %v4187 = vunpack.c.l.b16 %v4087
      %v4188 = vunpack.c.h.b16 %v4087
      %v4189 = vunpack.c.l.b16 %v4088
      %v4190 = vunpack.c.h.b16 %v4088
      %v4191 = vunpack.c.l.b16 %v4089
      %v4192 = vunpack.c.h.b16 %v4089
      %v4193 = vunpack.c.l.b16 %v4090
      %v4194 = vunpack.c.h.b16 %v4090
      %v4195 = vunpack.c.l.b16 %v4091
      %v4196 = vunpack.c.h.b16 %v4091
      %v4197 = vunpack.c.l.b16 %v4092
      %v4198 = vunpack.c.h.b16 %v4092
      %v4199 = vunpack.c.l.b16 %v4093
      %v4200 = vunpack.c.h.b16 %v4093
      %v4201 = vunpack.c.l.b16 %v4094
      %v4202 = vunpack.c.h.b16 %v4094
      %v4203 = vunpack.c.l.b16 %v4095
      %v4204 = vunpack.c.h.b16 %v4095
      %v4205 = vunpack.c.l.b16 %v4096
      %v4206 = vunpack.c.h.b16 %v4096
      %v4207 = vunpack.c.l.b16 %v4097
      %v4208 = vunpack.c.h.b16 %v4097
      %v4209 = vunpack.c.l.b16 %v4098
      %v4210 = vunpack.c.h.b16 %v4098
      %v4211 = vunpack.c.l.b16 %v4099
      %v4212 = vunpack.c.h.b16 %v4099
      %v4213 = vunpack.c.l.b16 %v4100
      %v4214 = vunpack.c.h.b16 %v4100
      %v4215 = vunpack.c.l.b16 %v4101
      %v4216 = vunpack.c.h.b16 %v4101
      %v4217 = vunpack.c.l.b16 %v4102
      %v4218 = vunpack.c.h.b16 %v4102
      %v4219 = vunpack.c.l.b16 %v4103
      %v4220 = vunpack.c.h.b16 %v4103
      %v4221 = vunpack.c.l.b16 %v4104
      %v4222 = vunpack.c.h.b16 %v4104
      %v4223 = vunpack.c.l.b16 %v4105
      %v4224 = vunpack.c.h.b16 %v4105
      %v4225 = vunpack.c.l.b16 %v4106
      %v4226 = vunpack.c.h.b16 %v4106
      %v4227 = vunpack.c.l.b16 %v4107
      %v4228 = vunpack.c.h.b16 %v4107
      %v4229 = vunpack.c.l.b16 %v4108
      %v4230 = vunpack.c.h.b16 %v4108
      %v4231 = vunpack.c.l.b16 %v4109
      %v4232 = vunpack.c.h.b16 %v4109
      %v4233 = vunpack.c.l.b16 %v4110
      %v4234 = vunpack.c.h.b16 %v4110
      %v4235 = vunpack.c.l.b16 %v4111
      %v4236 = vunpack.c.h.b16 %v4111
      %v4237 = vunpack.c.l.b16 %v4112
      %v4238 = vunpack.c.h.b16 %v4112
      %v4239 = vunpack.c.l.b16 %v4113
      %v4240 = vunpack.c.h.b16 %v4113
      %v4241 = vunpack.c.l.b16 %v4114
      %v4242 = vunpack.c.h.b16 %v4114
      %v4243 = vunpack.c.l.b16 %v4115
      %v4244 = vunpack.c.h.b16 %v4115
      %v4245 = vunpack.c.l.b16 %v4116
      %v4246 = vunpack.c.h.b16 %v4116
      %v4247 = vunpack.c.l.b16 %v4117
      %v4248 = vunpack.c.h.b16 %v4117
      %v4249 = vunpack.c.l.b16 %v4118
      %v4250 = vunpack.c.h.b16 %v4118
      %v4251 = vpack.c.b16 %v4171, %v4163
      %v4252 = vpack.c.b16 %v4172, %v4164
      %v4253 = vpack.c.b16 %v4173, %v4165
      %v4254 = vpack.c.b16 %v4174, %v4166
      %v4255 = vpack.c.b16 %v4175, %v4167
      %v4256 = vpack.c.b16 %v4176, %v4168
      %v4257 = vpack.c.b16 %v4177, %v4169
      %v4258 = vpack.c.b16 %v4178, %v4170
      %v4259 = vpack.c.b16 %v4187, %v4179
      %v4260 = vpack.c.b16 %v4188, %v4180
      %v4261 = vpack.c.b16 %v4189, %v4181
      %v4262 = vpack.c.b16 %v4190, %v4182
      %v4263 = vpack.c.b16 %v4191, %v4183
      %v4264 = vpack.c.b16 %v4192, %v4184
      %v4265 = vpack.c.b16 %v4193, %v4185
      %v4266 = vpack.c.b16 %v4194, %v4186
      %v4267 = vpack.c.b16 %v4203, %v4195
      %v4268 = vpack.c.b16 %v4204, %v4196
      %v4269 = vpack.c.b16 %v4205, %v4197
      %v4270 = vpack.c.b16 %v4206, %v4198
      %v4271 = vpack.c.b16 %v4207, %v4199
      %v4272 = vpack.c.b16 %v4208, %v4200
      %v4273 = vpack.c.b16 %v4209, %v4201
      %v4274 = vpack.c.b16 %v4210, %v4202
      %v4275 = vpack.c.b16 %v4219, %v4211
      %v4276 = vpack.c.b16 %v4220, %v4212
      %v4277 = vpack.c.b16 %v4221, %v4213
      %v4278 = vpack.c.b16 %v4222, %v4214
      %v4279 = vpack.c.b16 %v4223, %v4215
      %v4280 = vpack.c.b16 %v4224, %v4216
      %v4281 = vpack.c.b16 %v4225, %v4217
      %v4282 = vpack.c.b16 %v4226, %v4218
      %v4283 = vpack.c.b16 %v4235, %v4227
      %v4284 = vpack.c.b16 %v4236, %v4228
      %v4285 = vpack.c.b16 %v4237, %v4229
      %v4286 = vpack.c.b16 %v4238, %v4230
      %v4287 = vpack.c.b16 %v4239, %v4231
      %v4288 = vpack.c.b16 %v4240, %v4232
      %v4289 = vpack.c.b16 %v4241, %v4233
      %v4290 = vpack.c.b16 %v4242, %v4234
      %v4291 = vpack.c.b16 %v4243, %v4243
      %v4292 = vpack.c.b16 %v4244, %v4244
      %v4293 = vpack.c.b16 %v4245, %v4245
      %v4294 = vpack.c.b16 %v4246, %v4246
      %v4295 = vpack.c.b16 %v4247, %v4247
      %v4296 = vpack.c.b16 %v4248, %v4248
      %v4297 = vpack.c.b16 %v4249, %v4249
      %v4298 = vpack.c.b16 %v4250, %v4250
      %vm4339 = vcmask 695296
      %v4341 = vsel %vm4339, %v4074, 0
      %vm4343 = vcmask 1042432
      %v4344 = vsel %vm1401, 4294967295, 65535
      %v4345 = vsel %vm4343, %v4344, 0
      %v4347 = vand.u32 %v4291, %v4345
      %v4350 = vand.u32 %v4292, %v4345
      %v4353 = vand.u32 %v4293, %v4345
      %v4356 = vand.u32 %v4294, %v4345
      %v4359 = vand.u32 %v4295, %v4345
      %v4362 = vand.u32 %v4296, %v4345
      %v4365 = vand.u32 %v4297, %v4345
      %v4368 = vand.u32 %v4298, %v4345
      %4370 = vmatprep.subr.bf16.mxu0 0
      %4371 = vmatpush1.bf16.msra.mxu0 0
      %4372 = vmatprep.subr.bf16.mxu0 0
      %4373 = vmatpush1.bf16.msra.mxu0 0
      %4374 = vmatprep.subr.bf16.mxu0 %v4350
      %4375 = vmatpush1.bf16.msra.mxu0 %v4347
      %4376 = vmatprep.subr.bf16.mxu0 %v4284
      %4377 = vmatpush1.bf16.msra.mxu0 %v4283
      %4378 = vmatprep.subr.bf16.mxu0 %v4276
      %4379 = vmatpush1.bf16.msra.mxu0 %v4275
      %4380 = vmatprep.subr.bf16.mxu0 %v4268
      %4381 = vmatpush1.bf16.msra.mxu0 %v4267
      %4382 = vmatprep.subr.bf16.mxu0 %v4260
      %4383 = vmatpush1.bf16.msra.mxu0 %v4259
      %4384 = vmatprep.subr.bf16.mxu0 %v4252
      %4385 = vmatpush1.bf16.msra.mxu0 %v4251
      %4386 = vmatprep.subr.bf16.mxu0 0
      %4387 = vmatpush2.bf16.msra.mxu0 0
      %4388 = vmatprep.subr.bf16.mxu0 0
      %4389 = vmatpush2.bf16.msra.mxu0 0
      %4390 = vmatprep.subr.bf16.mxu0 0
      %4391 = vmatpush2.bf16.msra.mxu0 0
      %4392 = vmatprep.subr.bf16.mxu0 0
      %4393 = vmatpush2.bf16.msra.mxu0 0
      %4394 = vmatprep.subr.bf16.mxu0 0
      %4395 = vmatpush2.bf16.msra.mxu0 0
      %4396 = vmatprep.subr.bf16.mxu0 0
      %4397 = vmatpush2.bf16.msra.mxu0 0
      %4398 = vmatprep.subr.bf16.mxu0 0
      %4399 = vmatpush2.bf16.msra.mxu0 0
      %4400 = vmatprep.subr.bf16.mxu0 0
      %4401 = vmatpush2.bf16.msra.mxu0 0
      %4402 = vmatprep.mubr.bf16.mxu0 0
      %4403 = vmatmul.mubr.bf16.gmra.mxu0 %v4341
      %v4404 = vpop.f32.mrf.mxu0
      %v4405 = vadd.f32 0.0, %v4404
      %v4406 = vpop.f32.mrf.mxu0
      %v4407 = vadd.f32 0.0, %v4406
      %v4408 = vpop.f32.mrf.mxu0
      %v4409 = vpop.f32.mrf.mxu0
      %4410 = vdwg.mxu0
      %4411 = vmatprep.subr.bf16.mxu0 0
      %4412 = vmatpush1.bf16.msra.mxu0 0
      %4413 = vmatprep.subr.bf16.mxu0 0
      %4414 = vmatpush1.bf16.msra.mxu0 0
      %4415 = vmatprep.subr.bf16.mxu0 %v4356
      %4416 = vmatpush1.bf16.msra.mxu0 %v4353
      %4417 = vmatprep.subr.bf16.mxu0 %v4286
      %4418 = vmatpush1.bf16.msra.mxu0 %v4285
      %4419 = vmatprep.subr.bf16.mxu0 %v4278
      %4420 = vmatpush1.bf16.msra.mxu0 %v4277
      %4421 = vmatprep.subr.bf16.mxu0 %v4270
      %4422 = vmatpush1.bf16.msra.mxu0 %v4269
      %4423 = vmatprep.subr.bf16.mxu0 %v4262
      %4424 = vmatpush1.bf16.msra.mxu0 %v4261
      %4425 = vmatprep.subr.bf16.mxu0 %v4254
      %4426 = vmatpush1.bf16.msra.mxu0 %v4253
      %4427 = vmatprep.subr.bf16.mxu0 0
      %4428 = vmatpush2.bf16.msra.mxu0 0
      %4429 = vmatprep.subr.bf16.mxu0 0
      %4430 = vmatpush2.bf16.msra.mxu0 0
      %4431 = vmatprep.subr.bf16.mxu0 0
      %4432 = vmatpush2.bf16.msra.mxu0 0
      %4433 = vmatprep.subr.bf16.mxu0 0
      %4434 = vmatpush2.bf16.msra.mxu0 0
      %4435 = vmatprep.subr.bf16.mxu0 0
      %4436 = vmatpush2.bf16.msra.mxu0 0
      %4437 = vmatprep.subr.bf16.mxu0 0
      %4438 = vmatpush2.bf16.msra.mxu0 0
      %4439 = vmatprep.subr.bf16.mxu0 0
      %4440 = vmatpush2.bf16.msra.mxu0 0
      %4441 = vmatprep.subr.bf16.mxu0 0
      %4442 = vmatpush2.bf16.msra.mxu0 0
      %4443 = vmatprep.mubr.bf16.mxu0 0
      %4444 = vmatmul.mubr.bf16.gmra.mxu0 %v4341
      %v4445 = vpop.f32.mrf.mxu0
      %v4446 = vadd.f32 0.0, %v4445
      %v4447 = vpop.f32.mrf.mxu0
      %v4448 = vadd.f32 0.0, %v4447
      %v4449 = vpop.f32.mrf.mxu0
      %v4450 = vpop.f32.mrf.mxu0
      %4451 = vdwg.mxu0
      %4452 = vmatprep.subr.bf16.mxu0 0
      %4453 = vmatpush1.bf16.msra.mxu0 0
      %4454 = vmatprep.subr.bf16.mxu0 0
      %4455 = vmatpush1.bf16.msra.mxu0 0
      %4456 = vmatprep.subr.bf16.mxu0 %v4362
      %4457 = vmatpush1.bf16.msra.mxu0 %v4359
      %4458 = vmatprep.subr.bf16.mxu0 %v4288
      %4459 = vmatpush1.bf16.msra.mxu0 %v4287
      %4460 = vmatprep.subr.bf16.mxu0 %v4280
      %4461 = vmatpush1.bf16.msra.mxu0 %v4279
      %4462 = vmatprep.subr.bf16.mxu0 %v4272
      %4463 = vmatpush1.bf16.msra.mxu0 %v4271
      %4464 = vmatprep.subr.bf16.mxu0 %v4264
      %4465 = vmatpush1.bf16.msra.mxu0 %v4263
      %4466 = vmatprep.subr.bf16.mxu0 %v4256
      %4467 = vmatpush1.bf16.msra.mxu0 %v4255
      %4468 = vmatprep.subr.bf16.mxu0 0
      %4469 = vmatpush2.bf16.msra.mxu0 0
      %4470 = vmatprep.subr.bf16.mxu0 0
      %4471 = vmatpush2.bf16.msra.mxu0 0
      %4472 = vmatprep.subr.bf16.mxu0 0
      %4473 = vmatpush2.bf16.msra.mxu0 0
      %4474 = vmatprep.subr.bf16.mxu0 0
      %4475 = vmatpush2.bf16.msra.mxu0 0
      %4476 = vmatprep.subr.bf16.mxu0 0
      %4477 = vmatpush2.bf16.msra.mxu0 0
      %4478 = vmatprep.subr.bf16.mxu0 0
      %4479 = vmatpush2.bf16.msra.mxu0 0
      %4480 = vmatprep.subr.bf16.mxu0 0
      %4481 = vmatpush2.bf16.msra.mxu0 0
      %4482 = vmatprep.subr.bf16.mxu0 0
      %4483 = vmatpush2.bf16.msra.mxu0 0
      %4484 = vmatprep.mubr.bf16.mxu0 0
      %4485 = vmatmul.mubr.bf16.gmra.mxu0 %v4341
      %v4486 = vpop.f32.mrf.mxu0
      %v4487 = vadd.f32 0.0, %v4486
      %v4488 = vpop.f32.mrf.mxu0
      %v4489 = vadd.f32 0.0, %v4488
      %v4490 = vpop.f32.mrf.mxu0
      %v4491 = vpop.f32.mrf.mxu0
      %4492 = vdwg.mxu0
      %4493 = vmatprep.subr.bf16.mxu0 0
      %4494 = vmatpush1.bf16.msra.mxu0 0
      %4495 = vmatprep.subr.bf16.mxu0 0
      %4496 = vmatpush1.bf16.msra.mxu0 0
      %4497 = vmatprep.subr.bf16.mxu0 %v4368
      %4498 = vmatpush1.bf16.msra.mxu0 %v4365
      %4499 = vmatprep.subr.bf16.mxu0 %v4290
      %4500 = vmatpush1.bf16.msra.mxu0 %v4289
      %4501 = vmatprep.subr.bf16.mxu0 %v4282
      %4502 = vmatpush1.bf16.msra.mxu0 %v4281
      %4503 = vmatprep.subr.bf16.mxu0 %v4274
      %4504 = vmatpush1.bf16.msra.mxu0 %v4273
      %4505 = vmatprep.subr.bf16.mxu0 %v4266
      %4506 = vmatpush1.bf16.msra.mxu0 %v4265
      %4507 = vmatprep.subr.bf16.mxu0 %v4258
      %4508 = vmatpush1.bf16.msra.mxu0 %v4257
      %4509 = vmatprep.subr.bf16.mxu0 0
      %4510 = vmatpush2.bf16.msra.mxu0 0
      %4511 = vmatprep.subr.bf16.mxu0 0
      %4512 = vmatpush2.bf16.msra.mxu0 0
      %4513 = vmatprep.subr.bf16.mxu0 0
      %4514 = vmatpush2.bf16.msra.mxu0 0
      %4515 = vmatprep.subr.bf16.mxu0 0
      %4516 = vmatpush2.bf16.msra.mxu0 0
      %4517 = vmatprep.subr.bf16.mxu0 0
      %4518 = vmatpush2.bf16.msra.mxu0 0
      %4519 = vmatprep.subr.bf16.mxu0 0
      %4520 = vmatpush2.bf16.msra.mxu0 0
      %4521 = vmatprep.subr.bf16.mxu0 0
      %4522 = vmatpush2.bf16.msra.mxu0 0
      %4523 = vmatprep.subr.bf16.mxu0 0
      %4524 = vmatpush2.bf16.msra.mxu0 0
      %4525 = vmatprep.mubr.bf16.mxu0 0
      %4526 = vmatmul.mubr.bf16.gmra.mxu0 %v4341
      %v4527 = vpop.f32.mrf.mxu0
      %v4528 = vadd.f32 0.0, %v4527
      %v4529 = vpop.f32.mrf.mxu0
      %v4530 = vadd.f32 0.0, %v4529
      %v4531 = vpop.f32.mrf.mxu0
      %v4532 = vpop.f32.mrf.mxu0
      %4533 = vdwg.mxu0
      %v4558 = vrot.slane %v3269, 4
      %v4559 = vrot.slane %v3270, 4
      %v4560 = vrot.slane %v3271, 4
      %v4561 = vrot.slane %v3272, 4
      %v4562 = vrot.slane %v3273, 4
      %v4563 = vrot.slane %v3274, 4
      %v4564 = vrot.slane %v3275, 4
      %v4565 = vrot.slane %v3276, 4
      %v4566 = vrot.slane %v3277, 4
      %v4567 = vsel %vm1308, %v4558, %v4566
      %v4568 = vrot.slane %v3278, 4
      %v4569 = vsel %vm1308, %v4559, %v4568
      %v4570 = vrot.slane %v3279, 4
      %v4571 = vsel %vm1308, %v4560, %v4570
      %v4572 = vrot.slane %v3280, 4
      %v4573 = vsel %vm1308, %v4561, %v4572
      %v4574 = vrot.slane %v3281, 4
      %v4575 = vsel %vm1308, %v4562, %v4574
      %v4576 = vrot.slane %v3282, 4
      %v4577 = vsel %vm1308, %v4563, %v4576
      %v4578 = vrot.slane %v3283, 4
      %v4579 = vsel %vm1308, %v4564, %v4578
      %v4580 = vrot.slane %v3284, 4
      %v4581 = vsel %vm1308, %v4565, %v4580
      %v4582 = vrot.slane %v3285, 4
      %v4583 = vsel %vm1308, %v4566, %v4582
      %v4584 = vrot.slane %v3286, 4
      %v4585 = vsel %vm1308, %v4568, %v4584
      %v4586 = vrot.slane %v3287, 4
      %v4587 = vsel %vm1308, %v4570, %v4586
      %v4588 = vrot.slane %v3288, 4
      %v4589 = vsel %vm1308, %v4572, %v4588
      %v4590 = vrot.slane %v3289, 4
      %v4591 = vsel %vm1308, %v4574, %v4590
      %v4592 = vrot.slane %v3290, 4
      %v4593 = vsel %vm1308, %v4576, %v4592
      %v4594 = vrot.slane %v3291, 4
      %v4595 = vsel %vm1308, %v4578, %v4594
      %v4596 = vrot.slane %v3292, 4
      %v4597 = vsel %vm1308, %v4580, %v4596
      %v4622 = vsel %vm1308, %v4405, %v4558
      %v4623 = vsel %vm1308, %v4407, %v4559
      %v4624 = vsel %vm1308, %v4446, %v4560
      %v4625 = vsel %vm1308, %v4448, %v4561
      %v4626 = vsel %vm1308, %v4487, %v4562
      %v4627 = vsel %vm1308, %v4489, %v4563
      %v4628 = vsel %vm1308, %v4528, %v4564
      %v4629 = vsel %vm1308, %v4530, %v4565
      %4630 = vrot.lane.b32.xlu0 %v4622, 33
      %v4631 = vpop.permute.xlu0 %4630
      %4632 = vrot.lane.b32.xlu0 %v4567, 33
      %v4633 = vpop.permute.xlu0 %4632
      %4634 = vrot.lane.b32.xlu0 %v4583, 33
      %v4635 = vpop.permute.xlu0 %4634
      %4636 = vrot.lane.b32.xlu0 %v4623, 33
      %v4637 = vpop.permute.xlu0 %4636
      %4638 = vrot.lane.b32.xlu0 %v4569, 33
      %v4639 = vpop.permute.xlu0 %4638
      %4640 = vrot.lane.b32.xlu0 %v4585, 33
      %v4641 = vpop.permute.xlu0 %4640
      %4642 = vrot.lane.b32.xlu0 %v4624, 33
      %v4643 = vpop.permute.xlu0 %4642
      %4644 = vrot.lane.b32.xlu0 %v4571, 33
      %v4645 = vpop.permute.xlu0 %4644
      %4646 = vrot.lane.b32.xlu0 %v4587, 33
      %v4647 = vpop.permute.xlu0 %4646
      %4648 = vrot.lane.b32.xlu0 %v4625, 33
      %v4649 = vpop.permute.xlu0 %4648
      %4650 = vrot.lane.b32.xlu0 %v4573, 33
      %v4651 = vpop.permute.xlu0 %4650
      %4652 = vrot.lane.b32.xlu0 %v4589, 33
      %v4653 = vpop.permute.xlu0 %4652
      %4654 = vrot.lane.b32.xlu0 %v4626, 33
      %v4655 = vpop.permute.xlu0 %4654
      %4656 = vrot.lane.b32.xlu0 %v4575, 33
      %v4657 = vpop.permute.xlu0 %4656
      %4658 = vrot.lane.b32.xlu0 %v4591, 33
      %v4659 = vpop.permute.xlu0 %4658
      %4660 = vrot.lane.b32.xlu0 %v4627, 33
      %v4661 = vpop.permute.xlu0 %4660
      %4662 = vrot.lane.b32.xlu0 %v4577, 33
      %v4663 = vpop.permute.xlu0 %4662
      %4664 = vrot.lane.b32.xlu0 %v4593, 33
      %v4665 = vpop.permute.xlu0 %4664
      %4666 = vrot.lane.b32.xlu0 %v4628, 33
      %v4667 = vpop.permute.xlu0 %4666
      %4668 = vrot.lane.b32.xlu0 %v4579, 33
      %v4669 = vpop.permute.xlu0 %4668
      %4670 = vrot.lane.b32.xlu0 %v4595, 33
      %v4671 = vpop.permute.xlu0 %4670
      %4672 = vrot.lane.b32.xlu0 %v4629, 33
      %v4673 = vpop.permute.xlu0 %4672
      %4674 = vrot.lane.b32.xlu0 %v4581, 33
      %v4675 = vpop.permute.xlu0 %4674
      %4676 = vrot.lane.b32.xlu0 %v4597, 33
      %v4677 = vpop.permute.xlu0 %4676
      %v4678 = vsel %vm708, %v4667, %v4673
      %v4679 = vsel %vm708, %v4669, %v4675
      %v4680 = vsel %vm708, %v4671, %v4677
      %v4681 = vsel %vm708, %v4661, %v4667
      %v4682 = vsel %vm708, %v4663, %v4669
      %v4683 = vsel %vm708, %v4665, %v4671
      %v4684 = vsel %vm708, %v4655, %v4661
      %v4685 = vsel %vm708, %v4657, %v4663
      %v4686 = vsel %vm708, %v4659, %v4665
      %v4687 = vsel %vm708, %v4649, %v4655
      %v4688 = vsel %vm708, %v4651, %v4657
      %v4689 = vsel %vm708, %v4653, %v4659
      %v4690 = vsel %vm708, %v4643, %v4649
      %v4691 = vsel %vm708, %v4645, %v4651
      %v4692 = vsel %vm708, %v4647, %v4653
      %v4693 = vsel %vm708, %v4637, %v4643
      %v4694 = vsel %vm708, %v4639, %v4645
      %v4695 = vsel %vm708, %v4641, %v4647
      %v4696 = vsel %vm708, %v4631, %v4637
      %v4697 = vsel %vm708, %v4633, %v4639
      %v4698 = vsel %vm708, %v4635, %v4641
      %v4699 = vsel %vm708, %v4673, %v4631
      %v4700 = vsel %vm708, %v4675, %v4633
      %v4701 = vsel %vm708, %v4677, %v4635
      %v4702 = vmul.f32 %v4699, %v720
      %v4703 = vmul.f32 %v4696, %v724
      %v4704 = vmul.f32 %v4693, %v728
      %v4705 = vmul.f32 %v4690, %v732
      %v4706 = vmul.f32 %v4687, %v736
      %v4707 = vmul.f32 %v4684, %v740
      %v4708 = vmul.f32 %v4681, %v744
      %v4709 = vmul.f32 %v4678, %v748
      %v4710 = vmul.f32 %v4700, %v720
      %v4711 = vmul.f32 %v4697, %v724
      %v4712 = vmul.f32 %v4694, %v728
      %v4713 = vmul.f32 %v4691, %v732
      %v4714 = vmul.f32 %v4688, %v736
      %v4715 = vmul.f32 %v4685, %v740
      %v4716 = vmul.f32 %v4682, %v744
      %v4717 = vmul.f32 %v4679, %v748
      %v4718 = vmul.f32 %v4701, %v720
      %v4719 = vmul.f32 %v4698, %v724
      %v4720 = vmul.f32 %v4695, %v728
      %v4721 = vmul.f32 %v4692, %v732
      %v4722 = vmul.f32 %v4689, %v736
      %v4723 = vmul.f32 %v4686, %v740
      %v4724 = vmul.f32 %v4683, %v744
      %v4725 = vmul.f32 %v4680, %v748
      %4726 = vrot.lane.b32.xlu0 %v4622, 32
      %v4727 = vpop.permute.xlu0 %4726
      %4728 = vrot.lane.b32.xlu0 %v4567, 32
      %v4729 = vpop.permute.xlu0 %4728
      %4730 = vrot.lane.b32.xlu0 %v4583, 32
      %v4731 = vpop.permute.xlu0 %4730
      %4732 = vrot.lane.b32.xlu0 %v4623, 32
      %v4733 = vpop.permute.xlu0 %4732
      %4734 = vrot.lane.b32.xlu0 %v4569, 32
      %v4735 = vpop.permute.xlu0 %4734
      %4736 = vrot.lane.b32.xlu0 %v4585, 32
      %v4737 = vpop.permute.xlu0 %4736
      %4738 = vrot.lane.b32.xlu0 %v4624, 32
      %v4739 = vpop.permute.xlu0 %4738
      %4740 = vrot.lane.b32.xlu0 %v4571, 32
      %v4741 = vpop.permute.xlu0 %4740
      %4742 = vrot.lane.b32.xlu0 %v4587, 32
      %v4743 = vpop.permute.xlu0 %4742
      %4744 = vrot.lane.b32.xlu0 %v4625, 32
      %v4745 = vpop.permute.xlu0 %4744
      %4746 = vrot.lane.b32.xlu0 %v4573, 32
      %v4747 = vpop.permute.xlu0 %4746
      %4748 = vrot.lane.b32.xlu0 %v4589, 32
      %v4749 = vpop.permute.xlu0 %4748
      %4750 = vrot.lane.b32.xlu0 %v4626, 32
      %v4751 = vpop.permute.xlu0 %4750
      %4752 = vrot.lane.b32.xlu0 %v4575, 32
      %v4753 = vpop.permute.xlu0 %4752
      %4754 = vrot.lane.b32.xlu0 %v4591, 32
      %v4755 = vpop.permute.xlu0 %4754
      %4756 = vrot.lane.b32.xlu0 %v4627, 32
      %v4757 = vpop.permute.xlu0 %4756
      %4758 = vrot.lane.b32.xlu0 %v4577, 32
      %v4759 = vpop.permute.xlu0 %4758
      %4760 = vrot.lane.b32.xlu0 %v4593, 32
      %v4761 = vpop.permute.xlu0 %4760
      %4762 = vrot.lane.b32.xlu0 %v4628, 32
      %v4763 = vpop.permute.xlu0 %4762
      %4764 = vrot.lane.b32.xlu0 %v4579, 32
      %v4765 = vpop.permute.xlu0 %4764
      %4766 = vrot.lane.b32.xlu0 %v4595, 32
      %v4767 = vpop.permute.xlu0 %4766
      %4768 = vrot.lane.b32.xlu0 %v4629, 32
      %v4769 = vpop.permute.xlu0 %4768
      %4770 = vrot.lane.b32.xlu0 %v4581, 32
      %v4771 = vpop.permute.xlu0 %4770
      %4772 = vrot.lane.b32.xlu0 %v4597, 32
      %v4773 = vpop.permute.xlu0 %4772
      %v4774 = vsel %vm773, %v4763, %v4769
      %v4775 = vsel %vm773, %v4765, %v4771
      %v4776 = vsel %vm773, %v4767, %v4773
      %v4777 = vsel %vm773, %v4757, %v4763
      %v4778 = vsel %vm773, %v4759, %v4765
      %v4779 = vsel %vm773, %v4761, %v4767
      %v4780 = vsel %vm773, %v4751, %v4757
      %v4781 = vsel %vm773, %v4753, %v4759
      %v4782 = vsel %vm773, %v4755, %v4761
      %v4783 = vsel %vm773, %v4745, %v4751
      %v4784 = vsel %vm773, %v4747, %v4753
      %v4785 = vsel %vm773, %v4749, %v4755
      %v4786 = vsel %vm773, %v4739, %v4745
      %v4787 = vsel %vm773, %v4741, %v4747
      %v4788 = vsel %vm773, %v4743, %v4749
      %v4789 = vsel %vm773, %v4733, %v4739
      %v4790 = vsel %vm773, %v4735, %v4741
      %v4791 = vsel %vm773, %v4737, %v4743
      %v4792 = vsel %vm773, %v4727, %v4733
      %v4793 = vsel %vm773, %v4729, %v4735
      %v4794 = vsel %vm773, %v4731, %v4737
      %v4795 = vsel %vm773, %v4769, %v4727
      %v4796 = vsel %vm773, %v4771, %v4729
      %v4797 = vsel %vm773, %v4773, %v4731
      %v4798 = vmul.f32 %v4795, %v785
      %v4799 = vmul.f32 %v4792, %v789
      %v4800 = vmul.f32 %v4789, %v793
      %v4801 = vmul.f32 %v4786, %v797
      %v4802 = vmul.f32 %v4783, %v801
      %v4803 = vmul.f32 %v4780, %v805
      %v4804 = vmul.f32 %v4777, %v809
      %v4805 = vmul.f32 %v4774, %v813
      %v4806 = vmul.f32 %v4796, %v785
      %v4807 = vmul.f32 %v4793, %v789
      %v4808 = vmul.f32 %v4790, %v793
      %v4809 = vmul.f32 %v4787, %v797
      %v4810 = vmul.f32 %v4784, %v801
      %v4811 = vmul.f32 %v4781, %v805
      %v4812 = vmul.f32 %v4778, %v809
      %v4813 = vmul.f32 %v4775, %v813
      %v4814 = vmul.f32 %v4797, %v785
      %v4815 = vmul.f32 %v4794, %v789
      %v4816 = vmul.f32 %v4791, %v793
      %v4817 = vmul.f32 %v4788, %v797
      %v4818 = vmul.f32 %v4785, %v801
      %v4819 = vmul.f32 %v4782, %v805
      %v4820 = vmul.f32 %v4779, %v809
      %v4821 = vmul.f32 %v4776, %v813
      %4822 = vrot.lane.b32.xlu0 %v4622, 31
      %v4823 = vpop.permute.xlu0 %4822
      %4824 = vrot.lane.b32.xlu0 %v4567, 31
      %v4825 = vpop.permute.xlu0 %4824
      %4826 = vrot.lane.b32.xlu0 %v4583, 31
      %v4827 = vpop.permute.xlu0 %4826
      %4828 = vrot.lane.b32.xlu0 %v4623, 31
      %v4829 = vpop.permute.xlu0 %4828
      %4830 = vrot.lane.b32.xlu0 %v4569, 31
      %v4831 = vpop.permute.xlu0 %4830
      %4832 = vrot.lane.b32.xlu0 %v4585, 31
      %v4833 = vpop.permute.xlu0 %4832
      %4834 = vrot.lane.b32.xlu0 %v4624, 31
      %v4835 = vpop.permute.xlu0 %4834
      %4836 = vrot.lane.b32.xlu0 %v4571, 31
      %v4837 = vpop.permute.xlu0 %4836
      %4838 = vrot.lane.b32.xlu0 %v4587, 31
      %v4839 = vpop.permute.xlu0 %4838
      %4840 = vrot.lane.b32.xlu0 %v4625, 31
      %v4841 = vpop.permute.xlu0 %4840
      %4842 = vrot.lane.b32.xlu0 %v4573, 31
      %v4843 = vpop.permute.xlu0 %4842
      %4844 = vrot.lane.b32.xlu0 %v4589, 31
      %v4845 = vpop.permute.xlu0 %4844
      %4846 = vrot.lane.b32.xlu0 %v4626, 31
      %v4847 = vpop.permute.xlu0 %4846
      %4848 = vrot.lane.b32.xlu0 %v4575, 31
      %v4849 = vpop.permute.xlu0 %4848
      %4850 = vrot.lane.b32.xlu0 %v4591, 31
      %v4851 = vpop.permute.xlu0 %4850
      %4852 = vrot.lane.b32.xlu0 %v4627, 31
      %v4853 = vpop.permute.xlu0 %4852
      %4854 = vrot.lane.b32.xlu0 %v4577, 31
      %v4855 = vpop.permute.xlu0 %4854
      %4856 = vrot.lane.b32.xlu0 %v4593, 31
      %v4857 = vpop.permute.xlu0 %4856
      %4858 = vrot.lane.b32.xlu0 %v4628, 31
      %v4859 = vpop.permute.xlu0 %4858
      %4860 = vrot.lane.b32.xlu0 %v4579, 31
      %v4861 = vpop.permute.xlu0 %4860
      %4862 = vrot.lane.b32.xlu0 %v4595, 31
      %v4863 = vpop.permute.xlu0 %4862
      %4864 = vrot.lane.b32.xlu0 %v4629, 31
      %v4865 = vpop.permute.xlu0 %4864
      %4866 = vrot.lane.b32.xlu0 %v4581, 31
      %v4867 = vpop.permute.xlu0 %4866
      %4868 = vrot.lane.b32.xlu0 %v4597, 31
      %v4869 = vpop.permute.xlu0 %4868
      %v4870 = vsel %vm838, %v4859, %v4865
      %v4871 = vsel %vm838, %v4861, %v4867
      %v4872 = vsel %vm838, %v4863, %v4869
      %v4873 = vsel %vm838, %v4853, %v4859
      %v4874 = vsel %vm838, %v4855, %v4861
      %v4875 = vsel %vm838, %v4857, %v4863
      %v4876 = vsel %vm838, %v4847, %v4853
      %v4877 = vsel %vm838, %v4849, %v4855
      %v4878 = vsel %vm838, %v4851, %v4857
      %v4879 = vsel %vm838, %v4841, %v4847
      %v4880 = vsel %vm838, %v4843, %v4849
      %v4881 = vsel %vm838, %v4845, %v4851
      %v4882 = vsel %vm838, %v4835, %v4841
      %v4883 = vsel %vm838, %v4837, %v4843
      %v4884 = vsel %vm838, %v4839, %v4845
      %v4885 = vsel %vm838, %v4829, %v4835
      %v4886 = vsel %vm838, %v4831, %v4837
      %v4887 = vsel %vm838, %v4833, %v4839
      %v4888 = vsel %vm838, %v4823, %v4829
      %v4889 = vsel %vm838, %v4825, %v4831
      %v4890 = vsel %vm838, %v4827, %v4833
      %v4891 = vsel %vm838, %v4865, %v4823
      %v4892 = vsel %vm838, %v4867, %v4825
      %v4893 = vsel %vm838, %v4869, %v4827
      %v4894 = vmul.f32 %v4891, %v850
      %v4895 = vmul.f32 %v4888, %v854
      %v4896 = vmul.f32 %v4885, %v858
      %v4897 = vmul.f32 %v4882, %v862
      %v4898 = vmul.f32 %v4879, %v866
      %v4899 = vmul.f32 %v4876, %v870
      %v4900 = vmul.f32 %v4873, %v874
      %v4901 = vmul.f32 %v4870, %v878
      %v4902 = vmul.f32 %v4892, %v850
      %v4903 = vmul.f32 %v4889, %v854
      %v4904 = vmul.f32 %v4886, %v858
      %v4905 = vmul.f32 %v4883, %v862
      %v4906 = vmul.f32 %v4880, %v866
      %v4907 = vmul.f32 %v4877, %v870
      %v4908 = vmul.f32 %v4874, %v874
      %v4909 = vmul.f32 %v4871, %v878
      %v4910 = vmul.f32 %v4893, %v850
      %v4911 = vmul.f32 %v4890, %v854
      %v4912 = vmul.f32 %v4887, %v858
      %v4913 = vmul.f32 %v4884, %v862
      %v4914 = vmul.f32 %v4881, %v866
      %v4915 = vmul.f32 %v4878, %v870
      %v4916 = vmul.f32 %v4875, %v874
      %v4917 = vmul.f32 %v4872, %v878
      %4918 = vrot.lane.b32.xlu0 %v4622, 1
      %v4919 = vpop.permute.xlu0 %4918
      %4920 = vrot.lane.b32.xlu0 %v4567, 1
      %v4921 = vpop.permute.xlu0 %4920
      %4922 = vrot.lane.b32.xlu0 %v4583, 1
      %v4923 = vpop.permute.xlu0 %4922
      %4924 = vrot.lane.b32.xlu0 %v4623, 1
      %v4925 = vpop.permute.xlu0 %4924
      %4926 = vrot.lane.b32.xlu0 %v4569, 1
      %v4927 = vpop.permute.xlu0 %4926
      %4928 = vrot.lane.b32.xlu0 %v4585, 1
      %v4929 = vpop.permute.xlu0 %4928
      %4930 = vrot.lane.b32.xlu0 %v4624, 1
      %v4931 = vpop.permute.xlu0 %4930
      %4932 = vrot.lane.b32.xlu0 %v4571, 1
      %v4933 = vpop.permute.xlu0 %4932
      %4934 = vrot.lane.b32.xlu0 %v4587, 1
      %v4935 = vpop.permute.xlu0 %4934
      %4936 = vrot.lane.b32.xlu0 %v4625, 1
      %v4937 = vpop.permute.xlu0 %4936
      %4938 = vrot.lane.b32.xlu0 %v4573, 1
      %v4939 = vpop.permute.xlu0 %4938
      %4940 = vrot.lane.b32.xlu0 %v4589, 1
      %v4941 = vpop.permute.xlu0 %4940
      %4942 = vrot.lane.b32.xlu0 %v4626, 1
      %v4943 = vpop.permute.xlu0 %4942
      %4944 = vrot.lane.b32.xlu0 %v4575, 1
      %v4945 = vpop.permute.xlu0 %4944
      %4946 = vrot.lane.b32.xlu0 %v4591, 1
      %v4947 = vpop.permute.xlu0 %4946
      %4948 = vrot.lane.b32.xlu0 %v4627, 1
      %v4949 = vpop.permute.xlu0 %4948
      %4950 = vrot.lane.b32.xlu0 %v4577, 1
      %v4951 = vpop.permute.xlu0 %4950
      %4952 = vrot.lane.b32.xlu0 %v4593, 1
      %v4953 = vpop.permute.xlu0 %4952
      %4954 = vrot.lane.b32.xlu0 %v4628, 1
      %v4955 = vpop.permute.xlu0 %4954
      %4956 = vrot.lane.b32.xlu0 %v4579, 1
      %v4957 = vpop.permute.xlu0 %4956
      %4958 = vrot.lane.b32.xlu0 %v4595, 1
      %v4959 = vpop.permute.xlu0 %4958
      %4960 = vrot.lane.b32.xlu0 %v4629, 1
      %v4961 = vpop.permute.xlu0 %4960
      %4962 = vrot.lane.b32.xlu0 %v4581, 1
      %v4963 = vpop.permute.xlu0 %4962
      %4964 = vrot.lane.b32.xlu0 %v4597, 1
      %v4965 = vpop.permute.xlu0 %4964
      %v4966 = vsel %vm903, %v4955, %v4961
      %v4967 = vsel %vm903, %v4957, %v4963
      %v4968 = vsel %vm903, %v4959, %v4965
      %v4969 = vsel %vm903, %v4949, %v4955
      %v4970 = vsel %vm903, %v4951, %v4957
      %v4971 = vsel %vm903, %v4953, %v4959
      %v4972 = vsel %vm903, %v4943, %v4949
      %v4973 = vsel %vm903, %v4945, %v4951
      %v4974 = vsel %vm903, %v4947, %v4953
      %v4975 = vsel %vm903, %v4937, %v4943
      %v4976 = vsel %vm903, %v4939, %v4945
      %v4977 = vsel %vm903, %v4941, %v4947
      %v4978 = vsel %vm903, %v4931, %v4937
      %v4979 = vsel %vm903, %v4933, %v4939
      %v4980 = vsel %vm903, %v4935, %v4941
      %v4981 = vsel %vm903, %v4925, %v4931
      %v4982 = vsel %vm903, %v4927, %v4933
      %v4983 = vsel %vm903, %v4929, %v4935
      %v4984 = vsel %vm903, %v4919, %v4925
      %v4985 = vsel %vm903, %v4921, %v4927
      %v4986 = vsel %vm903, %v4923, %v4929
      %v4987 = vsel %vm903, %v4961, %v4919
      %v4988 = vsel %vm903, %v4963, %v4921
      %v4989 = vsel %vm903, %v4965, %v4923
      %v4990 = vmul.f32 %v4987, %v915
      %v4991 = vmul.f32 %v4984, %v919
      %v4992 = vmul.f32 %v4981, %v923
      %v4993 = vmul.f32 %v4978, %v927
      %v4994 = vmul.f32 %v4975, %v931
      %v4995 = vmul.f32 %v4972, %v935
      %v4996 = vmul.f32 %v4969, %v939
      %v4997 = vmul.f32 %v4966, %v943
      %v4998 = vmul.f32 %v4988, %v915
      %v4999 = vmul.f32 %v4985, %v919
      %v5000 = vmul.f32 %v4982, %v923
      %v5001 = vmul.f32 %v4979, %v927
      %v5002 = vmul.f32 %v4976, %v931
      %v5003 = vmul.f32 %v4973, %v935
      %v5004 = vmul.f32 %v4970, %v939
      %v5005 = vmul.f32 %v4967, %v943
      %v5006 = vmul.f32 %v4989, %v915
      %v5007 = vmul.f32 %v4986, %v919
      %v5008 = vmul.f32 %v4983, %v923
      %v5009 = vmul.f32 %v4980, %v927
      %v5010 = vmul.f32 %v4977, %v931
      %v5011 = vmul.f32 %v4974, %v935
      %v5012 = vmul.f32 %v4971, %v939
      %v5013 = vmul.f32 %v4968, %v943
      %5014 = vrot.lane.b32.xlu0 %v4622, 127
      %v5015 = vpop.permute.xlu0 %5014
      %5016 = vrot.lane.b32.xlu0 %v4567, 127
      %v5017 = vpop.permute.xlu0 %5016
      %5018 = vrot.lane.b32.xlu0 %v4583, 127
      %v5019 = vpop.permute.xlu0 %5018
      %5020 = vrot.lane.b32.xlu0 %v4623, 127
      %v5021 = vpop.permute.xlu0 %5020
      %5022 = vrot.lane.b32.xlu0 %v4569, 127
      %v5023 = vpop.permute.xlu0 %5022
      %5024 = vrot.lane.b32.xlu0 %v4585, 127
      %v5025 = vpop.permute.xlu0 %5024
      %5026 = vrot.lane.b32.xlu0 %v4624, 127
      %v5027 = vpop.permute.xlu0 %5026
      %5028 = vrot.lane.b32.xlu0 %v4571, 127
      %v5029 = vpop.permute.xlu0 %5028
      %5030 = vrot.lane.b32.xlu0 %v4587, 127
      %v5031 = vpop.permute.xlu0 %5030
      %5032 = vrot.lane.b32.xlu0 %v4625, 127
      %v5033 = vpop.permute.xlu0 %5032
      %5034 = vrot.lane.b32.xlu0 %v4573, 127
      %v5035 = vpop.permute.xlu0 %5034
      %5036 = vrot.lane.b32.xlu0 %v4589, 127
      %v5037 = vpop.permute.xlu0 %5036
      %5038 = vrot.lane.b32.xlu0 %v4626, 127
      %v5039 = vpop.permute.xlu0 %5038
      %5040 = vrot.lane.b32.xlu0 %v4575, 127
      %v5041 = vpop.permute.xlu0 %5040
      %5042 = vrot.lane.b32.xlu0 %v4591, 127
      %v5043 = vpop.permute.xlu0 %5042
      %5044 = vrot.lane.b32.xlu0 %v4627, 127
      %v5045 = vpop.permute.xlu0 %5044
      %5046 = vrot.lane.b32.xlu0 %v4577, 127
      %v5047 = vpop.permute.xlu0 %5046
      %5048 = vrot.lane.b32.xlu0 %v4593, 127
      %v5049 = vpop.permute.xlu0 %5048
      %5050 = vrot.lane.b32.xlu0 %v4628, 127
      %v5051 = vpop.permute.xlu0 %5050
      %5052 = vrot.lane.b32.xlu0 %v4579, 127
      %v5053 = vpop.permute.xlu0 %5052
      %5054 = vrot.lane.b32.xlu0 %v4595, 127
      %v5055 = vpop.permute.xlu0 %5054
      %5056 = vrot.lane.b32.xlu0 %v4629, 127
      %v5057 = vpop.permute.xlu0 %5056
      %5058 = vrot.lane.b32.xlu0 %v4581, 127
      %v5059 = vpop.permute.xlu0 %5058
      %5060 = vrot.lane.b32.xlu0 %v4597, 127
      %v5061 = vpop.permute.xlu0 %5060
      %v5062 = vsel %vm968, %v5051, %v5057
      %v5063 = vsel %vm968, %v5053, %v5059
      %v5064 = vsel %vm968, %v5055, %v5061
      %v5065 = vsel %vm968, %v5045, %v5051
      %v5066 = vsel %vm968, %v5047, %v5053
      %v5067 = vsel %vm968, %v5049, %v5055
      %v5068 = vsel %vm968, %v5039, %v5045
      %v5069 = vsel %vm968, %v5041, %v5047
      %v5070 = vsel %vm968, %v5043, %v5049
      %v5071 = vsel %vm968, %v5033, %v5039
      %v5072 = vsel %vm968, %v5035, %v5041
      %v5073 = vsel %vm968, %v5037, %v5043
      %v5074 = vsel %vm968, %v5027, %v5033
      %v5075 = vsel %vm968, %v5029, %v5035
      %v5076 = vsel %vm968, %v5031, %v5037
      %v5077 = vsel %vm968, %v5021, %v5027
      %v5078 = vsel %vm968, %v5023, %v5029
      %v5079 = vsel %vm968, %v5025, %v5031
      %v5080 = vsel %vm968, %v5015, %v5021
      %v5081 = vsel %vm968, %v5017, %v5023
      %v5082 = vsel %vm968, %v5019, %v5025
      %v5083 = vsel %vm968, %v5057, %v5015
      %v5084 = vsel %vm968, %v5059, %v5017
      %v5085 = vsel %vm968, %v5061, %v5019
      %v5086 = vmul.f32 %v5080, %v980
      %v5087 = vmul.f32 %v5077, %v984
      %v5088 = vmul.f32 %v5074, %v988
      %v5089 = vmul.f32 %v5071, %v992
      %v5090 = vmul.f32 %v5068, %v996
      %v5091 = vmul.f32 %v5065, %v1000
      %v5092 = vmul.f32 %v5062, %v1004
      %v5093 = vmul.f32 %v5083, %v1008
      %v5094 = vmul.f32 %v5081, %v980
      %v5095 = vmul.f32 %v5078, %v984
      %v5096 = vmul.f32 %v5075, %v988
      %v5097 = vmul.f32 %v5072, %v992
      %v5098 = vmul.f32 %v5069, %v996
      %v5099 = vmul.f32 %v5066, %v1000
      %v5100 = vmul.f32 %v5063, %v1004
      %v5101 = vmul.f32 %v5084, %v1008
      %v5102 = vmul.f32 %v5082, %v980
      %v5103 = vmul.f32 %v5079, %v984
      %v5104 = vmul.f32 %v5076, %v988
      %v5105 = vmul.f32 %v5073, %v992
      %v5106 = vmul.f32 %v5070, %v996
      %v5107 = vmul.f32 %v5067, %v1000
      %v5108 = vmul.f32 %v5064, %v1004
      %v5109 = vmul.f32 %v5085, %v1008
      %5110 = vrot.lane.b32.xlu0 %v4622, 97
      %v5111 = vpop.permute.xlu0 %5110
      %5112 = vrot.lane.b32.xlu0 %v4567, 97
      %v5113 = vpop.permute.xlu0 %5112
      %5114 = vrot.lane.b32.xlu0 %v4583, 97
      %v5115 = vpop.permute.xlu0 %5114
      %5116 = vrot.lane.b32.xlu0 %v4623, 97
      %v5117 = vpop.permute.xlu0 %5116
      %5118 = vrot.lane.b32.xlu0 %v4569, 97
      %v5119 = vpop.permute.xlu0 %5118
      %5120 = vrot.lane.b32.xlu0 %v4585, 97
      %v5121 = vpop.permute.xlu0 %5120
      %5122 = vrot.lane.b32.xlu0 %v4624, 97
      %v5123 = vpop.permute.xlu0 %5122
      %5124 = vrot.lane.b32.xlu0 %v4571, 97
      %v5125 = vpop.permute.xlu0 %5124
      %5126 = vrot.lane.b32.xlu0 %v4587, 97
      %v5127 = vpop.permute.xlu0 %5126
      %5128 = vrot.lane.b32.xlu0 %v4625, 97
      %v5129 = vpop.permute.xlu0 %5128
      %5130 = vrot.lane.b32.xlu0 %v4573, 97
      %v5131 = vpop.permute.xlu0 %5130
      %5132 = vrot.lane.b32.xlu0 %v4589, 97
      %v5133 = vpop.permute.xlu0 %5132
      %5134 = vrot.lane.b32.xlu0 %v4626, 97
      %v5135 = vpop.permute.xlu0 %5134
      %5136 = vrot.lane.b32.xlu0 %v4575, 97
      %v5137 = vpop.permute.xlu0 %5136
      %5138 = vrot.lane.b32.xlu0 %v4591, 97
      %v5139 = vpop.permute.xlu0 %5138
      %5140 = vrot.lane.b32.xlu0 %v4627, 97
      %v5141 = vpop.permute.xlu0 %5140
      %5142 = vrot.lane.b32.xlu0 %v4577, 97
      %v5143 = vpop.permute.xlu0 %5142
      %5144 = vrot.lane.b32.xlu0 %v4593, 97
      %v5145 = vpop.permute.xlu0 %5144
      %5146 = vrot.lane.b32.xlu0 %v4628, 97
      %v5147 = vpop.permute.xlu0 %5146
      %5148 = vrot.lane.b32.xlu0 %v4579, 97
      %v5149 = vpop.permute.xlu0 %5148
      %5150 = vrot.lane.b32.xlu0 %v4595, 97
      %v5151 = vpop.permute.xlu0 %5150
      %5152 = vrot.lane.b32.xlu0 %v4629, 97
      %v5153 = vpop.permute.xlu0 %5152
      %5154 = vrot.lane.b32.xlu0 %v4581, 97
      %v5155 = vpop.permute.xlu0 %5154
      %5156 = vrot.lane.b32.xlu0 %v4597, 97
      %v5157 = vpop.permute.xlu0 %5156
      %v5158 = vsel %vm1033, %v5147, %v5153
      %v5159 = vsel %vm1033, %v5149, %v5155
      %v5160 = vsel %vm1033, %v5151, %v5157
      %v5161 = vsel %vm1033, %v5141, %v5147
      %v5162 = vsel %vm1033, %v5143, %v5149
      %v5163 = vsel %vm1033, %v5145, %v5151
      %v5164 = vsel %vm1033, %v5135, %v5141
      %v5165 = vsel %vm1033, %v5137, %v5143
      %v5166 = vsel %vm1033, %v5139, %v5145
      %v5167 = vsel %vm1033, %v5129, %v5135
      %v5168 = vsel %vm1033, %v5131, %v5137
      %v5169 = vsel %vm1033, %v5133, %v5139
      %v5170 = vsel %vm1033, %v5123, %v5129
      %v5171 = vsel %vm1033, %v5125, %v5131
      %v5172 = vsel %vm1033, %v5127, %v5133
      %v5173 = vsel %vm1033, %v5117, %v5123
      %v5174 = vsel %vm1033, %v5119, %v5125
      %v5175 = vsel %vm1033, %v5121, %v5127
      %v5176 = vsel %vm1033, %v5111, %v5117
      %v5177 = vsel %vm1033, %v5113, %v5119
      %v5178 = vsel %vm1033, %v5115, %v5121
      %v5179 = vsel %vm1033, %v5153, %v5111
      %v5180 = vsel %vm1033, %v5155, %v5113
      %v5181 = vsel %vm1033, %v5157, %v5115
      %v5182 = vmul.f32 %v5176, %v1045
      %v5183 = vmul.f32 %v5173, %v1049
      %v5184 = vmul.f32 %v5170, %v1053
      %v5185 = vmul.f32 %v5167, %v1057
      %v5186 = vmul.f32 %v5164, %v1061
      %v5187 = vmul.f32 %v5161, %v1065
      %v5188 = vmul.f32 %v5158, %v1069
      %v5189 = vmul.f32 %v5179, %v1073
      %v5190 = vmul.f32 %v5177, %v1045
      %v5191 = vmul.f32 %v5174, %v1049
      %v5192 = vmul.f32 %v5171, %v1053
      %v5193 = vmul.f32 %v5168, %v1057
      %v5194 = vmul.f32 %v5165, %v1061
      %v5195 = vmul.f32 %v5162, %v1065
      %v5196 = vmul.f32 %v5159, %v1069
      %v5197 = vmul.f32 %v5180, %v1073
      %v5198 = vmul.f32 %v5178, %v1045
      %v5199 = vmul.f32 %v5175, %v1049
      %v5200 = vmul.f32 %v5172, %v1053
      %v5201 = vmul.f32 %v5169, %v1057
      %v5202 = vmul.f32 %v5166, %v1061
      %v5203 = vmul.f32 %v5163, %v1065
      %v5204 = vmul.f32 %v5160, %v1069
      %v5205 = vmul.f32 %v5181, %v1073
      %5206 = vrot.lane.b32.xlu0 %v4622, 96
      %v5207 = vpop.permute.xlu0 %5206
      %5208 = vrot.lane.b32.xlu0 %v4567, 96
      %v5209 = vpop.permute.xlu0 %5208
      %5210 = vrot.lane.b32.xlu0 %v4583, 96
      %v5211 = vpop.permute.xlu0 %5210
      %5212 = vrot.lane.b32.xlu0 %v4623, 96
      %v5213 = vpop.permute.xlu0 %5212
      %5214 = vrot.lane.b32.xlu0 %v4569, 96
      %v5215 = vpop.permute.xlu0 %5214
      %5216 = vrot.lane.b32.xlu0 %v4585, 96
      %v5217 = vpop.permute.xlu0 %5216
      %5218 = vrot.lane.b32.xlu0 %v4624, 96
      %v5219 = vpop.permute.xlu0 %5218
      %5220 = vrot.lane.b32.xlu0 %v4571, 96
      %v5221 = vpop.permute.xlu0 %5220
      %5222 = vrot.lane.b32.xlu0 %v4587, 96
      %v5223 = vpop.permute.xlu0 %5222
      %5224 = vrot.lane.b32.xlu0 %v4625, 96
      %v5225 = vpop.permute.xlu0 %5224
      %5226 = vrot.lane.b32.xlu0 %v4573, 96
      %v5227 = vpop.permute.xlu0 %5226
      %5228 = vrot.lane.b32.xlu0 %v4589, 96
      %v5229 = vpop.permute.xlu0 %5228
      %5230 = vrot.lane.b32.xlu0 %v4626, 96
      %v5231 = vpop.permute.xlu0 %5230
      %5232 = vrot.lane.b32.xlu0 %v4575, 96
      %v5233 = vpop.permute.xlu0 %5232
      %5234 = vrot.lane.b32.xlu0 %v4591, 96
      %v5235 = vpop.permute.xlu0 %5234
      %5236 = vrot.lane.b32.xlu0 %v4627, 96
      %v5237 = vpop.permute.xlu0 %5236
      %5238 = vrot.lane.b32.xlu0 %v4577, 96
      %v5239 = vpop.permute.xlu0 %5238
      %5240 = vrot.lane.b32.xlu0 %v4593, 96
      %v5241 = vpop.permute.xlu0 %5240
      %5242 = vrot.lane.b32.xlu0 %v4628, 96
      %v5243 = vpop.permute.xlu0 %5242
      %5244 = vrot.lane.b32.xlu0 %v4579, 96
      %v5245 = vpop.permute.xlu0 %5244
      %5246 = vrot.lane.b32.xlu0 %v4595, 96
      %v5247 = vpop.permute.xlu0 %5246
      %5248 = vrot.lane.b32.xlu0 %v4629, 96
      %v5249 = vpop.permute.xlu0 %5248
      %5250 = vrot.lane.b32.xlu0 %v4581, 96
      %v5251 = vpop.permute.xlu0 %5250
      %5252 = vrot.lane.b32.xlu0 %v4597, 96
      %v5253 = vpop.permute.xlu0 %5252
      %v5254 = vsel %vm1098, %v5243, %v5249
      %v5255 = vsel %vm1098, %v5245, %v5251
      %v5256 = vsel %vm1098, %v5247, %v5253
      %v5257 = vsel %vm1098, %v5237, %v5243
      %v5258 = vsel %vm1098, %v5239, %v5245
      %v5259 = vsel %vm1098, %v5241, %v5247
      %v5260 = vsel %vm1098, %v5231, %v5237
      %v5261 = vsel %vm1098, %v5233, %v5239
      %v5262 = vsel %vm1098, %v5235, %v5241
      %v5263 = vsel %vm1098, %v5225, %v5231
      %v5264 = vsel %vm1098, %v5227, %v5233
      %v5265 = vsel %vm1098, %v5229, %v5235
      %v5266 = vsel %vm1098, %v5219, %v5225
      %v5267 = vsel %vm1098, %v5221, %v5227
      %v5268 = vsel %vm1098, %v5223, %v5229
      %v5269 = vsel %vm1098, %v5213, %v5219
      %v5270 = vsel %vm1098, %v5215, %v5221
      %v5271 = vsel %vm1098, %v5217, %v5223
      %v5272 = vsel %vm1098, %v5207, %v5213
      %v5273 = vsel %vm1098, %v5209, %v5215
      %v5274 = vsel %vm1098, %v5211, %v5217
      %v5275 = vsel %vm1098, %v5249, %v5207
      %v5276 = vsel %vm1098, %v5251, %v5209
      %v5277 = vsel %vm1098, %v5253, %v5211
      %v5278 = vmul.f32 %v5272, %v1110
      %v5279 = vmul.f32 %v5269, %v1114
      %v5280 = vmul.f32 %v5266, %v1118
      %v5281 = vmul.f32 %v5263, %v1122
      %v5282 = vmul.f32 %v5260, %v1126
      %v5283 = vmul.f32 %v5257, %v1130
      %v5284 = vmul.f32 %v5254, %v1134
      %v5285 = vmul.f32 %v5275, %v1138
      %v5286 = vmul.f32 %v5273, %v1110
      %v5287 = vmul.f32 %v5270, %v1114
      %v5288 = vmul.f32 %v5267, %v1118
      %v5289 = vmul.f32 %v5264, %v1122
      %v5290 = vmul.f32 %v5261, %v1126
      %v5291 = vmul.f32 %v5258, %v1130
      %v5292 = vmul.f32 %v5255, %v1134
      %v5293 = vmul.f32 %v5276, %v1138
      %v5294 = vmul.f32 %v5274, %v1110
      %v5295 = vmul.f32 %v5271, %v1114
      %v5296 = vmul.f32 %v5268, %v1118
      %v5297 = vmul.f32 %v5265, %v1122
      %v5298 = vmul.f32 %v5262, %v1126
      %v5299 = vmul.f32 %v5259, %v1130
      %v5300 = vmul.f32 %v5256, %v1134
      %v5301 = vmul.f32 %v5277, %v1138
      %5302 = vrot.lane.b32.xlu0 %v4622, 95
      %v5303 = vpop.permute.xlu0 %5302
      %5304 = vrot.lane.b32.xlu0 %v4567, 95
      %v5305 = vpop.permute.xlu0 %5304
      %5306 = vrot.lane.b32.xlu0 %v4583, 95
      %v5307 = vpop.permute.xlu0 %5306
      %5308 = vrot.lane.b32.xlu0 %v4623, 95
      %v5309 = vpop.permute.xlu0 %5308
      %5310 = vrot.lane.b32.xlu0 %v4569, 95
      %v5311 = vpop.permute.xlu0 %5310
      %5312 = vrot.lane.b32.xlu0 %v4585, 95
      %v5313 = vpop.permute.xlu0 %5312
      %5314 = vrot.lane.b32.xlu0 %v4624, 95
      %v5315 = vpop.permute.xlu0 %5314
      %5316 = vrot.lane.b32.xlu0 %v4571, 95
      %v5317 = vpop.permute.xlu0 %5316
      %5318 = vrot.lane.b32.xlu0 %v4587, 95
      %v5319 = vpop.permute.xlu0 %5318
      %5320 = vrot.lane.b32.xlu0 %v4625, 95
      %v5321 = vpop.permute.xlu0 %5320
      %5322 = vrot.lane.b32.xlu0 %v4573, 95
      %v5323 = vpop.permute.xlu0 %5322
      %5324 = vrot.lane.b32.xlu0 %v4589, 95
      %v5325 = vpop.permute.xlu0 %5324
      %5326 = vrot.lane.b32.xlu0 %v4626, 95
      %v5327 = vpop.permute.xlu0 %5326
      %5328 = vrot.lane.b32.xlu0 %v4575, 95
      %v5329 = vpop.permute.xlu0 %5328
      %5330 = vrot.lane.b32.xlu0 %v4591, 95
      %v5331 = vpop.permute.xlu0 %5330
      %5332 = vrot.lane.b32.xlu0 %v4627, 95
      %v5333 = vpop.permute.xlu0 %5332
      %5334 = vrot.lane.b32.xlu0 %v4577, 95
      %v5335 = vpop.permute.xlu0 %5334
      %5336 = vrot.lane.b32.xlu0 %v4593, 95
      %v5337 = vpop.permute.xlu0 %5336
      %5338 = vrot.lane.b32.xlu0 %v4628, 95
      %v5339 = vpop.permute.xlu0 %5338
      %5340 = vrot.lane.b32.xlu0 %v4579, 95
      %v5341 = vpop.permute.xlu0 %5340
      %5342 = vrot.lane.b32.xlu0 %v4595, 95
      %v5343 = vpop.permute.xlu0 %5342
      %5344 = vrot.lane.b32.xlu0 %v4629, 95
      %v5345 = vpop.permute.xlu0 %5344
      %5346 = vrot.lane.b32.xlu0 %v4581, 95
      %v5347 = vpop.permute.xlu0 %5346
      %5348 = vrot.lane.b32.xlu0 %v4597, 95
      %v5349 = vpop.permute.xlu0 %5348
      %v5350 = vsel %vm1163, %v5339, %v5345
      %v5351 = vsel %vm1163, %v5341, %v5347
      %v5352 = vsel %vm1163, %v5343, %v5349
      %v5353 = vsel %vm1163, %v5333, %v5339
      %v5354 = vsel %vm1163, %v5335, %v5341
      %v5355 = vsel %vm1163, %v5337, %v5343
      %v5356 = vsel %vm1163, %v5327, %v5333
      %v5357 = vsel %vm1163, %v5329, %v5335
      %v5358 = vsel %vm1163, %v5331, %v5337
      %v5359 = vsel %vm1163, %v5321, %v5327
      %v5360 = vsel %vm1163, %v5323, %v5329
      %v5361 = vsel %vm1163, %v5325, %v5331
      %v5362 = vsel %vm1163, %v5315, %v5321
      %v5363 = vsel %vm1163, %v5317, %v5323
      %v5364 = vsel %vm1163, %v5319, %v5325
      %v5365 = vsel %vm1163, %v5309, %v5315
      %v5366 = vsel %vm1163, %v5311, %v5317
      %v5367 = vsel %vm1163, %v5313, %v5319
      %v5368 = vsel %vm1163, %v5303, %v5309
      %v5369 = vsel %vm1163, %v5305, %v5311
      %v5370 = vsel %vm1163, %v5307, %v5313
      %v5371 = vsel %vm1163, %v5345, %v5303
      %v5372 = vsel %vm1163, %v5347, %v5305
      %v5373 = vsel %vm1163, %v5349, %v5307
      %v5374 = vmul.f32 %v5368, %v1175
      %v5375 = vmul.f32 %v5365, %v1179
      %v5376 = vmul.f32 %v5362, %v1183
      %v5377 = vmul.f32 %v5359, %v1187
      %v5378 = vmul.f32 %v5356, %v1191
      %v5379 = vmul.f32 %v5353, %v1195
      %v5380 = vmul.f32 %v5350, %v1199
      %v5381 = vmul.f32 %v5371, %v1203
      %v5382 = vmul.f32 %v5369, %v1175
      %v5383 = vmul.f32 %v5366, %v1179
      %v5384 = vmul.f32 %v5363, %v1183
      %v5385 = vmul.f32 %v5360, %v1187
      %v5386 = vmul.f32 %v5357, %v1191
      %v5387 = vmul.f32 %v5354, %v1195
      %v5388 = vmul.f32 %v5351, %v1199
      %v5389 = vmul.f32 %v5372, %v1203
      %v5390 = vmul.f32 %v5370, %v1175
      %v5391 = vmul.f32 %v5367, %v1179
      %v5392 = vmul.f32 %v5364, %v1183
      %v5393 = vmul.f32 %v5361, %v1187
      %v5394 = vmul.f32 %v5358, %v1191
      %v5395 = vmul.f32 %v5355, %v1195
      %v5396 = vmul.f32 %v5352, %v1199
      %v5397 = vmul.f32 %v5373, %v1203
      %v5398 = vpack.c.bf16 %v4710, %v4702
      %v5399 = vpack.c.bf16 %v4711, %v4703
      %v5400 = vpack.c.bf16 %v4712, %v4704
      %v5401 = vpack.c.bf16 %v4713, %v4705
      %v5402 = vpack.c.bf16 %v4714, %v4706
      %v5403 = vpack.c.bf16 %v4715, %v4707
      %v5404 = vpack.c.bf16 %v4716, %v4708
      %v5405 = vpack.c.bf16 %v4717, %v4709
      %v5406 = vpack.c.bf16 %v4798, %v4718
      %v5407 = vpack.c.bf16 %v4799, %v4719
      %v5408 = vpack.c.bf16 %v4800, %v4720
      %v5409 = vpack.c.bf16 %v4801, %v4721
      %v5410 = vpack.c.bf16 %v4802, %v4722
      %v5411 = vpack.c.bf16 %v4803, %v4723
      %v5412 = vpack.c.bf16 %v4804, %v4724
      %v5413 = vpack.c.bf16 %v4805, %v4725
      %v5414 = vpack.c.bf16 %v4814, %v4806
      %v5415 = vpack.c.bf16 %v4815, %v4807
      %v5416 = vpack.c.bf16 %v4816, %v4808
      %v5417 = vpack.c.bf16 %v4817, %v4809
      %v5418 = vpack.c.bf16 %v4818, %v4810
      %v5419 = vpack.c.bf16 %v4819, %v4811
      %v5420 = vpack.c.bf16 %v4820, %v4812
      %v5421 = vpack.c.bf16 %v4821, %v4813
      %v5422 = vpack.c.bf16 %v4902, %v4894
      %v5423 = vpack.c.bf16 %v4903, %v4895
      %v5424 = vpack.c.bf16 %v4904, %v4896
      %v5425 = vpack.c.bf16 %v4905, %v4897
      %v5426 = vpack.c.bf16 %v4906, %v4898
      %v5427 = vpack.c.bf16 %v4907, %v4899
      %v5428 = vpack.c.bf16 %v4908, %v4900
      %v5429 = vpack.c.bf16 %v4909, %v4901
      %v5430 = vpack.c.bf16 %v4990, %v4910
      %v5431 = vpack.c.bf16 %v4991, %v4911
      %v5432 = vpack.c.bf16 %v4992, %v4912
      %v5433 = vpack.c.bf16 %v4993, %v4913
      %v5434 = vpack.c.bf16 %v4994, %v4914
      %v5435 = vpack.c.bf16 %v4995, %v4915
      %v5436 = vpack.c.bf16 %v4996, %v4916
      %v5437 = vpack.c.bf16 %v4997, %v4917
      %v5438 = vpack.c.bf16 %v5006, %v4998
      %v5439 = vpack.c.bf16 %v5007, %v4999
      %v5440 = vpack.c.bf16 %v5008, %v5000
      %v5441 = vpack.c.bf16 %v5009, %v5001
      %v5442 = vpack.c.bf16 %v5010, %v5002
      %v5443 = vpack.c.bf16 %v5011, %v5003
      %v5444 = vpack.c.bf16 %v5012, %v5004
      %v5445 = vpack.c.bf16 %v5013, %v5005
      %v5446 = vpack.c.bf16 %v4567, %v4622
      %v5447 = vpack.c.bf16 %v4569, %v4623
      %v5448 = vpack.c.bf16 %v4571, %v4624
      %v5449 = vpack.c.bf16 %v4573, %v4625
      %v5450 = vpack.c.bf16 %v4575, %v4626
      %v5451 = vpack.c.bf16 %v4577, %v4627
      %v5452 = vpack.c.bf16 %v4579, %v4628
      %v5453 = vpack.c.bf16 %v4581, %v4629
      %v5454 = vpack.c.bf16 %v5086, %v4583
      %v5455 = vpack.c.bf16 %v5087, %v4585
      %v5456 = vpack.c.bf16 %v5088, %v4587
      %v5457 = vpack.c.bf16 %v5089, %v4589
      %v5458 = vpack.c.bf16 %v5090, %v4591
      %v5459 = vpack.c.bf16 %v5091, %v4593
      %v5460 = vpack.c.bf16 %v5092, %v4595
      %v5461 = vpack.c.bf16 %v5093, %v4597
      %v5462 = vpack.c.bf16 %v5102, %v5094
      %v5463 = vpack.c.bf16 %v5103, %v5095
      %v5464 = vpack.c.bf16 %v5104, %v5096
      %v5465 = vpack.c.bf16 %v5105, %v5097
      %v5466 = vpack.c.bf16 %v5106, %v5098
      %v5467 = vpack.c.bf16 %v5107, %v5099
      %v5468 = vpack.c.bf16 %v5108, %v5100
      %v5469 = vpack.c.bf16 %v5109, %v5101
      %v5470 = vpack.c.bf16 %v5190, %v5182
      %v5471 = vpack.c.bf16 %v5191, %v5183
      %v5472 = vpack.c.bf16 %v5192, %v5184
      %v5473 = vpack.c.bf16 %v5193, %v5185
      %v5474 = vpack.c.bf16 %v5194, %v5186
      %v5475 = vpack.c.bf16 %v5195, %v5187
      %v5476 = vpack.c.bf16 %v5196, %v5188
      %v5477 = vpack.c.bf16 %v5197, %v5189
      %v5478 = vpack.c.bf16 %v5278, %v5198
      %v5479 = vpack.c.bf16 %v5279, %v5199
      %v5480 = vpack.c.bf16 %v5280, %v5200
      %v5481 = vpack.c.bf16 %v5281, %v5201
      %v5482 = vpack.c.bf16 %v5282, %v5202
      %v5483 = vpack.c.bf16 %v5283, %v5203
      %v5484 = vpack.c.bf16 %v5284, %v5204
      %v5485 = vpack.c.bf16 %v5285, %v5205
      %v5486 = vpack.c.bf16 %v5294, %v5286
      %v5487 = vpack.c.bf16 %v5295, %v5287
      %v5488 = vpack.c.bf16 %v5296, %v5288
      %v5489 = vpack.c.bf16 %v5297, %v5289
      %v5490 = vpack.c.bf16 %v5298, %v5290
      %v5491 = vpack.c.bf16 %v5299, %v5291
      %v5492 = vpack.c.bf16 %v5300, %v5292
      %v5493 = vpack.c.bf16 %v5301, %v5293
      %v5494 = vpack.c.bf16 %v5382, %v5374
      %v5495 = vpack.c.bf16 %v5383, %v5375
      %v5496 = vpack.c.bf16 %v5384, %v5376
      %v5497 = vpack.c.bf16 %v5385, %v5377
      %v5498 = vpack.c.bf16 %v5386, %v5378
      %v5499 = vpack.c.bf16 %v5387, %v5379
      %v5500 = vpack.c.bf16 %v5388, %v5380
      %v5501 = vpack.c.bf16 %v5389, %v5381
      %v5502 = vpack.c.bf16 %v5390, %v5390
      %v5503 = vpack.c.bf16 %v5391, %v5391
      %v5504 = vpack.c.bf16 %v5392, %v5392
      %v5505 = vpack.c.bf16 %v5393, %v5393
      %v5506 = vpack.c.bf16 %v5394, %v5394
      %v5507 = vpack.c.bf16 %v5395, %v5395
      %v5508 = vpack.c.bf16 %v5396, %v5396
      %v5509 = vpack.c.bf16 %v5397, %v5397
      %v5510 = vld [vmem:[%s11] sm:$0xf]
      %v5511 = vld [vmem:[%s12] sm:$0x7]
      %5513 = vset.pattern.permute.xlu0 0
      %5514 = vperm.xlu0 %5513, %v5511
      %v5515 = vpop.permute.xlu0 %5514
      %v5519 = vunpack.c.l.s4 1983009808
      %v5520 = vunpack.c.0.s8 %v5519
      %v5521 = vlaneseq
      %v5522 = vshrl.u32 %v5521, 7
      %v5523 = vsub.s32 %v5520, %v5522
      %v5524 = vrot.slane %v5510, %v5523
      %v5525 = vcombine.high %v5524, %v5524
      %vm5527 = vcmask 719872
      %v5529 = vsel %vm5527, %v5525, 0
      %v5532 = vsel %vm1308, %v5502, 0
      %v5535 = vsel %vm1308, %v5503, 0
      %v5538 = vsel %vm1308, %v5504, 0
      %v5541 = vsel %vm1308, %v5505, 0
      %v5544 = vsel %vm1308, %v5506, 0
      %v5547 = vsel %vm1308, %v5507, 0
      %v5550 = vsel %vm1308, %v5508, 0
      %v5553 = vsel %vm1308, %v5509, 0
      %5555 = vmatprep.subr.bf16.mxu0 %v5455
      %5556 = vmatpush1.bf16.msra.mxu0 %v5454
      %5557 = vmatprep.subr.bf16.mxu0 %v5447
      %5558 = vmatpush1.bf16.msra.mxu0 %v5446
      %5559 = vmatprep.subr.bf16.mxu0 %v5439
      %5560 = vmatpush1.bf16.msra.mxu0 %v5438
      %5561 = vmatprep.subr.bf16.mxu0 %v5431
      %5562 = vmatpush1.bf16.msra.mxu0 %v5430
      %5563 = vmatprep.subr.bf16.mxu0 %v5423
      %5564 = vmatpush1.bf16.msra.mxu0 %v5422
      %5565 = vmatprep.subr.bf16.mxu0 %v5415
      %5566 = vmatpush1.bf16.msra.mxu0 %v5414
      %5567 = vmatprep.subr.bf16.mxu0 %v5407
      %5568 = vmatpush1.bf16.msra.mxu0 %v5406
      %5569 = vmatprep.subr.bf16.mxu0 %v5399
      %5570 = vmatpush1.bf16.msra.mxu0 %v5398
      %5571 = vmatprep.subr.bf16.mxu0 0
      %5572 = vmatpush2.bf16.msra.mxu0 0
      %5573 = vmatprep.subr.bf16.mxu0 0
      %5574 = vmatpush2.bf16.msra.mxu0 0
      %5575 = vmatprep.subr.bf16.mxu0 %v5535
      %5576 = vmatpush2.bf16.msra.mxu0 %v5532
      %5577 = vmatprep.subr.bf16.mxu0 %v5495
      %5578 = vmatpush2.bf16.msra.mxu0 %v5494
      %5579 = vmatprep.subr.bf16.mxu0 %v5487
      %5580 = vmatpush2.bf16.msra.mxu0 %v5486
      %5581 = vmatprep.subr.bf16.mxu0 %v5479
      %5582 = vmatpush2.bf16.msra.mxu0 %v5478
      %5583 = vmatprep.subr.bf16.mxu0 %v5471
      %5584 = vmatpush2.bf16.msra.mxu0 %v5470
      %5585 = vmatprep.subr.bf16.mxu0 %v5463
      %5586 = vmatpush2.bf16.msra.mxu0 %v5462
      %5587 = vmatprep.mubr.bf16.mxu0 %v5529
      %5588 = vmatmul.mubr.bf16.gmra.mxu0 %v5524
      %v5589 = vpop.f32.mrf.mxu0
      %v5590 = vadd.f32 %v5515, %v5589
      %v5591 = vpop.f32.mrf.mxu0
      %v5592 = vadd.f32 %v5515, %v5591
      %v5593 = vpop.f32.mrf.mxu0
      %v5594 = vpop.f32.mrf.mxu0
      %5595 = vdwg.mxu0
      %5596 = vmatprep.subr.bf16.mxu0 %v5457
      %5597 = vmatpush1.bf16.msra.mxu0 %v5456
      %5598 = vmatprep.subr.bf16.mxu0 %v5449
      %5599 = vmatpush1.bf16.msra.mxu0 %v5448
      %5600 = vmatprep.subr.bf16.mxu0 %v5441
      %5601 = vmatpush1.bf16.msra.mxu0 %v5440
      %5602 = vmatprep.subr.bf16.mxu0 %v5433
      %5603 = vmatpush1.bf16.msra.mxu0 %v5432
      %5604 = vmatprep.subr.bf16.mxu0 %v5425
      %5605 = vmatpush1.bf16.msra.mxu0 %v5424
      %5606 = vmatprep.subr.bf16.mxu0 %v5417
      %5607 = vmatpush1.bf16.msra.mxu0 %v5416
      %5608 = vmatprep.subr.bf16.mxu0 %v5409
      %5609 = vmatpush1.bf16.msra.mxu0 %v5408
      %5610 = vmatprep.subr.bf16.mxu0 %v5401
      %5611 = vmatpush1.bf16.msra.mxu0 %v5400
      %5612 = vmatprep.subr.bf16.mxu0 0
      %5613 = vmatpush2.bf16.msra.mxu0 0
      %5614 = vmatprep.subr.bf16.mxu0 0
      %5615 = vmatpush2.bf16.msra.mxu0 0
      %5616 = vmatprep.subr.bf16.mxu0 %v5541
      %5617 = vmatpush2.bf16.msra.mxu0 %v5538
      %5618 = vmatprep.subr.bf16.mxu0 %v5497
      %5619 = vmatpush2.bf16.msra.mxu0 %v5496
      %5620 = vmatprep.subr.bf16.mxu0 %v5489
      %5621 = vmatpush2.bf16.msra.mxu0 %v5488
      %5622 = vmatprep.subr.bf16.mxu0 %v5481
      %5623 = vmatpush2.bf16.msra.mxu0 %v5480
      %5624 = vmatprep.subr.bf16.mxu0 %v5473
      %5625 = vmatpush2.bf16.msra.mxu0 %v5472
      %5626 = vmatprep.subr.bf16.mxu0 %v5465
      %5627 = vmatpush2.bf16.msra.mxu0 %v5464
      %5628 = vmatprep.mubr.bf16.mxu0 %v5529
      %5629 = vmatmul.mubr.bf16.gmra.mxu0 %v5524
      %v5630 = vpop.f32.mrf.mxu0
      %v5631 = vadd.f32 %v5515, %v5630
      %v5632 = vpop.f32.mrf.mxu0
      %v5633 = vadd.f32 %v5515, %v5632
      %v5634 = vpop.f32.mrf.mxu0
      %v5635 = vpop.f32.mrf.mxu0
      %5636 = vdwg.mxu0
      %5637 = vmatprep.subr.bf16.mxu0 %v5459
      %5638 = vmatpush1.bf16.msra.mxu0 %v5458
      %5639 = vmatprep.subr.bf16.mxu0 %v5451
      %5640 = vmatpush1.bf16.msra.mxu0 %v5450
      %5641 = vmatprep.subr.bf16.mxu0 %v5443
      %5642 = vmatpush1.bf16.msra.mxu0 %v5442
      %5643 = vmatprep.subr.bf16.mxu0 %v5435
      %5644 = vmatpush1.bf16.msra.mxu0 %v5434
      %5645 = vmatprep.subr.bf16.mxu0 %v5427
      %5646 = vmatpush1.bf16.msra.mxu0 %v5426
      %5647 = vmatprep.subr.bf16.mxu0 %v5419
      %5648 = vmatpush1.bf16.msra.mxu0 %v5418
      %5649 = vmatprep.subr.bf16.mxu0 %v5411
      %5650 = vmatpush1.bf16.msra.mxu0 %v5410
      %5651 = vmatprep.subr.bf16.mxu0 %v5403
      %5652 = vmatpush1.bf16.msra.mxu0 %v5402
      %5653 = vmatprep.subr.bf16.mxu0 0
      %5654 = vmatpush2.bf16.msra.mxu0 0
      %5655 = vmatprep.subr.bf16.mxu0 0
      %5656 = vmatpush2.bf16.msra.mxu0 0
      %5657 = vmatprep.subr.bf16.mxu0 %v5547
      %5658 = vmatpush2.bf16.msra.mxu0 %v5544
      %5659 = vmatprep.subr.bf16.mxu0 %v5499
      %5660 = vmatpush2.bf16.msra.mxu0 %v5498
      %5661 = vmatprep.subr.bf16.mxu0 %v5491
      %5662 = vmatpush2.bf16.msra.mxu0 %v5490
      %5663 = vmatprep.subr.bf16.mxu0 %v5483
      %5664 = vmatpush2.bf16.msra.mxu0 %v5482
      %5665 = vmatprep.subr.bf16.mxu0 %v5475
      %5666 = vmatpush2.bf16.msra.mxu0 %v5474
      %5667 = vmatprep.subr.bf16.mxu0 %v5467
      %5668 = vmatpush2.bf16.msra.mxu0 %v5466
      %5669 = vmatprep.mubr.bf16.mxu0 %v5529
      %5670 = vmatmul.mubr.bf16.gmra.mxu0 %v5524
      %v5671 = vpop.f32.mrf.mxu0
      %v5672 = vadd.f32 %v5515, %v5671
      %v5673 = vpop.f32.mrf.mxu0
      %v5674 = vadd.f32 %v5515, %v5673
      %v5675 = vpop.f32.mrf.mxu0
      %v5676 = vpop.f32.mrf.mxu0
      %5677 = vdwg.mxu0
      %5678 = vmatprep.subr.bf16.mxu0 %v5461
      %5679 = vmatpush1.bf16.msra.mxu0 %v5460
      %5680 = vmatprep.subr.bf16.mxu0 %v5453
      %5681 = vmatpush1.bf16.msra.mxu0 %v5452
      %5682 = vmatprep.subr.bf16.mxu0 %v5445
      %5683 = vmatpush1.bf16.msra.mxu0 %v5444
      %5684 = vmatprep.subr.bf16.mxu0 %v5437
      %5685 = vmatpush1.bf16.msra.mxu0 %v5436
      %5686 = vmatprep.subr.bf16.mxu0 %v5429
      %5687 = vmatpush1.bf16.msra.mxu0 %v5428
      %5688 = vmatprep.subr.bf16.mxu0 %v5421
      %5689 = vmatpush1.bf16.msra.mxu0 %v5420
      %5690 = vmatprep.subr.bf16.mxu0 %v5413
      %5691 = vmatpush1.bf16.msra.mxu0 %v5412
      %5692 = vmatprep.subr.bf16.mxu0 %v5405
      %5693 = vmatpush1.bf16.msra.mxu0 %v5404
      %5694 = vmatprep.subr.bf16.mxu0 0
      %5695 = vmatpush2.bf16.msra.mxu0 0
      %5696 = vmatprep.subr.bf16.mxu0 0
      %5697 = vmatpush2.bf16.msra.mxu0 0
      %5698 = vmatprep.subr.bf16.mxu0 %v5553
      %5699 = vmatpush2.bf16.msra.mxu0 %v5550
      %5700 = vmatprep.subr.bf16.mxu0 %v5501
      %5701 = vmatpush2.bf16.msra.mxu0 %v5500
      %5702 = vmatprep.subr.bf16.mxu0 %v5493
      %5703 = vmatpush2.bf16.msra.mxu0 %v5492
      %5704 = vmatprep.subr.bf16.mxu0 %v5485
      %5705 = vmatpush2.bf16.msra.mxu0 %v5484
      %5706 = vmatprep.subr.bf16.mxu0 %v5477
      %5707 = vmatpush2.bf16.msra.mxu0 %v5476
      %5708 = vmatprep.subr.bf16.mxu0 %v5469
      %5709 = vmatpush2.bf16.msra.mxu0 %v5468
      %5710 = vmatprep.mubr.bf16.mxu0 %v5529
      %5711 = vmatmul.mubr.bf16.gmra.mxu0 %v5524
      %v5712 = vpop.f32.mrf.mxu0
      %v5713 = vadd.f32 %v5515, %v5712
      %v5714 = vpop.f32.mrf.mxu0
      %v5715 = vadd.f32 %v5515, %v5714
      %v5716 = vpop.f32.mrf.mxu0
      %v5717 = vpop.f32.mrf.mxu0
      %5718 = vdwg.mxu0
      %v5719 = vtanh.pop %v5590
      %v5720 = vtanh.pop %v5592
      %v5721 = vtanh.pop %v5631
      %v5722 = vtanh.pop %v5633
      %v5723 = vtanh.pop %v5672
      %v5724 = vtanh.pop %v5674
      %v5725 = vtanh.pop %v5713
      %v5726 = vtanh.pop %v5715
      %v5735 = vrot.slane %v5719, 4
      %v5736 = vrot.slane %v5720, 4
      %v5737 = vrot.slane %v5721, 4
      %v5738 = vrot.slane %v5722, 4
      %v5739 = vrot.slane %v5723, 4
      %v5740 = vrot.slane %v5724, 4
      %v5741 = vrot.slane %v5725, 4
      %v5742 = vrot.slane %v5726, 4
      %v5751 = vsel %vm1308, %v674, %v5735
      %v5752 = vsel %vm1308, %v682, %v5736
      %v5753 = vsel %vm1308, %v675, %v5737
      %v5754 = vsel %vm1308, %v683, %v5738
      %v5755 = vsel %vm1308, %v676, %v5739
      %v5756 = vsel %vm1308, %v684, %v5740
      %v5757 = vsel %vm1308, %v677, %v5741
      %v5758 = vsel %vm1308, %v685, %v5742
      %5759 = vrot.lane.b32.xlu0 %v5751, 33
      %v5760 = vpop.permute.xlu0 %5759
      %5761 = vrot.lane.b32.xlu0 %v5752, 33
      %v5762 = vpop.permute.xlu0 %5761
      %5763 = vrot.lane.b32.xlu0 %v5753, 33
      %v5764 = vpop.permute.xlu0 %5763
      %5765 = vrot.lane.b32.xlu0 %v5754, 33
      %v5766 = vpop.permute.xlu0 %5765
      %5767 = vrot.lane.b32.xlu0 %v5755, 33
      %v5768 = vpop.permute.xlu0 %5767
      %5769 = vrot.lane.b32.xlu0 %v5756, 33
      %v5770 = vpop.permute.xlu0 %5769
      %5771 = vrot.lane.b32.xlu0 %v5757, 33
      %v5772 = vpop.permute.xlu0 %5771
      %5773 = vrot.lane.b32.xlu0 %v5758, 33
      %v5774 = vpop.permute.xlu0 %5773
      %v5775 = vsel %vm708, %v5772, %v5774
      %v5776 = vsel %vm708, %v5770, %v5772
      %v5777 = vsel %vm708, %v5768, %v5770
      %v5778 = vsel %vm708, %v5766, %v5768
      %v5779 = vsel %vm708, %v5764, %v5766
      %v5780 = vsel %vm708, %v5762, %v5764
      %v5781 = vsel %vm708, %v5760, %v5762
      %v5782 = vsel %vm708, %v5774, %v5760
      %v5783 = vmul.f32 %v5782, %v720
      %v5784 = vmul.f32 %v5781, %v724
      %v5785 = vmul.f32 %v5780, %v728
      %v5786 = vmul.f32 %v5779, %v732
      %v5787 = vmul.f32 %v5778, %v736
      %v5788 = vmul.f32 %v5777, %v740
      %v5789 = vmul.f32 %v5776, %v744
      %v5790 = vmul.f32 %v5775, %v748
      %5791 = vrot.lane.b32.xlu0 %v5751, 32
      %v5792 = vpop.permute.xlu0 %5791
      %5793 = vrot.lane.b32.xlu0 %v5752, 32
      %v5794 = vpop.permute.xlu0 %5793
      %5795 = vrot.lane.b32.xlu0 %v5753, 32
      %v5796 = vpop.permute.xlu0 %5795
      %5797 = vrot.lane.b32.xlu0 %v5754, 32
      %v5798 = vpop.permute.xlu0 %5797
      %5799 = vrot.lane.b32.xlu0 %v5755, 32
      %v5800 = vpop.permute.xlu0 %5799
      %5801 = vrot.lane.b32.xlu0 %v5756, 32
      %v5802 = vpop.permute.xlu0 %5801
      %5803 = vrot.lane.b32.xlu0 %v5757, 32
      %v5804 = vpop.permute.xlu0 %5803
      %5805 = vrot.lane.b32.xlu0 %v5758, 32
      %v5806 = vpop.permute.xlu0 %5805
      %v5807 = vsel %vm773, %v5804, %v5806
      %v5808 = vsel %vm773, %v5802, %v5804
      %v5809 = vsel %vm773, %v5800, %v5802
      %v5810 = vsel %vm773, %v5798, %v5800
      %v5811 = vsel %vm773, %v5796, %v5798
      %v5812 = vsel %vm773, %v5794, %v5796
      %v5813 = vsel %vm773, %v5792, %v5794
      %v5814 = vsel %vm773, %v5806, %v5792
      %v5815 = vmul.f32 %v5814, %v785
      %v5816 = vmul.f32 %v5813, %v789
      %v5817 = vmul.f32 %v5812, %v793
      %v5818 = vmul.f32 %v5811, %v797
      %v5819 = vmul.f32 %v5810, %v801
      %v5820 = vmul.f32 %v5809, %v805
      %v5821 = vmul.f32 %v5808, %v809
      %v5822 = vmul.f32 %v5807, %v813
      %5823 = vrot.lane.b32.xlu0 %v5751, 31
      %v5824 = vpop.permute.xlu0 %5823
      %5825 = vrot.lane.b32.xlu0 %v5752, 31
      %v5826 = vpop.permute.xlu0 %5825
      %5827 = vrot.lane.b32.xlu0 %v5753, 31
      %v5828 = vpop.permute.xlu0 %5827
      %5829 = vrot.lane.b32.xlu0 %v5754, 31
      %v5830 = vpop.permute.xlu0 %5829
      %5831 = vrot.lane.b32.xlu0 %v5755, 31
      %v5832 = vpop.permute.xlu0 %5831
      %5833 = vrot.lane.b32.xlu0 %v5756, 31
      %v5834 = vpop.permute.xlu0 %5833
      %5835 = vrot.lane.b32.xlu0 %v5757, 31
      %v5836 = vpop.permute.xlu0 %5835
      %5837 = vrot.lane.b32.xlu0 %v5758, 31
      %v5838 = vpop.permute.xlu0 %5837
      %v5839 = vsel %vm838, %v5836, %v5838
      %v5840 = vsel %vm838, %v5834, %v5836
      %v5841 = vsel %vm838, %v5832, %v5834
      %v5842 = vsel %vm838, %v5830, %v5832
      %v5843 = vsel %vm838, %v5828, %v5830
      %v5844 = vsel %vm838, %v5826, %v5828
      %v5845 = vsel %vm838, %v5824, %v5826
      %v5846 = vsel %vm838, %v5838, %v5824
      %v5847 = vmul.f32 %v5846, %v850
      %v5848 = vmul.f32 %v5845, %v854
      %v5849 = vmul.f32 %v5844, %v858
      %v5850 = vmul.f32 %v5843, %v862
      %v5851 = vmul.f32 %v5842, %v866
      %v5852 = vmul.f32 %v5841, %v870
      %v5853 = vmul.f32 %v5840, %v874
      %v5854 = vmul.f32 %v5839, %v878
      %5855 = vrot.lane.b32.xlu0 %v5751, 1
      %v5856 = vpop.permute.xlu0 %5855
      %5857 = vrot.lane.b32.xlu0 %v5752, 1
      %v5858 = vpop.permute.xlu0 %5857
      %5859 = vrot.lane.b32.xlu0 %v5753, 1
      %v5860 = vpop.permute.xlu0 %5859
      %5861 = vrot.lane.b32.xlu0 %v5754, 1
      %v5862 = vpop.permute.xlu0 %5861
      %5863 = vrot.lane.b32.xlu0 %v5755, 1
      %v5864 = vpop.permute.xlu0 %5863
      %5865 = vrot.lane.b32.xlu0 %v5756, 1
      %v5866 = vpop.permute.xlu0 %5865
      %5867 = vrot.lane.b32.xlu0 %v5757, 1
      %v5868 = vpop.permute.xlu0 %5867
      %5869 = vrot.lane.b32.xlu0 %v5758, 1
      %v5870 = vpop.permute.xlu0 %5869
      %v5871 = vsel %vm903, %v5868, %v5870
      %v5872 = vsel %vm903, %v5866, %v5868
      %v5873 = vsel %vm903, %v5864, %v5866
      %v5874 = vsel %vm903, %v5862, %v5864
      %v5875 = vsel %vm903, %v5860, %v5862
      %v5876 = vsel %vm903, %v5858, %v5860
      %v5877 = vsel %vm903, %v5856, %v5858
      %v5878 = vsel %vm903, %v5870, %v5856
      %v5879 = vmul.f32 %v5878, %v915
      %v5880 = vmul.f32 %v5877, %v919
      %v5881 = vmul.f32 %v5876, %v923
      %v5882 = vmul.f32 %v5875, %v927
      %v5883 = vmul.f32 %v5874, %v931
      %v5884 = vmul.f32 %v5873, %v935
      %v5885 = vmul.f32 %v5872, %v939
      %v5886 = vmul.f32 %v5871, %v943
      %5887 = vrot.lane.b32.xlu0 %v5751, 127
      %v5888 = vpop.permute.xlu0 %5887
      %5889 = vrot.lane.b32.xlu0 %v5752, 127
      %v5890 = vpop.permute.xlu0 %5889
      %5891 = vrot.lane.b32.xlu0 %v5753, 127
      %v5892 = vpop.permute.xlu0 %5891
      %5893 = vrot.lane.b32.xlu0 %v5754, 127
      %v5894 = vpop.permute.xlu0 %5893
      %5895 = vrot.lane.b32.xlu0 %v5755, 127
      %v5896 = vpop.permute.xlu0 %5895
      %5897 = vrot.lane.b32.xlu0 %v5756, 127
      %v5898 = vpop.permute.xlu0 %5897
      %5899 = vrot.lane.b32.xlu0 %v5757, 127
      %v5900 = vpop.permute.xlu0 %5899
      %5901 = vrot.lane.b32.xlu0 %v5758, 127
      %v5902 = vpop.permute.xlu0 %5901
      %v5903 = vsel %vm968, %v5900, %v5902
      %v5904 = vsel %vm968, %v5898, %v5900
      %v5905 = vsel %vm968, %v5896, %v5898
      %v5906 = vsel %vm968, %v5894, %v5896
      %v5907 = vsel %vm968, %v5892, %v5894
      %v5908 = vsel %vm968, %v5890, %v5892
      %v5909 = vsel %vm968, %v5888, %v5890
      %v5910 = vsel %vm968, %v5902, %v5888
      %v5911 = vmul.f32 %v5909, %v980
      %v5912 = vmul.f32 %v5908, %v984
      %v5913 = vmul.f32 %v5907, %v988
      %v5914 = vmul.f32 %v5906, %v992
      %v5915 = vmul.f32 %v5905, %v996
      %v5916 = vmul.f32 %v5904, %v1000
      %v5917 = vmul.f32 %v5903, %v1004
      %v5918 = vmul.f32 %v5910, %v1008
      %5919 = vrot.lane.b32.xlu0 %v5751, 97
      %v5920 = vpop.permute.xlu0 %5919
      %5921 = vrot.lane.b32.xlu0 %v5752, 97
      %v5922 = vpop.permute.xlu0 %5921
      %5923 = vrot.lane.b32.xlu0 %v5753, 97
      %v5924 = vpop.permute.xlu0 %5923
      %5925 = vrot.lane.b32.xlu0 %v5754, 97
      %v5926 = vpop.permute.xlu0 %5925
      %5927 = vrot.lane.b32.xlu0 %v5755, 97
      %v5928 = vpop.permute.xlu0 %5927
      %5929 = vrot.lane.b32.xlu0 %v5756, 97
      %v5930 = vpop.permute.xlu0 %5929
      %5931 = vrot.lane.b32.xlu0 %v5757, 97
      %v5932 = vpop.permute.xlu0 %5931
      %5933 = vrot.lane.b32.xlu0 %v5758, 97
      %v5934 = vpop.permute.xlu0 %5933
      %v5935 = vsel %vm1033, %v5932, %v5934
      %v5936 = vsel %vm1033, %v5930, %v5932
      %v5937 = vsel %vm1033, %v5928, %v5930
      %v5938 = vsel %vm1033, %v5926, %v5928
      %v5939 = vsel %vm1033, %v5924, %v5926
      %v5940 = vsel %vm1033, %v5922, %v5924
      %v5941 = vsel %vm1033, %v5920, %v5922
      %v5942 = vsel %vm1033, %v5934, %v5920
      %v5943 = vmul.f32 %v5941, %v1045
      %v5944 = vmul.f32 %v5940, %v1049
      %v5945 = vmul.f32 %v5939, %v1053
      %v5946 = vmul.f32 %v5938, %v1057
      %v5947 = vmul.f32 %v5937, %v1061
      %v5948 = vmul.f32 %v5936, %v1065
      %v5949 = vmul.f32 %v5935, %v1069
      %v5950 = vmul.f32 %v5942, %v1073
      %5951 = vrot.lane.b32.xlu0 %v5751, 96
      %v5952 = vpop.permute.xlu0 %5951
      %5953 = vrot.lane.b32.xlu0 %v5752, 96
      %v5954 = vpop.permute.xlu0 %5953
      %5955 = vrot.lane.b32.xlu0 %v5753, 96
      %v5956 = vpop.permute.xlu0 %5955
      %5957 = vrot.lane.b32.xlu0 %v5754, 96
      %v5958 = vpop.permute.xlu0 %5957
      %5959 = vrot.lane.b32.xlu0 %v5755, 96
      %v5960 = vpop.permute.xlu0 %5959
      %5961 = vrot.lane.b32.xlu0 %v5756, 96
      %v5962 = vpop.permute.xlu0 %5961
      %5963 = vrot.lane.b32.xlu0 %v5757, 96
      %v5964 = vpop.permute.xlu0 %5963
      %5965 = vrot.lane.b32.xlu0 %v5758, 96
      %v5966 = vpop.permute.xlu0 %5965
      %v5967 = vsel %vm1098, %v5964, %v5966
      %v5968 = vsel %vm1098, %v5962, %v5964
      %v5969 = vsel %vm1098, %v5960, %v5962
      %v5970 = vsel %vm1098, %v5958, %v5960
      %v5971 = vsel %vm1098, %v5956, %v5958
      %v5972 = vsel %vm1098, %v5954, %v5956
      %v5973 = vsel %vm1098, %v5952, %v5954
      %v5974 = vsel %vm1098, %v5966, %v5952
      %v5975 = vmul.f32 %v5973, %v1110
      %v5976 = vmul.f32 %v5972, %v1114
      %v5977 = vmul.f32 %v5971, %v1118
      %v5978 = vmul.f32 %v5970, %v1122
      %v5979 = vmul.f32 %v5969, %v1126
      %v5980 = vmul.f32 %v5968, %v1130
      %v5981 = vmul.f32 %v5967, %v1134
      %v5982 = vmul.f32 %v5974, %v1138
      %5983 = vrot.lane.b32.xlu0 %v5751, 95
      %v5984 = vpop.permute.xlu0 %5983
      %5985 = vrot.lane.b32.xlu0 %v5752, 95
      %v5986 = vpop.permute.xlu0 %5985
      %5987 = vrot.lane.b32.xlu0 %v5753, 95
      %v5988 = vpop.permute.xlu0 %5987
      %5989 = vrot.lane.b32.xlu0 %v5754, 95
      %v5990 = vpop.permute.xlu0 %5989
      %5991 = vrot.lane.b32.xlu0 %v5755, 95
      %v5992 = vpop.permute.xlu0 %5991
      %5993 = vrot.lane.b32.xlu0 %v5756, 95
      %v5994 = vpop.permute.xlu0 %5993
      %5995 = vrot.lane.b32.xlu0 %v5757, 95
      %v5996 = vpop.permute.xlu0 %5995
      %5997 = vrot.lane.b32.xlu0 %v5758, 95
      %v5998 = vpop.permute.xlu0 %5997
      %v5999 = vsel %vm1163, %v5996, %v5998
      %v6000 = vsel %vm1163, %v5994, %v5996
      %v6001 = vsel %vm1163, %v5992, %v5994
      %v6002 = vsel %vm1163, %v5990, %v5992
      %v6003 = vsel %vm1163, %v5988, %v5990
      %v6004 = vsel %vm1163, %v5986, %v5988
      %v6005 = vsel %vm1163, %v5984, %v5986
      %v6006 = vsel %vm1163, %v5998, %v5984
      %v6007 = vmul.f32 %v6005, %v1175
      %v6008 = vmul.f32 %v6004, %v1179
      %v6009 = vmul.f32 %v6003, %v1183
      %v6010 = vmul.f32 %v6002, %v1187
      %v6011 = vmul.f32 %v6001, %v1191
      %v6012 = vmul.f32 %v6000, %v1195
      %v6013 = vmul.f32 %v5999, %v1199
      %v6014 = vmul.f32 %v6006, %v1203
      %v6023 = vrot.slane %v5815, 1
      %v6024 = vrot.slane %v5816, 1
      %v6025 = vrot.slane %v5817, 1
      %v6026 = vrot.slane %v5818, 1
      %v6027 = vrot.slane %v5819, 1
      %v6028 = vrot.slane %v5820, 1
      %v6029 = vrot.slane %v5821, 1
      %v6030 = vrot.slane %v5822, 1
      %v6047 = vrot.slane %v5847, 2
      %v6048 = vrot.slane %v5848, 2
      %v6049 = vrot.slane %v5849, 2
      %v6050 = vrot.slane %v5850, 2
      %v6051 = vrot.slane %v5851, 2
      %v6052 = vrot.slane %v5852, 2
      %v6053 = vrot.slane %v5853, 2
      %v6054 = vrot.slane %v5854, 2
      %v6071 = vrot.slane %v5879, 3
      %v6072 = vrot.slane %v5880, 3
      %v6073 = vrot.slane %v5881, 3
      %v6074 = vrot.slane %v5882, 3
      %v6075 = vrot.slane %v5883, 3
      %v6076 = vrot.slane %v5884, 3
      %v6077 = vrot.slane %v5885, 3
      %v6078 = vrot.slane %v5886, 3
      %v6095 = vrot.slane %v5751, 4
      %v6096 = vrot.slane %v5752, 4
      %v6097 = vrot.slane %v5753, 4
      %v6098 = vrot.slane %v5754, 4
      %v6099 = vrot.slane %v5755, 4
      %v6100 = vrot.slane %v5756, 4
      %v6101 = vrot.slane %v5757, 4
      %v6102 = vrot.slane %v5758, 4
      %v6119 = vrot.slane %v5911, 5
      %v6120 = vrot.slane %v5912, 5
      %v6121 = vrot.slane %v5913, 5
      %v6122 = vrot.slane %v5914, 5
      %v6123 = vrot.slane %v5915, 5
      %v6124 = vrot.slane %v5916, 5
      %v6125 = vrot.slane %v5917, 5
      %v6126 = vrot.slane %v5918, 5
      %v6143 = vrot.slane %v5943, 6
      %v6144 = vrot.slane %v5944, 6
      %v6145 = vrot.slane %v5945, 6
      %v6146 = vrot.slane %v5946, 6
      %v6147 = vrot.slane %v5947, 6
      %v6148 = vrot.slane %v5948, 6
      %v6149 = vrot.slane %v5949, 6
      %v6150 = vrot.slane %v5950, 6
      %v6167 = vrot.slane %v5975, 7
      %v6168 = vrot.slane %v5976, 7
      %v6169 = vrot.slane %v5977, 7
      %v6170 = vrot.slane %v5978, 7
      %v6171 = vrot.slane %v5979, 7
      %v6172 = vrot.slane %v5980, 7
      %v6173 = vrot.slane %v5981, 7
      %v6174 = vrot.slane %v5982, 7
      %vm6183 = vcmask 1046528
      %v6184 = vsel %vm6183, %v5783, %v6023
      %v6185 = vsel %vm6183, %v5784, %v6024
      %v6186 = vsel %vm6183, %v5785, %v6025
      %v6187 = vsel %vm6183, %v5786, %v6026
      %v6188 = vsel %vm6183, %v5787, %v6027
      %v6189 = vsel %vm6183, %v5788, %v6028
      %v6190 = vsel %vm6183, %v5789, %v6029
      %v6191 = vsel %vm6183, %v5790, %v6030
      %vm6192 = vcmask 1045504
      %v6193 = vsel %vm6192, %v6023, %v6047
      %v6194 = vsel %vm6192, %v6024, %v6048
      %v6195 = vsel %vm6192, %v6025, %v6049
      %v6196 = vsel %vm6192, %v6026, %v6050
      %v6197 = vsel %vm6192, %v6027, %v6051
      %v6198 = vsel %vm6192, %v6028, %v6052
      %v6199 = vsel %vm6192, %v6029, %v6053
      %v6200 = vsel %vm6192, %v6030, %v6054
      %vm6201 = vcmask 1044480
      %v6202 = vsel %vm6201, %v6047, %v6071
      %v6203 = vsel %vm6201, %v6048, %v6072
      %v6204 = vsel %vm6201, %v6049, %v6073
      %v6205 = vsel %vm6201, %v6050, %v6074
      %v6206 = vsel %vm6201, %v6051, %v6075
      %v6207 = vsel %vm6201, %v6052, %v6076
      %v6208 = vsel %vm6201, %v6053, %v6077
      %v6209 = vsel %vm6201, %v6054, %v6078
      %v6210 = vsel %vm1308, %v6071, %v6095
      %v6211 = vsel %vm1308, %v6072, %v6096
      %v6212 = vsel %vm1308, %v6073, %v6097
      %v6213 = vsel %vm1308, %v6074, %v6098
      %v6214 = vsel %vm1308, %v6075, %v6099
      %v6215 = vsel %vm1308, %v6076, %v6100
      %v6216 = vsel %vm1308, %v6077, %v6101
      %v6217 = vsel %vm1308, %v6078, %v6102
      %v6218 = vsel %vm4343, %v6095, %v6119
      %v6219 = vsel %vm4343, %v6096, %v6120
      %v6220 = vsel %vm4343, %v6097, %v6121
      %v6221 = vsel %vm4343, %v6098, %v6122
      %v6222 = vsel %vm4343, %v6099, %v6123
      %v6223 = vsel %vm4343, %v6100, %v6124
      %v6224 = vsel %vm4343, %v6101, %v6125
      %v6225 = vsel %vm4343, %v6102, %v6126
      %v6226 = vsel %vm1401, %v6119, %v6143
      %v6227 = vsel %vm1401, %v6120, %v6144
      %v6228 = vsel %vm1401, %v6121, %v6145
      %v6229 = vsel %vm1401, %v6122, %v6146
      %v6230 = vsel %vm1401, %v6123, %v6147
      %v6231 = vsel %vm1401, %v6124, %v6148
      %v6232 = vsel %vm1401, %v6125, %v6149
      %v6233 = vsel %vm1401, %v6126, %v6150
      %vm6234 = vcmask 1040384
      %v6235 = vsel %vm6234, %v6143, %v6167
      %v6236 = vsel %vm6234, %v6144, %v6168
      %v6237 = vsel %vm6234, %v6145, %v6169
      %v6238 = vsel %vm6234, %v6146, %v6170
      %v6239 = vsel %vm6234, %v6147, %v6171
      %v6240 = vsel %vm6234, %v6148, %v6172
      %v6241 = vsel %vm6234, %v6149, %v6173
      %v6242 = vsel %vm6234, %v6150, %v6174
      %v6243 = vpack.c.bf16 %v6193, %v6184
      %v6244 = vpack.c.bf16 %v6194, %v6185
      %v6245 = vpack.c.bf16 %v6195, %v6186
      %v6246 = vpack.c.bf16 %v6196, %v6187
      %v6247 = vpack.c.bf16 %v6197, %v6188
      %v6248 = vpack.c.bf16 %v6198, %v6189
      %v6249 = vpack.c.bf16 %v6199, %v6190
      %v6250 = vpack.c.bf16 %v6200, %v6191
      %v6251 = vpack.c.bf16 %v6210, %v6202
      %v6252 = vpack.c.bf16 %v6211, %v6203
      %v6253 = vpack.c.bf16 %v6212, %v6204
      %v6254 = vpack.c.bf16 %v6213, %v6205
      %v6255 = vpack.c.bf16 %v6214, %v6206
      %v6256 = vpack.c.bf16 %v6215, %v6207
      %v6257 = vpack.c.bf16 %v6216, %v6208
      %v6258 = vpack.c.bf16 %v6217, %v6209
      %v6259 = vpack.c.bf16 %v6226, %v6218
      %v6260 = vpack.c.bf16 %v6227, %v6219
      %v6261 = vpack.c.bf16 %v6228, %v6220
      %v6262 = vpack.c.bf16 %v6229, %v6221
      %v6263 = vpack.c.bf16 %v6230, %v6222
      %v6264 = vpack.c.bf16 %v6231, %v6223
      %v6265 = vpack.c.bf16 %v6232, %v6224
      %v6266 = vpack.c.bf16 %v6233, %v6225
      %v6267 = vpack.c.bf16 %v6007, %v6235
      %v6268 = vpack.c.bf16 %v6008, %v6236
      %v6269 = vpack.c.bf16 %v6009, %v6237
      %v6270 = vpack.c.bf16 %v6010, %v6238
      %v6271 = vpack.c.bf16 %v6011, %v6239
      %v6272 = vpack.c.bf16 %v6012, %v6240
      %v6273 = vpack.c.bf16 %v6013, %v6241
      %v6274 = vpack.c.bf16 %v6014, %v6242
      %v6275 = vld [vmem:[%s13] sm:$0xf]
      %v6276 = vld [vmem:[%s13 + $0x4] sm:$0xf]
      %v6277 = vld [vmem:[%s13 + $0x8] sm:$0x3]
      %v6278 = vld [vmem:[%s14] sm:$0xff]
      %v6279 = vld [vmem:[%s14 + $0x8] sm:$0xff]
      %v6280 = vld [vmem:[%s14 + $0x10] sm:$0xf]
      %6282 = vset.pattern.permute.xlu0 0
      %6283 = vperm.xlu0 %6282, %v6278
      %v6284 = vpop.permute.xlu0 %6283
      %6287 = vset.pattern.permute.xlu0 0
      %6288 = vperm.xlu0 %6287, %v6279
      %v6289 = vpop.permute.xlu0 %6288
      %6292 = vset.pattern.permute.xlu0 0
      %6293 = vperm.xlu0 %6292, %v6280
      %v6294 = vpop.permute.xlu0 %6293
      %v6299 = vunpack.c.l.b16 %v6275
      %v6300 = vunpack.c.l.b16 %v6276
      %v6301 = vunpack.c.l.b16 %v6277
      %v6302 = vpack.c.b16 %v6300, %v6299
      %v6303 = vpack.c.b16 %v6301, %v6301
      %vm6304 = vcmask 515072
      %v6306 = vsel %vm6304, %v6302, 0
      %v6309 = vsel %vm6304, %v6303, 0
      %vm6311 = vcmask 1047552
      %v6312 = vsel %vm6183, 4294967295, 65535
      %v6313 = vsel %vm6311, %v6312, 0
      %v6315 = vand.u32 %v6267, %v6313
      %v6318 = vand.u32 %v6268, %v6313
      %v6321 = vand.u32 %v6269, %v6313
      %v6324 = vand.u32 %v6270, %v6313
      %v6327 = vand.u32 %v6271, %v6313
      %v6330 = vand.u32 %v6272, %v6313
      %v6333 = vand.u32 %v6273, %v6313
      %v6336 = vand.u32 %v6274, %v6313
      %6338 = vmatprep.subr.bf16.mxu0 0
      %6339 = vmatpush1.bf16.msra.mxu0 0
      %6340 = vmatprep.subr.bf16.mxu0 0
      %6341 = vmatpush1.bf16.msra.mxu0 0
      %6342 = vmatprep.subr.bf16.mxu0 0
      %6343 = vmatpush1.bf16.msra.mxu0 0
      %6344 = vmatprep.subr.bf16.mxu0 0
      %6345 = vmatpush1.bf16.msra.mxu0 0
      %6346 = vmatprep.subr.bf16.mxu0 %v6318
      %6347 = vmatpush1.bf16.msra.mxu0 %v6315
      %6348 = vmatprep.subr.bf16.mxu0 %v6260
      %6349 = vmatpush1.bf16.msra.mxu0 %v6259
      %6350 = vmatprep.subr.bf16.mxu0 %v6252
      %6351 = vmatpush1.bf16.msra.mxu0 %v6251
      %6352 = vmatprep.subr.bf16.mxu0 %v6244
      %6353 = vmatpush1.bf16.msra.mxu0 %v6243
      %6354 = vmatprep.subr.bf16.mxu0 0
      %6355 = vmatpush2.bf16.msra.mxu0 0
      %6356 = vmatprep.subr.bf16.mxu0 0
      %6357 = vmatpush2.bf16.msra.mxu0 0
      %6358 = vmatprep.subr.bf16.mxu0 0
      %6359 = vmatpush2.bf16.msra.mxu0 0
      %6360 = vmatprep.subr.bf16.mxu0 0
      %6361 = vmatpush2.bf16.msra.mxu0 0
      %6362 = vmatprep.subr.bf16.mxu0 0
      %6363 = vmatpush2.bf16.msra.mxu0 0
      %6364 = vmatprep.subr.bf16.mxu0 0
      %6365 = vmatpush2.bf16.msra.mxu0 0
      %6366 = vmatprep.subr.bf16.mxu0 0
      %6367 = vmatpush2.bf16.msra.mxu0 0
      %6368 = vmatprep.subr.bf16.mxu0 0
      %6369 = vmatpush2.bf16.msra.mxu0 0
      %6370 = vmatprep.mubr.bf16.mxu0 0
      %6371 = vmatmul.mubr.bf16.gmra.mxu0 %v6306
      %v6372 = vpop.f32.mrf.mxu0
      %v6373 = vadd.f32 %v6284, %v6372
      %v6374 = vpop.f32.mrf.mxu0
      %v6375 = vadd.f32 %v6284, %v6374
      %v6376 = vpop.f32.mrf.mxu0
      %v6377 = vadd.f32 %v6289, %v6376
      %v6378 = vpop.f32.mrf.mxu0
      %v6379 = vadd.f32 %v6289, %v6378
      %6380 = vmatprep.mubr.bf16.mxu0 0
      %6381 = vmatmul.mubr.bf16.gmra.mxu0 %v6309
      %v6382 = vpop.f32.mrf.mxu0
      %v6383 = vadd.f32 %v6294, %v6382
      %v6384 = vpop.f32.mrf.mxu0
      %v6385 = vadd.f32 %v6294, %v6384
      %v6386 = vpop.f32.mrf.mxu0
      %v6387 = vpop.f32.mrf.mxu0
      %6388 = vdwg.mxu0
      %6389 = vmatprep.subr.bf16.mxu0 0
      %6390 = vmatpush1.bf16.msra.mxu0 0
      %6391 = vmatprep.subr.bf16.mxu0 0
      %6392 = vmatpush1.bf16.msra.mxu0 0
      %6393 = vmatprep.subr.bf16.mxu0 0
      %6394 = vmatpush1.bf16.msra.mxu0 0
      %6395 = vmatprep.subr.bf16.mxu0 0
      %6396 = vmatpush1.bf16.msra.mxu0 0
      %6397 = vmatprep.subr.bf16.mxu0 %v6324
      %6398 = vmatpush1.bf16.msra.mxu0 %v6321
      %6399 = vmatprep.subr.bf16.mxu0 %v6262
      %6400 = vmatpush1.bf16.msra.mxu0 %v6261
      %6401 = vmatprep.subr.bf16.mxu0 %v6254
      %6402 = vmatpush1.bf16.msra.mxu0 %v6253
      %6403 = vmatprep.subr.bf16.mxu0 %v6246
      %6404 = vmatpush1.bf16.msra.mxu0 %v6245
      %6405 = vmatprep.subr.bf16.mxu0 0
      %6406 = vmatpush2.bf16.msra.mxu0 0
      %6407 = vmatprep.subr.bf16.mxu0 0
      %6408 = vmatpush2.bf16.msra.mxu0 0
      %6409 = vmatprep.subr.bf16.mxu0 0
      %6410 = vmatpush2.bf16.msra.mxu0 0
      %6411 = vmatprep.subr.bf16.mxu0 0
      %6412 = vmatpush2.bf16.msra.mxu0 0
      %6413 = vmatprep.subr.bf16.mxu0 0
      %6414 = vmatpush2.bf16.msra.mxu0 0
      %6415 = vmatprep.subr.bf16.mxu0 0
      %6416 = vmatpush2.bf16.msra.mxu0 0
      %6417 = vmatprep.subr.bf16.mxu0 0
      %6418 = vmatpush2.bf16.msra.mxu0 0
      %6419 = vmatprep.subr.bf16.mxu0 0
      %6420 = vmatpush2.bf16.msra.mxu0 0
      %6421 = vmatprep.mubr.bf16.mxu0 0
      %6422 = vmatmul.mubr.bf16.gmra.mxu0 %v6306
      %v6423 = vpop.f32.mrf.mxu0
      %v6424 = vadd.f32 %v6284, %v6423
      %v6425 = vpop.f32.mrf.mxu0
      %v6426 = vadd.f32 %v6284, %v6425
      %v6427 = vpop.f32.mrf.mxu0
      %v6428 = vadd.f32 %v6289, %v6427
      %v6429 = vpop.f32.mrf.mxu0
      %v6430 = vadd.f32 %v6289, %v6429
      %6431 = vmatprep.mubr.bf16.mxu0 0
      %6432 = vmatmul.mubr.bf16.gmra.mxu0 %v6309
      %v6433 = vpop.f32.mrf.mxu0
      %v6434 = vadd.f32 %v6294, %v6433
      %v6435 = vpop.f32.mrf.mxu0
      %v6436 = vadd.f32 %v6294, %v6435
      %v6437 = vpop.f32.mrf.mxu0
      %v6438 = vpop.f32.mrf.mxu0
      %6439 = vdwg.mxu0
      %6440 = vmatprep.subr.bf16.mxu0 0
      %6441 = vmatpush1.bf16.msra.mxu0 0
      %6442 = vmatprep.subr.bf16.mxu0 0
      %6443 = vmatpush1.bf16.msra.mxu0 0
      %6444 = vmatprep.subr.bf16.mxu0 0
      %6445 = vmatpush1.bf16.msra.mxu0 0
      %6446 = vmatprep.subr.bf16.mxu0 0
      %6447 = vmatpush1.bf16.msra.mxu0 0
      %6448 = vmatprep.subr.bf16.mxu0 %v6330
      %6449 = vmatpush1.bf16.msra.mxu0 %v6327
      %6450 = vmatprep.subr.bf16.mxu0 %v6264
      %6451 = vmatpush1.bf16.msra.mxu0 %v6263
      %6452 = vmatprep.subr.bf16.mxu0 %v6256
      %6453 = vmatpush1.bf16.msra.mxu0 %v6255
      %6454 = vmatprep.subr.bf16.mxu0 %v6248
      %6455 = vmatpush1.bf16.msra.mxu0 %v6247
      %6456 = vmatprep.subr.bf16.mxu0 0
      %6457 = vmatpush2.bf16.msra.mxu0 0
      %6458 = vmatprep.subr.bf16.mxu0 0
      %6459 = vmatpush2.bf16.msra.mxu0 0
      %6460 = vmatprep.subr.bf16.mxu0 0
      %6461 = vmatpush2.bf16.msra.mxu0 0
      %6462 = vmatprep.subr.bf16.mxu0 0
      %6463 = vmatpush2.bf16.msra.mxu0 0
      %6464 = vmatprep.subr.bf16.mxu0 0
      %6465 = vmatpush2.bf16.msra.mxu0 0
      %6466 = vmatprep.subr.bf16.mxu0 0
      %6467 = vmatpush2.bf16.msra.mxu0 0
      %6468 = vmatprep.subr.bf16.mxu0 0
      %6469 = vmatpush2.bf16.msra.mxu0 0
      %6470 = vmatprep.subr.bf16.mxu0 0
      %6471 = vmatpush2.bf16.msra.mxu0 0
      %6472 = vmatprep.mubr.bf16.mxu0 0
      %6473 = vmatmul.mubr.bf16.gmra.mxu0 %v6306
      %v6474 = vpop.f32.mrf.mxu0
      %v6475 = vadd.f32 %v6284, %v6474
      %v6476 = vpop.f32.mrf.mxu0
      %v6477 = vadd.f32 %v6284, %v6476
      %v6478 = vpop.f32.mrf.mxu0
      %v6479 = vadd.f32 %v6289, %v6478
      %v6480 = vpop.f32.mrf.mxu0
      %v6481 = vadd.f32 %v6289, %v6480
      %6482 = vmatprep.mubr.bf16.mxu0 0
      %6483 = vmatmul.mubr.bf16.gmra.mxu0 %v6309
      %v6484 = vpop.f32.mrf.mxu0
      %v6485 = vadd.f32 %v6294, %v6484
      %v6486 = vpop.f32.mrf.mxu0
      %v6487 = vadd.f32 %v6294, %v6486
      %v6488 = vpop.f32.mrf.mxu0
      %v6489 = vpop.f32.mrf.mxu0
      %6490 = vdwg.mxu0
      %6491 = vmatprep.subr.bf16.mxu0 0
      %6492 = vmatpush1.bf16.msra.mxu0 0
      %6493 = vmatprep.subr.bf16.mxu0 0
      %6494 = vmatpush1.bf16.msra.mxu0 0
      %6495 = vmatprep.subr.bf16.mxu0 0
      %6496 = vmatpush1.bf16.msra.mxu0 0
      %6497 = vmatprep.subr.bf16.mxu0 0
      %6498 = vmatpush1.bf16.msra.mxu0 0
      %6499 = vmatprep.subr.bf16.mxu0 %v6336
      %6500 = vmatpush1.bf16.msra.mxu0 %v6333
      %6501 = vmatprep.subr.bf16.mxu0 %v6266
      %6502 = vmatpush1.bf16.msra.mxu0 %v6265
      %6503 = vmatprep.subr.bf16.mxu0 %v6258
      %6504 = vmatpush1.bf16.msra.mxu0 %v6257
      %6505 = vmatprep.subr.bf16.mxu0 %v6250
      %6506 = vmatpush1.bf16.msra.mxu0 %v6249
      %6507 = vmatprep.subr.bf16.mxu0 0
      %6508 = vmatpush2.bf16.msra.mxu0 0
      %6509 = vmatprep.subr.bf16.mxu0 0
      %6510 = vmatpush2.bf16.msra.mxu0 0
      %6511 = vmatprep.subr.bf16.mxu0 0
      %6512 = vmatpush2.bf16.msra.mxu0 0
      %6513 = vmatprep.subr.bf16.mxu0 0
      %6514 = vmatpush2.bf16.msra.mxu0 0
      %6515 = vmatprep.subr.bf16.mxu0 0
      %6516 = vmatpush2.bf16.msra.mxu0 0
      %6517 = vmatprep.subr.bf16.mxu0 0
      %6518 = vmatpush2.bf16.msra.mxu0 0
      %6519 = vmatprep.subr.bf16.mxu0 0
      %6520 = vmatpush2.bf16.msra.mxu0 0
      %6521 = vmatprep.subr.bf16.mxu0 0
      %6522 = vmatpush2.bf16.msra.mxu0 0
      %6523 = vmatprep.mubr.bf16.mxu0 0
      %6524 = vmatmul.mubr.bf16.gmra.mxu0 %v6306
      %v6525 = vpop.f32.mrf.mxu0
      %v6526 = vadd.f32 %v6284, %v6525
      %v6527 = vpop.f32.mrf.mxu0
      %v6528 = vadd.f32 %v6284, %v6527
      %v6529 = vpop.f32.mrf.mxu0
      %v6530 = vadd.f32 %v6289, %v6529
      %v6531 = vpop.f32.mrf.mxu0
      %v6532 = vadd.f32 %v6289, %v6531
      %6533 = vmatprep.mubr.bf16.mxu0 0
      %6534 = vmatmul.mubr.bf16.gmra.mxu0 %v6309
      %v6535 = vpop.f32.mrf.mxu0
      %v6536 = vadd.f32 %v6294, %v6535
      %v6537 = vpop.f32.mrf.mxu0
      %v6538 = vadd.f32 %v6294, %v6537
      %v6539 = vpop.f32.mrf.mxu0
      %v6540 = vpop.f32.mrf.mxu0
      %6541 = vdwg.mxu0
      %vm6542 = vcmp.gt.f32.partialorder %v6373, 0.0
      %vm6543 = vcmp.gt.f32.partialorder %v6375, 0.0
      %vm6544 = vcmp.gt.f32.partialorder %v6424, 0.0
      %vm6545 = vcmp.gt.f32.partialorder %v6426, 0.0
      %vm6546 = vcmp.gt.f32.partialorder %v6475, 0.0
      %vm6547 = vcmp.gt.f32.partialorder %v6477, 0.0
      %vm6548 = vcmp.gt.f32.partialorder %v6526, 0.0
      %vm6549 = vcmp.gt.f32.partialorder %v6528, 0.0
      %vm6550 = vcmp.gt.f32.partialorder %v6377, 0.0
      %vm6551 = vcmp.gt.f32.partialorder %v6379, 0.0
      %vm6552 = vcmp.gt.f32.partialorder %v6428, 0.0
      %vm6553 = vcmp.gt.f32.partialorder %v6430, 0.0
      %vm6554 = vcmp.gt.f32.partialorder %v6479, 0.0
      %vm6555 = vcmp.gt.f32.partialorder %v6481, 0.0
      %vm6556 = vcmp.gt.f32.partialorder %v6530, 0.0
      %vm6557 = vcmp.gt.f32.partialorder %v6532, 0.0
      %vm6558 = vcmp.gt.f32.partialorder %v6383, 0.0
      %vm6559 = vcmp.gt.f32.partialorder %v6385, 0.0
      %vm6560 = vcmp.gt.f32.partialorder %v6434, 0.0
      %vm6561 = vcmp.gt.f32.partialorder %v6436, 0.0
      %vm6562 = vcmp.gt.f32.partialorder %v6485, 0.0
      %vm6563 = vcmp.gt.f32.partialorder %v6487, 0.0
      %vm6564 = vcmp.gt.f32.partialorder %v6536, 0.0
      %vm6565 = vcmp.gt.f32.partialorder %v6538, 0.0
      %v6566 = vmul.f32 %v6373, 0.2
      %v6567 = vmul.f32 %v6375, 0.2
      %v6568 = vmul.f32 %v6424, 0.2
      %v6569 = vmul.f32 %v6426, 0.2
      %v6570 = vmul.f32 %v6475, 0.2
      %v6571 = vmul.f32 %v6477, 0.2
      %v6572 = vmul.f32 %v6526, 0.2
      %v6573 = vmul.f32 %v6528, 0.2
      %v6574 = vmul.f32 %v6377, 0.2
      %v6575 = vmul.f32 %v6379, 0.2
      %v6576 = vmul.f32 %v6428, 0.2
      %v6577 = vmul.f32 %v6430, 0.2
      %v6578 = vmul.f32 %v6479, 0.2
      %v6579 = vmul.f32 %v6481, 0.2
      %v6580 = vmul.f32 %v6530, 0.2
      %v6581 = vmul.f32 %v6532, 0.2
      %v6582 = vmul.f32 %v6383, 0.2
      %v6583 = vmul.f32 %v6385, 0.2
      %v6584 = vmul.f32 %v6434, 0.2
      %v6585 = vmul.f32 %v6436, 0.2
      %v6586 = vmul.f32 %v6485, 0.2
      %v6587 = vmul.f32 %v6487, 0.2
      %v6588 = vmul.f32 %v6536, 0.2
      %v6589 = vmul.f32 %v6538, 0.2
      %v6590 = vsel %vm6542, %v6373, %v6566
      %v6591 = vsel %vm6543, %v6375, %v6567
      %v6592 = vsel %vm6544, %v6424, %v6568
      %v6593 = vsel %vm6545, %v6426, %v6569
      %v6594 = vsel %vm6546, %v6475, %v6570
      %v6595 = vsel %vm6547, %v6477, %v6571
      %v6596 = vsel %vm6548, %v6526, %v6572
      %v6597 = vsel %vm6549, %v6528, %v6573
      %v6598 = vsel %vm6550, %v6377, %v6574
      %v6599 = vsel %vm6551, %v6379, %v6575
      %v6600 = vsel %vm6552, %v6428, %v6576
      %v6601 = vsel %vm6553, %v6430, %v6577
      %v6602 = vsel %vm6554, %v6479, %v6578
      %v6603 = vsel %vm6555, %v6481, %v6579
      %v6604 = vsel %vm6556, %v6530, %v6580
      %v6605 = vsel %vm6557, %v6532, %v6581
      %v6606 = vsel %vm6558, %v6383, %v6582
      %v6607 = vsel %vm6559, %v6385, %v6583
      %v6608 = vsel %vm6560, %v6434, %v6584
      %v6609 = vsel %vm6561, %v6436, %v6585
      %v6610 = vsel %vm6562, %v6485, %v6586
      %v6611 = vsel %vm6563, %v6487, %v6587
      %v6612 = vsel %vm6564, %v6536, %v6588
      %v6613 = vsel %vm6565, %v6538, %v6589
      %6614 = vrot.lane.b32.xlu0 %v6590, 33
      %v6615 = vpop.permute.xlu0 %6614
      %6616 = vrot.lane.b32.xlu0 %v6598, 33
      %v6617 = vpop.permute.xlu0 %6616
      %6618 = vrot.lane.b32.xlu0 %v6606, 33
      %v6619 = vpop.permute.xlu0 %6618
      %6620 = vrot.lane.b32.xlu0 %v6591, 33
      %v6621 = vpop.permute.xlu0 %6620
      %6622 = vrot.lane.b32.xlu0 %v6599, 33
      %v6623 = vpop.permute.xlu0 %6622
      %6624 = vrot.lane.b32.xlu0 %v6607, 33
      %v6625 = vpop.permute.xlu0 %6624
      %6626 = vrot.lane.b32.xlu0 %v6592, 33
      %v6627 = vpop.permute.xlu0 %6626
      %6628 = vrot.lane.b32.xlu0 %v6600, 33
      %v6629 = vpop.permute.xlu0 %6628
      %6630 = vrot.lane.b32.xlu0 %v6608, 33
      %v6631 = vpop.permute.xlu0 %6630
      %6632 = vrot.lane.b32.xlu0 %v6593, 33
      %v6633 = vpop.permute.xlu0 %6632
      %6634 = vrot.lane.b32.xlu0 %v6601, 33
      %v6635 = vpop.permute.xlu0 %6634
      %6636 = vrot.lane.b32.xlu0 %v6609, 33
      %v6637 = vpop.permute.xlu0 %6636
      %6638 = vrot.lane.b32.xlu0 %v6594, 33
      %v6639 = vpop.permute.xlu0 %6638
      %6640 = vrot.lane.b32.xlu0 %v6602, 33
      %v6641 = vpop.permute.xlu0 %6640
      %6642 = vrot.lane.b32.xlu0 %v6610, 33
      %v6643 = vpop.permute.xlu0 %6642
      %6644 = vrot.lane.b32.xlu0 %v6595, 33
      %v6645 = vpop.permute.xlu0 %6644
      %6646 = vrot.lane.b32.xlu0 %v6603, 33
      %v6647 = vpop.permute.xlu0 %6646
      %6648 = vrot.lane.b32.xlu0 %v6611, 33
      %v6649 = vpop.permute.xlu0 %6648
      %6650 = vrot.lane.b32.xlu0 %v6596, 33
      %v6651 = vpop.permute.xlu0 %6650
      %6652 = vrot.lane.b32.xlu0 %v6604, 33
      %v6653 = vpop.permute.xlu0 %6652
      %6654 = vrot.lane.b32.xlu0 %v6612, 33
      %v6655 = vpop.permute.xlu0 %6654
      %6656 = vrot.lane.b32.xlu0 %v6597, 33
      %v6657 = vpop.permute.xlu0 %6656
      %6658 = vrot.lane.b32.xlu0 %v6605, 33
      %v6659 = vpop.permute.xlu0 %6658
      %6660 = vrot.lane.b32.xlu0 %v6613, 33
      %v6661 = vpop.permute.xlu0 %6660
      %v6662 = vsel %vm708, %v6651, %v6657
      %v6663 = vsel %vm708, %v6653, %v6659
      %v6664 = vsel %vm708, %v6655, %v6661
      %v6665 = vsel %vm708, %v6645, %v6651
      %v6666 = vsel %vm708, %v6647, %v6653
      %v6667 = vsel %vm708, %v6649, %v6655
      %v6668 = vsel %vm708, %v6639, %v6645
      %v6669 = vsel %vm708, %v6641, %v6647
      %v6670 = vsel %vm708, %v6643, %v6649
      %v6671 = vsel %vm708, %v6633, %v6639
      %v6672 = vsel %vm708, %v6635, %v6641
      %v6673 = vsel %vm708, %v6637, %v6643
      %v6674 = vsel %vm708, %v6627, %v6633
      %v6675 = vsel %vm708, %v6629, %v6635
      %v6676 = vsel %vm708, %v6631, %v6637
      %v6677 = vsel %vm708, %v6621, %v6627
      %v6678 = vsel %vm708, %v6623, %v6629
      %v6679 = vsel %vm708, %v6625, %v6631
      %v6680 = vsel %vm708, %v6615, %v6621
      %v6681 = vsel %vm708, %v6617, %v6623
      %v6682 = vsel %vm708, %v6619, %v6625
      %v6683 = vsel %vm708, %v6657, %v6615
      %v6684 = vsel %vm708, %v6659, %v6617
      %v6685 = vsel %vm708, %v6661, %v6619
      %v6686 = vmul.f32 %v6683, %v720
      %v6687 = vmul.f32 %v6680, %v724
      %v6688 = vmul.f32 %v6677, %v728
      %v6689 = vmul.f32 %v6674, %v732
      %v6690 = vmul.f32 %v6671, %v736
      %v6691 = vmul.f32 %v6668, %v740
      %v6692 = vmul.f32 %v6665, %v744
      %v6693 = vmul.f32 %v6662, %v748
      %v6694 = vmul.f32 %v6684, %v720
      %v6695 = vmul.f32 %v6681, %v724
      %v6696 = vmul.f32 %v6678, %v728
      %v6697 = vmul.f32 %v6675, %v732
      %v6698 = vmul.f32 %v6672, %v736
      %v6699 = vmul.f32 %v6669, %v740
      %v6700 = vmul.f32 %v6666, %v744
      %v6701 = vmul.f32 %v6663, %v748
      %v6702 = vmul.f32 %v6685, %v720
      %v6703 = vmul.f32 %v6682, %v724
      %v6704 = vmul.f32 %v6679, %v728
      %v6705 = vmul.f32 %v6676, %v732
      %v6706 = vmul.f32 %v6673, %v736
      %v6707 = vmul.f32 %v6670, %v740
      %v6708 = vmul.f32 %v6667, %v744
      %v6709 = vmul.f32 %v6664, %v748
      %6710 = vrot.lane.b32.xlu0 %v6590, 32
      %v6711 = vpop.permute.xlu0 %6710
      %6712 = vrot.lane.b32.xlu0 %v6598, 32
      %v6713 = vpop.permute.xlu0 %6712
      %6714 = vrot.lane.b32.xlu0 %v6606, 32
      %v6715 = vpop.permute.xlu0 %6714
      %6716 = vrot.lane.b32.xlu0 %v6591, 32
      %v6717 = vpop.permute.xlu0 %6716
      %6718 = vrot.lane.b32.xlu0 %v6599, 32
      %v6719 = vpop.permute.xlu0 %6718
      %6720 = vrot.lane.b32.xlu0 %v6607, 32
      %v6721 = vpop.permute.xlu0 %6720
      %6722 = vrot.lane.b32.xlu0 %v6592, 32
      %v6723 = vpop.permute.xlu0 %6722
      %6724 = vrot.lane.b32.xlu0 %v6600, 32
      %v6725 = vpop.permute.xlu0 %6724
      %6726 = vrot.lane.b32.xlu0 %v6608, 32
      %v6727 = vpop.permute.xlu0 %6726
      %6728 = vrot.lane.b32.xlu0 %v6593, 32
      %v6729 = vpop.permute.xlu0 %6728
      %6730 = vrot.lane.b32.xlu0 %v6601, 32
      %v6731 = vpop.permute.xlu0 %6730
      %6732 = vrot.lane.b32.xlu0 %v6609, 32
      %v6733 = vpop.permute.xlu0 %6732
      %6734 = vrot.lane.b32.xlu0 %v6594, 32
      %v6735 = vpop.permute.xlu0 %6734
      %6736 = vrot.lane.b32.xlu0 %v6602, 32
      %v6737 = vpop.permute.xlu0 %6736
      %6738 = vrot.lane.b32.xlu0 %v6610, 32
      %v6739 = vpop.permute.xlu0 %6738
      %6740 = vrot.lane.b32.xlu0 %v6595, 32
      %v6741 = vpop.permute.xlu0 %6740
      %6742 = vrot.lane.b32.xlu0 %v6603, 32
      %v6743 = vpop.permute.xlu0 %6742
      %6744 = vrot.lane.b32.xlu0 %v6611, 32
      %v6745 = vpop.permute.xlu0 %6744
      %6746 = vrot.lane.b32.xlu0 %v6596, 32
      %v6747 = vpop.permute.xlu0 %6746
      %6748 = vrot.lane.b32.xlu0 %v6604, 32
      %v6749 = vpop.permute.xlu0 %6748
      %6750 = vrot.lane.b32.xlu0 %v6612, 32
      %v6751 = vpop.permute.xlu0 %6750
      %6752 = vrot.lane.b32.xlu0 %v6597, 32
      %v6753 = vpop.permute.xlu0 %6752
      %6754 = vrot.lane.b32.xlu0 %v6605, 32
      %v6755 = vpop.permute.xlu0 %6754
      %6756 = vrot.lane.b32.xlu0 %v6613, 32
      %v6757 = vpop.permute.xlu0 %6756
      %v6758 = vsel %vm773, %v6747, %v6753
      %v6759 = vsel %vm773, %v6749, %v6755
      %v6760 = vsel %vm773, %v6751, %v6757
      %v6761 = vsel %vm773, %v6741, %v6747
      %v6762 = vsel %vm773, %v6743, %v6749
      %v6763 = vsel %vm773, %v6745, %v6751
      %v6764 = vsel %vm773, %v6735, %v6741
      %v6765 = vsel %vm773, %v6737, %v6743
      %v6766 = vsel %vm773, %v6739, %v6745
      %v6767 = vsel %vm773, %v6729, %v6735
      %v6768 = vsel %vm773, %v6731, %v6737
      %v6769 = vsel %vm773, %v6733, %v6739
      %v6770 = vsel %vm773, %v6723, %v6729
      %v6771 = vsel %vm773, %v6725, %v6731
      %v6772 = vsel %vm773, %v6727, %v6733
      %v6773 = vsel %vm773, %v6717, %v6723
      %v6774 = vsel %vm773, %v6719, %v6725
      %v6775 = vsel %vm773, %v6721, %v6727
      %v6776 = vsel %vm773, %v6711, %v6717
      %v6777 = vsel %vm773, %v6713, %v6719
      %v6778 = vsel %vm773, %v6715, %v6721
      %v6779 = vsel %vm773, %v6753, %v6711
      %v6780 = vsel %vm773, %v6755, %v6713
      %v6781 = vsel %vm773, %v6757, %v6715
      %v6782 = vmul.f32 %v6779, %v785
      %v6783 = vmul.f32 %v6776, %v789
      %v6784 = vmul.f32 %v6773, %v793
      %v6785 = vmul.f32 %v6770, %v797
      %v6786 = vmul.f32 %v6767, %v801
      %v6787 = vmul.f32 %v6764, %v805
      %v6788 = vmul.f32 %v6761, %v809
      %v6789 = vmul.f32 %v6758, %v813
      %v6790 = vmul.f32 %v6780, %v785
      %v6791 = vmul.f32 %v6777, %v789
      %v6792 = vmul.f32 %v6774, %v793
      %v6793 = vmul.f32 %v6771, %v797
      %v6794 = vmul.f32 %v6768, %v801
      %v6795 = vmul.f32 %v6765, %v805
      %v6796 = vmul.f32 %v6762, %v809
      %v6797 = vmul.f32 %v6759, %v813
      %v6798 = vmul.f32 %v6781, %v785
      %v6799 = vmul.f32 %v6778, %v789
      %v6800 = vmul.f32 %v6775, %v793
      %v6801 = vmul.f32 %v6772, %v797
      %v6802 = vmul.f32 %v6769, %v801
      %v6803 = vmul.f32 %v6766, %v805
      %v6804 = vmul.f32 %v6763, %v809
      %v6805 = vmul.f32 %v6760, %v813
      %6806 = vrot.lane.b32.xlu0 %v6590, 31
      %v6807 = vpop.permute.xlu0 %6806
      %6808 = vrot.lane.b32.xlu0 %v6598, 31
      %v6809 = vpop.permute.xlu0 %6808
      %6810 = vrot.lane.b32.xlu0 %v6606, 31
      %v6811 = vpop.permute.xlu0 %6810
      %6812 = vrot.lane.b32.xlu0 %v6591, 31
      %v6813 = vpop.permute.xlu0 %6812
      %6814 = vrot.lane.b32.xlu0 %v6599, 31
      %v6815 = vpop.permute.xlu0 %6814
      %6816 = vrot.lane.b32.xlu0 %v6607, 31
      %v6817 = vpop.permute.xlu0 %6816
      %6818 = vrot.lane.b32.xlu0 %v6592, 31
      %v6819 = vpop.permute.xlu0 %6818
      %6820 = vrot.lane.b32.xlu0 %v6600, 31
      %v6821 = vpop.permute.xlu0 %6820
      %6822 = vrot.lane.b32.xlu0 %v6608, 31
      %v6823 = vpop.permute.xlu0 %6822
      %6824 = vrot.lane.b32.xlu0 %v6593, 31
      %v6825 = vpop.permute.xlu0 %6824
      %6826 = vrot.lane.b32.xlu0 %v6601, 31
      %v6827 = vpop.permute.xlu0 %6826
      %6828 = vrot.lane.b32.xlu0 %v6609, 31
      %v6829 = vpop.permute.xlu0 %6828
      %6830 = vrot.lane.b32.xlu0 %v6594, 31
      %v6831 = vpop.permute.xlu0 %6830
      %6832 = vrot.lane.b32.xlu0 %v6602, 31
      %v6833 = vpop.permute.xlu0 %6832
      %6834 = vrot.lane.b32.xlu0 %v6610, 31
      %v6835 = vpop.permute.xlu0 %6834
      %6836 = vrot.lane.b32.xlu0 %v6595, 31
      %v6837 = vpop.permute.xlu0 %6836
      %6838 = vrot.lane.b32.xlu0 %v6603, 31
      %v6839 = vpop.permute.xlu0 %6838
      %6840 = vrot.lane.b32.xlu0 %v6611, 31
      %v6841 = vpop.permute.xlu0 %6840
      %6842 = vrot.lane.b32.xlu0 %v6596, 31
      %v6843 = vpop.permute.xlu0 %6842
      %6844 = vrot.lane.b32.xlu0 %v6604, 31
      %v6845 = vpop.permute.xlu0 %6844
      %6846 = vrot.lane.b32.xlu0 %v6612, 31
      %v6847 = vpop.permute.xlu0 %6846
      %6848 = vrot.lane.b32.xlu0 %v6597, 31
      %v6849 = vpop.permute.xlu0 %6848
      %6850 = vrot.lane.b32.xlu0 %v6605, 31
      %v6851 = vpop.permute.xlu0 %6850
      %6852 = vrot.lane.b32.xlu0 %v6613, 31
      %v6853 = vpop.permute.xlu0 %6852
      %v6854 = vsel %vm838, %v6843, %v6849
      %v6855 = vsel %vm838, %v6845, %v6851
      %v6856 = vsel %vm838, %v6847, %v6853
      %v6857 = vsel %vm838, %v6837, %v6843
      %v6858 = vsel %vm838, %v6839, %v6845
      %v6859 = vsel %vm838, %v6841, %v6847
      %v6860 = vsel %vm838, %v6831, %v6837
      %v6861 = vsel %vm838, %v6833, %v6839
      %v6862 = vsel %vm838, %v6835, %v6841
      %v6863 = vsel %vm838, %v6825, %v6831
      %v6864 = vsel %vm838, %v6827, %v6833
      %v6865 = vsel %vm838, %v6829, %v6835
      %v6866 = vsel %vm838, %v6819, %v6825
      %v6867 = vsel %vm838, %v6821, %v6827
      %v6868 = vsel %vm838, %v6823, %v6829
      %v6869 = vsel %vm838, %v6813, %v6819
      %v6870 = vsel %vm838, %v6815, %v6821
      %v6871 = vsel %vm838, %v6817, %v6823
      %v6872 = vsel %vm838, %v6807, %v6813
      %v6873 = vsel %vm838, %v6809, %v6815
      %v6874 = vsel %vm838, %v6811, %v6817
      %v6875 = vsel %vm838, %v6849, %v6807
      %v6876 = vsel %vm838, %v6851, %v6809
      %v6877 = vsel %vm838, %v6853, %v6811
      %v6878 = vmul.f32 %v6875, %v850
      %v6879 = vmul.f32 %v6872, %v854
      %v6880 = vmul.f32 %v6869, %v858
      %v6881 = vmul.f32 %v6866, %v862
      %v6882 = vmul.f32 %v6863, %v866
      %v6883 = vmul.f32 %v6860, %v870
      %v6884 = vmul.f32 %v6857, %v874
      %v6885 = vmul.f32 %v6854, %v878
      %v6886 = vmul.f32 %v6876, %v850
      %v6887 = vmul.f32 %v6873, %v854
      %v6888 = vmul.f32 %v6870, %v858
      %v6889 = vmul.f32 %v6867, %v862
      %v6890 = vmul.f32 %v6864, %v866
      %v6891 = vmul.f32 %v6861, %v870
      %v6892 = vmul.f32 %v6858, %v874
      %v6893 = vmul.f32 %v6855, %v878
      %v6894 = vmul.f32 %v6877, %v850
      %v6895 = vmul.f32 %v6874, %v854
      %v6896 = vmul.f32 %v6871, %v858
      %v6897 = vmul.f32 %v6868, %v862
      %v6898 = vmul.f32 %v6865, %v866
      %v6899 = vmul.f32 %v6862, %v870
      %v6900 = vmul.f32 %v6859, %v874
      %v6901 = vmul.f32 %v6856, %v878
      %6902 = vrot.lane.b32.xlu0 %v6590, 1
      %v6903 = vpop.permute.xlu0 %6902
      %6904 = vrot.lane.b32.xlu0 %v6598, 1
      %v6905 = vpop.permute.xlu0 %6904
      %6906 = vrot.lane.b32.xlu0 %v6606, 1
      %v6907 = vpop.permute.xlu0 %6906
      %6908 = vrot.lane.b32.xlu0 %v6591, 1
      %v6909 = vpop.permute.xlu0 %6908
      %6910 = vrot.lane.b32.xlu0 %v6599, 1
      %v6911 = vpop.permute.xlu0 %6910
      %6912 = vrot.lane.b32.xlu0 %v6607, 1
      %v6913 = vpop.permute.xlu0 %6912
      %6914 = vrot.lane.b32.xlu0 %v6592, 1
      %v6915 = vpop.permute.xlu0 %6914
      %6916 = vrot.lane.b32.xlu0 %v6600, 1
      %v6917 = vpop.permute.xlu0 %6916
      %6918 = vrot.lane.b32.xlu0 %v6608, 1
      %v6919 = vpop.permute.xlu0 %6918
      %6920 = vrot.lane.b32.xlu0 %v6593, 1
      %v6921 = vpop.permute.xlu0 %6920
      %6922 = vrot.lane.b32.xlu0 %v6601, 1
      %v6923 = vpop.permute.xlu0 %6922
      %6924 = vrot.lane.b32.xlu0 %v6609, 1
      %v6925 = vpop.permute.xlu0 %6924
      %6926 = vrot.lane.b32.xlu0 %v6594, 1
      %v6927 = vpop.permute.xlu0 %6926
      %6928 = vrot.lane.b32.xlu0 %v6602, 1
      %v6929 = vpop.permute.xlu0 %6928
      %6930 = vrot.lane.b32.xlu0 %v6610, 1
      %v6931 = vpop.permute.xlu0 %6930
      %6932 = vrot.lane.b32.xlu0 %v6595, 1
      %v6933 = vpop.permute.xlu0 %6932
      %6934 = vrot.lane.b32.xlu0 %v6603, 1
      %v6935 = vpop.permute.xlu0 %6934
      %6936 = vrot.lane.b32.xlu0 %v6611, 1
      %v6937 = vpop.permute.xlu0 %6936
      %6938 = vrot.lane.b32.xlu0 %v6596, 1
      %v6939 = vpop.permute.xlu0 %6938
      %6940 = vrot.lane.b32.xlu0 %v6604, 1
      %v6941 = vpop.permute.xlu0 %6940
      %6942 = vrot.lane.b32.xlu0 %v6612, 1
      %v6943 = vpop.permute.xlu0 %6942
      %6944 = vrot.lane.b32.xlu0 %v6597, 1
      %v6945 = vpop.permute.xlu0 %6944
      %6946 = vrot.lane.b32.xlu0 %v6605, 1
      %v6947 = vpop.permute.xlu0 %6946
      %6948 = vrot.lane.b32.xlu0 %v6613, 1
      %v6949 = vpop.permute.xlu0 %6948
      %v6950 = vsel %vm903, %v6939, %v6945
      %v6951 = vsel %vm903, %v6941, %v6947
      %v6952 = vsel %vm903, %v6943, %v6949
      %v6953 = vsel %vm903, %v6933, %v6939
      %v6954 = vsel %vm903, %v6935, %v6941
      %v6955 = vsel %vm903, %v6937, %v6943
      %v6956 = vsel %vm903, %v6927, %v6933
      %v6957 = vsel %vm903, %v6929, %v6935
      %v6958 = vsel %vm903, %v6931, %v6937
      %v6959 = vsel %vm903, %v6921, %v6927
      %v6960 = vsel %vm903, %v6923, %v6929
      %v6961 = vsel %vm903, %v6925, %v6931
      %v6962 = vsel %vm903, %v6915, %v6921
      %v6963 = vsel %vm903, %v6917, %v6923
      %v6964 = vsel %vm903, %v6919, %v6925
      %v6965 = vsel %vm903, %v6909, %v6915
      %v6966 = vsel %vm903, %v6911, %v6917
      %v6967 = vsel %vm903, %v6913, %v6919
      %v6968 = vsel %vm903, %v6903, %v6909
      %v6969 = vsel %vm903, %v6905, %v6911
      %v6970 = vsel %vm903, %v6907, %v6913
      %v6971 = vsel %vm903, %v6945, %v6903
      %v6972 = vsel %vm903, %v6947, %v6905
      %v6973 = vsel %vm903, %v6949, %v6907
      %v6974 = vmul.f32 %v6971, %v915
      %v6975 = vmul.f32 %v6968, %v919
      %v6976 = vmul.f32 %v6965, %v923
      %v6977 = vmul.f32 %v6962, %v927
      %v6978 = vmul.f32 %v6959, %v931
      %v6979 = vmul.f32 %v6956, %v935
      %v6980 = vmul.f32 %v6953, %v939
      %v6981 = vmul.f32 %v6950, %v943
      %v6982 = vmul.f32 %v6972, %v915
      %v6983 = vmul.f32 %v6969, %v919
      %v6984 = vmul.f32 %v6966, %v923
      %v6985 = vmul.f32 %v6963, %v927
      %v6986 = vmul.f32 %v6960, %v931
      %v6987 = vmul.f32 %v6957, %v935
      %v6988 = vmul.f32 %v6954, %v939
      %v6989 = vmul.f32 %v6951, %v943
      %v6990 = vmul.f32 %v6973, %v915
      %v6991 = vmul.f32 %v6970, %v919
      %v6992 = vmul.f32 %v6967, %v923
      %v6993 = vmul.f32 %v6964, %v927
      %v6994 = vmul.f32 %v6961, %v931
      %v6995 = vmul.f32 %v6958, %v935
      %v6996 = vmul.f32 %v6955, %v939
      %v6997 = vmul.f32 %v6952, %v943
      %6998 = vrot.lane.b32.xlu0 %v6590, 127
      %v6999 = vpop.permute.xlu0 %6998
      %7000 = vrot.lane.b32.xlu0 %v6598, 127
      %v7001 = vpop.permute.xlu0 %7000
      %7002 = vrot.lane.b32.xlu0 %v6606, 127
      %v7003 = vpop.permute.xlu0 %7002
      %7004 = vrot.lane.b32.xlu0 %v6591, 127
      %v7005 = vpop.permute.xlu0 %7004
      %7006 = vrot.lane.b32.xlu0 %v6599, 127
      %v7007 = vpop.permute.xlu0 %7006
      %7008 = vrot.lane.b32.xlu0 %v6607, 127
      %v7009 = vpop.permute.xlu0 %7008
      %7010 = vrot.lane.b32.xlu0 %v6592, 127
      %v7011 = vpop.permute.xlu0 %7010
      %7012 = vrot.lane.b32.xlu0 %v6600, 127
      %v7013 = vpop.permute.xlu0 %7012
      %7014 = vrot.lane.b32.xlu0 %v6608, 127
      %v7015 = vpop.permute.xlu0 %7014
      %7016 = vrot.lane.b32.xlu0 %v6593, 127
      %v7017 = vpop.permute.xlu0 %7016
      %7018 = vrot.lane.b32.xlu0 %v6601, 127
      %v7019 = vpop.permute.xlu0 %7018
      %7020 = vrot.lane.b32.xlu0 %v6609, 127
      %v7021 = vpop.permute.xlu0 %7020
      %7022 = vrot.lane.b32.xlu0 %v6594, 127
      %v7023 = vpop.permute.xlu0 %7022
      %7024 = vrot.lane.b32.xlu0 %v6602, 127
      %v7025 = vpop.permute.xlu0 %7024
      %7026 = vrot.lane.b32.xlu0 %v6610, 127
      %v7027 = vpop.permute.xlu0 %7026
      %7028 = vrot.lane.b32.xlu0 %v6595, 127
      %v7029 = vpop.permute.xlu0 %7028
      %7030 = vrot.lane.b32.xlu0 %v6603, 127
      %v7031 = vpop.permute.xlu0 %7030
      %7032 = vrot.lane.b32.xlu0 %v6611, 127
      %v7033 = vpop.permute.xlu0 %7032
      %7034 = vrot.lane.b32.xlu0 %v6596, 127
      %v7035 = vpop.permute.xlu0 %7034
      %7036 = vrot.lane.b32.xlu0 %v6604, 127
      %v7037 = vpop.permute.xlu0 %7036
      %7038 = vrot.lane.b32.xlu0 %v6612, 127
      %v7039 = vpop.permute.xlu0 %7038
      %7040 = vrot.lane.b32.xlu0 %v6597, 127
      %v7041 = vpop.permute.xlu0 %7040
      %7042 = vrot.lane.b32.xlu0 %v6605, 127
      %v7043 = vpop.permute.xlu0 %7042
      %7044 = vrot.lane.b32.xlu0 %v6613, 127
      %v7045 = vpop.permute.xlu0 %7044
      %v7046 = vsel %vm968, %v7035, %v7041
      %v7047 = vsel %vm968, %v7037, %v7043
      %v7048 = vsel %vm968, %v7039, %v7045
      %v7049 = vsel %vm968, %v7029, %v7035
      %v7050 = vsel %vm968, %v7031, %v7037
      %v7051 = vsel %vm968, %v7033, %v7039
      %v7052 = vsel %vm968, %v7023, %v7029
      %v7053 = vsel %vm968, %v7025, %v7031
      %v7054 = vsel %vm968, %v7027, %v7033
      %v7055 = vsel %vm968, %v7017, %v7023
      %v7056 = vsel %vm968, %v7019, %v7025
      %v7057 = vsel %vm968, %v7021, %v7027
      %v7058 = vsel %vm968, %v7011, %v7017
      %v7059 = vsel %vm968, %v7013, %v7019
      %v7060 = vsel %vm968, %v7015, %v7021
      %v7061 = vsel %vm968, %v7005, %v7011
      %v7062 = vsel %vm968, %v7007, %v7013
      %v7063 = vsel %vm968, %v7009, %v7015
      %v7064 = vsel %vm968, %v6999, %v7005
      %v7065 = vsel %vm968, %v7001, %v7007
      %v7066 = vsel %vm968, %v7003, %v7009
      %v7067 = vsel %vm968, %v7041, %v6999
      %v7068 = vsel %vm968, %v7043, %v7001
      %v7069 = vsel %vm968, %v7045, %v7003
      %v7070 = vmul.f32 %v7064, %v980
      %v7071 = vmul.f32 %v7061, %v984
      %v7072 = vmul.f32 %v7058, %v988
      %v7073 = vmul.f32 %v7055, %v992
      %v7074 = vmul.f32 %v7052, %v996
      %v7075 = vmul.f32 %v7049, %v1000
      %v7076 = vmul.f32 %v7046, %v1004
      %v7077 = vmul.f32 %v7067, %v1008
      %v7078 = vmul.f32 %v7065, %v980
      %v7079 = vmul.f32 %v7062, %v984
      %v7080 = vmul.f32 %v7059, %v988
      %v7081 = vmul.f32 %v7056, %v992
      %v7082 = vmul.f32 %v7053, %v996
      %v7083 = vmul.f32 %v7050, %v1000
      %v7084 = vmul.f32 %v7047, %v1004
      %v7085 = vmul.f32 %v7068, %v1008
      %v7086 = vmul.f32 %v7066, %v980
      %v7087 = vmul.f32 %v7063, %v984
      %v7088 = vmul.f32 %v7060, %v988
      %v7089 = vmul.f32 %v7057, %v992
      %v7090 = vmul.f32 %v7054, %v996
      %v7091 = vmul.f32 %v7051, %v1000
      %v7092 = vmul.f32 %v7048, %v1004
      %v7093 = vmul.f32 %v7069, %v1008
      %7094 = vrot.lane.b32.xlu0 %v6590, 97
      %v7095 = vpop.permute.xlu0 %7094
      %7096 = vrot.lane.b32.xlu0 %v6598, 97
      %v7097 = vpop.permute.xlu0 %7096
      %7098 = vrot.lane.b32.xlu0 %v6606, 97
      %v7099 = vpop.permute.xlu0 %7098
      %7100 = vrot.lane.b32.xlu0 %v6591, 97
      %v7101 = vpop.permute.xlu0 %7100
      %7102 = vrot.lane.b32.xlu0 %v6599, 97
      %v7103 = vpop.permute.xlu0 %7102
      %7104 = vrot.lane.b32.xlu0 %v6607, 97
      %v7105 = vpop.permute.xlu0 %7104
      %7106 = vrot.lane.b32.xlu0 %v6592, 97
      %v7107 = vpop.permute.xlu0 %7106
      %7108 = vrot.lane.b32.xlu0 %v6600, 97
      %v7109 = vpop.permute.xlu0 %7108
      %7110 = vrot.lane.b32.xlu0 %v6608, 97
      %v7111 = vpop.permute.xlu0 %7110
      %7112 = vrot.lane.b32.xlu0 %v6593, 97
      %v7113 = vpop.permute.xlu0 %7112
      %7114 = vrot.lane.b32.xlu0 %v6601, 97
      %v7115 = vpop.permute.xlu0 %7114
      %7116 = vrot.lane.b32.xlu0 %v6609, 97
      %v7117 = vpop.permute.xlu0 %7116
      %7118 = vrot.lane.b32.xlu0 %v6594, 97
      %v7119 = vpop.permute.xlu0 %7118
      %7120 = vrot.lane.b32.xlu0 %v6602, 97
      %v7121 = vpop.permute.xlu0 %7120
      %7122 = vrot.lane.b32.xlu0 %v6610, 97
      %v7123 = vpop.permute.xlu0 %7122
      %7124 = vrot.lane.b32.xlu0 %v6595, 97
      %v7125 = vpop.permute.xlu0 %7124
      %7126 = vrot.lane.b32.xlu0 %v6603, 97
      %v7127 = vpop.permute.xlu0 %7126
      %7128 = vrot.lane.b32.xlu0 %v6611, 97
      %v7129 = vpop.permute.xlu0 %7128
      %7130 = vrot.lane.b32.xlu0 %v6596, 97
      %v7131 = vpop.permute.xlu0 %7130
      %7132 = vrot.lane.b32.xlu0 %v6604, 97
      %v7133 = vpop.permute.xlu0 %7132
      %7134 = vrot.lane.b32.xlu0 %v6612, 97
      %v7135 = vpop.permute.xlu0 %7134
      %7136 = vrot.lane.b32.xlu0 %v6597, 97
      %v7137 = vpop.permute.xlu0 %7136
      %7138 = vrot.lane.b32.xlu0 %v6605, 97
      %v7139 = vpop.permute.xlu0 %7138
      %7140 = vrot.lane.b32.xlu0 %v6613, 97
      %v7141 = vpop.permute.xlu0 %7140
      %v7142 = vsel %vm1033, %v7131, %v7137
      %v7143 = vsel %vm1033, %v7133, %v7139
      %v7144 = vsel %vm1033, %v7135, %v7141
      %v7145 = vsel %vm1033, %v7125, %v7131
      %v7146 = vsel %vm1033, %v7127, %v7133
      %v7147 = vsel %vm1033, %v7129, %v7135
      %v7148 = vsel %vm1033, %v7119, %v7125
      %v7149 = vsel %vm1033, %v7121, %v7127
      %v7150 = vsel %vm1033, %v7123, %v7129
      %v7151 = vsel %vm1033, %v7113, %v7119
      %v7152 = vsel %vm1033, %v7115, %v7121
      %v7153 = vsel %vm1033, %v7117, %v7123
      %v7154 = vsel %vm1033, %v7107, %v7113
      %v7155 = vsel %vm1033, %v7109, %v7115
      %v7156 = vsel %vm1033, %v7111, %v7117
      %v7157 = vsel %vm1033, %v7101, %v7107
      %v7158 = vsel %vm1033, %v7103, %v7109
      %v7159 = vsel %vm1033, %v7105, %v7111
      %v7160 = vsel %vm1033, %v7095, %v7101
      %v7161 = vsel %vm1033, %v7097, %v7103
      %v7162 = vsel %vm1033, %v7099, %v7105
      %v7163 = vsel %vm1033, %v7137, %v7095
      %v7164 = vsel %vm1033, %v7139, %v7097
      %v7165 = vsel %vm1033, %v7141, %v7099
      %v7166 = vmul.f32 %v7160, %v1045
      %v7167 = vmul.f32 %v7157, %v1049
      %v7168 = vmul.f32 %v7154, %v1053
      %v7169 = vmul.f32 %v7151, %v1057
      %v7170 = vmul.f32 %v7148, %v1061
      %v7171 = vmul.f32 %v7145, %v1065
      %v7172 = vmul.f32 %v7142, %v1069
      %v7173 = vmul.f32 %v7163, %v1073
      %v7174 = vmul.f32 %v7161, %v1045
      %v7175 = vmul.f32 %v7158, %v1049
      %v7176 = vmul.f32 %v7155, %v1053
      %v7177 = vmul.f32 %v7152, %v1057
      %v7178 = vmul.f32 %v7149, %v1061
      %v7179 = vmul.f32 %v7146, %v1065
      %v7180 = vmul.f32 %v7143, %v1069
      %v7181 = vmul.f32 %v7164, %v1073
      %v7182 = vmul.f32 %v7162, %v1045
      %v7183 = vmul.f32 %v7159, %v1049
      %v7184 = vmul.f32 %v7156, %v1053
      %v7185 = vmul.f32 %v7153, %v1057
      %v7186 = vmul.f32 %v7150, %v1061
      %v7187 = vmul.f32 %v7147, %v1065
      %v7188 = vmul.f32 %v7144, %v1069
      %v7189 = vmul.f32 %v7165, %v1073
      %7190 = vrot.lane.b32.xlu0 %v6590, 96
      %v7191 = vpop.permute.xlu0 %7190
      %7192 = vrot.lane.b32.xlu0 %v6598, 96
      %v7193 = vpop.permute.xlu0 %7192
      %7194 = vrot.lane.b32.xlu0 %v6606, 96
      %v7195 = vpop.permute.xlu0 %7194
      %7196 = vrot.lane.b32.xlu0 %v6591, 96
      %v7197 = vpop.permute.xlu0 %7196
      %7198 = vrot.lane.b32.xlu0 %v6599, 96
      %v7199 = vpop.permute.xlu0 %7198
      %7200 = vrot.lane.b32.xlu0 %v6607, 96
      %v7201 = vpop.permute.xlu0 %7200
      %7202 = vrot.lane.b32.xlu0 %v6592, 96
      %v7203 = vpop.permute.xlu0 %7202
      %7204 = vrot.lane.b32.xlu0 %v6600, 96
      %v7205 = vpop.permute.xlu0 %7204
      %7206 = vrot.lane.b32.xlu0 %v6608, 96
      %v7207 = vpop.permute.xlu0 %7206
      %7208 = vrot.lane.b32.xlu0 %v6593, 96
      %v7209 = vpop.permute.xlu0 %7208
      %7210 = vrot.lane.b32.xlu0 %v6601, 96
      %v7211 = vpop.permute.xlu0 %7210
      %7212 = vrot.lane.b32.xlu0 %v6609, 96
      %v7213 = vpop.permute.xlu0 %7212
      %7214 = vrot.lane.b32.xlu0 %v6594, 96
      %v7215 = vpop.permute.xlu0 %7214
      %7216 = vrot.lane.b32.xlu0 %v6602, 96
      %v7217 = vpop.permute.xlu0 %7216
      %7218 = vrot.lane.b32.xlu0 %v6610, 96
      %v7219 = vpop.permute.xlu0 %7218
      %7220 = vrot.lane.b32.xlu0 %v6595, 96
      %v7221 = vpop.permute.xlu0 %7220
      %7222 = vrot.lane.b32.xlu0 %v6603, 96
      %v7223 = vpop.permute.xlu0 %7222
      %7224 = vrot.lane.b32.xlu0 %v6611, 96
      %v7225 = vpop.permute.xlu0 %7224
      %7226 = vrot.lane.b32.xlu0 %v6596, 96
      %v7227 = vpop.permute.xlu0 %7226
      %7228 = vrot.lane.b32.xlu0 %v6604, 96
      %v7229 = vpop.permute.xlu0 %7228
      %7230 = vrot.lane.b32.xlu0 %v6612, 96
      %v7231 = vpop.permute.xlu0 %7230
      %7232 = vrot.lane.b32.xlu0 %v6597, 96
      %v7233 = vpop.permute.xlu0 %7232
      %7234 = vrot.lane.b32.xlu0 %v6605, 96
      %v7235 = vpop.permute.xlu0 %7234
      %7236 = vrot.lane.b32.xlu0 %v6613, 96
      %v7237 = vpop.permute.xlu0 %7236
      %v7238 = vsel %vm1098, %v7227, %v7233
      %v7239 = vsel %vm1098, %v7229, %v7235
      %v7240 = vsel %vm1098, %v7231, %v7237
      %v7241 = vsel %vm1098, %v7221, %v7227
      %v7242 = vsel %vm1098, %v7223, %v7229
      %v7243 = vsel %vm1098, %v7225, %v7231
      %v7244 = vsel %vm1098, %v7215, %v7221
      %v7245 = vsel %vm1098, %v7217, %v7223
      %v7246 = vsel %vm1098, %v7219, %v7225
      %v7247 = vsel %vm1098, %v7209, %v7215
      %v7248 = vsel %vm1098, %v7211, %v7217
      %v7249 = vsel %vm1098, %v7213, %v7219
      %v7250 = vsel %vm1098, %v7203, %v7209
      %v7251 = vsel %vm1098, %v7205, %v7211
      %v7252 = vsel %vm1098, %v7207, %v7213
      %v7253 = vsel %vm1098, %v7197, %v7203
      %v7254 = vsel %vm1098, %v7199, %v7205
      %v7255 = vsel %vm1098, %v7201, %v7207
      %v7256 = vsel %vm1098, %v7191, %v7197
      %v7257 = vsel %vm1098, %v7193, %v7199
      %v7258 = vsel %vm1098, %v7195, %v7201
      %v7259 = vsel %vm1098, %v7233, %v7191
      %v7260 = vsel %vm1098, %v7235, %v7193
      %v7261 = vsel %vm1098, %v7237, %v7195
      %v7262 = vmul.f32 %v7256, %v1110
      %v7263 = vmul.f32 %v7253, %v1114
      %v7264 = vmul.f32 %v7250, %v1118
      %v7265 = vmul.f32 %v7247, %v1122
      %v7266 = vmul.f32 %v7244, %v1126
      %v7267 = vmul.f32 %v7241, %v1130
      %v7268 = vmul.f32 %v7238, %v1134
      %v7269 = vmul.f32 %v7259, %v1138
      %v7270 = vmul.f32 %v7257, %v1110
      %v7271 = vmul.f32 %v7254, %v1114
      %v7272 = vmul.f32 %v7251, %v1118
      %v7273 = vmul.f32 %v7248, %v1122
      %v7274 = vmul.f32 %v7245, %v1126
      %v7275 = vmul.f32 %v7242, %v1130
      %v7276 = vmul.f32 %v7239, %v1134
      %v7277 = vmul.f32 %v7260, %v1138
      %v7278 = vmul.f32 %v7258, %v1110
      %v7279 = vmul.f32 %v7255, %v1114
      %v7280 = vmul.f32 %v7252, %v1118
      %v7281 = vmul.f32 %v7249, %v1122
      %v7282 = vmul.f32 %v7246, %v1126
      %v7283 = vmul.f32 %v7243, %v1130
      %v7284 = vmul.f32 %v7240, %v1134
      %v7285 = vmul.f32 %v7261, %v1138
      %7286 = vrot.lane.b32.xlu0 %v6590, 95
      %v7287 = vpop.permute.xlu0 %7286
      %7288 = vrot.lane.b32.xlu0 %v6598, 95
      %v7289 = vpop.permute.xlu0 %7288
      %7290 = vrot.lane.b32.xlu0 %v6606, 95
      %v7291 = vpop.permute.xlu0 %7290
      %7292 = vrot.lane.b32.xlu0 %v6591, 95
      %v7293 = vpop.permute.xlu0 %7292
      %7294 = vrot.lane.b32.xlu0 %v6599, 95
      %v7295 = vpop.permute.xlu0 %7294
      %7296 = vrot.lane.b32.xlu0 %v6607, 95
      %v7297 = vpop.permute.xlu0 %7296
      %7298 = vrot.lane.b32.xlu0 %v6592, 95
      %v7299 = vpop.permute.xlu0 %7298
      %7300 = vrot.lane.b32.xlu0 %v6600, 95
      %v7301 = vpop.permute.xlu0 %7300
      %7302 = vrot.lane.b32.xlu0 %v6608, 95
      %v7303 = vpop.permute.xlu0 %7302
      %7304 = vrot.lane.b32.xlu0 %v6593, 95
      %v7305 = vpop.permute.xlu0 %7304
      %7306 = vrot.lane.b32.xlu0 %v6601, 95
      %v7307 = vpop.permute.xlu0 %7306
      %7308 = vrot.lane.b32.xlu0 %v6609, 95
      %v7309 = vpop.permute.xlu0 %7308
      %7310 = vrot.lane.b32.xlu0 %v6594, 95
      %v7311 = vpop.permute.xlu0 %7310
      %7312 = vrot.lane.b32.xlu0 %v6602, 95
      %v7313 = vpop.permute.xlu0 %7312
      %7314 = vrot.lane.b32.xlu0 %v6610, 95
      %v7315 = vpop.permute.xlu0 %7314
      %7316 = vrot.lane.b32.xlu0 %v6595, 95
      %v7317 = vpop.permute.xlu0 %7316
      %7318 = vrot.lane.b32.xlu0 %v6603, 95
      %v7319 = vpop.permute.xlu0 %7318
      %7320 = vrot.lane.b32.xlu0 %v6611, 95
      %v7321 = vpop.permute.xlu0 %7320
      %7322 = vrot.lane.b32.xlu0 %v6596, 95
      %v7323 = vpop.permute.xlu0 %7322
      %7324 = vrot.lane.b32.xlu0 %v6604, 95
      %v7325 = vpop.permute.xlu0 %7324
      %7326 = vrot.lane.b32.xlu0 %v6612, 95
      %v7327 = vpop.permute.xlu0 %7326
      %7328 = vrot.lane.b32.xlu0 %v6597, 95
      %v7329 = vpop.permute.xlu0 %7328
      %7330 = vrot.lane.b32.xlu0 %v6605, 95
      %v7331 = vpop.permute.xlu0 %7330
      %7332 = vrot.lane.b32.xlu0 %v6613, 95
      %v7333 = vpop.permute.xlu0 %7332
      %v7334 = vsel %vm1163, %v7323, %v7329
      %v7335 = vsel %vm1163, %v7325, %v7331
      %v7336 = vsel %vm1163, %v7327, %v7333
      %v7337 = vsel %vm1163, %v7317, %v7323
      %v7338 = vsel %vm1163, %v7319, %v7325
      %v7339 = vsel %vm1163, %v7321, %v7327
      %v7340 = vsel %vm1163, %v7311, %v7317
      %v7341 = vsel %vm1163, %v7313, %v7319
      %v7342 = vsel %vm1163, %v7315, %v7321
      %v7343 = vsel %vm1163, %v7305, %v7311
      %v7344 = vsel %vm1163, %v7307, %v7313
      %v7345 = vsel %vm1163, %v7309, %v7315
      %v7346 = vsel %vm1163, %v7299, %v7305
      %v7347 = vsel %vm1163, %v7301, %v7307
      %v7348 = vsel %vm1163, %v7303, %v7309
      %v7349 = vsel %vm1163, %v7293, %v7299
      %v7350 = vsel %vm1163, %v7295, %v7301
      %v7351 = vsel %vm1163, %v7297, %v7303
      %v7352 = vsel %vm1163, %v7287, %v7293
      %v7353 = vsel %vm1163, %v7289, %v7295
      %v7354 = vsel %vm1163, %v7291, %v7297
      %v7355 = vsel %vm1163, %v7329, %v7287
      %v7356 = vsel %vm1163, %v7331, %v7289
      %v7357 = vsel %vm1163, %v7333, %v7291
      %v7358 = vmul.f32 %v7352, %v1175
      %v7359 = vmul.f32 %v7349, %v1179
      %v7360 = vmul.f32 %v7346, %v1183
      %v7361 = vmul.f32 %v7343, %v1187
      %v7362 = vmul.f32 %v7340, %v1191
      %v7363 = vmul.f32 %v7337, %v1195
      %v7364 = vmul.f32 %v7334, %v1199
      %v7365 = vmul.f32 %v7355, %v1203
      %v7366 = vmul.f32 %v7353, %v1175
      %v7367 = vmul.f32 %v7350, %v1179
      %v7368 = vmul.f32 %v7347, %v1183
      %v7369 = vmul.f32 %v7344, %v1187
      %v7370 = vmul.f32 %v7341, %v1191
      %v7371 = vmul.f32 %v7338, %v1195
      %v7372 = vmul.f32 %v7335, %v1199
      %v7373 = vmul.f32 %v7356, %v1203
      %v7374 = vmul.f32 %v7354, %v1175
      %v7375 = vmul.f32 %v7351, %v1179
      %v7376 = vmul.f32 %v7348, %v1183
      %v7377 = vmul.f32 %v7345, %v1187
      %v7378 = vmul.f32 %v7342, %v1191
      %v7379 = vmul.f32 %v7339, %v1195
      %v7380 = vmul.f32 %v7336, %v1199
      %v7381 = vmul.f32 %v7357, %v1203
      %v7406 = vrot.slane %v6782, 4
      %v7407 = vrot.slane %v6783, 4
      %v7408 = vrot.slane %v6784, 4
      %v7409 = vrot.slane %v6785, 4
      %v7410 = vrot.slane %v6786, 4
      %v7411 = vrot.slane %v6787, 4
      %v7412 = vrot.slane %v6788, 4
      %v7413 = vrot.slane %v6789, 4
      %v7414 = vrot.slane %v6790, 4
      %v7415 = vsel %vm1308, %v7406, %v7414
      %v7416 = vrot.slane %v6791, 4
      %v7417 = vsel %vm1308, %v7407, %v7416
      %v7418 = vrot.slane %v6792, 4
      %v7419 = vsel %vm1308, %v7408, %v7418
      %v7420 = vrot.slane %v6793, 4
      %v7421 = vsel %vm1308, %v7409, %v7420
      %v7422 = vrot.slane %v6794, 4
      %v7423 = vsel %vm1308, %v7410, %v7422
      %v7424 = vrot.slane %v6795, 4
      %v7425 = vsel %vm1308, %v7411, %v7424
      %v7426 = vrot.slane %v6796, 4
      %v7427 = vsel %vm1308, %v7412, %v7426
      %v7428 = vrot.slane %v6797, 4
      %v7429 = vsel %vm1308, %v7413, %v7428
      %v7430 = vrot.slane %v6798, 4
      %v7431 = vsel %vm1308, %v7414, %v7430
      %v7432 = vrot.slane %v6799, 4
      %v7433 = vsel %vm1308, %v7416, %v7432
      %v7434 = vrot.slane %v6800, 4
      %v7435 = vsel %vm1308, %v7418, %v7434
      %v7436 = vrot.slane %v6801, 4
      %v7437 = vsel %vm1308, %v7420, %v7436
      %v7438 = vrot.slane %v6802, 4
      %v7439 = vsel %vm1308, %v7422, %v7438
      %v7440 = vrot.slane %v6803, 4
      %v7441 = vsel %vm1308, %v7424, %v7440
      %v7442 = vrot.slane %v6804, 4
      %v7443 = vsel %vm1308, %v7426, %v7442
      %v7444 = vrot.slane %v6805, 4
      %v7445 = vsel %vm1308, %v7428, %v7444
      %v7494 = vrot.slane %v6974, 4
      %v7495 = vrot.slane %v6975, 4
      %v7496 = vrot.slane %v6976, 4
      %v7497 = vrot.slane %v6977, 4
      %v7498 = vrot.slane %v6978, 4
      %v7499 = vrot.slane %v6979, 4
      %v7500 = vrot.slane %v6980, 4
      %v7501 = vrot.slane %v6981, 4
      %v7502 = vrot.slane %v6982, 4
      %v7503 = vsel %vm1308, %v7494, %v7502
      %v7504 = vrot.slane %v6983, 4
      %v7505 = vsel %vm1308, %v7495, %v7504
      %v7506 = vrot.slane %v6984, 4
      %v7507 = vsel %vm1308, %v7496, %v7506
      %v7508 = vrot.slane %v6985, 4
      %v7509 = vsel %vm1308, %v7497, %v7508
      %v7510 = vrot.slane %v6986, 4
      %v7511 = vsel %vm1308, %v7498, %v7510
      %v7512 = vrot.slane %v6987, 4
      %v7513 = vsel %vm1308, %v7499, %v7512
      %v7514 = vrot.slane %v6988, 4
      %v7515 = vsel %vm1308, %v7500, %v7514
      %v7516 = vrot.slane %v6989, 4
      %v7517 = vsel %vm1308, %v7501, %v7516
      %v7518 = vrot.slane %v6990, 4
      %v7519 = vsel %vm1308, %v7502, %v7518
      %v7520 = vrot.slane %v6991, 4
      %v7521 = vsel %vm1308, %v7504, %v7520
      %v7522 = vrot.slane %v6992, 4
      %v7523 = vsel %vm1308, %v7506, %v7522
      %v7524 = vrot.slane %v6993, 4
      %v7525 = vsel %vm1308, %v7508, %v7524
      %v7526 = vrot.slane %v6994, 4
      %v7527 = vsel %vm1308, %v7510, %v7526
      %v7528 = vrot.slane %v6995, 4
      %v7529 = vsel %vm1308, %v7512, %v7528
      %v7530 = vrot.slane %v6996, 4
      %v7531 = vsel %vm1308, %v7514, %v7530
      %v7532 = vrot.slane %v6997, 4
      %v7533 = vsel %vm1308, %v7516, %v7532
      %v7582 = vrot.slane %v7070, 4
      %v7583 = vrot.slane %v7071, 4
      %v7584 = vrot.slane %v7072, 4
      %v7585 = vrot.slane %v7073, 4
      %v7586 = vrot.slane %v7074, 4
      %v7587 = vrot.slane %v7075, 4
      %v7588 = vrot.slane %v7076, 4
      %v7589 = vrot.slane %v7077, 4
      %v7590 = vrot.slane %v7078, 4
      %v7591 = vsel %vm1308, %v7582, %v7590
      %v7592 = vrot.slane %v7079, 4
      %v7593 = vsel %vm1308, %v7583, %v7592
      %v7594 = vrot.slane %v7080, 4
      %v7595 = vsel %vm1308, %v7584, %v7594
      %v7596 = vrot.slane %v7081, 4
      %v7597 = vsel %vm1308, %v7585, %v7596
      %v7598 = vrot.slane %v7082, 4
      %v7599 = vsel %vm1308, %v7586, %v7598
      %v7600 = vrot.slane %v7083, 4
      %v7601 = vsel %vm1308, %v7587, %v7600
      %v7602 = vrot.slane %v7084, 4
      %v7603 = vsel %vm1308, %v7588, %v7602
      %v7604 = vrot.slane %v7085, 4
      %v7605 = vsel %vm1308, %v7589, %v7604
      %v7606 = vrot.slane %v7086, 4
      %v7607 = vsel %vm1308, %v7590, %v7606
      %v7608 = vrot.slane %v7087, 4
      %v7609 = vsel %vm1308, %v7592, %v7608
      %v7610 = vrot.slane %v7088, 4
      %v7611 = vsel %vm1308, %v7594, %v7610
      %v7612 = vrot.slane %v7089, 4
      %v7613 = vsel %vm1308, %v7596, %v7612
      %v7614 = vrot.slane %v7090, 4
      %v7615 = vsel %vm1308, %v7598, %v7614
      %v7616 = vrot.slane %v7091, 4
      %v7617 = vsel %vm1308, %v7600, %v7616
      %v7618 = vrot.slane %v7092, 4
      %v7619 = vsel %vm1308, %v7602, %v7618
      %v7620 = vrot.slane %v7093, 4
      %v7621 = vsel %vm1308, %v7604, %v7620
      %v7670 = vrot.slane %v7262, 4
      %v7671 = vrot.slane %v7263, 4
      %v7672 = vrot.slane %v7264, 4
      %v7673 = vrot.slane %v7265, 4
      %v7674 = vrot.slane %v7266, 4
      %v7675 = vrot.slane %v7267, 4
      %v7676 = vrot.slane %v7268, 4
      %v7677 = vrot.slane %v7269, 4
      %v7678 = vrot.slane %v7270, 4
      %v7679 = vsel %vm1308, %v7670, %v7678
      %v7680 = vrot.slane %v7271, 4
      %v7681 = vsel %vm1308, %v7671, %v7680
      %v7682 = vrot.slane %v7272, 4
      %v7683 = vsel %vm1308, %v7672, %v7682
      %v7684 = vrot.slane %v7273, 4
      %v7685 = vsel %vm1308, %v7673, %v7684
      %v7686 = vrot.slane %v7274, 4
      %v7687 = vsel %vm1308, %v7674, %v7686
      %v7688 = vrot.slane %v7275, 4
      %v7689 = vsel %vm1308, %v7675, %v7688
      %v7690 = vrot.slane %v7276, 4
      %v7691 = vsel %vm1308, %v7676, %v7690
      %v7692 = vrot.slane %v7277, 4
      %v7693 = vsel %vm1308, %v7677, %v7692
      %v7694 = vrot.slane %v7278, 4
      %v7695 = vsel %vm1308, %v7678, %v7694
      %v7696 = vrot.slane %v7279, 4
      %v7697 = vsel %vm1308, %v7680, %v7696
      %v7698 = vrot.slane %v7280, 4
      %v7699 = vsel %vm1308, %v7682, %v7698
      %v7700 = vrot.slane %v7281, 4
      %v7701 = vsel %vm1308, %v7684, %v7700
      %v7702 = vrot.slane %v7282, 4
      %v7703 = vsel %vm1308, %v7686, %v7702
      %v7704 = vrot.slane %v7283, 4
      %v7705 = vsel %vm1308, %v7688, %v7704
      %v7706 = vrot.slane %v7284, 4
      %v7707 = vsel %vm1308, %v7690, %v7706
      %v7708 = vrot.slane %v7285, 4
      %v7709 = vsel %vm1308, %v7692, %v7708
      %v7734 = vsel %vm1308, %v6702, %v7406
      %v7735 = vsel %vm1308, %v6703, %v7407
      %v7736 = vsel %vm1308, %v6704, %v7408
      %v7737 = vsel %vm1308, %v6705, %v7409
      %v7738 = vsel %vm1308, %v6706, %v7410
      %v7739 = vsel %vm1308, %v6707, %v7411
      %v7740 = vsel %vm1308, %v6708, %v7412
      %v7741 = vsel %vm1308, %v6709, %v7413
      %v7742 = vsel %vm1308, %v6894, %v7494
      %v7743 = vsel %vm1308, %v6895, %v7495
      %v7744 = vsel %vm1308, %v6896, %v7496
      %v7745 = vsel %vm1308, %v6897, %v7497
      %v7746 = vsel %vm1308, %v6898, %v7498
      %v7747 = vsel %vm1308, %v6899, %v7499
      %v7748 = vsel %vm1308, %v6900, %v7500
      %v7749 = vsel %vm1308, %v6901, %v7501
      %v7750 = vsel %vm1308, %v6606, %v7582
      %v7751 = vsel %vm1308, %v6607, %v7583
      %v7752 = vsel %vm1308, %v6608, %v7584
      %v7753 = vsel %vm1308, %v6609, %v7585
      %v7754 = vsel %vm1308, %v6610, %v7586
      %v7755 = vsel %vm1308, %v6611, %v7587
      %v7756 = vsel %vm1308, %v6612, %v7588
      %v7757 = vsel %vm1308, %v6613, %v7589
      %v7758 = vsel %vm1308, %v7182, %v7670
      %v7759 = vsel %vm1308, %v7183, %v7671
      %v7760 = vsel %vm1308, %v7184, %v7672
      %v7761 = vsel %vm1308, %v7185, %v7673
      %v7762 = vsel %vm1308, %v7186, %v7674
      %v7763 = vsel %vm1308, %v7187, %v7675
      %v7764 = vsel %vm1308, %v7188, %v7676
      %v7765 = vsel %vm1308, %v7189, %v7677
      %v7766 = vpack.c.bf16 %v6694, %v6686
      %v7767 = vpack.c.bf16 %v6695, %v6687
      %v7768 = vpack.c.bf16 %v6696, %v6688
      %v7769 = vpack.c.bf16 %v6697, %v6689
      %v7770 = vpack.c.bf16 %v6698, %v6690
      %v7771 = vpack.c.bf16 %v6699, %v6691
      %v7772 = vpack.c.bf16 %v6700, %v6692
      %v7773 = vpack.c.bf16 %v6701, %v6693
      %v7774 = vpack.c.bf16 %v7415, %v7734
      %v7775 = vpack.c.bf16 %v7417, %v7735
      %v7776 = vpack.c.bf16 %v7419, %v7736
      %v7777 = vpack.c.bf16 %v7421, %v7737
      %v7778 = vpack.c.bf16 %v7423, %v7738
      %v7779 = vpack.c.bf16 %v7425, %v7739
      %v7780 = vpack.c.bf16 %v7427, %v7740
      %v7781 = vpack.c.bf16 %v7429, %v7741
      %v7782 = vpack.c.bf16 %v6878, %v7431
      %v7783 = vpack.c.bf16 %v6879, %v7433
      %v7784 = vpack.c.bf16 %v6880, %v7435
      %v7785 = vpack.c.bf16 %v6881, %v7437
      %v7786 = vpack.c.bf16 %v6882, %v7439
      %v7787 = vpack.c.bf16 %v6883, %v7441
      %v7788 = vpack.c.bf16 %v6884, %v7443
      %v7789 = vpack.c.bf16 %v6885, %v7445
      %v7790 = vpack.c.bf16 %v7742, %v6886
      %v7791 = vpack.c.bf16 %v7743, %v6887
      %v7792 = vpack.c.bf16 %v7744, %v6888
      %v7793 = vpack.c.bf16 %v7745, %v6889
      %v7794 = vpack.c.bf16 %v7746, %v6890
      %v7795 = vpack.c.bf16 %v7747, %v6891
      %v7796 = vpack.c.bf16 %v7748, %v6892
      %v7797 = vpack.c.bf16 %v7749, %v6893
      %v7798 = vpack.c.bf16 %v7519, %v7503
      %v7799 = vpack.c.bf16 %v7521, %v7505
      %v7800 = vpack.c.bf16 %v7523, %v7507
      %v7801 = vpack.c.bf16 %v7525, %v7509
      %v7802 = vpack.c.bf16 %v7527, %v7511
      %v7803 = vpack.c.bf16 %v7529, %v7513
      %v7804 = vpack.c.bf16 %v7531, %v7515
      %v7805 = vpack.c.bf16 %v7533, %v7517
      %v7806 = vpack.c.bf16 %v6598, %v6590
      %v7807 = vpack.c.bf16 %v6599, %v6591
      %v7808 = vpack.c.bf16 %v6600, %v6592
      %v7809 = vpack.c.bf16 %v6601, %v6593
      %v7810 = vpack.c.bf16 %v6602, %v6594
      %v7811 = vpack.c.bf16 %v6603, %v6595
      %v7812 = vpack.c.bf16 %v6604, %v6596
      %v7813 = vpack.c.bf16 %v6605, %v6597
      %v7814 = vpack.c.bf16 %v7591, %v7750
      %v7815 = vpack.c.bf16 %v7593, %v7751
      %v7816 = vpack.c.bf16 %v7595, %v7752
      %v7817 = vpack.c.bf16 %v7597, %v7753
      %v7818 = vpack.c.bf16 %v7599, %v7754
      %v7819 = vpack.c.bf16 %v7601, %v7755
      %v7820 = vpack.c.bf16 %v7603, %v7756
      %v7821 = vpack.c.bf16 %v7605, %v7757
      %v7822 = vpack.c.bf16 %v7166, %v7607
      %v7823 = vpack.c.bf16 %v7167, %v7609
      %v7824 = vpack.c.bf16 %v7168, %v7611
      %v7825 = vpack.c.bf16 %v7169, %v7613
      %v7826 = vpack.c.bf16 %v7170, %v7615
      %v7827 = vpack.c.bf16 %v7171, %v7617
      %v7828 = vpack.c.bf16 %v7172, %v7619
      %v7829 = vpack.c.bf16 %v7173, %v7621
      %v7830 = vpack.c.bf16 %v7758, %v7174
      %v7831 = vpack.c.bf16 %v7759, %v7175
      %v7832 = vpack.c.bf16 %v7760, %v7176
      %v7833 = vpack.c.bf16 %v7761, %v7177
      %v7834 = vpack.c.bf16 %v7762, %v7178
      %v7835 = vpack.c.bf16 %v7763, %v7179
      %v7836 = vpack.c.bf16 %v7764, %v7180
      %v7837 = vpack.c.bf16 %v7765, %v7181
      %v7838 = vpack.c.bf16 %v7695, %v7679
      %v7839 = vpack.c.bf16 %v7697, %v7681
      %v7840 = vpack.c.bf16 %v7699, %v7683
      %v7841 = vpack.c.bf16 %v7701, %v7685
      %v7842 = vpack.c.bf16 %v7703, %v7687
      %v7843 = vpack.c.bf16 %v7705, %v7689
      %v7844 = vpack.c.bf16 %v7707, %v7691
      %v7845 = vpack.c.bf16 %v7709, %v7693
      %v7846 = vpack.c.bf16 %v7366, %v7358
      %v7847 = vpack.c.bf16 %v7367, %v7359
      %v7848 = vpack.c.bf16 %v7368, %v7360
      %v7849 = vpack.c.bf16 %v7369, %v7361
      %v7850 = vpack.c.bf16 %v7370, %v7362
      %v7851 = vpack.c.bf16 %v7371, %v7363
      %v7852 = vpack.c.bf16 %v7372, %v7364
      %v7853 = vpack.c.bf16 %v7373, %v7365
      %v7854 = vpack.c.bf16 %v7374, %v7374
      %v7855 = vpack.c.bf16 %v7375, %v7375
      %v7856 = vpack.c.bf16 %v7376, %v7376
      %v7857 = vpack.c.bf16 %v7377, %v7377
      %v7858 = vpack.c.bf16 %v7378, %v7378
      %v7859 = vpack.c.bf16 %v7379, %v7379
      %v7860 = vpack.c.bf16 %v7380, %v7380
      %v7861 = vpack.c.bf16 %v7381, %v7381
      %v7862 = vld [vmem:[%s15] sm:$0xff]
      %v7863 = vld [vmem:[%s15 + $0x8] sm:$0xff]
      %v7864 = vld [vmem:[%s15 + $0x10] sm:$0x33]
      %v7865 = vld [vmem:[%s16] sm:$0xff]
      %v7866 = vld [vmem:[%s16 + $0x8] sm:$0xff]
      %v7867 = vld [vmem:[%s16 + $0x10] sm:$0xf]
      %7869 = vset.pattern.permute.xlu0 0
      %7870 = vperm.xlu0 %7869, %v7865
      %v7871 = vpop.permute.xlu0 %7870
      %7874 = vset.pattern.permute.xlu0 0
      %7875 = vperm.xlu0 %7874, %v7866
      %v7876 = vpop.permute.xlu0 %7875
      %7879 = vset.pattern.permute.xlu0 0
      %7880 = vperm.xlu0 %7879, %v7867
      %v7881 = vpop.permute.xlu0 %7880
      %v7886 = vunpack.c.l.b16 %v7862
      %v7887 = vunpack.c.h.b16 %v7862
      %v7888 = vunpack.c.l.b16 %v7863
      %v7889 = vunpack.c.h.b16 %v7863
      %v7890 = vunpack.c.l.b16 %v7864
      %v7891 = vunpack.c.h.b16 %v7864
      %v7892 = vpack.c.b16 %v7888, %v7886
      %v7893 = vpack.c.b16 %v7889, %v7887
      %v7894 = vpack.c.b16 %v7890, %v7890
      %v7895 = vpack.c.b16 %v7891, %v7891
      %v7899 = vsel %vm2986, %v7893, 0
      %v7902 = vsel %vm2986, %v7895, 0
      %v7905 = vsel %vm1401, %v7854, 0
      %v7908 = vsel %vm1401, %v7855, 0
      %v7911 = vsel %vm1401, %v7856, 0
      %v7914 = vsel %vm1401, %v7857, 0
      %v7917 = vsel %vm1401, %v7858, 0
      %v7920 = vsel %vm1401, %v7859, 0
      %v7923 = vsel %vm1401, %v7860, 0
      %v7926 = vsel %vm1401, %v7861, 0
      %7928 = vmatprep.subr.bf16.mxu0 %v7823
      %7929 = vmatpush1.bf16.msra.mxu0 %v7822
      %7930 = vmatprep.subr.bf16.mxu0 %v7815
      %7931 = vmatpush1.bf16.msra.mxu0 %v7814
      %7932 = vmatprep.subr.bf16.mxu0 %v7807
      %7933 = vmatpush1.bf16.msra.mxu0 %v7806
      %7934 = vmatprep.subr.bf16.mxu0 %v7799
      %7935 = vmatpush1.bf16.msra.mxu0 %v7798
      %7936 = vmatprep.subr.bf16.mxu0 %v7791
      %7937 = vmatpush1.bf16.msra.mxu0 %v7790
      %7938 = vmatprep.subr.bf16.mxu0 %v7783
      %7939 = vmatpush1.bf16.msra.mxu0 %v7782
      %7940 = vmatprep.subr.bf16.mxu0 %v7775
      %7941 = vmatpush1.bf16.msra.mxu0 %v7774
      %7942 = vmatprep.subr.bf16.mxu0 %v7767
      %7943 = vmatpush1.bf16.msra.mxu0 %v7766
      %7944 = vmatprep.subr.bf16.mxu0 0
      %7945 = vmatpush2.bf16.msra.mxu0 0
      %7946 = vmatprep.subr.bf16.mxu0 0
      %7947 = vmatpush2.bf16.msra.mxu0 0
      %7948 = vmatprep.subr.bf16.mxu0 0
      %7949 = vmatpush2.bf16.msra.mxu0 0
      %7950 = vmatprep.subr.bf16.mxu0 0
      %7951 = vmatpush2.bf16.msra.mxu0 0
      %7952 = vmatprep.subr.bf16.mxu0 %v7908
      %7953 = vmatpush2.bf16.msra.mxu0 %v7905
      %7954 = vmatprep.subr.bf16.mxu0 %v7847
      %7955 = vmatpush2.bf16.msra.mxu0 %v7846
      %7956 = vmatprep.subr.bf16.mxu0 %v7839
      %7957 = vmatpush2.bf16.msra.mxu0 %v7838
      %7958 = vmatprep.subr.bf16.mxu0 %v7831
      %7959 = vmatpush2.bf16.msra.mxu0 %v7830
      %7960 = vmatprep.mubr.bf16.mxu0 %v7899
      %7961 = vmatmul.mubr.bf16.gmra.mxu0 %v7892
      %v7962 = vpop.f32.mrf.mxu0
      %v7963 = vadd.f32 %v7871, %v7962
      %v7964 = vpop.f32.mrf.mxu0
      %v7965 = vadd.f32 %v7871, %v7964
      %v7966 = vpop.f32.mrf.mxu0
      %v7967 = vadd.f32 %v7876, %v7966
      %v7968 = vpop.f32.mrf.mxu0
      %v7969 = vadd.f32 %v7876, %v7968
      %7970 = vmatprep.mubr.bf16.mxu0 %v7902
      %7971 = vmatmul.mubr.bf16.gmra.mxu0 %v7894
      %v7972 = vpop.f32.mrf.mxu0
      %v7973 = vadd.f32 %v7881, %v7972
      %v7974 = vpop.f32.mrf.mxu0
      %v7975 = vadd.f32 %v7881, %v7974
      %v7976 = vpop.f32.mrf.mxu0
      %v7977 = vpop.f32.mrf.mxu0
      %7978 = vdwg.mxu0
      %7979 = vmatprep.subr.bf16.mxu0 %v7825
      %7980 = vmatpush1.bf16.msra.mxu0 %v7824
      %7981 = vmatprep.subr.bf16.mxu0 %v7817
      %7982 = vmatpush1.bf16.msra.mxu0 %v7816
      %7983 = vmatprep.subr.bf16.mxu0 %v7809
      %7984 = vmatpush1.bf16.msra.mxu0 %v7808
      %7985 = vmatprep.subr.bf16.mxu0 %v7801
      %7986 = vmatpush1.bf16.msra.mxu0 %v7800
      %7987 = vmatprep.subr.bf16.mxu0 %v7793
      %7988 = vmatpush1.bf16.msra.mxu0 %v7792
      %7989 = vmatprep.subr.bf16.mxu0 %v7785
      %7990 = vmatpush1.bf16.msra.mxu0 %v7784
      %7991 = vmatprep.subr.bf16.mxu0 %v7777
      %7992 = vmatpush1.bf16.msra.mxu0 %v7776
      %7993 = vmatprep.subr.bf16.mxu0 %v7769
      %7994 = vmatpush1.bf16.msra.mxu0 %v7768
      %7995 = vmatprep.subr.bf16.mxu0 0
      %7996 = vmatpush2.bf16.msra.mxu0 0
      %7997 = vmatprep.subr.bf16.mxu0 0
      %7998 = vmatpush2.bf16.msra.mxu0 0
      %7999 = vmatprep.subr.bf16.mxu0 0
      %8000 = vmatpush2.bf16.msra.mxu0 0
      %8001 = vmatprep.subr.bf16.mxu0 0
      %8002 = vmatpush2.bf16.msra.mxu0 0
      %8003 = vmatprep.subr.bf16.mxu0 %v7914
      %8004 = vmatpush2.bf16.msra.mxu0 %v7911
      %8005 = vmatprep.subr.bf16.mxu0 %v7849
      %8006 = vmatpush2.bf16.msra.mxu0 %v7848
      %8007 = vmatprep.subr.bf16.mxu0 %v7841
      %8008 = vmatpush2.bf16.msra.mxu0 %v7840
      %8009 = vmatprep.subr.bf16.mxu0 %v7833
      %8010 = vmatpush2.bf16.msra.mxu0 %v7832
      %8011 = vmatprep.mubr.bf16.mxu0 %v7899
      %8012 = vmatmul.mubr.bf16.gmra.mxu0 %v7892
      %v8013 = vpop.f32.mrf.mxu0
      %v8014 = vadd.f32 %v7871, %v8013
      %v8015 = vpop.f32.mrf.mxu0
      %v8016 = vadd.f32 %v7871, %v8015
      %v8017 = vpop.f32.mrf.mxu0
      %v8018 = vadd.f32 %v7876, %v8017
      %v8019 = vpop.f32.mrf.mxu0
      %v8020 = vadd.f32 %v7876, %v8019
      %8021 = vmatprep.mubr.bf16.mxu0 %v7902
      %8022 = vmatmul.mubr.bf16.gmra.mxu0 %v7894
      %v8023 = vpop.f32.mrf.mxu0
      %v8024 = vadd.f32 %v7881, %v8023
      %v8025 = vpop.f32.mrf.mxu0
      %v8026 = vadd.f32 %v7881, %v8025
      %v8027 = vpop.f32.mrf.mxu0
      %v8028 = vpop.f32.mrf.mxu0
      %8029 = vdwg.mxu0
      %8030 = vmatprep.subr.bf16.mxu0 %v7827
      %8031 = vmatpush1.bf16.msra.mxu0 %v7826
      %8032 = vmatprep.subr.bf16.mxu0 %v7819
      %8033 = vmatpush1.bf16.msra.mxu0 %v7818
      %8034 = vmatprep.subr.bf16.mxu0 %v7811
      %8035 = vmatpush1.bf16.msra.mxu0 %v7810
      %8036 = vmatprep.subr.bf16.mxu0 %v7803
      %8037 = vmatpush1.bf16.msra.mxu0 %v7802
      %8038 = vmatprep.subr.bf16.mxu0 %v7795
      %8039 = vmatpush1.bf16.msra.mxu0 %v7794
      %8040 = vmatprep.subr.bf16.mxu0 %v7787
      %8041 = vmatpush1.bf16.msra.mxu0 %v7786
      %8042 = vmatprep.subr.bf16.mxu0 %v7779
      %8043 = vmatpush1.bf16.msra.mxu0 %v7778
      %8044 = vmatprep.subr.bf16.mxu0 %v7771
      %8045 = vmatpush1.bf16.msra.mxu0 %v7770
      %8046 = vmatprep.subr.bf16.mxu0 0
      %8047 = vmatpush2.bf16.msra.mxu0 0
      %8048 = vmatprep.subr.bf16.mxu0 0
      %8049 = vmatpush2.bf16.msra.mxu0 0
      %8050 = vmatprep.subr.bf16.mxu0 0
      %8051 = vmatpush2.bf16.msra.mxu0 0
      %8052 = vmatprep.subr.bf16.mxu0 0
      %8053 = vmatpush2.bf16.msra.mxu0 0
      %8054 = vmatprep.subr.bf16.mxu0 %v7920
      %8055 = vmatpush2.bf16.msra.mxu0 %v7917
      %8056 = vmatprep.subr.bf16.mxu0 %v7851
      %8057 = vmatpush2.bf16.msra.mxu0 %v7850
      %8058 = vmatprep.subr.bf16.mxu0 %v7843
      %8059 = vmatpush2.bf16.msra.mxu0 %v7842
      %8060 = vmatprep.subr.bf16.mxu0 %v7835
      %8061 = vmatpush2.bf16.msra.mxu0 %v7834
      %8062 = vmatprep.mubr.bf16.mxu0 %v7899
      %8063 = vmatmul.mubr.bf16.gmra.mxu0 %v7892
      %v8064 = vpop.f32.mrf.mxu0
      %v8065 = vadd.f32 %v7871, %v8064
      %v8066 = vpop.f32.mrf.mxu0
      %v8067 = vadd.f32 %v7871, %v8066
      %v8068 = vpop.f32.mrf.mxu0
      %v8069 = vadd.f32 %v7876, %v8068
      %v8070 = vpop.f32.mrf.mxu0
      %v8071 = vadd.f32 %v7876, %v8070
      %8072 = vmatprep.mubr.bf16.mxu0 %v7902
      %8073 = vmatmul.mubr.bf16.gmra.mxu0 %v7894
      %v8074 = vpop.f32.mrf.mxu0
      %v8075 = vadd.f32 %v7881, %v8074
      %v8076 = vpop.f32.mrf.mxu0
      %v8077 = vadd.f32 %v7881, %v8076
      %v8078 = vpop.f32.mrf.mxu0
      %v8079 = vpop.f32.mrf.mxu0
      %8080 = vdwg.mxu0
      %8081 = vmatprep.subr.bf16.mxu0 %v7829
      %8082 = vmatpush1.bf16.msra.mxu0 %v7828
      %8083 = vmatprep.subr.bf16.mxu0 %v7821
      %8084 = vmatpush1.bf16.msra.mxu0 %v7820
      %8085 = vmatprep.subr.bf16.mxu0 %v7813
      %8086 = vmatpush1.bf16.msra.mxu0 %v7812
      %8087 = vmatprep.subr.bf16.mxu0 %v7805
      %8088 = vmatpush1.bf16.msra.mxu0 %v7804
      %8089 = vmatprep.subr.bf16.mxu0 %v7797
      %8090 = vmatpush1.bf16.msra.mxu0 %v7796
      %8091 = vmatprep.subr.bf16.mxu0 %v7789
      %8092 = vmatpush1.bf16.msra.mxu0 %v7788
      %8093 = vmatprep.subr.bf16.mxu0 %v7781
      %8094 = vmatpush1.bf16.msra.mxu0 %v7780
      %8095 = vmatprep.subr.bf16.mxu0 %v7773
      %8096 = vmatpush1.bf16.msra.mxu0 %v7772
      %8097 = vmatprep.subr.bf16.mxu0 0
      %8098 = vmatpush2.bf16.msra.mxu0 0
      %8099 = vmatprep.subr.bf16.mxu0 0
      %8100 = vmatpush2.bf16.msra.mxu0 0
      %8101 = vmatprep.subr.bf16.mxu0 0
      %8102 = vmatpush2.bf16.msra.mxu0 0
      %8103 = vmatprep.subr.bf16.mxu0 0
      %8104 = vmatpush2.bf16.msra.mxu0 0
      %8105 = vmatprep.subr.bf16.mxu0 %v7926
      %8106 = vmatpush2.bf16.msra.mxu0 %v7923
      %8107 = vmatprep.subr.bf16.mxu0 %v7853
      %8108 = vmatpush2.bf16.msra.mxu0 %v7852
      %8109 = vmatprep.subr.bf16.mxu0 %v7845
      %8110 = vmatpush2.bf16.msra.mxu0 %v7844
      %8111 = vmatprep.subr.bf16.mxu0 %v7837
      %8112 = vmatpush2.bf16.msra.mxu0 %v7836
      %8113 = vmatprep.mubr.bf16.mxu0 %v7899
      %8114 = vmatmul.mubr.bf16.gmra.mxu0 %v7892
      %v8115 = vpop.f32.mrf.mxu0
      %v8116 = vadd.f32 %v7871, %v8115
      %v8117 = vpop.f32.mrf.mxu0
      %v8118 = vadd.f32 %v7871, %v8117
      %v8119 = vpop.f32.mrf.mxu0
      %v8120 = vadd.f32 %v7876, %v8119
      %v8121 = vpop.f32.mrf.mxu0
      %v8122 = vadd.f32 %v7876, %v8121
      %8123 = vmatprep.mubr.bf16.mxu0 %v7902
      %8124 = vmatmul.mubr.bf16.gmra.mxu0 %v7894
      %v8125 = vpop.f32.mrf.mxu0
      %v8126 = vadd.f32 %v7881, %v8125
      %v8127 = vpop.f32.mrf.mxu0
      %v8128 = vadd.f32 %v7881, %v8127
      %v8129 = vpop.f32.mrf.mxu0
      %v8130 = vpop.f32.mrf.mxu0
      %8131 = vdwg.mxu0
      %vm8132 = vcmp.gt.f32.partialorder %v7963, 0.0
      %vm8133 = vcmp.gt.f32.partialorder %v7965, 0.0
      %vm8134 = vcmp.gt.f32.partialorder %v8014, 0.0
      %vm8135 = vcmp.gt.f32.partialorder %v8016, 0.0
      %vm8136 = vcmp.gt.f32.partialorder %v8065, 0.0
      %vm8137 = vcmp.gt.f32.partialorder %v8067, 0.0
      %vm8138 = vcmp.gt.f32.partialorder %v8116, 0.0
      %vm8139 = vcmp.gt.f32.partialorder %v8118, 0.0
      %vm8140 = vcmp.gt.f32.partialorder %v7967, 0.0
      %vm8141 = vcmp.gt.f32.partialorder %v7969, 0.0
      %vm8142 = vcmp.gt.f32.partialorder %v8018, 0.0
      %vm8143 = vcmp.gt.f32.partialorder %v8020, 0.0
      %vm8144 = vcmp.gt.f32.partialorder %v8069, 0.0
      %vm8145 = vcmp.gt.f32.partialorder %v8071, 0.0
      %vm8146 = vcmp.gt.f32.partialorder %v8120, 0.0
      %vm8147 = vcmp.gt.f32.partialorder %v8122, 0.0
      %vm8148 = vcmp.gt.f32.partialorder %v7973, 0.0
      %vm8149 = vcmp.gt.f32.partialorder %v7975, 0.0
      %vm8150 = vcmp.gt.f32.partialorder %v8024, 0.0
      %vm8151 = vcmp.gt.f32.partialorder %v8026, 0.0
      %vm8152 = vcmp.gt.f32.partialorder %v8075, 0.0
      %vm8153 = vcmp.gt.f32.partialorder %v8077, 0.0
      %vm8154 = vcmp.gt.f32.partialorder %v8126, 0.0
      %vm8155 = vcmp.gt.f32.partialorder %v8128, 0.0
      %v8156 = vmul.f32 %v7963, 0.2
      %v8157 = vmul.f32 %v7965, 0.2
      %v8158 = vmul.f32 %v8014, 0.2
      %v8159 = vmul.f32 %v8016, 0.2
      %v8160 = vmul.f32 %v8065, 0.2
      %v8161 = vmul.f32 %v8067, 0.2
      %v8162 = vmul.f32 %v8116, 0.2
      %v8163 = vmul.f32 %v8118, 0.2
      %v8164 = vmul.f32 %v7967, 0.2
      %v8165 = vmul.f32 %v7969, 0.2
      %v8166 = vmul.f32 %v8018, 0.2
      %v8167 = vmul.f32 %v8020, 0.2
      %v8168 = vmul.f32 %v8069, 0.2
      %v8169 = vmul.f32 %v8071, 0.2
      %v8170 = vmul.f32 %v8120, 0.2
      %v8171 = vmul.f32 %v8122, 0.2
      %v8172 = vmul.f32 %v7973, 0.2
      %v8173 = vmul.f32 %v7975, 0.2
      %v8174 = vmul.f32 %v8024, 0.2
      %v8175 = vmul.f32 %v8026, 0.2
      %v8176 = vmul.f32 %v8075, 0.2
      %v8177 = vmul.f32 %v8077, 0.2
      %v8178 = vmul.f32 %v8126, 0.2
      %v8179 = vmul.f32 %v8128, 0.2
      %v8180 = vsel %vm8132, %v7963, %v8156
      %v8181 = vsel %vm8133, %v7965, %v8157
      %v8182 = vsel %vm8134, %v8014, %v8158
      %v8183 = vsel %vm8135, %v8016, %v8159
      %v8184 = vsel %vm8136, %v8065, %v8160
      %v8185 = vsel %vm8137, %v8067, %v8161
      %v8186 = vsel %vm8138, %v8116, %v8162
      %v8187 = vsel %vm8139, %v8118, %v8163
      %v8188 = vsel %vm8140, %v7967, %v8164
      %v8189 = vsel %vm8141, %v7969, %v8165
      %v8190 = vsel %vm8142, %v8018, %v8166
      %v8191 = vsel %vm8143, %v8020, %v8167
      %v8192 = vsel %vm8144, %v8069, %v8168
      %v8193 = vsel %vm8145, %v8071, %v8169
      %v8194 = vsel %vm8146, %v8120, %v8170
      %v8195 = vsel %vm8147, %v8122, %v8171
      %v8196 = vsel %vm8148, %v7973, %v8172
      %v8197 = vsel %vm8149, %v7975, %v8173
      %v8198 = vsel %vm8150, %v8024, %v8174
      %v8199 = vsel %vm8151, %v8026, %v8175
      %v8200 = vsel %vm8152, %v8075, %v8176
      %v8201 = vsel %vm8153, %v8077, %v8177
      %v8202 = vsel %vm8154, %v8126, %v8178
      %v8203 = vsel %vm8155, %v8128, %v8179
      %v8204 = vpack.c.bf16 %v8188, %v8180
      %v8205 = vpack.c.bf16 %v8189, %v8181
      %v8206 = vpack.c.bf16 %v8190, %v8182
      %v8207 = vpack.c.bf16 %v8191, %v8183
      %v8208 = vpack.c.bf16 %v8192, %v8184
      %v8209 = vpack.c.bf16 %v8193, %v8185
      %v8210 = vpack.c.bf16 %v8194, %v8186
      %v8211 = vpack.c.bf16 %v8195, %v8187
      %v8212 = vpack.c.bf16 %v8196, %v8196
      %v8213 = vpack.c.bf16 %v8197, %v8197
      %v8214 = vpack.c.bf16 %v8198, %v8198
      %v8215 = vpack.c.bf16 %v8199, %v8199
      %v8216 = vpack.c.bf16 %v8200, %v8200
      %v8217 = vpack.c.bf16 %v8201, %v8201
      %v8218 = vpack.c.bf16 %v8202, %v8202
      %v8219 = vpack.c.bf16 %v8203, %v8203
      %8220 = vmatprep.subr.bf16.mxu0 0
      %8221 = vmatpush1.bf16.msra.mxu0 %v3700
      %8222 = vmatprep.subr.bf16.mxu0 0
      %8223 = vmatpush1.bf16.msra.mxu0 %v3699
      %8224 = vmatprep.subr.bf16.mxu0 0
      %8225 = vmatpush1.bf16.msra.mxu0 %v3698
      %8226 = vmatprep.subr.bf16.mxu0 0
      %8227 = vmatpush1.bf16.msra.mxu0 %v3697
      %8228 = vmatprep.subr.bf16.mxu0 0
      %8229 = vmatpush1.bf16.msra.mxu0 %v3696
      %8230 = vmatprep.subr.bf16.mxu0 0
      %8231 = vmatpush1.bf16.msra.mxu0 %v3695
      %8232 = vmatprep.subr.bf16.mxu0 0
      %8233 = vmatpush1.bf16.msra.mxu0 %v3694
      %8234 = vmatprep.subr.bf16.mxu0 0
      %8235 = vmatpush1.bf16.msra.mxu0 %v3693
      %8236 = vmatprep.subr.bf16.mxu0 0
      %8237 = vmatpush2.bf16.msra.mxu0 %v3708
      %8238 = vmatprep.subr.bf16.mxu0 0
      %8239 = vmatpush2.bf16.msra.mxu0 %v3707
      %8240 = vmatprep.subr.bf16.mxu0 0
      %8241 = vmatpush2.bf16.msra.mxu0 %v3706
      %8242 = vmatprep.subr.bf16.mxu0 0
      %8243 = vmatpush2.bf16.msra.mxu0 %v3705
      %8244 = vmatprep.subr.bf16.mxu0 0
      %8245 = vmatpush2.bf16.msra.mxu0 %v3704
      %8246 = vmatprep.subr.bf16.mxu0 0
      %8247 = vmatpush2.bf16.msra.mxu0 %v3703
      %8248 = vmatprep.subr.bf16.mxu0 0
      %8249 = vmatpush2.bf16.msra.mxu0 %v3702
      %8250 = vmatprep.subr.bf16.mxu0 0
      %8251 = vmatpush2.bf16.msra.mxu0 %v3701
      %8252 = vmatprep.mubr.bf16.mxu0 %v8205
      %8253 = vmatmul.mubr.bf16.gmra.mxu0 %v8204
      %v8254 = vpop.f32.mrf.mxu0
      %v8255 = vadd.f32 0.0, %v8254
      %v8256 = vpop.f32.mrf.mxu0
      %v8257 = vpop.f32.mrf.mxu0
      %v8258 = vadd.f32 0.0, %v8257
      %v8259 = vpop.f32.mrf.mxu0
      %8260 = vmatprep.mubr.bf16.mxu0 %v8213
      %8261 = vmatmul.mubr.bf16.gmra.mxu0 %v8212
      %v8262 = vpop.f32.mrf.mxu0
      %v8263 = vadd.f32 0.0, %v8262
      %v8264 = vpop.f32.mrf.mxu0
      %v8265 = vpop.f32.mrf.mxu0
      %v8266 = vpop.f32.mrf.mxu0
      %8267 = vdwg.mxu0
      %8268 = vmatprep.subr.bf16.mxu0 0
      %8269 = vmatpush1.bf16.msra.mxu0 %v3716
      %8270 = vmatprep.subr.bf16.mxu0 0
      %8271 = vmatpush1.bf16.msra.mxu0 %v3715
      %8272 = vmatprep.subr.bf16.mxu0 0
      %8273 = vmatpush1.bf16.msra.mxu0 %v3714
      %8274 = vmatprep.subr.bf16.mxu0 0
      %8275 = vmatpush1.bf16.msra.mxu0 %v3713
      %8276 = vmatprep.subr.bf16.mxu0 0
      %8277 = vmatpush1.bf16.msra.mxu0 %v3712
      %8278 = vmatprep.subr.bf16.mxu0 0
      %8279 = vmatpush1.bf16.msra.mxu0 %v3711
      %8280 = vmatprep.subr.bf16.mxu0 0
      %8281 = vmatpush1.bf16.msra.mxu0 %v3710
      %8282 = vmatprep.subr.bf16.mxu0 0
      %8283 = vmatpush1.bf16.msra.mxu0 %v3709
      %8284 = vmatprep.subr.bf16.mxu0 0
      %8285 = vmatpush2.bf16.msra.mxu0 %v3724
      %8286 = vmatprep.subr.bf16.mxu0 0
      %8287 = vmatpush2.bf16.msra.mxu0 %v3723
      %8288 = vmatprep.subr.bf16.mxu0 0
      %8289 = vmatpush2.bf16.msra.mxu0 %v3722
      %8290 = vmatprep.subr.bf16.mxu0 0
      %8291 = vmatpush2.bf16.msra.mxu0 %v3721
      %8292 = vmatprep.subr.bf16.mxu0 0
      %8293 = vmatpush2.bf16.msra.mxu0 %v3720
      %8294 = vmatprep.subr.bf16.mxu0 0
      %8295 = vmatpush2.bf16.msra.mxu0 %v3719
      %8296 = vmatprep.subr.bf16.mxu0 0
      %8297 = vmatpush2.bf16.msra.mxu0 %v3718
      %8298 = vmatprep.subr.bf16.mxu0 0
      %8299 = vmatpush2.bf16.msra.mxu0 %v3717
      %8300 = vmatprep.mubr.bf16.mxu0 %v8207
      %8301 = vmatmul.mubr.bf16.gmra.mxu0 %v8206
      %v8302 = vpop.f32.mrf.mxu0
      %v8303 = vadd.f32 %v8255, %v8302
      %v8304 = vpop.f32.mrf.mxu0
      %v8305 = vpop.f32.mrf.mxu0
      %v8306 = vadd.f32 %v8258, %v8305
      %v8307 = vpop.f32.mrf.mxu0
      %8308 = vmatprep.mubr.bf16.mxu0 %v8215
      %8309 = vmatmul.mubr.bf16.gmra.mxu0 %v8214
      %v8310 = vpop.f32.mrf.mxu0
      %v8311 = vadd.f32 %v8263, %v8310
      %v8312 = vpop.f32.mrf.mxu0
      %v8313 = vpop.f32.mrf.mxu0
      %v8314 = vpop.f32.mrf.mxu0
      %8315 = vdwg.mxu0
      %8316 = vmatprep.subr.bf16.mxu0 0
      %8317 = vmatpush1.bf16.msra.mxu0 %v3732
      %8318 = vmatprep.subr.bf16.mxu0 0
      %8319 = vmatpush1.bf16.msra.mxu0 %v3731
      %8320 = vmatprep.subr.bf16.mxu0 0
      %8321 = vmatpush1.bf16.msra.mxu0 %v3730
      %8322 = vmatprep.subr.bf16.mxu0 0
      %8323 = vmatpush1.bf16.msra.mxu0 %v3729
      %8324 = vmatprep.subr.bf16.mxu0 0
      %8325 = vmatpush1.bf16.msra.mxu0 %v3728
      %8326 = vmatprep.subr.bf16.mxu0 0
      %8327 = vmatpush1.bf16.msra.mxu0 %v3727
      %8328 = vmatprep.subr.bf16.mxu0 0
      %8329 = vmatpush1.bf16.msra.mxu0 %v3726
      %8330 = vmatprep.subr.bf16.mxu0 0
      %8331 = vmatpush1.bf16.msra.mxu0 %v3725
      %8332 = vmatprep.subr.bf16.mxu0 0
      %8333 = vmatpush2.bf16.msra.mxu0 %v3740
      %8334 = vmatprep.subr.bf16.mxu0 0
      %8335 = vmatpush2.bf16.msra.mxu0 %v3739
      %8336 = vmatprep.subr.bf16.mxu0 0
      %8337 = vmatpush2.bf16.msra.mxu0 %v3738
      %8338 = vmatprep.subr.bf16.mxu0 0
      %8339 = vmatpush2.bf16.msra.mxu0 %v3737
      %8340 = vmatprep.subr.bf16.mxu0 0
      %8341 = vmatpush2.bf16.msra.mxu0 %v3736
      %8342 = vmatprep.subr.bf16.mxu0 0
      %8343 = vmatpush2.bf16.msra.mxu0 %v3735
      %8344 = vmatprep.subr.bf16.mxu0 0
      %8345 = vmatpush2.bf16.msra.mxu0 %v3734
      %8346 = vmatprep.subr.bf16.mxu0 0
      %8347 = vmatpush2.bf16.msra.mxu0 %v3733
      %8348 = vmatprep.mubr.bf16.mxu0 %v8209
      %8349 = vmatmul.mubr.bf16.gmra.mxu0 %v8208
      %v8350 = vpop.f32.mrf.mxu0
      %v8351 = vadd.f32 %v8303, %v8350
      %v8352 = vpop.f32.mrf.mxu0
      %v8353 = vpop.f32.mrf.mxu0
      %v8354 = vadd.f32 %v8306, %v8353
      %v8355 = vpop.f32.mrf.mxu0
      %8356 = vmatprep.mubr.bf16.mxu0 %v8217
      %8357 = vmatmul.mubr.bf16.gmra.mxu0 %v8216
      %v8358 = vpop.f32.mrf.mxu0
      %v8359 = vadd.f32 %v8311, %v8358
      %v8360 = vpop.f32.mrf.mxu0
      %v8361 = vpop.f32.mrf.mxu0
      %v8362 = vpop.f32.mrf.mxu0
      %8363 = vdwg.mxu0
      %8364 = vmatprep.subr.bf16.mxu0 0
      %8365 = vmatpush1.bf16.msra.mxu0 %v3748
      %8366 = vmatprep.subr.bf16.mxu0 0
      %8367 = vmatpush1.bf16.msra.mxu0 %v3747
      %8368 = vmatprep.subr.bf16.mxu0 0
      %8369 = vmatpush1.bf16.msra.mxu0 %v3746
      %8370 = vmatprep.subr.bf16.mxu0 0
      %8371 = vmatpush1.bf16.msra.mxu0 %v3745
      %8372 = vmatprep.subr.bf16.mxu0 0
      %8373 = vmatpush1.bf16.msra.mxu0 %v3744
      %8374 = vmatprep.subr.bf16.mxu0 0
      %8375 = vmatpush1.bf16.msra.mxu0 %v3743
      %8376 = vmatprep.subr.bf16.mxu0 0
      %8377 = vmatpush1.bf16.msra.mxu0 %v3742
      %8378 = vmatprep.subr.bf16.mxu0 0
      %8379 = vmatpush1.bf16.msra.mxu0 %v3741
      %8380 = vmatprep.subr.bf16.mxu0 0
      %8381 = vmatpush2.bf16.msra.mxu0 %v3756
      %8382 = vmatprep.subr.bf16.mxu0 0
      %8383 = vmatpush2.bf16.msra.mxu0 %v3755
      %8384 = vmatprep.subr.bf16.mxu0 0
      %8385 = vmatpush2.bf16.msra.mxu0 %v3754
      %8386 = vmatprep.subr.bf16.mxu0 0
      %8387 = vmatpush2.bf16.msra.mxu0 %v3753
      %8388 = vmatprep.subr.bf16.mxu0 0
      %8389 = vmatpush2.bf16.msra.mxu0 %v3752
      %8390 = vmatprep.subr.bf16.mxu0 0
      %8391 = vmatpush2.bf16.msra.mxu0 %v3751
      %8392 = vmatprep.subr.bf16.mxu0 0
      %8393 = vmatpush2.bf16.msra.mxu0 %v3750
      %8394 = vmatprep.subr.bf16.mxu0 0
      %8395 = vmatpush2.bf16.msra.mxu0 %v3749
      %8396 = vmatprep.mubr.bf16.mxu0 %v8211
      %8397 = vmatmul.mubr.bf16.gmra.mxu0 %v8210
      %v8398 = vpop.f32.mrf.mxu0
      %v8399 = vadd.f32 %v8351, %v8398
      %v8400 = vpop.f32.mrf.mxu0
      %v8401 = vpop.f32.mrf.mxu0
      %v8402 = vadd.f32 %v8354, %v8401
      %v8403 = vpop.f32.mrf.mxu0
      %8404 = vmatprep.mubr.bf16.mxu0 %v8219
      %8405 = vmatmul.mubr.bf16.gmra.mxu0 %v8218
      %v8406 = vpop.f32.mrf.mxu0
      %v8407 = vadd.f32 %v8359, %v8406
      %v8408 = vpop.f32.mrf.mxu0
      %v8409 = vpop.f32.mrf.mxu0
      %v8410 = vpop.f32.mrf.mxu0
      %8411 = vdwg.mxu0
      %v8412 = vld [vmem:[%s17] sm:$0x3]
      %v8413 = vpack.c.bf16 %v8402, %v8399
      %v8414 = vpack.c.bf16 %v8407, %v8407
      %v8415 = vld [vmem:[%s18] sm:$0xf]
      %8417 = vset.pattern.permute.xlu0 0
      %8418 = vperm.xlu0 %8417, %v8415
      %v8419 = vpop.permute.xlu0 %8418
      %v8422 = vsel %vm4022, %v8412, 0
      %v8425 = vsel %vm1401, %v8414, 0
      %8427 = vmatprep.subr.bf16.mxu0 0
      %8428 = vmatpush1.bf16.msra.mxu0 0
      %8429 = vmatprep.subr.bf16.mxu0 0
      %8430 = vmatpush1.bf16.msra.mxu0 0
      %8431 = vmatprep.subr.bf16.mxu0 0
      %8432 = vmatpush1.bf16.msra.mxu0 0
      %8433 = vmatprep.subr.bf16.mxu0 0
      %8434 = vmatpush1.bf16.msra.mxu0 0
      %8435 = vmatprep.subr.bf16.mxu0 0
      %8436 = vmatpush1.bf16.msra.mxu0 0
      %8437 = vmatprep.subr.bf16.mxu0 0
      %8438 = vmatpush1.bf16.msra.mxu0 0
      %8439 = vmatprep.subr.bf16.mxu0 0
      %8440 = vmatpush1.bf16.msra.mxu0 %v8425
      %8441 = vmatprep.subr.bf16.mxu0 0
      %8442 = vmatpush1.bf16.msra.mxu0 %v8413
      %8443 = vmatprep.subr.bf16.mxu0 0
      %8444 = vmatpush2.bf16.msra.mxu0 0
      %8445 = vmatprep.subr.bf16.mxu0 0
      %8446 = vmatpush2.bf16.msra.mxu0 0
      %8447 = vmatprep.subr.bf16.mxu0 0
      %8448 = vmatpush2.bf16.msra.mxu0 0
      %8449 = vmatprep.subr.bf16.mxu0 0
      %8450 = vmatpush2.bf16.msra.mxu0 0
      %8451 = vmatprep.subr.bf16.mxu0 0
      %8452 = vmatpush2.bf16.msra.mxu0 0
      %8453 = vmatprep.subr.bf16.mxu0 0
      %8454 = vmatpush2.bf16.msra.mxu0 0
      %8455 = vmatprep.subr.bf16.mxu0 0
      %8456 = vmatpush2.bf16.msra.mxu0 0
      %8457 = vmatprep.subr.bf16.mxu0 0
      %8458 = vmatpush2.bf16.msra.mxu0 0
      %8459 = vmatprep.mubr.bf16.mxu0 0
      %8460 = vmatmul.mubr.bf16.gmra.mxu0 %v8422
      %v8461 = vpop.f32.mrf.mxu0
      %v8462 = vadd.f32 %v8419, %v8461
      %v8463 = vpop.f32.mrf.mxu0
      %v8464 = vpop.f32.mrf.mxu0
      %v8465 = vpop.f32.mrf.mxu0
      %8466 = vdwg.mxu0
      %vm8467 = vcmp.gt.f32.partialorder %v8462, 0.0
      %v8468 = vmul.f32 %v8462, 0.2
      %v8469 = vsel %vm8467, %v8462, %v8468
      %v8470 = vmul.f32 %v8469, %v4072
      %v8471 = vpack.c.bf16 %v8470, %v8470
      %v8473 = vsel %vm4339, %v8471, 0
      %8475 = vmatprep.subr.bf16.mxu0 0
      %8476 = vmatpush1.bf16.msra.mxu0 0
      %8477 = vmatprep.subr.bf16.mxu0 0
      %8478 = vmatpush1.bf16.msra.mxu0 0
      %8479 = vmatprep.subr.bf16.mxu0 %v4350
      %8480 = vmatpush1.bf16.msra.mxu0 %v4347
      %8481 = vmatprep.subr.bf16.mxu0 %v4284
      %8482 = vmatpush1.bf16.msra.mxu0 %v4283
      %8483 = vmatprep.subr.bf16.mxu0 %v4276
      %8484 = vmatpush1.bf16.msra.mxu0 %v4275
      %8485 = vmatprep.subr.bf16.mxu0 %v4268
      %8486 = vmatpush1.bf16.msra.mxu0 %v4267
      %8487 = vmatprep.subr.bf16.mxu0 %v4260
      %8488 = vmatpush1.bf16.msra.mxu0 %v4259
      %8489 = vmatprep.subr.bf16.mxu0 %v4252
      %8490 = vmatpush1.bf16.msra.mxu0 %v4251
      %8491 = vmatprep.subr.bf16.mxu0 0
      %8492 = vmatpush2.bf16.msra.mxu0 0
      %8493 = vmatprep.subr.bf16.mxu0 0
      %8494 = vmatpush2.bf16.msra.mxu0 0
      %8495 = vmatprep.subr.bf16.mxu0 0
      %8496 = vmatpush2.bf16.msra.mxu0 0
      %8497 = vmatprep.subr.bf16.mxu0 0
      %8498 = vmatpush2.bf16.msra.mxu0 0
      %8499 = vmatprep.subr.bf16.mxu0 0
      %8500 = vmatpush2.bf16.msra.mxu0 0
      %8501 = vmatprep.subr.bf16.mxu0 0
      %8502 = vmatpush2.bf16.msra.mxu0 0
      %8503 = vmatprep.subr.bf16.mxu0 0
      %8504 = vmatpush2.bf16.msra.mxu0 0
      %8505 = vmatprep.subr.bf16.mxu0 0
      %8506 = vmatpush2.bf16.msra.mxu0 0
      %8507 = vmatprep.mubr.bf16.mxu0 0
      %8508 = vmatmul.mubr.bf16.gmra.mxu0 %v8473
      %v8509 = vpop.f32.mrf.mxu0
      %v8510 = vadd.f32 0.0, %v8509
      %v8511 = vpop.f32.mrf.mxu0
      %v8512 = vadd.f32 0.0, %v8511
      %v8513 = vpop.f32.mrf.mxu0
      %v8514 = vpop.f32.mrf.mxu0
      %8515 = vdwg.mxu0
      %8516 = vmatprep.subr.bf16.mxu0 0
      %8517 = vmatpush1.bf16.msra.mxu0 0
      %8518 = vmatprep.subr.bf16.mxu0 0
      %8519 = vmatpush1.bf16.msra.mxu0 0
      %8520 = vmatprep.subr.bf16.mxu0 %v4356
      %8521 = vmatpush1.bf16.msra.mxu0 %v4353
      %8522 = vmatprep.subr.bf16.mxu0 %v4286
      %8523 = vmatpush1.bf16.msra.mxu0 %v4285
      %8524 = vmatprep.subr.bf16.mxu0 %v4278
      %8525 = vmatpush1.bf16.msra.mxu0 %v4277
      %8526 = vmatprep.subr.bf16.mxu0 %v4270
      %8527 = vmatpush1.bf16.msra.mxu0 %v4269
      %8528 = vmatprep.subr.bf16.mxu0 %v4262
      %8529 = vmatpush1.bf16.msra.mxu0 %v4261
      %8530 = vmatprep.subr.bf16.mxu0 %v4254
      %8531 = vmatpush1.bf16.msra.mxu0 %v4253
      %8532 = vmatprep.subr.bf16.mxu0 0
      %8533 = vmatpush2.bf16.msra.mxu0 0
      %8534 = vmatprep.subr.bf16.mxu0 0
      %8535 = vmatpush2.bf16.msra.mxu0 0
      %8536 = vmatprep.subr.bf16.mxu0 0
      %8537 = vmatpush2.bf16.msra.mxu0 0
      %8538 = vmatprep.subr.bf16.mxu0 0
      %8539 = vmatpush2.bf16.msra.mxu0 0
      %8540 = vmatprep.subr.bf16.mxu0 0
      %8541 = vmatpush2.bf16.msra.mxu0 0
      %8542 = vmatprep.subr.bf16.mxu0 0
      %8543 = vmatpush2.bf16.msra.mxu0 0
      %8544 = vmatprep.subr.bf16.mxu0 0
      %8545 = vmatpush2.bf16.msra.mxu0 0
      %8546 = vmatprep.subr.bf16.mxu0 0
      %8547 = vmatpush2.bf16.msra.mxu0 0
      %8548 = vmatprep.mubr.bf16.mxu0 0
      %8549 = vmatmul.mubr.bf16.gmra.mxu0 %v8473
      %v8550 = vpop.f32.mrf.mxu0
      %v8551 = vadd.f32 0.0, %v8550
      %v8552 = vpop.f32.mrf.mxu0
      %v8553 = vadd.f32 0.0, %v8552
      %v8554 = vpop.f32.mrf.mxu0
      %v8555 = vpop.f32.mrf.mxu0
      %8556 = vdwg.mxu0
      %8557 = vmatprep.subr.bf16.mxu0 0
      %8558 = vmatpush1.bf16.msra.mxu0 0
      %8559 = vmatprep.subr.bf16.mxu0 0
      %8560 = vmatpush1.bf16.msra.mxu0 0
      %8561 = vmatprep.subr.bf16.mxu0 %v4362
      %8562 = vmatpush1.bf16.msra.mxu0 %v4359
      %8563 = vmatprep.subr.bf16.mxu0 %v4288
      %8564 = vmatpush1.bf16.msra.mxu0 %v4287
      %8565 = vmatprep.subr.bf16.mxu0 %v4280
      %8566 = vmatpush1.bf16.msra.mxu0 %v4279
      %8567 = vmatprep.subr.bf16.mxu0 %v4272
      %8568 = vmatpush1.bf16.msra.mxu0 %v4271
      %8569 = vmatprep.subr.bf16.mxu0 %v4264
      %8570 = vmatpush1.bf16.msra.mxu0 %v4263
      %8571 = vmatprep.subr.bf16.mxu0 %v4256
      %8572 = vmatpush1.bf16.msra.mxu0 %v4255
      %8573 = vmatprep.subr.bf16.mxu0 0
      %8574 = vmatpush2.bf16.msra.mxu0 0
      %8575 = vmatprep.subr.bf16.mxu0 0
      %8576 = vmatpush2.bf16.msra.mxu0 0
      %8577 = vmatprep.subr.bf16.mxu0 0
      %8578 = vmatpush2.bf16.msra.mxu0 0
      %8579 = vmatprep.subr.bf16.mxu0 0
      %8580 = vmatpush2.bf16.msra.mxu0 0
      %8581 = vmatprep.subr.bf16.mxu0 0
      %8582 = vmatpush2.bf16.msra.mxu0 0
      %8583 = vmatprep.subr.bf16.mxu0 0
      %8584 = vmatpush2.bf16.msra.mxu0 0
      %8585 = vmatprep.subr.bf16.mxu0 0
      %8586 = vmatpush2.bf16.msra.mxu0 0
      %8587 = vmatprep.subr.bf16.mxu0 0
      %8588 = vmatpush2.bf16.msra.mxu0 0
      %8589 = vmatprep.mubr.bf16.mxu0 0
      %8590 = vmatmul.mubr.bf16.gmra.mxu0 %v8473
      %v8591 = vpop.f32.mrf.mxu0
      %v8592 = vadd.f32 0.0, %v8591
      %v8593 = vpop.f32.mrf.mxu0
      %v8594 = vadd.f32 0.0, %v8593
      %v8595 = vpop.f32.mrf.mxu0
      %v8596 = vpop.f32.mrf.mxu0
      %8597 = vdwg.mxu0
      %8598 = vmatprep.subr.bf16.mxu0 0
      %8599 = vmatpush1.bf16.msra.mxu0 0
      %8600 = vmatprep.subr.bf16.mxu0 0
      %8601 = vmatpush1.bf16.msra.mxu0 0
      %8602 = vmatprep.subr.bf16.mxu0 %v4368
      %8603 = vmatpush1.bf16.msra.mxu0 %v4365
      %8604 = vmatprep.subr.bf16.mxu0 %v4290
      %8605 = vmatpush1.bf16.msra.mxu0 %v4289
      %8606 = vmatprep.subr.bf16.mxu0 %v4282
      %8607 = vmatpush1.bf16.msra.mxu0 %v4281
      %8608 = vmatprep.subr.bf16.mxu0 %v4274
      %8609 = vmatpush1.bf16.msra.mxu0 %v4273
      %8610 = vmatprep.subr.bf16.mxu0 %v4266
      %8611 = vmatpush1.bf16.msra.mxu0 %v4265
      %8612 = vmatprep.subr.bf16.mxu0 %v4258
      %8613 = vmatpush1.bf16.msra.mxu0 %v4257
      %8614 = vmatprep.subr.bf16.mxu0 0
      %8615 = vmatpush2.bf16.msra.mxu0 0
      %8616 = vmatprep.subr.bf16.mxu0 0
      %8617 = vmatpush2.bf16.msra.mxu0 0
      %8618 = vmatprep.subr.bf16.mxu0 0
      %8619 = vmatpush2.bf16.msra.mxu0 0
      %8620 = vmatprep.subr.bf16.mxu0 0
      %8621 = vmatpush2.bf16.msra.mxu0 0
      %8622 = vmatprep.subr.bf16.mxu0 0
      %8623 = vmatpush2.bf16.msra.mxu0 0
      %8624 = vmatprep.subr.bf16.mxu0 0
      %8625 = vmatpush2.bf16.msra.mxu0 0
      %8626 = vmatprep.subr.bf16.mxu0 0
      %8627 = vmatpush2.bf16.msra.mxu0 0
      %8628 = vmatprep.subr.bf16.mxu0 0
      %8629 = vmatpush2.bf16.msra.mxu0 0
      %8630 = vmatprep.mubr.bf16.mxu0 0
      %8631 = vmatmul.mubr.bf16.gmra.mxu0 %v8473
      %v8632 = vpop.f32.mrf.mxu0
      %v8633 = vadd.f32 0.0, %v8632
      %v8634 = vpop.f32.mrf.mxu0
      %v8635 = vadd.f32 0.0, %v8634
      %v8636 = vpop.f32.mrf.mxu0
      %v8637 = vpop.f32.mrf.mxu0
      %8638 = vdwg.mxu0
      %v8663 = vrot.slane %v8180, 4
      %v8664 = vrot.slane %v8181, 4
      %v8665 = vrot.slane %v8182, 4
      %v8666 = vrot.slane %v8183, 4
      %v8667 = vrot.slane %v8184, 4
      %v8668 = vrot.slane %v8185, 4
      %v8669 = vrot.slane %v8186, 4
      %v8670 = vrot.slane %v8187, 4
      %v8671 = vrot.slane %v8188, 4
      %v8672 = vsel %vm1308, %v8663, %v8671
      %v8673 = vrot.slane %v8189, 4
      %v8674 = vsel %vm1308, %v8664, %v8673
      %v8675 = vrot.slane %v8190, 4
      %v8676 = vsel %vm1308, %v8665, %v8675
      %v8677 = vrot.slane %v8191, 4
      %v8678 = vsel %vm1308, %v8666, %v8677
      %v8679 = vrot.slane %v8192, 4
      %v8680 = vsel %vm1308, %v8667, %v8679
      %v8681 = vrot.slane %v8193, 4
      %v8682 = vsel %vm1308, %v8668, %v8681
      %v8683 = vrot.slane %v8194, 4
      %v8684 = vsel %vm1308, %v8669, %v8683
      %v8685 = vrot.slane %v8195, 4
      %v8686 = vsel %vm1308, %v8670, %v8685
      %v8687 = vrot.slane %v8196, 4
      %v8688 = vsel %vm1308, %v8671, %v8687
      %v8689 = vrot.slane %v8197, 4
      %v8690 = vsel %vm1308, %v8673, %v8689
      %v8691 = vrot.slane %v8198, 4
      %v8692 = vsel %vm1308, %v8675, %v8691
      %v8693 = vrot.slane %v8199, 4
      %v8694 = vsel %vm1308, %v8677, %v8693
      %v8695 = vrot.slane %v8200, 4
      %v8696 = vsel %vm1308, %v8679, %v8695
      %v8697 = vrot.slane %v8201, 4
      %v8698 = vsel %vm1308, %v8681, %v8697
      %v8699 = vrot.slane %v8202, 4
      %v8700 = vsel %vm1308, %v8683, %v8699
      %v8701 = vrot.slane %v8203, 4
      %v8702 = vsel %vm1308, %v8685, %v8701
      %v8727 = vsel %vm1308, %v8510, %v8663
      %v8728 = vsel %vm1308, %v8512, %v8664
      %v8729 = vsel %vm1308, %v8551, %v8665
      %v8730 = vsel %vm1308, %v8553, %v8666
      %v8731 = vsel %vm1308, %v8592, %v8667
      %v8732 = vsel %vm1308, %v8594, %v8668
      %v8733 = vsel %vm1308, %v8633, %v8669
      %v8734 = vsel %vm1308, %v8635, %v8670
      %8735 = vrot.lane.b32.xlu0 %v8727, 33
      %v8736 = vpop.permute.xlu0 %8735
      %8737 = vrot.lane.b32.xlu0 %v8672, 33
      %v8738 = vpop.permute.xlu0 %8737
      %8739 = vrot.lane.b32.xlu0 %v8688, 33
      %v8740 = vpop.permute.xlu0 %8739
      %8741 = vrot.lane.b32.xlu0 %v8728, 33
      %v8742 = vpop.permute.xlu0 %8741
      %8743 = vrot.lane.b32.xlu0 %v8674, 33
      %v8744 = vpop.permute.xlu0 %8743
      %8745 = vrot.lane.b32.xlu0 %v8690, 33
      %v8746 = vpop.permute.xlu0 %8745
      %8747 = vrot.lane.b32.xlu0 %v8729, 33
      %v8748 = vpop.permute.xlu0 %8747
      %8749 = vrot.lane.b32.xlu0 %v8676, 33
      %v8750 = vpop.permute.xlu0 %8749
      %8751 = vrot.lane.b32.xlu0 %v8692, 33
      %v8752 = vpop.permute.xlu0 %8751
      %8753 = vrot.lane.b32.xlu0 %v8730, 33
      %v8754 = vpop.permute.xlu0 %8753
      %8755 = vrot.lane.b32.xlu0 %v8678, 33
      %v8756 = vpop.permute.xlu0 %8755
      %8757 = vrot.lane.b32.xlu0 %v8694, 33
      %v8758 = vpop.permute.xlu0 %8757
      %8759 = vrot.lane.b32.xlu0 %v8731, 33
      %v8760 = vpop.permute.xlu0 %8759
      %8761 = vrot.lane.b32.xlu0 %v8680, 33
      %v8762 = vpop.permute.xlu0 %8761
      %8763 = vrot.lane.b32.xlu0 %v8696, 33
      %v8764 = vpop.permute.xlu0 %8763
      %8765 = vrot.lane.b32.xlu0 %v8732, 33
      %v8766 = vpop.permute.xlu0 %8765
      %8767 = vrot.lane.b32.xlu0 %v8682, 33
      %v8768 = vpop.permute.xlu0 %8767
      %8769 = vrot.lane.b32.xlu0 %v8698, 33
      %v8770 = vpop.permute.xlu0 %8769
      %8771 = vrot.lane.b32.xlu0 %v8733, 33
      %v8772 = vpop.permute.xlu0 %8771
      %8773 = vrot.lane.b32.xlu0 %v8684, 33
      %v8774 = vpop.permute.xlu0 %8773
      %8775 = vrot.lane.b32.xlu0 %v8700, 33
      %v8776 = vpop.permute.xlu0 %8775
      %8777 = vrot.lane.b32.xlu0 %v8734, 33
      %v8778 = vpop.permute.xlu0 %8777
      %8779 = vrot.lane.b32.xlu0 %v8686, 33
      %v8780 = vpop.permute.xlu0 %8779
      %8781 = vrot.lane.b32.xlu0 %v8702, 33
      %v8782 = vpop.permute.xlu0 %8781
      %v8783 = vsel %vm708, %v8772, %v8778
      %v8784 = vsel %vm708, %v8774, %v8780
      %v8785 = vsel %vm708, %v8776, %v8782
      %v8786 = vsel %vm708, %v8766, %v8772
      %v8787 = vsel %vm708, %v8768, %v8774
      %v8788 = vsel %vm708, %v8770, %v8776
      %v8789 = vsel %vm708, %v8760, %v8766
      %v8790 = vsel %vm708, %v8762, %v8768
      %v8791 = vsel %vm708, %v8764, %v8770
      %v8792 = vsel %vm708, %v8754, %v8760
      %v8793 = vsel %vm708, %v8756, %v8762
      %v8794 = vsel %vm708, %v8758, %v8764
      %v8795 = vsel %vm708, %v8748, %v8754
      %v8796 = vsel %vm708, %v8750, %v8756
      %v8797 = vsel %vm708, %v8752, %v8758
      %v8798 = vsel %vm708, %v8742, %v8748
      %v8799 = vsel %vm708, %v8744, %v8750
      %v8800 = vsel %vm708, %v8746, %v8752
      %v8801 = vsel %vm708, %v8736, %v8742
      %v8802 = vsel %vm708, %v8738, %v8744
      %v8803 = vsel %vm708, %v8740, %v8746
      %v8804 = vsel %vm708, %v8778, %v8736
      %v8805 = vsel %vm708, %v8780, %v8738
      %v8806 = vsel %vm708, %v8782, %v8740
      %v8807 = vmul.f32 %v8804, %v720
      %v8808 = vmul.f32 %v8801, %v724
      %v8809 = vmul.f32 %v8798, %v728
      %v8810 = vmul.f32 %v8795, %v732
      %v8811 = vmul.f32 %v8792, %v736
      %v8812 = vmul.f32 %v8789, %v740
      %v8813 = vmul.f32 %v8786, %v744
      %v8814 = vmul.f32 %v8783, %v748
      %v8815 = vmul.f32 %v8805, %v720
      %v8816 = vmul.f32 %v8802, %v724
      %v8817 = vmul.f32 %v8799, %v728
      %v8818 = vmul.f32 %v8796, %v732
      %v8819 = vmul.f32 %v8793, %v736
      %v8820 = vmul.f32 %v8790, %v740
      %v8821 = vmul.f32 %v8787, %v744
      %v8822 = vmul.f32 %v8784, %v748
      %v8823 = vmul.f32 %v8806, %v720
      %v8824 = vmul.f32 %v8803, %v724
      %v8825 = vmul.f32 %v8800, %v728
      %v8826 = vmul.f32 %v8797, %v732
      %v8827 = vmul.f32 %v8794, %v736
      %v8828 = vmul.f32 %v8791, %v740
      %v8829 = vmul.f32 %v8788, %v744
      %v8830 = vmul.f32 %v8785, %v748
      %8831 = vrot.lane.b32.xlu0 %v8727, 32
      %v8832 = vpop.permute.xlu0 %8831
      %8833 = vrot.lane.b32.xlu0 %v8672, 32
      %v8834 = vpop.permute.xlu0 %8833
      %8835 = vrot.lane.b32.xlu0 %v8688, 32
      %v8836 = vpop.permute.xlu0 %8835
      %8837 = vrot.lane.b32.xlu0 %v8728, 32
      %v8838 = vpop.permute.xlu0 %8837
      %8839 = vrot.lane.b32.xlu0 %v8674, 32
      %v8840 = vpop.permute.xlu0 %8839
      %8841 = vrot.lane.b32.xlu0 %v8690, 32
      %v8842 = vpop.permute.xlu0 %8841
      %8843 = vrot.lane.b32.xlu0 %v8729, 32
      %v8844 = vpop.permute.xlu0 %8843
      %8845 = vrot.lane.b32.xlu0 %v8676, 32
      %v8846 = vpop.permute.xlu0 %8845
      %8847 = vrot.lane.b32.xlu0 %v8692, 32
      %v8848 = vpop.permute.xlu0 %8847
      %8849 = vrot.lane.b32.xlu0 %v8730, 32
      %v8850 = vpop.permute.xlu0 %8849
      %8851 = vrot.lane.b32.xlu0 %v8678, 32
      %v8852 = vpop.permute.xlu0 %8851
      %8853 = vrot.lane.b32.xlu0 %v8694, 32
      %v8854 = vpop.permute.xlu0 %8853
      %8855 = vrot.lane.b32.xlu0 %v8731, 32
      %v8856 = vpop.permute.xlu0 %8855
      %8857 = vrot.lane.b32.xlu0 %v8680, 32
      %v8858 = vpop.permute.xlu0 %8857
      %8859 = vrot.lane.b32.xlu0 %v8696, 32
      %v8860 = vpop.permute.xlu0 %8859
      %8861 = vrot.lane.b32.xlu0 %v8732, 32
      %v8862 = vpop.permute.xlu0 %8861
      %8863 = vrot.lane.b32.xlu0 %v8682, 32
      %v8864 = vpop.permute.xlu0 %8863
      %8865 = vrot.lane.b32.xlu0 %v8698, 32
      %v8866 = vpop.permute.xlu0 %8865
      %8867 = vrot.lane.b32.xlu0 %v8733, 32
      %v8868 = vpop.permute.xlu0 %8867
      %8869 = vrot.lane.b32.xlu0 %v8684, 32
      %v8870 = vpop.permute.xlu0 %8869
      %8871 = vrot.lane.b32.xlu0 %v8700, 32
      %v8872 = vpop.permute.xlu0 %8871
      %8873 = vrot.lane.b32.xlu0 %v8734, 32
      %v8874 = vpop.permute.xlu0 %8873
      %8875 = vrot.lane.b32.xlu0 %v8686, 32
      %v8876 = vpop.permute.xlu0 %8875
      %8877 = vrot.lane.b32.xlu0 %v8702, 32
      %v8878 = vpop.permute.xlu0 %8877
      %v8879 = vsel %vm773, %v8868, %v8874
      %v8880 = vsel %vm773, %v8870, %v8876
      %v8881 = vsel %vm773, %v8872, %v8878
      %v8882 = vsel %vm773, %v8862, %v8868
      %v8883 = vsel %vm773, %v8864, %v8870
      %v8884 = vsel %vm773, %v8866, %v8872
      %v8885 = vsel %vm773, %v8856, %v8862
      %v8886 = vsel %vm773, %v8858, %v8864
      %v8887 = vsel %vm773, %v8860, %v8866
      %v8888 = vsel %vm773, %v8850, %v8856
      %v8889 = vsel %vm773, %v8852, %v8858
      %v8890 = vsel %vm773, %v8854, %v8860
      %v8891 = vsel %vm773, %v8844, %v8850
      %v8892 = vsel %vm773, %v8846, %v8852
      %v8893 = vsel %vm773, %v8848, %v8854
      %v8894 = vsel %vm773, %v8838, %v8844
      %v8895 = vsel %vm773, %v8840, %v8846
      %v8896 = vsel %vm773, %v8842, %v8848
      %v8897 = vsel %vm773, %v8832, %v8838
      %v8898 = vsel %vm773, %v8834, %v8840
      %v8899 = vsel %vm773, %v8836, %v8842
      %v8900 = vsel %vm773, %v8874, %v8832
      %v8901 = vsel %vm773, %v8876, %v8834
      %v8902 = vsel %vm773, %v8878, %v8836
      %v8903 = vmul.f32 %v8900, %v785
      %v8904 = vmul.f32 %v8897, %v789
      %v8905 = vmul.f32 %v8894, %v793
      %v8906 = vmul.f32 %v8891, %v797
      %v8907 = vmul.f32 %v8888, %v801
      %v8908 = vmul.f32 %v8885, %v805
      %v8909 = vmul.f32 %v8882, %v809
      %v8910 = vmul.f32 %v8879, %v813
      %v8911 = vmul.f32 %v8901, %v785
      %v8912 = vmul.f32 %v8898, %v789
      %v8913 = vmul.f32 %v8895, %v793
      %v8914 = vmul.f32 %v8892, %v797
      %v8915 = vmul.f32 %v8889, %v801
      %v8916 = vmul.f32 %v8886, %v805
      %v8917 = vmul.f32 %v8883, %v809
      %v8918 = vmul.f32 %v8880, %v813
      %v8919 = vmul.f32 %v8902, %v785
      %v8920 = vmul.f32 %v8899, %v789
      %v8921 = vmul.f32 %v8896, %v793
      %v8922 = vmul.f32 %v8893, %v797
      %v8923 = vmul.f32 %v8890, %v801
      %v8924 = vmul.f32 %v8887, %v805
      %v8925 = vmul.f32 %v8884, %v809
      %v8926 = vmul.f32 %v8881, %v813
      %8927 = vrot.lane.b32.xlu0 %v8727, 31
      %v8928 = vpop.permute.xlu0 %8927
      %8929 = vrot.lane.b32.xlu0 %v8672, 31
      %v8930 = vpop.permute.xlu0 %8929
      %8931 = vrot.lane.b32.xlu0 %v8688, 31
      %v8932 = vpop.permute.xlu0 %8931
      %8933 = vrot.lane.b32.xlu0 %v8728, 31
      %v8934 = vpop.permute.xlu0 %8933
      %8935 = vrot.lane.b32.xlu0 %v8674, 31
      %v8936 = vpop.permute.xlu0 %8935
      %8937 = vrot.lane.b32.xlu0 %v8690, 31
      %v8938 = vpop.permute.xlu0 %8937
      %8939 = vrot.lane.b32.xlu0 %v8729, 31
      %v8940 = vpop.permute.xlu0 %8939
      %8941 = vrot.lane.b32.xlu0 %v8676, 31
      %v8942 = vpop.permute.xlu0 %8941
      %8943 = vrot.lane.b32.xlu0 %v8692, 31
      %v8944 = vpop.permute.xlu0 %8943
      %8945 = vrot.lane.b32.xlu0 %v8730, 31
      %v8946 = vpop.permute.xlu0 %8945
      %8947 = vrot.lane.b32.xlu0 %v8678, 31
      %v8948 = vpop.permute.xlu0 %8947
      %8949 = vrot.lane.b32.xlu0 %v8694, 31
      %v8950 = vpop.permute.xlu0 %8949
      %8951 = vrot.lane.b32.xlu0 %v8731, 31
      %v8952 = vpop.permute.xlu0 %8951
      %8953 = vrot.lane.b32.xlu0 %v8680, 31
      %v8954 = vpop.permute.xlu0 %8953
      %8955 = vrot.lane.b32.xlu0 %v8696, 31
      %v8956 = vpop.permute.xlu0 %8955
      %8957 = vrot.lane.b32.xlu0 %v8732, 31
      %v8958 = vpop.permute.xlu0 %8957
      %8959 = vrot.lane.b32.xlu0 %v8682, 31
      %v8960 = vpop.permute.xlu0 %8959
      %8961 = vrot.lane.b32.xlu0 %v8698, 31
      %v8962 = vpop.permute.xlu0 %8961
      %8963 = vrot.lane.b32.xlu0 %v8733, 31
      %v8964 = vpop.permute.xlu0 %8963
      %8965 = vrot.lane.b32.xlu0 %v8684, 31
      %v8966 = vpop.permute.xlu0 %8965
      %8967 = vrot.lane.b32.xlu0 %v8700, 31
      %v8968 = vpop.permute.xlu0 %8967
      %8969 = vrot.lane.b32.xlu0 %v8734, 31
      %v8970 = vpop.permute.xlu0 %8969
      %8971 = vrot.lane.b32.xlu0 %v8686, 31
      %v8972 = vpop.permute.xlu0 %8971
      %8973 = vrot.lane.b32.xlu0 %v8702, 31
      %v8974 = vpop.permute.xlu0 %8973
      %v8975 = vsel %vm838, %v8964, %v8970
      %v8976 = vsel %vm838, %v8966, %v8972
      %v8977 = vsel %vm838, %v8968, %v8974
      %v8978 = vsel %vm838, %v8958, %v8964
      %v8979 = vsel %vm838, %v8960, %v8966
      %v8980 = vsel %vm838, %v8962, %v8968
      %v8981 = vsel %vm838, %v8952, %v8958
      %v8982 = vsel %vm838, %v8954, %v8960
      %v8983 = vsel %vm838, %v8956, %v8962
      %v8984 = vsel %vm838, %v8946, %v8952
      %v8985 = vsel %vm838, %v8948, %v8954
      %v8986 = vsel %vm838, %v8950, %v8956
      %v8987 = vsel %vm838, %v8940, %v8946
      %v8988 = vsel %vm838, %v8942, %v8948
      %v8989 = vsel %vm838, %v8944, %v8950
      %v8990 = vsel %vm838, %v8934, %v8940
      %v8991 = vsel %vm838, %v8936, %v8942
      %v8992 = vsel %vm838, %v8938, %v8944
      %v8993 = vsel %vm838, %v8928, %v8934
      %v8994 = vsel %vm838, %v8930, %v8936
      %v8995 = vsel %vm838, %v8932, %v8938
      %v8996 = vsel %vm838, %v8970, %v8928
      %v8997 = vsel %vm838, %v8972, %v8930
      %v8998 = vsel %vm838, %v8974, %v8932
      %v8999 = vmul.f32 %v8996, %v850
      %v9000 = vmul.f32 %v8993, %v854
      %v9001 = vmul.f32 %v8990, %v858
      %v9002 = vmul.f32 %v8987, %v862
      %v9003 = vmul.f32 %v8984, %v866
      %v9004 = vmul.f32 %v8981, %v870
      %v9005 = vmul.f32 %v8978, %v874
      %v9006 = vmul.f32 %v8975, %v878
      %v9007 = vmul.f32 %v8997, %v850
      %v9008 = vmul.f32 %v8994, %v854
      %v9009 = vmul.f32 %v8991, %v858
      %v9010 = vmul.f32 %v8988, %v862
      %v9011 = vmul.f32 %v8985, %v866
      %v9012 = vmul.f32 %v8982, %v870
      %v9013 = vmul.f32 %v8979, %v874
      %v9014 = vmul.f32 %v8976, %v878
      %v9015 = vmul.f32 %v8998, %v850
      %v9016 = vmul.f32 %v8995, %v854
      %v9017 = vmul.f32 %v8992, %v858
      %v9018 = vmul.f32 %v8989, %v862
      %v9019 = vmul.f32 %v8986, %v866
      %v9020 = vmul.f32 %v8983, %v870
      %v9021 = vmul.f32 %v8980, %v874
      %v9022 = vmul.f32 %v8977, %v878
      %9023 = vrot.lane.b32.xlu0 %v8727, 1
      %v9024 = vpop.permute.xlu0 %9023
      %9025 = vrot.lane.b32.xlu0 %v8672, 1
      %v9026 = vpop.permute.xlu0 %9025
      %9027 = vrot.lane.b32.xlu0 %v8688, 1
      %v9028 = vpop.permute.xlu0 %9027
      %9029 = vrot.lane.b32.xlu0 %v8728, 1
      %v9030 = vpop.permute.xlu0 %9029
      %9031 = vrot.lane.b32.xlu0 %v8674, 1
      %v9032 = vpop.permute.xlu0 %9031
      %9033 = vrot.lane.b32.xlu0 %v8690, 1
      %v9034 = vpop.permute.xlu0 %9033
      %9035 = vrot.lane.b32.xlu0 %v8729, 1
      %v9036 = vpop.permute.xlu0 %9035
      %9037 = vrot.lane.b32.xlu0 %v8676, 1
      %v9038 = vpop.permute.xlu0 %9037
      %9039 = vrot.lane.b32.xlu0 %v8692, 1
      %v9040 = vpop.permute.xlu0 %9039
      %9041 = vrot.lane.b32.xlu0 %v8730, 1
      %v9042 = vpop.permute.xlu0 %9041
      %9043 = vrot.lane.b32.xlu0 %v8678, 1
      %v9044 = vpop.permute.xlu0 %9043
      %9045 = vrot.lane.b32.xlu0 %v8694, 1
      %v9046 = vpop.permute.xlu0 %9045
      %9047 = vrot.lane.b32.xlu0 %v8731, 1
      %v9048 = vpop.permute.xlu0 %9047
      %9049 = vrot.lane.b32.xlu0 %v8680, 1
      %v9050 = vpop.permute.xlu0 %9049
      %9051 = vrot.lane.b32.xlu0 %v8696, 1
      %v9052 = vpop.permute.xlu0 %9051
      %9053 = vrot.lane.b32.xlu0 %v8732, 1
      %v9054 = vpop.permute.xlu0 %9053
      %9055 = vrot.lane.b32.xlu0 %v8682, 1
      %v9056 = vpop.permute.xlu0 %9055
      %9057 = vrot.lane.b32.xlu0 %v8698, 1
      %v9058 = vpop.permute.xlu0 %9057
      %9059 = vrot.lane.b32.xlu0 %v8733, 1
      %v9060 = vpop.permute.xlu0 %9059
      %9061 = vrot.lane.b32.xlu0 %v8684, 1
      %v9062 = vpop.permute.xlu0 %9061
      %9063 = vrot.lane.b32.xlu0 %v8700, 1
      %v9064 = vpop.permute.xlu0 %9063
      %9065 = vrot.lane.b32.xlu0 %v8734, 1
      %v9066 = vpop.permute.xlu0 %9065
      %9067 = vrot.lane.b32.xlu0 %v8686, 1
      %v9068 = vpop.permute.xlu0 %9067
      %9069 = vrot.lane.b32.xlu0 %v8702, 1
      %v9070 = vpop.permute.xlu0 %9069
      %v9071 = vsel %vm903, %v9060, %v9066
      %v9072 = vsel %vm903, %v9062, %v9068
      %v9073 = vsel %vm903, %v9064, %v9070
      %v9074 = vsel %vm903, %v9054, %v9060
      %v9075 = vsel %vm903, %v9056, %v9062
      %v9076 = vsel %vm903, %v9058, %v9064
      %v9077 = vsel %vm903, %v9048, %v9054
      %v9078 = vsel %vm903, %v9050, %v9056
      %v9079 = vsel %vm903, %v9052, %v9058
      %v9080 = vsel %vm903, %v9042, %v9048
      %v9081 = vsel %vm903, %v9044, %v9050
      %v9082 = vsel %vm903, %v9046, %v9052
      %v9083 = vsel %vm903, %v9036, %v9042
      %v9084 = vsel %vm903, %v9038, %v9044
      %v9085 = vsel %vm903, %v9040, %v9046
      %v9086 = vsel %vm903, %v9030, %v9036
      %v9087 = vsel %vm903, %v9032, %v9038
      %v9088 = vsel %vm903, %v9034, %v9040
      %v9089 = vsel %vm903, %v9024, %v9030
      %v9090 = vsel %vm903, %v9026, %v9032
      %v9091 = vsel %vm903, %v9028, %v9034
      %v9092 = vsel %vm903, %v9066, %v9024
      %v9093 = vsel %vm903, %v9068, %v9026
      %v9094 = vsel %vm903, %v9070, %v9028
      %v9095 = vmul.f32 %v9092, %v915
      %v9096 = vmul.f32 %v9089, %v919
      %v9097 = vmul.f32 %v9086, %v923
      %v9098 = vmul.f32 %v9083, %v927
      %v9099 = vmul.f32 %v9080, %v931
      %v9100 = vmul.f32 %v9077, %v935
      %v9101 = vmul.f32 %v9074, %v939
      %v9102 = vmul.f32 %v9071, %v943
      %v9103 = vmul.f32 %v9093, %v915
      %v9104 = vmul.f32 %v9090, %v919
      %v9105 = vmul.f32 %v9087, %v923
      %v9106 = vmul.f32 %v9084, %v927
      %v9107 = vmul.f32 %v9081, %v931
      %v9108 = vmul.f32 %v9078, %v935
      %v9109 = vmul.f32 %v9075, %v939
      %v9110 = vmul.f32 %v9072, %v943
      %v9111 = vmul.f32 %v9094, %v915
      %v9112 = vmul.f32 %v9091, %v919
      %v9113 = vmul.f32 %v9088, %v923
      %v9114 = vmul.f32 %v9085, %v927
      %v9115 = vmul.f32 %v9082, %v931
      %v9116 = vmul.f32 %v9079, %v935
      %v9117 = vmul.f32 %v9076, %v939
      %v9118 = vmul.f32 %v9073, %v943
      %9119 = vrot.lane.b32.xlu0 %v8727, 127
      %v9120 = vpop.permute.xlu0 %9119
      %9121 = vrot.lane.b32.xlu0 %v8672, 127
      %v9122 = vpop.permute.xlu0 %9121
      %9123 = vrot.lane.b32.xlu0 %v8688, 127
      %v9124 = vpop.permute.xlu0 %9123
      %9125 = vrot.lane.b32.xlu0 %v8728, 127
      %v9126 = vpop.permute.xlu0 %9125
      %9127 = vrot.lane.b32.xlu0 %v8674, 127
      %v9128 = vpop.permute.xlu0 %9127
      %9129 = vrot.lane.b32.xlu0 %v8690, 127
      %v9130 = vpop.permute.xlu0 %9129
      %9131 = vrot.lane.b32.xlu0 %v8729, 127
      %v9132 = vpop.permute.xlu0 %9131
      %9133 = vrot.lane.b32.xlu0 %v8676, 127
      %v9134 = vpop.permute.xlu0 %9133
      %9135 = vrot.lane.b32.xlu0 %v8692, 127
      %v9136 = vpop.permute.xlu0 %9135
      %9137 = vrot.lane.b32.xlu0 %v8730, 127
      %v9138 = vpop.permute.xlu0 %9137
      %9139 = vrot.lane.b32.xlu0 %v8678, 127
      %v9140 = vpop.permute.xlu0 %9139
      %9141 = vrot.lane.b32.xlu0 %v8694, 127
      %v9142 = vpop.permute.xlu0 %9141
      %9143 = vrot.lane.b32.xlu0 %v8731, 127
      %v9144 = vpop.permute.xlu0 %9143
      %9145 = vrot.lane.b32.xlu0 %v8680, 127
      %v9146 = vpop.permute.xlu0 %9145
      %9147 = vrot.lane.b32.xlu0 %v8696, 127
      %v9148 = vpop.permute.xlu0 %9147
      %9149 = vrot.lane.b32.xlu0 %v8732, 127
      %v9150 = vpop.permute.xlu0 %9149
      %9151 = vrot.lane.b32.xlu0 %v8682, 127
      %v9152 = vpop.permute.xlu0 %9151
      %9153 = vrot.lane.b32.xlu0 %v8698, 127
      %v9154 = vpop.permute.xlu0 %9153
      %9155 = vrot.lane.b32.xlu0 %v8733, 127
      %v9156 = vpop.permute.xlu0 %9155
      %9157 = vrot.lane.b32.xlu0 %v8684, 127
      %v9158 = vpop.permute.xlu0 %9157
      %9159 = vrot.lane.b32.xlu0 %v8700, 127
      %v9160 = vpop.permute.xlu0 %9159
      %9161 = vrot.lane.b32.xlu0 %v8734, 127
      %v9162 = vpop.permute.xlu0 %9161
      %9163 = vrot.lane.b32.xlu0 %v8686, 127
      %v9164 = vpop.permute.xlu0 %9163
      %9165 = vrot.lane.b32.xlu0 %v8702, 127
      %v9166 = vpop.permute.xlu0 %9165
      %v9167 = vsel %vm968, %v9156, %v9162
      %v9168 = vsel %vm968, %v9158, %v9164
      %v9169 = vsel %vm968, %v9160, %v9166
      %v9170 = vsel %vm968, %v9150, %v9156
      %v9171 = vsel %vm968, %v9152, %v9158
      %v9172 = vsel %vm968, %v9154, %v9160
      %v9173 = vsel %vm968, %v9144, %v9150
      %v9174 = vsel %vm968, %v9146, %v9152
      %v9175 = vsel %vm968, %v9148, %v9154
      %v9176 = vsel %vm968, %v9138, %v9144
      %v9177 = vsel %vm968, %v9140, %v9146
      %v9178 = vsel %vm968, %v9142, %v9148
      %v9179 = vsel %vm968, %v9132, %v9138
      %v9180 = vsel %vm968, %v9134, %v9140
      %v9181 = vsel %vm968, %v9136, %v9142
      %v9182 = vsel %vm968, %v9126, %v9132
      %v9183 = vsel %vm968, %v9128, %v9134
      %v9184 = vsel %vm968, %v9130, %v9136
      %v9185 = vsel %vm968, %v9120, %v9126
      %v9186 = vsel %vm968, %v9122, %v9128
      %v9187 = vsel %vm968, %v9124, %v9130
      %v9188 = vsel %vm968, %v9162, %v9120
      %v9189 = vsel %vm968, %v9164, %v9122
      %v9190 = vsel %vm968, %v9166, %v9124
      %v9191 = vmul.f32 %v9185, %v980
      %v9192 = vmul.f32 %v9182, %v984
      %v9193 = vmul.f32 %v9179, %v988
      %v9194 = vmul.f32 %v9176, %v992
      %v9195 = vmul.f32 %v9173, %v996
      %v9196 = vmul.f32 %v9170, %v1000
      %v9197 = vmul.f32 %v9167, %v1004
      %v9198 = vmul.f32 %v9188, %v1008
      %v9199 = vmul.f32 %v9186, %v980
      %v9200 = vmul.f32 %v9183, %v984
      %v9201 = vmul.f32 %v9180, %v988
      %v9202 = vmul.f32 %v9177, %v992
      %v9203 = vmul.f32 %v9174, %v996
      %v9204 = vmul.f32 %v9171, %v1000
      %v9205 = vmul.f32 %v9168, %v1004
      %v9206 = vmul.f32 %v9189, %v1008
      %v9207 = vmul.f32 %v9187, %v980
      %v9208 = vmul.f32 %v9184, %v984
      %v9209 = vmul.f32 %v9181, %v988
      %v9210 = vmul.f32 %v9178, %v992
      %v9211 = vmul.f32 %v9175, %v996
      %v9212 = vmul.f32 %v9172, %v1000
      %v9213 = vmul.f32 %v9169, %v1004
      %v9214 = vmul.f32 %v9190, %v1008
      %9215 = vrot.lane.b32.xlu0 %v8727, 97
      %v9216 = vpop.permute.xlu0 %9215
      %9217 = vrot.lane.b32.xlu0 %v8672, 97
      %v9218 = vpop.permute.xlu0 %9217
      %9219 = vrot.lane.b32.xlu0 %v8688, 97
      %v9220 = vpop.permute.xlu0 %9219
      %9221 = vrot.lane.b32.xlu0 %v8728, 97
      %v9222 = vpop.permute.xlu0 %9221
      %9223 = vrot.lane.b32.xlu0 %v8674, 97
      %v9224 = vpop.permute.xlu0 %9223
      %9225 = vrot.lane.b32.xlu0 %v8690, 97
      %v9226 = vpop.permute.xlu0 %9225
      %9227 = vrot.lane.b32.xlu0 %v8729, 97
      %v9228 = vpop.permute.xlu0 %9227
      %9229 = vrot.lane.b32.xlu0 %v8676, 97
      %v9230 = vpop.permute.xlu0 %9229
      %9231 = vrot.lane.b32.xlu0 %v8692, 97
      %v9232 = vpop.permute.xlu0 %9231
      %9233 = vrot.lane.b32.xlu0 %v8730, 97
      %v9234 = vpop.permute.xlu0 %9233
      %9235 = vrot.lane.b32.xlu0 %v8678, 97
      %v9236 = vpop.permute.xlu0 %9235
      %9237 = vrot.lane.b32.xlu0 %v8694, 97
      %v9238 = vpop.permute.xlu0 %9237
      %9239 = vrot.lane.b32.xlu0 %v8731, 97
      %v9240 = vpop.permute.xlu0 %9239
      %9241 = vrot.lane.b32.xlu0 %v8680, 97
      %v9242 = vpop.permute.xlu0 %9241
      %9243 = vrot.lane.b32.xlu0 %v8696, 97
      %v9244 = vpop.permute.xlu0 %9243
      %9245 = vrot.lane.b32.xlu0 %v8732, 97
      %v9246 = vpop.permute.xlu0 %9245
      %9247 = vrot.lane.b32.xlu0 %v8682, 97
      %v9248 = vpop.permute.xlu0 %9247
      %9249 = vrot.lane.b32.xlu0 %v8698, 97
      %v9250 = vpop.permute.xlu0 %9249
      %9251 = vrot.lane.b32.xlu0 %v8733, 97
      %v9252 = vpop.permute.xlu0 %9251
      %9253 = vrot.lane.b32.xlu0 %v8684, 97
      %v9254 = vpop.permute.xlu0 %9253
      %9255 = vrot.lane.b32.xlu0 %v8700, 97
      %v9256 = vpop.permute.xlu0 %9255
      %9257 = vrot.lane.b32.xlu0 %v8734, 97
      %v9258 = vpop.permute.xlu0 %9257
      %9259 = vrot.lane.b32.xlu0 %v8686, 97
      %v9260 = vpop.permute.xlu0 %9259
      %9261 = vrot.lane.b32.xlu0 %v8702, 97
      %v9262 = vpop.permute.xlu0 %9261
      %v9263 = vsel %vm1033, %v9252, %v9258
      %v9264 = vsel %vm1033, %v9254, %v9260
      %v9265 = vsel %vm1033, %v9256, %v9262
      %v9266 = vsel %vm1033, %v9246, %v9252
      %v9267 = vsel %vm1033, %v9248, %v9254
      %v9268 = vsel %vm1033, %v9250, %v9256
      %v9269 = vsel %vm1033, %v9240, %v9246
      %v9270 = vsel %vm1033, %v9242, %v9248
      %v9271 = vsel %vm1033, %v9244, %v9250
      %v9272 = vsel %vm1033, %v9234, %v9240
      %v9273 = vsel %vm1033, %v9236, %v9242
      %v9274 = vsel %vm1033, %v9238, %v9244
      %v9275 = vsel %vm1033, %v9228, %v9234
      %v9276 = vsel %vm1033, %v9230, %v9236
      %v9277 = vsel %vm1033, %v9232, %v9238
      %v9278 = vsel %vm1033, %v9222, %v9228
      %v9279 = vsel %vm1033, %v9224, %v9230
      %v9280 = vsel %vm1033, %v9226, %v9232
      %v9281 = vsel %vm1033, %v9216, %v9222
      %v9282 = vsel %vm1033, %v9218, %v9224
      %v9283 = vsel %vm1033, %v9220, %v9226
      %v9284 = vsel %vm1033, %v9258, %v9216
      %v9285 = vsel %vm1033, %v9260, %v9218
      %v9286 = vsel %vm1033, %v9262, %v9220
      %v9287 = vmul.f32 %v9281, %v1045
      %v9288 = vmul.f32 %v9278, %v1049
      %v9289 = vmul.f32 %v9275, %v1053
      %v9290 = vmul.f32 %v9272, %v1057
      %v9291 = vmul.f32 %v9269, %v1061
      %v9292 = vmul.f32 %v9266, %v1065
      %v9293 = vmul.f32 %v9263, %v1069
      %v9294 = vmul.f32 %v9284, %v1073
      %v9295 = vmul.f32 %v9282, %v1045
      %v9296 = vmul.f32 %v9279, %v1049
      %v9297 = vmul.f32 %v9276, %v1053
      %v9298 = vmul.f32 %v9273, %v1057
      %v9299 = vmul.f32 %v9270, %v1061
      %v9300 = vmul.f32 %v9267, %v1065
      %v9301 = vmul.f32 %v9264, %v1069
      %v9302 = vmul.f32 %v9285, %v1073
      %v9303 = vmul.f32 %v9283, %v1045
      %v9304 = vmul.f32 %v9280, %v1049
      %v9305 = vmul.f32 %v9277, %v1053
      %v9306 = vmul.f32 %v9274, %v1057
      %v9307 = vmul.f32 %v9271, %v1061
      %v9308 = vmul.f32 %v9268, %v1065
      %v9309 = vmul.f32 %v9265, %v1069
      %v9310 = vmul.f32 %v9286, %v1073
      %9311 = vrot.lane.b32.xlu0 %v8727, 96
      %v9312 = vpop.permute.xlu0 %9311
      %9313 = vrot.lane.b32.xlu0 %v8672, 96
      %v9314 = vpop.permute.xlu0 %9313
      %9315 = vrot.lane.b32.xlu0 %v8688, 96
      %v9316 = vpop.permute.xlu0 %9315
      %9317 = vrot.lane.b32.xlu0 %v8728, 96
      %v9318 = vpop.permute.xlu0 %9317
      %9319 = vrot.lane.b32.xlu0 %v8674, 96
      %v9320 = vpop.permute.xlu0 %9319
      %9321 = vrot.lane.b32.xlu0 %v8690, 96
      %v9322 = vpop.permute.xlu0 %9321
      %9323 = vrot.lane.b32.xlu0 %v8729, 96
      %v9324 = vpop.permute.xlu0 %9323
      %9325 = vrot.lane.b32.xlu0 %v8676, 96
      %v9326 = vpop.permute.xlu0 %9325
      %9327 = vrot.lane.b32.xlu0 %v8692, 96
      %v9328 = vpop.permute.xlu0 %9327
      %9329 = vrot.lane.b32.xlu0 %v8730, 96
      %v9330 = vpop.permute.xlu0 %9329
      %9331 = vrot.lane.b32.xlu0 %v8678, 96
      %v9332 = vpop.permute.xlu0 %9331
      %9333 = vrot.lane.b32.xlu0 %v8694, 96
      %v9334 = vpop.permute.xlu0 %9333
      %9335 = vrot.lane.b32.xlu0 %v8731, 96
      %v9336 = vpop.permute.xlu0 %9335
      %9337 = vrot.lane.b32.xlu0 %v8680, 96
      %v9338 = vpop.permute.xlu0 %9337
      %9339 = vrot.lane.b32.xlu0 %v8696, 96
      %v9340 = vpop.permute.xlu0 %9339
      %9341 = vrot.lane.b32.xlu0 %v8732, 96
      %v9342 = vpop.permute.xlu0 %9341
      %9343 = vrot.lane.b32.xlu0 %v8682, 96
      %v9344 = vpop.permute.xlu0 %9343
      %9345 = vrot.lane.b32.xlu0 %v8698, 96
      %v9346 = vpop.permute.xlu0 %9345
      %9347 = vrot.lane.b32.xlu0 %v8733, 96
      %v9348 = vpop.permute.xlu0 %9347
      %9349 = vrot.lane.b32.xlu0 %v8684, 96
      %v9350 = vpop.permute.xlu0 %9349
      %9351 = vrot.lane.b32.xlu0 %v8700, 96
      %v9352 = vpop.permute.xlu0 %9351
      %9353 = vrot.lane.b32.xlu0 %v8734, 96
      %v9354 = vpop.permute.xlu0 %9353
      %9355 = vrot.lane.b32.xlu0 %v8686, 96
      %v9356 = vpop.permute.xlu0 %9355
      %9357 = vrot.lane.b32.xlu0 %v8702, 96
      %v9358 = vpop.permute.xlu0 %9357
      %v9359 = vsel %vm1098, %v9348, %v9354
      %v9360 = vsel %vm1098, %v9350, %v9356
      %v9361 = vsel %vm1098, %v9352, %v9358
      %v9362 = vsel %vm1098, %v9342, %v9348
      %v9363 = vsel %vm1098, %v9344, %v9350
      %v9364 = vsel %vm1098, %v9346, %v9352
      %v9365 = vsel %vm1098, %v9336, %v9342
      %v9366 = vsel %vm1098, %v9338, %v9344
      %v9367 = vsel %vm1098, %v9340, %v9346
      %v9368 = vsel %vm1098, %v9330, %v9336
      %v9369 = vsel %vm1098, %v9332, %v9338
      %v9370 = vsel %vm1098, %v9334, %v9340
      %v9371 = vsel %vm1098, %v9324, %v9330
      %v9372 = vsel %vm1098, %v9326, %v9332
      %v9373 = vsel %vm1098, %v9328, %v9334
      %v9374 = vsel %vm1098, %v9318, %v9324
      %v9375 = vsel %vm1098, %v9320, %v9326
      %v9376 = vsel %vm1098, %v9322, %v9328
      %v9377 = vsel %vm1098, %v9312, %v9318
      %v9378 = vsel %vm1098, %v9314, %v9320
      %v9379 = vsel %vm1098, %v9316, %v9322
      %v9380 = vsel %vm1098, %v9354, %v9312
      %v9381 = vsel %vm1098, %v9356, %v9314
      %v9382 = vsel %vm1098, %v9358, %v9316
      %v9383 = vmul.f32 %v9377, %v1110
      %v9384 = vmul.f32 %v9374, %v1114
      %v9385 = vmul.f32 %v9371, %v1118
      %v9386 = vmul.f32 %v9368, %v1122
      %v9387 = vmul.f32 %v9365, %v1126
      %v9388 = vmul.f32 %v9362, %v1130
      %v9389 = vmul.f32 %v9359, %v1134
      %v9390 = vmul.f32 %v9380, %v1138
      %v9391 = vmul.f32 %v9378, %v1110
      %v9392 = vmul.f32 %v9375, %v1114
      %v9393 = vmul.f32 %v9372, %v1118
      %v9394 = vmul.f32 %v9369, %v1122
      %v9395 = vmul.f32 %v9366, %v1126
      %v9396 = vmul.f32 %v9363, %v1130
      %v9397 = vmul.f32 %v9360, %v1134
      %v9398 = vmul.f32 %v9381, %v1138
      %v9399 = vmul.f32 %v9379, %v1110
      %v9400 = vmul.f32 %v9376, %v1114
      %v9401 = vmul.f32 %v9373, %v1118
      %v9402 = vmul.f32 %v9370, %v1122
      %v9403 = vmul.f32 %v9367, %v1126
      %v9404 = vmul.f32 %v9364, %v1130
      %v9405 = vmul.f32 %v9361, %v1134
      %v9406 = vmul.f32 %v9382, %v1138
      %9407 = vrot.lane.b32.xlu0 %v8727, 95
      %v9408 = vpop.permute.xlu0 %9407
      %9409 = vrot.lane.b32.xlu0 %v8672, 95
      %v9410 = vpop.permute.xlu0 %9409
      %9411 = vrot.lane.b32.xlu0 %v8688, 95
      %v9412 = vpop.permute.xlu0 %9411
      %9413 = vrot.lane.b32.xlu0 %v8728, 95
      %v9414 = vpop.permute.xlu0 %9413
      %9415 = vrot.lane.b32.xlu0 %v8674, 95
      %v9416 = vpop.permute.xlu0 %9415
      %9417 = vrot.lane.b32.xlu0 %v8690, 95
      %v9418 = vpop.permute.xlu0 %9417
      %9419 = vrot.lane.b32.xlu0 %v8729, 95
      %v9420 = vpop.permute.xlu0 %9419
      %9421 = vrot.lane.b32.xlu0 %v8676, 95
      %v9422 = vpop.permute.xlu0 %9421
      %9423 = vrot.lane.b32.xlu0 %v8692, 95
      %v9424 = vpop.permute.xlu0 %9423
      %9425 = vrot.lane.b32.xlu0 %v8730, 95
      %v9426 = vpop.permute.xlu0 %9425
      %9427 = vrot.lane.b32.xlu0 %v8678, 95
      %v9428 = vpop.permute.xlu0 %9427
      %9429 = vrot.lane.b32.xlu0 %v8694, 95
      %v9430 = vpop.permute.xlu0 %9429
      %9431 = vrot.lane.b32.xlu0 %v8731, 95
      %v9432 = vpop.permute.xlu0 %9431
      %9433 = vrot.lane.b32.xlu0 %v8680, 95
      %v9434 = vpop.permute.xlu0 %9433
      %9435 = vrot.lane.b32.xlu0 %v8696, 95
      %v9436 = vpop.permute.xlu0 %9435
      %9437 = vrot.lane.b32.xlu0 %v8732, 95
      %v9438 = vpop.permute.xlu0 %9437
      %9439 = vrot.lane.b32.xlu0 %v8682, 95
      %v9440 = vpop.permute.xlu0 %9439
      %9441 = vrot.lane.b32.xlu0 %v8698, 95
      %v9442 = vpop.permute.xlu0 %9441
      %9443 = vrot.lane.b32.xlu0 %v8733, 95
      %v9444 = vpop.permute.xlu0 %9443
      %9445 = vrot.lane.b32.xlu0 %v8684, 95
      %v9446 = vpop.permute.xlu0 %9445
      %9447 = vrot.lane.b32.xlu0 %v8700, 95
      %v9448 = vpop.permute.xlu0 %9447
      %9449 = vrot.lane.b32.xlu0 %v8734, 95
      %v9450 = vpop.permute.xlu0 %9449
      %9451 = vrot.lane.b32.xlu0 %v8686, 95
      %v9452 = vpop.permute.xlu0 %9451
      %9453 = vrot.lane.b32.xlu0 %v8702, 95
      %v9454 = vpop.permute.xlu0 %9453
      %v9455 = vsel %vm1163, %v9444, %v9450
      %v9456 = vsel %vm1163, %v9446, %v9452
      %v9457 = vsel %vm1163, %v9448, %v9454
      %v9458 = vsel %vm1163, %v9438, %v9444
      %v9459 = vsel %vm1163, %v9440, %v9446
      %v9460 = vsel %vm1163, %v9442, %v9448
      %v9461 = vsel %vm1163, %v9432, %v9438
      %v9462 = vsel %vm1163, %v9434, %v9440
      %v9463 = vsel %vm1163, %v9436, %v9442
      %v9464 = vsel %vm1163, %v9426, %v9432
      %v9465 = vsel %vm1163, %v9428, %v9434
      %v9466 = vsel %vm1163, %v9430, %v9436
      %v9467 = vsel %vm1163, %v9420, %v9426
      %v9468 = vsel %vm1163, %v9422, %v9428
      %v9469 = vsel %vm1163, %v9424, %v9430
      %v9470 = vsel %vm1163, %v9414, %v9420
      %v9471 = vsel %vm1163, %v9416, %v9422
      %v9472 = vsel %vm1163, %v9418, %v9424
      %v9473 = vsel %vm1163, %v9408, %v9414
      %v9474 = vsel %vm1163, %v9410, %v9416
      %v9475 = vsel %vm1163, %v9412, %v9418
      %v9476 = vsel %vm1163, %v9450, %v9408
      %v9477 = vsel %vm1163, %v9452, %v9410
      %v9478 = vsel %vm1163, %v9454, %v9412
      %v9479 = vmul.f32 %v9473, %v1175
      %v9480 = vmul.f32 %v9470, %v1179
      %v9481 = vmul.f32 %v9467, %v1183
      %v9482 = vmul.f32 %v9464, %v1187
      %v9483 = vmul.f32 %v9461, %v1191
      %v9484 = vmul.f32 %v9458, %v1195
      %v9485 = vmul.f32 %v9455, %v1199
      %v9486 = vmul.f32 %v9476, %v1203
      %v9487 = vmul.f32 %v9474, %v1175
      %v9488 = vmul.f32 %v9471, %v1179
      %v9489 = vmul.f32 %v9468, %v1183
      %v9490 = vmul.f32 %v9465, %v1187
      %v9491 = vmul.f32 %v9462, %v1191
      %v9492 = vmul.f32 %v9459, %v1195
      %v9493 = vmul.f32 %v9456, %v1199
      %v9494 = vmul.f32 %v9477, %v1203
      %v9495 = vmul.f32 %v9475, %v1175
      %v9496 = vmul.f32 %v9472, %v1179
      %v9497 = vmul.f32 %v9469, %v1183
      %v9498 = vmul.f32 %v9466, %v1187
      %v9499 = vmul.f32 %v9463, %v1191
      %v9500 = vmul.f32 %v9460, %v1195
      %v9501 = vmul.f32 %v9457, %v1199
      %v9502 = vmul.f32 %v9478, %v1203
      %v9503 = vpack.c.bf16 %v8815, %v8807
      %v9504 = vpack.c.bf16 %v8816, %v8808
      %v9505 = vpack.c.bf16 %v8817, %v8809
      %v9506 = vpack.c.bf16 %v8818, %v8810
      %v9507 = vpack.c.bf16 %v8819, %v8811
      %v9508 = vpack.c.bf16 %v8820, %v8812
      %v9509 = vpack.c.bf16 %v8821, %v8813
      %v9510 = vpack.c.bf16 %v8822, %v8814
      %v9511 = vpack.c.bf16 %v8903, %v8823
      %v9512 = vpack.c.bf16 %v8904, %v8824
      %v9513 = vpack.c.bf16 %v8905, %v8825
      %v9514 = vpack.c.bf16 %v8906, %v8826
      %v9515 = vpack.c.bf16 %v8907, %v8827
      %v9516 = vpack.c.bf16 %v8908, %v8828
      %v9517 = vpack.c.bf16 %v8909, %v8829
      %v9518 = vpack.c.bf16 %v8910, %v8830
      %v9519 = vpack.c.bf16 %v8919, %v8911
      %v9520 = vpack.c.bf16 %v8920, %v8912
      %v9521 = vpack.c.bf16 %v8921, %v8913
      %v9522 = vpack.c.bf16 %v8922, %v8914
      %v9523 = vpack.c.bf16 %v8923, %v8915
      %v9524 = vpack.c.bf16 %v8924, %v8916
      %v9525 = vpack.c.bf16 %v8925, %v8917
      %v9526 = vpack.c.bf16 %v8926, %v8918
      %v9527 = vpack.c.bf16 %v9007, %v8999
      %v9528 = vpack.c.bf16 %v9008, %v9000
      %v9529 = vpack.c.bf16 %v9009, %v9001
      %v9530 = vpack.c.bf16 %v9010, %v9002
      %v9531 = vpack.c.bf16 %v9011, %v9003
      %v9532 = vpack.c.bf16 %v9012, %v9004
      %v9533 = vpack.c.bf16 %v9013, %v9005
      %v9534 = vpack.c.bf16 %v9014, %v9006
      %v9535 = vpack.c.bf16 %v9095, %v9015
      %v9536 = vpack.c.bf16 %v9096, %v9016
      %v9537 = vpack.c.bf16 %v9097, %v9017
      %v9538 = vpack.c.bf16 %v9098, %v9018
      %v9539 = vpack.c.bf16 %v9099, %v9019
      %v9540 = vpack.c.bf16 %v9100, %v9020
      %v9541 = vpack.c.bf16 %v9101, %v9021
      %v9542 = vpack.c.bf16 %v9102, %v9022
      %v9543 = vpack.c.bf16 %v9111, %v9103
      %v9544 = vpack.c.bf16 %v9112, %v9104
      %v9545 = vpack.c.bf16 %v9113, %v9105
      %v9546 = vpack.c.bf16 %v9114, %v9106
      %v9547 = vpack.c.bf16 %v9115, %v9107
      %v9548 = vpack.c.bf16 %v9116, %v9108
      %v9549 = vpack.c.bf16 %v9117, %v9109
      %v9550 = vpack.c.bf16 %v9118, %v9110
      %v9551 = vpack.c.bf16 %v8672, %v8727
      %v9552 = vpack.c.bf16 %v8674, %v8728
      %v9553 = vpack.c.bf16 %v8676, %v8729
      %v9554 = vpack.c.bf16 %v8678, %v8730
      %v9555 = vpack.c.bf16 %v8680, %v8731
      %v9556 = vpack.c.bf16 %v8682, %v8732
      %v9557 = vpack.c.bf16 %v8684, %v8733
      %v9558 = vpack.c.bf16 %v8686, %v8734
      %v9559 = vpack.c.bf16 %v9191, %v8688
      %v9560 = vpack.c.bf16 %v9192, %v8690
      %v9561 = vpack.c.bf16 %v9193, %v8692
      %v9562 = vpack.c.bf16 %v9194, %v8694
      %v9563 = vpack.c.bf16 %v9195, %v8696
      %v9564 = vpack.c.bf16 %v9196, %v8698
      %v9565 = vpack.c.bf16 %v9197, %v8700
      %v9566 = vpack.c.bf16 %v9198, %v8702
      %v9567 = vpack.c.bf16 %v9207, %v9199
      %v9568 = vpack.c.bf16 %v9208, %v9200
      %v9569 = vpack.c.bf16 %v9209, %v9201
      %v9570 = vpack.c.bf16 %v9210, %v9202
      %v9571 = vpack.c.bf16 %v9211, %v9203
      %v9572 = vpack.c.bf16 %v9212, %v9204
      %v9573 = vpack.c.bf16 %v9213, %v9205
      %v9574 = vpack.c.bf16 %v9214, %v9206
      %v9575 = vpack.c.bf16 %v9295, %v9287
      %v9576 = vpack.c.bf16 %v9296, %v9288
      %v9577 = vpack.c.bf16 %v9297, %v9289
      %v9578 = vpack.c.bf16 %v9298, %v9290
      %v9579 = vpack.c.bf16 %v9299, %v9291
      %v9580 = vpack.c.bf16 %v9300, %v9292
      %v9581 = vpack.c.bf16 %v9301, %v9293
      %v9582 = vpack.c.bf16 %v9302, %v9294
      %v9583 = vpack.c.bf16 %v9383, %v9303
      %v9584 = vpack.c.bf16 %v9384, %v9304
      %v9585 = vpack.c.bf16 %v9385, %v9305
      %v9586 = vpack.c.bf16 %v9386, %v9306
      %v9587 = vpack.c.bf16 %v9387, %v9307
      %v9588 = vpack.c.bf16 %v9388, %v9308
      %v9589 = vpack.c.bf16 %v9389, %v9309
      %v9590 = vpack.c.bf16 %v9390, %v9310
      %v9591 = vpack.c.bf16 %v9399, %v9391
      %v9592 = vpack.c.bf16 %v9400, %v9392
      %v9593 = vpack.c.bf16 %v9401, %v9393
      %v9594 = vpack.c.bf16 %v9402, %v9394
      %v9595 = vpack.c.bf16 %v9403, %v9395
      %v9596 = vpack.c.bf16 %v9404, %v9396
      %v9597 = vpack.c.bf16 %v9405, %v9397
      %v9598 = vpack.c.bf16 %v9406, %v9398
      %v9599 = vpack.c.bf16 %v9487, %v9479
      %v9600 = vpack.c.bf16 %v9488, %v9480
      %v9601 = vpack.c.bf16 %v9489, %v9481
      %v9602 = vpack.c.bf16 %v9490, %v9482
      %v9603 = vpack.c.bf16 %v9491, %v9483
      %v9604 = vpack.c.bf16 %v9492, %v9484
      %v9605 = vpack.c.bf16 %v9493, %v9485
      %v9606 = vpack.c.bf16 %v9494, %v9486
      %v9607 = vpack.c.bf16 %v9495, %v9495
      %v9608 = vpack.c.bf16 %v9496, %v9496
      %v9609 = vpack.c.bf16 %v9497, %v9497
      %v9610 = vpack.c.bf16 %v9498, %v9498
      %v9611 = vpack.c.bf16 %v9499, %v9499
      %v9612 = vpack.c.bf16 %v9500, %v9500
      %v9613 = vpack.c.bf16 %v9501, %v9501
      %v9614 = vpack.c.bf16 %v9502, %v9502
      %v9615 = vld [vmem:[%s19] sm:$0xf]
      %v9616 = vld [vmem:[%s20] sm:$0x7]
      %9618 = vset.pattern.permute.xlu0 0
      %9619 = vperm.xlu0 %9618, %v9616
      %v9620 = vpop.permute.xlu0 %9619
      %v9624 = vunpack.c.l.s4 1983009808
      %v9625 = vunpack.c.0.s8 %v9624
      %v9626 = vlaneseq
      %v9627 = vshrl.u32 %v9626, 7
      %v9628 = vsub.s32 %v9625, %v9627
      %v9629 = vrot.slane %v9615, %v9628
      %v9630 = vcombine.high %v9629, %v9629
      %v9633 = vsel %vm5527, %v9630, 0
      %v9636 = vsel %vm1308, %v9607, 0
      %v9639 = vsel %vm1308, %v9608, 0
      %v9642 = vsel %vm1308, %v9609, 0
      %v9645 = vsel %vm1308, %v9610, 0
      %v9648 = vsel %vm1308, %v9611, 0
      %v9651 = vsel %vm1308, %v9612, 0
      %v9654 = vsel %vm1308, %v9613, 0
      %v9657 = vsel %vm1308, %v9614, 0
      %9659 = vmatprep.subr.bf16.mxu0 %v9560
      %9660 = vmatpush1.bf16.msra.mxu0 %v9559
      %9661 = vmatprep.subr.bf16.mxu0 %v9552
      %9662 = vmatpush1.bf16.msra.mxu0 %v9551
      %9663 = vmatprep.subr.bf16.mxu0 %v9544
      %9664 = vmatpush1.bf16.msra.mxu0 %v9543
      %9665 = vmatprep.subr.bf16.mxu0 %v9536
      %9666 = vmatpush1.bf16.msra.mxu0 %v9535
      %9667 = vmatprep.subr.bf16.mxu0 %v9528
      %9668 = vmatpush1.bf16.msra.mxu0 %v9527
      %9669 = vmatprep.subr.bf16.mxu0 %v9520
      %9670 = vmatpush1.bf16.msra.mxu0 %v9519
      %9671 = vmatprep.subr.bf16.mxu0 %v9512
      %9672 = vmatpush1.bf16.msra.mxu0 %v9511
      %9673 = vmatprep.subr.bf16.mxu0 %v9504
      %9674 = vmatpush1.bf16.msra.mxu0 %v9503
      %9675 = vmatprep.subr.bf16.mxu0 0
      %9676 = vmatpush2.bf16.msra.mxu0 0
      %9677 = vmatprep.subr.bf16.mxu0 0
      %9678 = vmatpush2.bf16.msra.mxu0 0
      %9679 = vmatprep.subr.bf16.mxu0 %v9639
      %9680 = vmatpush2.bf16.msra.mxu0 %v9636
      %9681 = vmatprep.subr.bf16.mxu0 %v9600
      %9682 = vmatpush2.bf16.msra.mxu0 %v9599
      %9683 = vmatprep.subr.bf16.mxu0 %v9592
      %9684 = vmatpush2.bf16.msra.mxu0 %v9591
      %9685 = vmatprep.subr.bf16.mxu0 %v9584
      %9686 = vmatpush2.bf16.msra.mxu0 %v9583
      %9687 = vmatprep.subr.bf16.mxu0 %v9576
      %9688 = vmatpush2.bf16.msra.mxu0 %v9575
      %9689 = vmatprep.subr.bf16.mxu0 %v9568
      %9690 = vmatpush2.bf16.msra.mxu0 %v9567
      %9691 = vmatprep.mubr.bf16.mxu0 %v9633
      %9692 = vmatmul.mubr.bf16.gmra.mxu0 %v9629
      %v9693 = vpop.f32.mrf.mxu0
      %v9694 = vadd.f32 %v9620, %v9693
      %v9695 = vpop.f32.mrf.mxu0
      %v9696 = vadd.f32 %v9620, %v9695
      %v9697 = vpop.f32.mrf.mxu0
      %v9698 = vpop.f32.mrf.mxu0
      %9699 = vdwg.mxu0
      %9700 = vmatprep.subr.bf16.mxu0 %v9562
      %9701 = vmatpush1.bf16.msra.mxu0 %v9561
      %9702 = vmatprep.subr.bf16.mxu0 %v9554
      %9703 = vmatpush1.bf16.msra.mxu0 %v9553
      %9704 = vmatprep.subr.bf16.mxu0 %v9546
      %9705 = vmatpush1.bf16.msra.mxu0 %v9545
      %9706 = vmatprep.subr.bf16.mxu0 %v9538
      %9707 = vmatpush1.bf16.msra.mxu0 %v9537
      %9708 = vmatprep.subr.bf16.mxu0 %v9530
      %9709 = vmatpush1.bf16.msra.mxu0 %v9529
      %9710 = vmatprep.subr.bf16.mxu0 %v9522
      %9711 = vmatpush1.bf16.msra.mxu0 %v9521
      %9712 = vmatprep.subr.bf16.mxu0 %v9514
      %9713 = vmatpush1.bf16.msra.mxu0 %v9513
      %9714 = vmatprep.subr.bf16.mxu0 %v9506
      %9715 = vmatpush1.bf16.msra.mxu0 %v9505
      %9716 = vmatprep.subr.bf16.mxu0 0
      %9717 = vmatpush2.bf16.msra.mxu0 0
      %9718 = vmatprep.subr.bf16.mxu0 0
      %9719 = vmatpush2.bf16.msra.mxu0 0
      %9720 = vmatprep.subr.bf16.mxu0 %v9645
      %9721 = vmatpush2.bf16.msra.mxu0 %v9642
      %9722 = vmatprep.subr.bf16.mxu0 %v9602
      %9723 = vmatpush2.bf16.msra.mxu0 %v9601
      %9724 = vmatprep.subr.bf16.mxu0 %v9594
      %9725 = vmatpush2.bf16.msra.mxu0 %v9593
      %9726 = vmatprep.subr.bf16.mxu0 %v9586
      %9727 = vmatpush2.bf16.msra.mxu0 %v9585
      %9728 = vmatprep.subr.bf16.mxu0 %v9578
      %9729 = vmatpush2.bf16.msra.mxu0 %v9577
      %9730 = vmatprep.subr.bf16.mxu0 %v9570
      %9731 = vmatpush2.bf16.msra.mxu0 %v9569
      %9732 = vmatprep.mubr.bf16.mxu0 %v9633
      %9733 = vmatmul.mubr.bf16.gmra.mxu0 %v9629
      %v9734 = vpop.f32.mrf.mxu0
      %v9735 = vadd.f32 %v9620, %v9734
      %v9736 = vpop.f32.mrf.mxu0
      %v9737 = vadd.f32 %v9620, %v9736
      %v9738 = vpop.f32.mrf.mxu0
      %v9739 = vpop.f32.mrf.mxu0
      %9740 = vdwg.mxu0
      %9741 = vmatprep.subr.bf16.mxu0 %v9564
      %9742 = vmatpush1.bf16.msra.mxu0 %v9563
      %9743 = vmatprep.subr.bf16.mxu0 %v9556
      %9744 = vmatpush1.bf16.msra.mxu0 %v9555
      %9745 = vmatprep.subr.bf16.mxu0 %v9548
      %9746 = vmatpush1.bf16.msra.mxu0 %v9547
      %9747 = vmatprep.subr.bf16.mxu0 %v9540
      %9748 = vmatpush1.bf16.msra.mxu0 %v9539
      %9749 = vmatprep.subr.bf16.mxu0 %v9532
      %9750 = vmatpush1.bf16.msra.mxu0 %v9531
      %9751 = vmatprep.subr.bf16.mxu0 %v9524
      %9752 = vmatpush1.bf16.msra.mxu0 %v9523
      %9753 = vmatprep.subr.bf16.mxu0 %v9516
      %9754 = vmatpush1.bf16.msra.mxu0 %v9515
      %9755 = vmatprep.subr.bf16.mxu0 %v9508
      %9756 = vmatpush1.bf16.msra.mxu0 %v9507
      %9757 = vmatprep.subr.bf16.mxu0 0
      %9758 = vmatpush2.bf16.msra.mxu0 0
      %9759 = vmatprep.subr.bf16.mxu0 0
      %9760 = vmatpush2.bf16.msra.mxu0 0
      %9761 = vmatprep.subr.bf16.mxu0 %v9651
      %9762 = vmatpush2.bf16.msra.mxu0 %v9648
      %9763 = vmatprep.subr.bf16.mxu0 %v9604
      %9764 = vmatpush2.bf16.msra.mxu0 %v9603
      %9765 = vmatprep.subr.bf16.mxu0 %v9596
      %9766 = vmatpush2.bf16.msra.mxu0 %v9595
      %9767 = vmatprep.subr.bf16.mxu0 %v9588
      %9768 = vmatpush2.bf16.msra.mxu0 %v9587
      %9769 = vmatprep.subr.bf16.mxu0 %v9580
      %9770 = vmatpush2.bf16.msra.mxu0 %v9579
      %9771 = vmatprep.subr.bf16.mxu0 %v9572
      %9772 = vmatpush2.bf16.msra.mxu0 %v9571
      %9773 = vmatprep.mubr.bf16.mxu0 %v9633
      %9774 = vmatmul.mubr.bf16.gmra.mxu0 %v9629
      %v9775 = vpop.f32.mrf.mxu0
      %v9776 = vadd.f32 %v9620, %v9775
      %v9777 = vpop.f32.mrf.mxu0
      %v9778 = vadd.f32 %v9620, %v9777
      %v9779 = vpop.f32.mrf.mxu0
      %v9780 = vpop.f32.mrf.mxu0
      %9781 = vdwg.mxu0
      %9782 = vmatprep.subr.bf16.mxu0 %v9566
      %9783 = vmatpush1.bf16.msra.mxu0 %v9565
      %9784 = vmatprep.subr.bf16.mxu0 %v9558
      %9785 = vmatpush1.bf16.msra.mxu0 %v9557
      %9786 = vmatprep.subr.bf16.mxu0 %v9550
      %9787 = vmatpush1.bf16.msra.mxu0 %v9549
      %9788 = vmatprep.subr.bf16.mxu0 %v9542
      %9789 = vmatpush1.bf16.msra.mxu0 %v9541
      %9790 = vmatprep.subr.bf16.mxu0 %v9534
      %9791 = vmatpush1.bf16.msra.mxu0 %v9533
      %9792 = vmatprep.subr.bf16.mxu0 %v9526
      %9793 = vmatpush1.bf16.msra.mxu0 %v9525
      %9794 = vmatprep.subr.bf16.mxu0 %v9518
      %9795 = vmatpush1.bf16.msra.mxu0 %v9517
      %9796 = vmatprep.subr.bf16.mxu0 %v9510
      %9797 = vmatpush1.bf16.msra.mxu0 %v9509
      %9798 = vmatprep.subr.bf16.mxu0 0
      %9799 = vmatpush2.bf16.msra.mxu0 0
      %9800 = vmatprep.subr.bf16.mxu0 0
      %9801 = vmatpush2.bf16.msra.mxu0 0
      %9802 = vmatprep.subr.bf16.mxu0 %v9657
      %9803 = vmatpush2.bf16.msra.mxu0 %v9654
      %9804 = vmatprep.subr.bf16.mxu0 %v9606
      %9805 = vmatpush2.bf16.msra.mxu0 %v9605
      %9806 = vmatprep.subr.bf16.mxu0 %v9598
      %9807 = vmatpush2.bf16.msra.mxu0 %v9597
      %9808 = vmatprep.subr.bf16.mxu0 %v9590
      %9809 = vmatpush2.bf16.msra.mxu0 %v9589
      %9810 = vmatprep.subr.bf16.mxu0 %v9582
      %9811 = vmatpush2.bf16.msra.mxu0 %v9581
      %9812 = vmatprep.subr.bf16.mxu0 %v9574
      %9813 = vmatpush2.bf16.msra.mxu0 %v9573
      %9814 = vmatprep.mubr.bf16.mxu0 %v9633
      %9815 = vmatmul.mubr.bf16.gmra.mxu0 %v9629
      %v9816 = vpop.f32.mrf.mxu0
      %v9817 = vadd.f32 %v9620, %v9816
      %v9818 = vpop.f32.mrf.mxu0
      %v9819 = vadd.f32 %v9620, %v9818
      %v9820 = vpop.f32.mrf.mxu0
      %v9821 = vpop.f32.mrf.mxu0
      %9822 = vdwg.mxu0
      %v9823 = vtanh.pop %v9694
      %v9824 = vtanh.pop %v9696
      %v9825 = vtanh.pop %v9735
      %v9826 = vtanh.pop %v9737
      %v9827 = vtanh.pop %v9776
      %v9828 = vtanh.pop %v9778
      %v9829 = vtanh.pop %v9817
      %v9830 = vtanh.pop %v9819
      %v9839 = vcombine.low %v9823, %v9824
      %v9840 = vcombine.low %v9825, %v9826
      %v9841 = vcombine.low %v9827, %v9828
      %v9842 = vcombine.low %v9829, %v9830
      %9847 = vst [vmem:[%s656] sm:$0x77] %v9839
      %9848 = vst [vmem:[%s656 + $0x8] sm:$0x77] %v9840
      %9849 = vst [vmem:[%s656 + $0x10] sm:$0x77] %v9841
      %9850 = vst [vmem:[%s656 + $0x18] sm:$0x77] %v9842
      %p9851 = scmp.lt.s32.totalorder %s32, 1
      %s9852 = scalar_select %p9851, %s32, 1
      %s9853 = smul.addr %s9852, 8
      %s9854 = smul.addr %s9853, 4
      %s9855 = scalar_lea.vmem %s21, %s9854
      // Predicated region
      $region105: #{haze_refiner_forward.1} parent=103 // pred_check
        %p9856 = pneg %p496
      $region106: #{haze_refiner_forward.1} parent=103 // pred_check_branch
        %9858 = sbr.rel (%p9856) target = $region108
      $region107: #{haze_refiner_forward.1} parent=103 // pred_region
        _
      $region108: #{haze_refiner_forward.1} parent=103 // pred_fallthru
        _
    $region104: #{haze_refiner_forward.1} parent=5 // pred_fallthru
      _
    %p9859 = scmp.le.s32.totalorder 2, %s27
    // Predicated region
    $region109: #{haze_refiner_forward.1} parent=5 // pred_check
      %p9860 = pneg %p9859
    $region110: #{haze_refiner_forward.1} parent=5 // pred_check_branch
      %9862 = sbr.rel (%p9860) target = $region112
    $region111: #{haze_refiner_forward.1} parent=5 // pred_region
      %s9863 = ssub.s32 %s27, 2
      // Predicated region
      $region113: #{haze_refiner_forward.1} parent=111 // pred_check
        %p9864 = pneg %p502
      $region114: #{haze_refiner_forward.1} parent=111 // pred_check_branch
        %9866 = sbr.rel (%p9864) target = $region116
      $region115: #{haze_refiner_forward.1} parent=111 // pred_region
        %p9867 = scmp.lt.s32.totalorder %s33, 1
        %s9868 = scalar_select %p9867, %s33, 1
        %s9869 = smul.addr %s9868, 8
        %s9870 = smul.addr %s9869, 4
        %s9871 = scalar_lea.vmem %s21, %s9870
      $region116: #{haze_refiner_forward.1} parent=111 // pred_fallthru
        _
    $region112: #{haze_refiner_forward.1} parent=5 // pred_fallthru
      _
  $region6: #{haze_refiner_forward.1} parent=0 // loop_footer
    %s31 = sadd.s32 1, %s27
  $region7: #{haze_refiner_forward.1} parent=0 // loop_footer_branch
    %26 = sbr.rel target = $region3
  $region8: #{haze_refiner_forward.1} parent=0 // loop_exit
    _

</llo_original>
